<compile_context>
chip_gen: v5e
topology: v5e:2x2
jax: 0.10.0
libtpu: 0.0.40
codegen_flags: <defaults>
</compile_context>

<pallas_src>
import numpy as np
import jax
import jax.numpy as jnp
from jax.experimental import pallas as pl
from jax.experimental.pallas import tpu as pltpu


_MAX_BATCH_TILE = 128   # VMEM-budget cap (sized for v7x's 64 MiB VMEM)


def _pick_batch_tile(n):
    """Large tiles to amortize per-step overhead / fill MXU rows, but keep
    >= 2 grid steps whenever possible so v7x megacore uses both cores."""
    tb = max(8, -(-n // 2))          # ceil(n / 2), at least 8
    tb = -(-tb // 8) * 8             # round up to a multiple of 8
    return min(_MAX_BATCH_TILE, tb)


# ------------------------------ Pallas kernel -------------------------------

def _net_fused_kernel(x_ref, w1t_ref, b1t_ref, w2b_ref, b2t_ref,
                      fc1w_ref, fc1b_ref, fc2w_ref, fc2b_ref, out_ref):
    tb = x_ref.shape[0]
    x = x_ref[...]                                      # (TB, 28, 28) f32

    # ---- conv1 (1->10, k=5, VALID): 5 lane-dense banded MXU matmuls.
    # w1t[ki, j_in, 10*j_out + co] = conv1_w[co, 0, ki, j_in - j_out]
    w1t = w1t_ref[...]                                  # (5, 28, 240) bf16
    acc1 = None
    for ki in range(5):
        rows = x[:, ki:ki + 24, :].reshape(tb * 24, 28).astype(jnp.bfloat16)
        d = jnp.dot(rows, w1t[ki], preferred_element_type=jnp.float32)
        acc1 = d if acc1 is None else acc1 + d
    acc1 = acc1 + b1t_ref[...]                          # (TB*24, 240) f32

    # ---- pool1 (2x2 max) + ReLU, kept in the lane-dense 240-wide layout:
    # H-pool = max of sublane row pairs; W-pool = max with a 10-lane-shifted
    # slice (valid pooled values land at lanes 20*j' + c; other lanes are
    # garbage and are zeroed by the conv2 band weights below).
    a1 = acc1.reshape(tb, 12, 2, 240)
    h_h = jnp.maximum(a1[:, :, 0, :], a1[:, :, 1, :])   # (TB, 12, 240)
    h1 = jnp.maximum(jnp.maximum(h_h[:, :, :230], h_h[:, :, 10:240]), 0.0)
    h1 = h1.astype(jnp.bfloat16)                        # (TB, 12, 230)

    # ---- conv2 (10->20, k=5): 5 banded MXU matmuls, K=230, N=160.
    # w2b[ki, 20*j_p + ci, 20*j_out + co] = conv2_w[co, ci, ki, j_p - j_out]
    w2b = w2b_ref[...]                                  # (5, 230, 160) bf16
    acc2 = None
    for ki in range(5):
        win = h1[:, ki:ki + 8, :].reshape(tb * 8, 230)
        d = jnp.dot(win, w2b[ki], preferred_element_type=jnp.float32)
        acc2 = d if acc2 is None else acc2 + d
    acc2 = acc2 + b2t_ref[...]                          # (TB*8, 160) f32
    # nn.Dropout2d: identity in eval mode.  TODO(synk): training-mode dropout.

    # ---- pool2 (2x2 max) + ReLU, again in the lane-dense 160-wide layout.
    a2 = acc2.reshape(tb, 4, 2, 160)
    h2h = jnp.maximum(a2[:, :, 0, :], a2[:, :, 1, :])   # (TB, 4, 160)
    h2 = jnp.maximum(jnp.maximum(h2h[:, :, :140], h2h[:, :, 20:160]), 0.0)

    # ---- fc1 + ReLU: garbage lanes are zero rows of the host-prepared
    # (560, 50) weight matrix, so the activations flatten directly.
    feat = h2.reshape(tb, 560).astype(jnp.bfloat16)
    z = jnp.dot(feat, fc1w_ref[...], preferred_element_type=jnp.float32)
    z = jnp.maximum(z + fc1b_ref[...], 0.0)             # (TB, 50) f32
    # F.dropout: identity in eval mode.

    # ---- fc2 + log_softmax (tiny; kept in f32).
    logits = jnp.dot(z, fc2w_ref[...], preferred_element_type=jnp.float32)
    logits = logits + fc2b_ref[...]                     # (TB, 10)
    m = jnp.max(logits, axis=-1, keepdims=True)
    s = logits - m
    out_ref[...] = s - jnp.log(jnp.sum(jnp.exp(s), axis=-1, keepdims=True))


# --------------------------- host-side weight prep ---------------------------

def _make_band(n_in_pos, n_out_pos):
    """E[d, j_in, j_out] = 1 iff j_in == j_out + d (0/1 selector)."""
    e = np.zeros((5, n_in_pos, n_out_pos), np.float32)
    for d in range(5):
        for j in range(n_out_pos):
            e[d, j + d, j] = 1.0
    return e


_E1 = _make_band(28, 24)   # conv1: 28 input columns -> 24 output columns
_E2 = _make_band(12, 8)    # conv2: 12 pooled columns -> 8 output columns


def _prep_weights(params):
    hp = jax.lax.Precision.HIGHEST
    bf16 = jnp.bfloat16

    # conv1 banded weights (one (28, 240) matrix per kernel row).
    w1r = params["conv1_w"][:, 0].transpose(1, 2, 0)             # (ki, kj, co)
    w1t = jnp.einsum("dmj,kdc->kmjc", _E1, w1r,
                     precision=hp).reshape(5, 28, 240).astype(bf16)
    b1t = jnp.tile(params["conv1_b"], 24).reshape(1, 240)

    # conv2 banded weights over the sparse 230-lane pooled layout; rows
    # 20*j_p + 10 .. 20*j_p + 19 stay zero so garbage lanes contribute 0.
    w2r = params["conv2_w"].transpose(2, 3, 1, 0)                # (ki,kj,ci,co)
    w2d = jnp.einsum("dpj,kdcf->kpcjf", _E2, w2r, precision=hp)  # (5,12,10,8,20)
    w2d = jnp.pad(w2d, ((0, 0), (0, 0), (0, 10), (0, 0), (0, 0)))
    w2b = w2d.reshape(5, 240, 160)[:, :230, :].astype(bf16)      # (5, 230, 160)
    b2t = jnp.tile(params["conv2_b"], 8).reshape(1, 160)

    # fc1 -> (560, 50): row index i'*140 + 40*j' + co (kernel's sparse NHWC
    # flatten); zero rows absorb garbage lanes; column semantics match
    # PyTorch's NCHW x.view(-1, 320) exactly.
    f1 = params["fc1_w"].reshape(50, 20, 4, 4).transpose(2, 3, 1, 0)  # (i',j',co,m)
    f1 = jnp.pad(f1, ((0, 0), (0, 0), (0, 20), (0, 0)))               # (4,4,40,50)
    fc1w = f1.reshape(4, 160, 50)[:, :140, :].reshape(560, 50).astype(bf16)
    fc1b = params["fc1_b"].reshape(1, 50)

    fc2w = params["fc2_w"].T                                          # (50, 10) f32
    fc2b = params["fc2_b"].reshape(1, 10)
    return w1t, b1t, w2b, b2t, fc1w, fc1b, fc2w, fc2b


# ------------------------------ forward pass ---------------------------------

@jax.jit
def net_forward(params, x):
    """x: (N, 1, 28, 28) float32 -> log-probabilities (N, 10)."""
    n = x.shape[0]
    tb = _pick_batch_tile(n)
    nb = pl.cdiv(n, tb)
    n_pad = nb * tb
    x3 = x.reshape(n, 28, 28)                      # cin == 1
    if n_pad != n:                                 # pad batch to a tile multiple
        x3 = jnp.pad(x3, ((0, n_pad - n), (0, 0), (0, 0)))
    weights = _prep_weights(params)

    def resident(shape):
        nd = len(shape)
        return pl.BlockSpec(shape, lambda i: (0,) * nd)   # same block every step

    macs = n_pad * (5 * 24 * 28 * 240 + 5 * 8 * 230 * 160 + 560 * 50 + 50 * 10)
    weight_bytes = sum(int(np.prod(w.shape)) * w.dtype.itemsize for w in weights)
    cost = pl.CostEstimate(
        flops=2 * macs,
        transcendentals=11 * n_pad,                      # exp + log of softmax
        bytes_accessed=n_pad * (28 * 28 * 4 + 10 * 4) + weight_bytes)

    out = pl.pallas_call(
        _net_fused_kernel,
        out_shape=jax.ShapeDtypeStruct((n_pad, 10), jnp.float32),
        grid=(nb,),
        in_specs=[
            pl.BlockSpec((tb, 28, 28), lambda i: (i, 0, 0)),   # input tile
            resident((5, 28, 240)),     # conv1 banded weights (bf16)
            resident((1, 240)),         # conv1 bias, tiled over columns
            resident((5, 230, 160)),    # conv2 banded weights (bf16)
            resident((1, 160)),         # conv2 bias, tiled over columns
            resident((560, 50)),        # fc1 weights, sparse layout folded (bf16)
            resident((1, 50)),          # fc1 bias
            resident((50, 10)),         # fc2 weights (f32)
            resident((1, 10)),          # fc2 bias
        ],
        out_specs=pl.BlockSpec((tb, 10), lambda i: (i, 0)),
        compiler_params=pltpu.CompilerParams(
            dimension_semantics=("parallel",),
            vmem_limit_bytes=48 * 1024 * 1024,
        ),
        cost_estimate=cost,
    )(x3, *weights)
    return out[:n]


# ------------------------- pure-JAX reference (check) ------------------------

def _ref_maxpool2x2(h):
    n, c, hh, ww = h.shape
    return h.reshape(n, c, hh // 2, 2, ww // 2, 2).max(axis=(3, 5))


def net_reference(params, x):
    """Plain-XLA forward pass mirroring the PyTorch module (for checking)."""
    hp = jax.lax.Precision.HIGHEST
    dn = ("NCHW", "OIHW", "NCHW")
    h = jax.lax.conv_general_dilated(x, params["conv1_w"], (1, 1), "VALID",
                                     dimension_numbers=dn, precision=hp)
    h = h + params["conv1_b"][None, :, None, None]
    h = jnp.maximum(_ref_maxpool2x2(h), 0.0)
    h = jax.lax.conv_general_dilated(h, params["conv2_w"], (1, 1), "VALID",
                                     dimension_numbers=dn, precision=hp)
    h = h + params["conv2_b"][None, :, None, None]
    h = jnp.maximum(_ref_maxpool2x2(h), 0.0)
    h = h.reshape(h.shape[0], 320)
    h = jnp.maximum(jnp.dot(h, params["fc1_w"].T, precision=hp)
                    + params["fc1_b"], 0.0)
    logits = jnp.dot(h, params["fc2_w"].T, precision=hp) + params["fc2_b"]
    return jax.nn.log_softmax(logits, axis=-1)


# ------------------------------- parameters ----------------------------------

def _uniform(key, shape, bound):
    return jax.random.uniform(key, shape, jnp.float32, -bound, bound)


def init_params(seed=0):
    keys = jax.random.split(jax.random.PRNGKey(seed), 8)
    p = {}
    p["conv1_w"] = _uniform(keys[0], (10, 1, 5, 5), 1.0 / 25 ** 0.5)
    p["conv1_b"] = _uniform(keys[1], (10,), 1.0 / 25 ** 0.5)
    p["conv2_w"] = _uniform(keys[2], (20, 10, 5, 5), 1.0 / 250 ** 0.5)
    p["conv2_b"] = _uniform(keys[3], (20,), 1.0 / 250 ** 0.5)
    p["fc1_w"] = _uniform(keys[4], (50, 320), 1.0 / 320 ** 0.5)
    p["fc1_b"] = _uniform(keys[5], (50,), 1.0 / 320 ** 0.5)
    p["fc2_w"] = _uniform(keys[6], (10, 50), 1.0 / 50 ** 0.5)
    p["fc2_b"] = _uniform(keys[7], (10,), 1.0 / 50 ** 0.5)
    return p


if __name__ == "__main__":
    params = init_params(seed=0)
    x = jax.random.normal(jax.random.PRNGKey(0), (16, 1, 28, 28), jnp.float32)

    y = net_forward(params, x)
    jax.block_until_ready(y)
    assert y.shape == (16, 10)
    # rows of exp(log_softmax) must sum to 1
    assert bool(jnp.all(jnp.abs(jnp.sum(jnp.exp(y), axis=1) - 1.0) < 1e-4))
    # must match the plain-XLA reference of the PyTorch module.
    # (bf16 matmul operands with f32 accumulation -> ~1e-2 worst-case drift)
    y_ref = net_reference(params, x)
    max_err = float(jnp.max(jnp.abs(y - y_ref)))
    assert max_err < 5e-2, f"mismatch vs reference: max abs err = {max_err}"
    print("KERNEL_OK")
</pallas_src>

<mosaic_0001>
module attributes {stable_mosaic.version = 11 : i64} {
  func.func @_net_fused_kernel(%arg0: i32, %arg1: memref<8x28x28xf32, #tpu.memory_space<vmem>>, %arg2: memref<5x28x240xbf16, #tpu.memory_space<vmem>>, %arg3: memref<1x240xf32, #tpu.memory_space<vmem>>, %arg4: memref<5x230x160xbf16, #tpu.memory_space<vmem>>, %arg5: memref<1x160xf32, #tpu.memory_space<vmem>>, %arg6: memref<560x50xbf16, #tpu.memory_space<vmem>>, %arg7: memref<1x50xf32, #tpu.memory_space<vmem>>, %arg8: memref<50x10xf32, #tpu.memory_space<vmem>>, %arg9: memref<1x10xf32, #tpu.memory_space<vmem>>, %arg10: memref<8x10xf32, #tpu.memory_space<vmem>>) attributes {dimension_semantics = [#tpu.dimension_semantics<parallel>], iteration_bounds = array<i64: 2>, scalar_prefetch = 0 : i64, scratch_operands = 0 : i64, tpu.core_type = #tpu.core_type<tc>, window_params = [{transform_indices = @transform_0, window_bounds = array<i64: 8, 28, 28>}, {pipeline_mode = #tpu.pipeline_mode<synchronous>, transform_indices = @transform_1, window_bounds = array<i64: 5, 28, 240>}, {pipeline_mode = #tpu.pipeline_mode<synchronous>, transform_indices = @transform_2, window_bounds = array<i64: 1, 240>}, {pipeline_mode = #tpu.pipeline_mode<synchronous>, transform_indices = @transform_3, window_bounds = array<i64: 5, 230, 160>}, {pipeline_mode = #tpu.pipeline_mode<synchronous>, transform_indices = @transform_4, window_bounds = array<i64: 1, 160>}, {pipeline_mode = #tpu.pipeline_mode<synchronous>, transform_indices = @transform_5, window_bounds = array<i64: 560, 50>}, {pipeline_mode = #tpu.pipeline_mode<synchronous>, transform_indices = @transform_6, window_bounds = array<i64: 1, 50>}, {pipeline_mode = #tpu.pipeline_mode<synchronous>, transform_indices = @transform_7, window_bounds = array<i64: 50, 10>}, {pipeline_mode = #tpu.pipeline_mode<synchronous>, transform_indices = @transform_8, window_bounds = array<i64: 1, 10>}, {transform_indices = @transform_9, window_bounds = array<i64: 8, 10>}]} {
    %c0 = arith.constant 0 : index
    %c0_0 = arith.constant 0 : index
    %c0_1 = arith.constant 0 : index
    %0 = vector.load %arg1[%c0, %c0_0, %c0_1] : memref<8x28x28xf32, #tpu.memory_space<vmem>>, vector<8x28x28xf32>
    %c0_2 = arith.constant 0 : index
    %c0_3 = arith.constant 0 : index
    %c0_4 = arith.constant 0 : index
    %1 = vector.load %arg2[%c0_2, %c0_3, %c0_4] : memref<5x28x240xbf16, #tpu.memory_space<vmem>>, vector<5x28x240xbf16>
    %2 = vector.extract_strided_slice %0 {offsets = [0, 0, 0], sizes = [8, 24, 28], strides = [1, 1, 1]} : vector<8x28x28xf32> to vector<8x24x28xf32>
    %3 = vector.shape_cast %2 : vector<8x24x28xf32> to vector<192x28xf32>
    %4 = arith.truncf %3 : vector<192x28xf32> to vector<192x28xbf16>
    %5 = vector.extract_strided_slice %1 {offsets = [0, 0, 0], sizes = [1, 28, 240], strides = [1, 1, 1]} : vector<5x28x240xbf16> to vector<1x28x240xbf16>
    %6 = vector.shape_cast %5 : vector<1x28x240xbf16> to vector<28x240xbf16>
    %cst = arith.constant dense<0.000000e+00> : vector<192x240xf32>
    %7 = tpu.matmul %4, %6, %cst {dimension_numbers = #tpu.dot_dimension_numbers<[1], [0], [0], [1], [0, 0, 1, 1], [], []>} : vector<192x28xbf16>, vector<28x240xbf16>, vector<192x240xf32> -> vector<192x240xf32>
    %8 = vector.extract_strided_slice %0 {offsets = [0, 1, 0], sizes = [8, 24, 28], strides = [1, 1, 1]} : vector<8x28x28xf32> to vector<8x24x28xf32>
    %9 = vector.shape_cast %8 : vector<8x24x28xf32> to vector<192x28xf32>
    %10 = arith.truncf %9 : vector<192x28xf32> to vector<192x28xbf16>
    %11 = vector.extract_strided_slice %1 {offsets = [1, 0, 0], sizes = [1, 28, 240], strides = [1, 1, 1]} : vector<5x28x240xbf16> to vector<1x28x240xbf16>
    %12 = vector.shape_cast %11 : vector<1x28x240xbf16> to vector<28x240xbf16>
    %cst_5 = arith.constant dense<0.000000e+00> : vector<192x240xf32>
    %13 = tpu.matmul %10, %12, %cst_5 {dimension_numbers = #tpu.dot_dimension_numbers<[1], [0], [0], [1], [0, 0, 1, 1], [], []>} : vector<192x28xbf16>, vector<28x240xbf16>, vector<192x240xf32> -> vector<192x240xf32>
    %14 = arith.addf %7, %13 : vector<192x240xf32>
    %15 = vector.extract_strided_slice %0 {offsets = [0, 2, 0], sizes = [8, 24, 28], strides = [1, 1, 1]} : vector<8x28x28xf32> to vector<8x24x28xf32>
    %16 = vector.shape_cast %15 : vector<8x24x28xf32> to vector<192x28xf32>
    %17 = arith.truncf %16 : vector<192x28xf32> to vector<192x28xbf16>
    %18 = vector.extract_strided_slice %1 {offsets = [2, 0, 0], sizes = [1, 28, 240], strides = [1, 1, 1]} : vector<5x28x240xbf16> to vector<1x28x240xbf16>
    %19 = vector.shape_cast %18 : vector<1x28x240xbf16> to vector<28x240xbf16>
    %cst_6 = arith.constant dense<0.000000e+00> : vector<192x240xf32>
    %20 = tpu.matmul %17, %19, %cst_6 {dimension_numbers = #tpu.dot_dimension_numbers<[1], [0], [0], [1], [0, 0, 1, 1], [], []>} : vector<192x28xbf16>, vector<28x240xbf16>, vector<192x240xf32> -> vector<192x240xf32>
    %21 = arith.addf %14, %20 : vector<192x240xf32>
    %22 = vector.extract_strided_slice %0 {offsets = [0, 3, 0], sizes = [8, 24, 28], strides = [1, 1, 1]} : vector<8x28x28xf32> to vector<8x24x28xf32>
    %23 = vector.shape_cast %22 : vector<8x24x28xf32> to vector<192x28xf32>
    %24 = arith.truncf %23 : vector<192x28xf32> to vector<192x28xbf16>
    %25 = vector.extract_strided_slice %1 {offsets = [3, 0, 0], sizes = [1, 28, 240], strides = [1, 1, 1]} : vector<5x28x240xbf16> to vector<1x28x240xbf16>
    %26 = vector.shape_cast %25 : vector<1x28x240xbf16> to vector<28x240xbf16>
    %cst_7 = arith.constant dense<0.000000e+00> : vector<192x240xf32>
    %27 = tpu.matmul %24, %26, %cst_7 {dimension_numbers = #tpu.dot_dimension_numbers<[1], [0], [0], [1], [0, 0, 1, 1], [], []>} : vector<192x28xbf16>, vector<28x240xbf16>, vector<192x240xf32> -> vector<192x240xf32>
    %28 = arith.addf %21, %27 : vector<192x240xf32>
    %29 = vector.extract_strided_slice %0 {offsets = [0, 4, 0], sizes = [8, 24, 28], strides = [1, 1, 1]} : vector<8x28x28xf32> to vector<8x24x28xf32>
    %30 = vector.shape_cast %29 : vector<8x24x28xf32> to vector<192x28xf32>
    %31 = arith.truncf %30 : vector<192x28xf32> to vector<192x28xbf16>
    %32 = vector.extract_strided_slice %1 {offsets = [4, 0, 0], sizes = [1, 28, 240], strides = [1, 1, 1]} : vector<5x28x240xbf16> to vector<1x28x240xbf16>
    %33 = vector.shape_cast %32 : vector<1x28x240xbf16> to vector<28x240xbf16>
    %cst_8 = arith.constant dense<0.000000e+00> : vector<192x240xf32>
    %34 = tpu.matmul %31, %33, %cst_8 {dimension_numbers = #tpu.dot_dimension_numbers<[1], [0], [0], [1], [0, 0, 1, 1], [], []>} : vector<192x28xbf16>, vector<28x240xbf16>, vector<192x240xf32> -> vector<192x240xf32>
    %35 = arith.addf %28, %34 : vector<192x240xf32>
    %c0_9 = arith.constant 0 : index
    %c0_10 = arith.constant 0 : index
    %36 = vector.load %arg3[%c0_9, %c0_10] : memref<1x240xf32, #tpu.memory_space<vmem>>, vector<1x240xf32>
    %37 = vector.broadcast %36 : vector<1x240xf32> to vector<192x240xf32>
    %38 = arith.addf %35, %37 : vector<192x240xf32>
    %39 = vector.shape_cast %38 : vector<192x240xf32> to vector<8x12x2x240xf32>
    %40 = vector.extract_strided_slice %39 {offsets = [0, 0, 0, 0], sizes = [8, 12, 1, 240], strides = [1, 1, 1, 1]} : vector<8x12x2x240xf32> to vector<8x12x1x240xf32>
    %41 = vector.shape_cast %40 : vector<8x12x1x240xf32> to vector<8x12x240xf32>
    %42 = vector.extract_strided_slice %39 {offsets = [0, 0, 1, 0], sizes = [8, 12, 1, 240], strides = [1, 1, 1, 1]} : vector<8x12x2x240xf32> to vector<8x12x1x240xf32>
    %43 = vector.shape_cast %42 : vector<8x12x1x240xf32> to vector<8x12x240xf32>
    %44 = arith.maximumf %41, %43 : vector<8x12x240xf32>
    %45 = vector.extract_strided_slice %44 {offsets = [0, 0, 0], sizes = [8, 12, 230], strides = [1, 1, 1]} : vector<8x12x240xf32> to vector<8x12x230xf32>
    %46 = vector.extract_strided_slice %44 {offsets = [0, 0, 10], sizes = [8, 12, 230], strides = [1, 1, 1]} : vector<8x12x240xf32> to vector<8x12x230xf32>
    %47 = arith.maximumf %45, %46 : vector<8x12x230xf32>
    %cst_11 = arith.constant 0.000000e+00 : f32
    %48 = vector.broadcast %cst_11 : f32 to vector<8x12x230xf32>
    %49 = arith.maximumf %47, %48 : vector<8x12x230xf32>
    %50 = arith.truncf %49 : vector<8x12x230xf32> to vector<8x12x230xbf16>
    %c0_12 = arith.constant 0 : index
    %c0_13 = arith.constant 0 : index
    %c0_14 = arith.constant 0 : index
    %51 = vector.load %arg4[%c0_12, %c0_13, %c0_14] : memref<5x230x160xbf16, #tpu.memory_space<vmem>>, vector<5x230x160xbf16>
    %52 = vector.extract_strided_slice %50 {offsets = [0, 0, 0], sizes = [8, 8, 230], strides = [1, 1, 1]} : vector<8x12x230xbf16> to vector<8x8x230xbf16>
    %53 = vector.shape_cast %52 : vector<8x8x230xbf16> to vector<64x230xbf16>
    %54 = vector.extract_strided_slice %51 {offsets = [0, 0, 0], sizes = [1, 230, 160], strides = [1, 1, 1]} : vector<5x230x160xbf16> to vector<1x230x160xbf16>
    %55 = vector.shape_cast %54 : vector<1x230x160xbf16> to vector<230x160xbf16>
    %cst_15 = arith.constant dense<0.000000e+00> : vector<64x160xf32>
    %56 = tpu.matmul %53, %55, %cst_15 {dimension_numbers = #tpu.dot_dimension_numbers<[1], [0], [0], [1], [0, 0, 1, 1], [], []>} : vector<64x230xbf16>, vector<230x160xbf16>, vector<64x160xf32> -> vector<64x160xf32>
    %57 = vector.extract_strided_slice %50 {offsets = [0, 1, 0], sizes = [8, 8, 230], strides = [1, 1, 1]} : vector<8x12x230xbf16> to vector<8x8x230xbf16>
    %58 = vector.shape_cast %57 : vector<8x8x230xbf16> to vector<64x230xbf16>
    %59 = vector.extract_strided_slice %51 {offsets = [1, 0, 0], sizes = [1, 230, 160], strides = [1, 1, 1]} : vector<5x230x160xbf16> to vector<1x230x160xbf16>
    %60 = vector.shape_cast %59 : vector<1x230x160xbf16> to vector<230x160xbf16>
    %cst_16 = arith.constant dense<0.000000e+00> : vector<64x160xf32>
    %61 = tpu.matmul %58, %60, %cst_16 {dimension_numbers = #tpu.dot_dimension_numbers<[1], [0], [0], [1], [0, 0, 1, 1], [], []>} : vector<64x230xbf16>, vector<230x160xbf16>, vector<64x160xf32> -> vector<64x160xf32>
    %62 = arith.addf %56, %61 : vector<64x160xf32>
    %63 = vector.extract_strided_slice %50 {offsets = [0, 2, 0], sizes = [8, 8, 230], strides = [1, 1, 1]} : vector<8x12x230xbf16> to vector<8x8x230xbf16>
    %64 = vector.shape_cast %63 : vector<8x8x230xbf16> to vector<64x230xbf16>
    %65 = vector.extract_strided_slice %51 {offsets = [2, 0, 0], sizes = [1, 230, 160], strides = [1, 1, 1]} : vector<5x230x160xbf16> to vector<1x230x160xbf16>
    %66 = vector.shape_cast %65 : vector<1x230x160xbf16> to vector<230x160xbf16>
    %cst_17 = arith.constant dense<0.000000e+00> : vector<64x160xf32>
    %67 = tpu.matmul %64, %66, %cst_17 {dimension_numbers = #tpu.dot_dimension_numbers<[1], [0], [0], [1], [0, 0, 1, 1], [], []>} : vector<64x230xbf16>, vector<230x160xbf16>, vector<64x160xf32> -> vector<64x160xf32>
    %68 = arith.addf %62, %67 : vector<64x160xf32>
    %69 = vector.extract_strided_slice %50 {offsets = [0, 3, 0], sizes = [8, 8, 230], strides = [1, 1, 1]} : vector<8x12x230xbf16> to vector<8x8x230xbf16>
    %70 = vector.shape_cast %69 : vector<8x8x230xbf16> to vector<64x230xbf16>
    %71 = vector.extract_strided_slice %51 {offsets = [3, 0, 0], sizes = [1, 230, 160], strides = [1, 1, 1]} : vector<5x230x160xbf16> to vector<1x230x160xbf16>
    %72 = vector.shape_cast %71 : vector<1x230x160xbf16> to vector<230x160xbf16>
    %cst_18 = arith.constant dense<0.000000e+00> : vector<64x160xf32>
    %73 = tpu.matmul %70, %72, %cst_18 {dimension_numbers = #tpu.dot_dimension_numbers<[1], [0], [0], [1], [0, 0, 1, 1], [], []>} : vector<64x230xbf16>, vector<230x160xbf16>, vector<64x160xf32> -> vector<64x160xf32>
    %74 = arith.addf %68, %73 : vector<64x160xf32>
    %75 = vector.extract_strided_slice %50 {offsets = [0, 4, 0], sizes = [8, 8, 230], strides = [1, 1, 1]} : vector<8x12x230xbf16> to vector<8x8x230xbf16>
    %76 = vector.shape_cast %75 : vector<8x8x230xbf16> to vector<64x230xbf16>
    %77 = vector.extract_strided_slice %51 {offsets = [4, 0, 0], sizes = [1, 230, 160], strides = [1, 1, 1]} : vector<5x230x160xbf16> to vector<1x230x160xbf16>
    %78 = vector.shape_cast %77 : vector<1x230x160xbf16> to vector<230x160xbf16>
    %cst_19 = arith.constant dense<0.000000e+00> : vector<64x160xf32>
    %79 = tpu.matmul %76, %78, %cst_19 {dimension_numbers = #tpu.dot_dimension_numbers<[1], [0], [0], [1], [0, 0, 1, 1], [], []>} : vector<64x230xbf16>, vector<230x160xbf16>, vector<64x160xf32> -> vector<64x160xf32>
    %80 = arith.addf %74, %79 : vector<64x160xf32>
    %c0_20 = arith.constant 0 : index
    %c0_21 = arith.constant 0 : index
    %81 = vector.load %arg5[%c0_20, %c0_21] : memref<1x160xf32, #tpu.memory_space<vmem>>, vector<1x160xf32>
    %82 = vector.broadcast %81 : vector<1x160xf32> to vector<64x160xf32>
    %83 = arith.addf %80, %82 : vector<64x160xf32>
    %84 = vector.shape_cast %83 : vector<64x160xf32> to vector<8x4x2x160xf32>
    %85 = vector.extract_strided_slice %84 {offsets = [0, 0, 0, 0], sizes = [8, 4, 1, 160], strides = [1, 1, 1, 1]} : vector<8x4x2x160xf32> to vector<8x4x1x160xf32>
    %86 = vector.shape_cast %85 : vector<8x4x1x160xf32> to vector<8x4x160xf32>
    %87 = vector.extract_strided_slice %84 {offsets = [0, 0, 1, 0], sizes = [8, 4, 1, 160], strides = [1, 1, 1, 1]} : vector<8x4x2x160xf32> to vector<8x4x1x160xf32>
    %88 = vector.shape_cast %87 : vector<8x4x1x160xf32> to vector<8x4x160xf32>
    %89 = arith.maximumf %86, %88 : vector<8x4x160xf32>
    %90 = vector.extract_strided_slice %89 {offsets = [0, 0, 0], sizes = [8, 4, 140], strides = [1, 1, 1]} : vector<8x4x160xf32> to vector<8x4x140xf32>
    %91 = vector.extract_strided_slice %89 {offsets = [0, 0, 20], sizes = [8, 4, 140], strides = [1, 1, 1]} : vector<8x4x160xf32> to vector<8x4x140xf32>
    %92 = arith.maximumf %90, %91 : vector<8x4x140xf32>
    %cst_22 = arith.constant 0.000000e+00 : f32
    %93 = vector.broadcast %cst_22 : f32 to vector<8x4x140xf32>
    %94 = arith.maximumf %92, %93 : vector<8x4x140xf32>
    %95 = vector.shape_cast %94 : vector<8x4x140xf32> to vector<8x560xf32>
    %96 = arith.truncf %95 : vector<8x560xf32> to vector<8x560xbf16>
    %c0_23 = arith.constant 0 : index
    %c0_24 = arith.constant 0 : index
    %97 = vector.load %arg6[%c0_23, %c0_24] : memref<560x50xbf16, #tpu.memory_space<vmem>>, vector<560x50xbf16>
    %cst_25 = arith.constant dense<0.000000e+00> : vector<8x50xf32>
    %98 = tpu.matmul %96, %97, %cst_25 {dimension_numbers = #tpu.dot_dimension_numbers<[1], [0], [0], [1], [0, 0, 1, 1], [], []>} : vector<8x560xbf16>, vector<560x50xbf16>, vector<8x50xf32> -> vector<8x50xf32>
    %c0_26 = arith.constant 0 : index
    %c0_27 = arith.constant 0 : index
    %99 = vector.load %arg7[%c0_26, %c0_27] : memref<1x50xf32, #tpu.memory_space<vmem>>, vector<1x50xf32>
    %100 = vector.broadcast %99 : vector<1x50xf32> to vector<8x50xf32>
    %101 = arith.addf %98, %100 : vector<8x50xf32>
    %cst_28 = arith.constant 0.000000e+00 : f32
    %102 = vector.broadcast %cst_28 : f32 to vector<8x50xf32>
    %103 = arith.maximumf %101, %102 : vector<8x50xf32>
    %c0_29 = arith.constant 0 : index
    %c0_30 = arith.constant 0 : index
    %104 = vector.load %arg8[%c0_29, %c0_30] : memref<50x10xf32, #tpu.memory_space<vmem>>, vector<50x10xf32>
    %cst_31 = arith.constant dense<0.000000e+00> : vector<8x10xf32>
    %105 = tpu.matmul %103, %104, %cst_31 {dimension_numbers = #tpu.dot_dimension_numbers<[1], [0], [0], [1], [0, 0, 1, 1], [], []>} : vector<8x50xf32>, vector<50x10xf32>, vector<8x10xf32> -> vector<8x10xf32>
    %c0_32 = arith.constant 0 : index
    %c0_33 = arith.constant 0 : index
    %106 = vector.load %arg9[%c0_32, %c0_33] : memref<1x10xf32, #tpu.memory_space<vmem>>, vector<1x10xf32>
    %107 = vector.broadcast %106 : vector<1x10xf32> to vector<8x10xf32>
    %108 = arith.addf %105, %107 : vector<8x10xf32>
    %cst_34 = arith.constant dense<0xFF800000> : vector<8xf32>
    %109 = vector.multi_reduction <maximumf>, %108, %cst_34 [1] : vector<8x10xf32> to vector<8xf32>
    %110 = vector.shape_cast %109 : vector<8xf32> to vector<8x1xf32>
    %111 = vector.broadcast %110 : vector<8x1xf32> to vector<8x10xf32>
    %112 = arith.subf %108, %111 : vector<8x10xf32>
    %113 = math.exp %112 : vector<8x10xf32>
    %cst_35 = arith.constant dense<0.000000e+00> : vector<8xf32>
    %114 = vector.multi_reduction <add>, %113, %cst_35 [1] : vector<8x10xf32> to vector<8xf32>
    %115 = vector.shape_cast %114 : vector<8xf32> to vector<8x1xf32>
    %116 = math.log %115 : vector<8x1xf32>
    %117 = vector.broadcast %116 : vector<8x1xf32> to vector<8x10xf32>
    %118 = arith.subf %112, %117 : vector<8x10xf32>
    %c0_36 = arith.constant 0 : index
    %c0_37 = arith.constant 0 : index
    %119 = vector.load %arg10[%c0_36, %c0_37] : memref<8x10xf32, #tpu.memory_space<vmem>>, vector<8x10xf32>
    tpu.vector_store %arg10[%c0_36, %c0_37], %118 {strides = array<i32>} : memref<8x10xf32, #tpu.memory_space<vmem>>, vector<8x10xf32>,
    return
  }
  func.func @transform_0(%arg0: i32) -> (i32, i32, i32) {
    %c0_i32 = arith.constant 0 : i32
    %c0_i32_0 = arith.constant 0 : i32
    %c0_i32_1 = arith.constant 0 : i32
    return %arg0, %c0_i32, %c0_i32_0 : i32, i32, i32
  }
  func.func @transform_1(%arg0: i32) -> (i32, i32, i32) {
    %c0_i32 = arith.constant 0 : i32
    %c0_i32_0 = arith.constant 0 : i32
    %c0_i32_1 = arith.constant 0 : i32
    %c0_i32_2 = arith.constant 0 : i32
    return %c0_i32, %c0_i32_0, %c0_i32_1 : i32, i32, i32
  }
  func.func @transform_2(%arg0: i32) -> (i32, i32) {
    %c0_i32 = arith.constant 0 : i32
    %c0_i32_0 = arith.constant 0 : i32
    %c0_i32_1 = arith.constant 0 : i32
    return %c0_i32, %c0_i32_0 : i32, i32
  }
  func.func @transform_3(%arg0: i32) -> (i32, i32, i32) {
    %c0_i32 = arith.constant 0 : i32
    %c0_i32_0 = arith.constant 0 : i32
    %c0_i32_1 = arith.constant 0 : i32
    %c0_i32_2 = arith.constant 0 : i32
    return %c0_i32, %c0_i32_0, %c0_i32_1 : i32, i32, i32
  }
  func.func @transform_4(%arg0: i32) -> (i32, i32) {
    %c0_i32 = arith.constant 0 : i32
    %c0_i32_0 = arith.constant 0 : i32
    %c0_i32_1 = arith.constant 0 : i32
    return %c0_i32, %c0_i32_0 : i32, i32
  }
  func.func @transform_5(%arg0: i32) -> (i32, i32) {
    %c0_i32 = arith.constant 0 : i32
    %c0_i32_0 = arith.constant 0 : i32
    %c0_i32_1 = arith.constant 0 : i32
    return %c0_i32, %c0_i32_0 : i32, i32
  }
  func.func @transform_6(%arg0: i32) -> (i32, i32) {
    %c0_i32 = arith.constant 0 : i32
    %c0_i32_0 = arith.constant 0 : i32
    %c0_i32_1 = arith.constant 0 : i32
    return %c0_i32, %c0_i32_0 : i32, i32
  }
  func.func @transform_7(%arg0: i32) -> (i32, i32) {
    %c0_i32 = arith.constant 0 : i32
    %c0_i32_0 = arith.constant 0 : i32
    %c0_i32_1 = arith.constant 0 : i32
    return %c0_i32, %c0_i32_0 : i32, i32
  }
  func.func @transform_8(%arg0: i32) -> (i32, i32) {
    %c0_i32 = arith.constant 0 : i32
    %c0_i32_0 = arith.constant 0 : i32
    %c0_i32_1 = arith.constant 0 : i32
    return %c0_i32, %c0_i32_0 : i32, i32
  }
  func.func @transform_9(%arg0: i32) -> (i32, i32) {
    %c0_i32 = arith.constant 0 : i32
    %c0_i32_0 = arith.constant 0 : i32
    return %arg0, %c0_i32 : i32, i32
  }
}

</mosaic_0001>

<llo_original>
// kernel: tile.13
$region0: #{tile.13}
  #allocation0 [shape = 's32[1]{0}', space=sflag, size = 0x4, scoped, tag = 'scoped memory for tile.13']
  %s0 = inlined_call_operand.vmem [shape: f32[10], index: 0, kind: input, shape index: {}]
  %s1 = inlined_call_operand.vmem [shape: f32[24,10], index: 1, kind: output, shape index: {}]
  // Predicated region
  $region2: #{tile.13} parent=0 // pred_check
    _
  $region3: #{tile.13} parent=0 // pred_check_branch
    %3 = sbr.rel (0) target = $region5
  $region4: #{tile.13} parent=0 // pred_region
    _
  $region5: #{tile.13} parent=0 // pred_fallthru
    _
  %v4 = vld [vmem:[%s0] ss:$0 sm:$0xff]
  %5 = vst [vmem:[%s1] sm:$0xff] %v4
  %s6 = scalar_lea.vmem %s1, 8
  %7 = vst [vmem:[%s6] sm:$0xff] %v4
  %s8 = scalar_lea.vmem %s1, 16
  %9 = vst [vmem:[%s8] sm:$0xff] %v4

// kernel: tile.14
$region0: #{tile.14}
  %s0 = inlined_call_operand.vmem [shape: f32[24,10], index: 0, kind: input, shape index: {}]
  %s1 = inlined_call_operand.vmem [shape: f32[1,240], index: 1, kind: output, shape index: {}]
  $region1: #{tile.14} parent=0
    #allocation0 [shape = 'u8[8192]{0}', space=vmem, size = 0x2000, scoped, tag = 'scoped mem for output reshape']
    %v2 = vld [vmem:[%s0] sm:$0x1]
    %vm3 = vcmask 80896
    %4 = vst.msk [vmem:[#allocation0] sm:$0x1] %vm3, %v2
    %s5 = scalar_lea.vmem %s0, 12
    %v6 = vld [vmem:[%s5] sm:$0x1]
    %s7 = scalar_lea.vmem %s0, 12
    %v8 = vld [vmem:[%s7] sm:$0x1]
    %vm9 = vcmask 64512
    %v10 = vsel %vm9, %v8, %v6
    %11 = vrot.lane.b32.xlu0 %v10, 120
    %v12 = vpop.permute.xlu0 %11
    %vm13 = vcmask 15360
    %s14 = scalar_lea.vmem [#allocation0], 8
    %15 = vst.msk [vmem:[%s14] sm:$0x1] %vm13, %v12
    %vm16 = vcmask 1048512
    %17 = vst.msk [vmem:[#allocation0] sm:$0x1] %vm16, %v12
    %s18 = scalar_lea.vmem %s0, 11
    %v19 = vld [vmem:[%s18] sm:$0x1]
    %20 = vrot.lane.b32.xlu0 %v19, 110
    %v21 = vpop.permute.xlu0 %20
    %vm22 = vcmask 982896
    %23 = vst.msk [vmem:[#allocation0] sm:$0x1] %vm22, %v21
    %s24 = scalar_lea.vmem %s0, 23
    %v25 = vld [vmem:[%s24] sm:$0x1]
    %26 = vrot.lane.b32.xlu0 %v25, 102
    %v27 = vpop.permute.xlu0 %26
    %vm28 = vcmask 917296
    %s29 = scalar_lea.vmem [#allocation0], 8
    %30 = vst.msk [vmem:[%s29] sm:$0x1] %vm28, %v27
    %s31 = scalar_lea.vmem %s0, 10
    %v32 = vld [vmem:[%s31] sm:$0x1]
    %33 = vrot.lane.b32.xlu0 %v32, 100
    %v34 = vpop.permute.xlu0 %33
    %vm35 = vcmask 900896
    %36 = vst.msk [vmem:[#allocation0] sm:$0x1] %vm35, %v34
    %s37 = scalar_lea.vmem %s0, 22
    %v38 = vld [vmem:[%s37] sm:$0x1]
    %39 = vrot.lane.b32.xlu0 %v38, 92
    %v40 = vpop.permute.xlu0 %39
    %vm41 = vcmask 835296
    %s42 = scalar_lea.vmem [#allocation0], 8
    %43 = vst.msk [vmem:[%s42] sm:$0x1] %vm41, %v40
    %s44 = scalar_lea.vmem %s0, 9
    %v45 = vld [vmem:[%s44] sm:$0x1]
    %46 = vrot.lane.b32.xlu0 %v45, 90
    %v47 = vpop.permute.xlu0 %46
    %vm48 = vcmask 818896
    %49 = vst.msk [vmem:[#allocation0] sm:$0x1] %vm48, %v47
    %s50 = scalar_lea.vmem %s0, 21
    %v51 = vld [vmem:[%s50] sm:$0x1]
    %52 = vrot.lane.b32.xlu0 %v51, 82
    %v53 = vpop.permute.xlu0 %52
    %vm54 = vcmask 753296
    %s55 = scalar_lea.vmem [#allocation0], 8
    %56 = vst.msk [vmem:[%s55] sm:$0x1] %vm54, %v53
    %s57 = scalar_lea.vmem %s0, 8
    %v58 = vld [vmem:[%s57] sm:$0x1]
    %59 = vrot.lane.b32.xlu0 %v58, 80
    %v60 = vpop.permute.xlu0 %59
    %vm61 = vcmask 736896
    %62 = vst.msk [vmem:[#allocation0] sm:$0x1] %vm61, %v60
    %s63 = scalar_lea.vmem %s0, 20
    %v64 = vld [vmem:[%s63] sm:$0x1]
    %65 = vrot.lane.b32.xlu0 %v64, 72
    %v66 = vpop.permute.xlu0 %65
    %vm67 = vcmask 671296
    %s68 = scalar_lea.vmem [#allocation0], 8
    %69 = vst.msk [vmem:[%s68] sm:$0x1] %vm67, %v66
    %s70 = scalar_lea.vmem %s0, 7
    %v71 = vld [vmem:[%s70] sm:$0x1]
    %72 = vrot.lane.b32.xlu0 %v71, 70
    %v73 = vpop.permute.xlu0 %72
    %vm74 = vcmask 654896
    %75 = vst.msk [vmem:[#allocation0] sm:$0x1] %vm74, %v73
    %s76 = scalar_lea.vmem %s0, 19
    %v77 = vld [vmem:[%s76] sm:$0x1]
    %78 = vrot.lane.b32.xlu0 %v77, 62
    %v79 = vpop.permute.xlu0 %78
    %vm80 = vcmask 589296
    %s81 = scalar_lea.vmem [#allocation0], 8
    %82 = vst.msk [vmem:[%s81] sm:$0x1] %vm80, %v79
    %s83 = scalar_lea.vmem %s0, 6
    %v84 = vld [vmem:[%s83] sm:$0x1]
    %85 = vrot.lane.b32.xlu0 %v84, 60
    %v86 = vpop.permute.xlu0 %85
    %vm87 = vcmask 572896
    %88 = vst.msk [vmem:[#allocation0] sm:$0x1] %vm87, %v86
    %s89 = scalar_lea.vmem %s0, 18
    %v90 = vld [vmem:[%s89] sm:$0x1]
    %91 = vrot.lane.b32.xlu0 %v90, 52
    %v92 = vpop.permute.xlu0 %91
    %vm93 = vcmask 507296
    %s94 = scalar_lea.vmem [#allocation0], 8
    %95 = vst.msk [vmem:[%s94] sm:$0x1] %vm93, %v92
    %s96 = scalar_lea.vmem %s0, 5
    %v97 = vld [vmem:[%s96] sm:$0x1]
    %98 = vrot.lane.b32.xlu0 %v97, 50
    %v99 = vpop.permute.xlu0 %98
    %vm100 = vcmask 490896
    %101 = vst.msk [vmem:[#allocation0] sm:$0x1] %vm100, %v99
    %s102 = scalar_lea.vmem %s0, 17
    %v103 = vld [vmem:[%s102] sm:$0x1]
    %104 = vrot.lane.b32.xlu0 %v103, 42
    %v105 = vpop.permute.xlu0 %104
    %vm106 = vcmask 425296
    %s107 = scalar_lea.vmem [#allocation0], 8
    %108 = vst.msk [vmem:[%s107] sm:$0x1] %vm106, %v105
    %s109 = scalar_lea.vmem %s0, 4
    %v110 = vld [vmem:[%s109] sm:$0x1]
    %111 = vrot.lane.b32.xlu0 %v110, 40
    %v112 = vpop.permute.xlu0 %111
    %vm113 = vcmask 408896
    %114 = vst.msk [vmem:[#allocation0] sm:$0x1] %vm113, %v112
    %s115 = scalar_lea.vmem %s0, 16
    %v116 = vld [vmem:[%s115] sm:$0x1]
    %117 = vrot.lane.b32.xlu0 %v116, 32
    %v118 = vpop.permute.xlu0 %117
    %vm119 = vcmask 343296
    %s120 = scalar_lea.vmem [#allocation0], 8
    %121 = vst.msk [vmem:[%s120] sm:$0x1] %vm119, %v118
    %s122 = scalar_lea.vmem %s0, 3
    %v123 = vld [vmem:[%s122] sm:$0x1]
    %124 = vrot.lane.b32.xlu0 %v123, 30
    %v125 = vpop.permute.xlu0 %124
    %vm126 = vcmask 326896
    %127 = vst.msk [vmem:[#allocation0] sm:$0x1] %vm126, %v125
    %s128 = scalar_lea.vmem %s0, 15
    %v129 = vld [vmem:[%s128] sm:$0x1]
    %130 = vrot.lane.b32.xlu0 %v129, 22
    %v131 = vpop.permute.xlu0 %130
    %vm132 = vcmask 261296
    %s133 = scalar_lea.vmem [#allocation0], 8
    %134 = vst.msk [vmem:[%s133] sm:$0x1] %vm132, %v131
    %s135 = scalar_lea.vmem %s0, 2
    %v136 = vld [vmem:[%s135] sm:$0x1]
    %137 = vrot.lane.b32.xlu0 %v136, 20
    %v138 = vpop.permute.xlu0 %137
    %vm139 = vcmask 244896
    %140 = vst.msk [vmem:[#allocation0] sm:$0x1] %vm139, %v138
    %s141 = scalar_lea.vmem %s0, 14
    %v142 = vld [vmem:[%s141] sm:$0x1]
    %143 = vrot.lane.b32.xlu0 %v142, 12
    %v144 = vpop.permute.xlu0 %143
    %vm145 = vcmask 179296
    %s146 = scalar_lea.vmem [#allocation0], 8
    %147 = vst.msk [vmem:[%s146] sm:$0x1] %vm145, %v144
    %s148 = scalar_lea.vmem %s0, 1
    %v149 = vld [vmem:[%s148] sm:$0x1]
    %150 = vrot.lane.b32.xlu0 %v149, 10
    %v151 = vpop.permute.xlu0 %150
    %vm152 = vcmask 162896
    %153 = vst.msk [vmem:[#allocation0] sm:$0x1] %vm152, %v151
    %s154 = scalar_lea.vmem %s0, 13
    %v155 = vld [vmem:[%s154] sm:$0x1]
    %156 = vrot.lane.b32.xlu0 %v155, 2
    %v157 = vpop.permute.xlu0 %156
    %vm158 = vcmask 97296
    %s159 = scalar_lea.vmem [#allocation0], 8
    %160 = vst.msk [vmem:[%s159] sm:$0x1] %vm158, %v157
    %s162 = ssub.s32 2, 1
    %v163 = vld [vmem:[#allocation0] sm:%s162]
    %s165 = ssub.s32 2, 1
    %166 = vst [vmem:[%s1] sm:%s165] %v163
    %s167 = scalar_lea.vmem [#allocation0], 8
    %v168 = vld [vmem:[%s167] sm:%s162]
    %s170 = ssub.s32 2, 1
    %s171 = scalar_lea.vmem %s1, 1
    %172 = vst [vmem:[%s171] sm:%s170] %v168

// kernel: tile.18
$region0: #{tile.18}
  #allocation0 [shape = 's32[1]{0}', space=sflag, size = 0x4, scoped, tag = 'scoped memory for tile.18']
  %s0 = inlined_call_operand.vmem [shape: f32[20], index: 0, kind: input, shape index: {}]
  %s1 = inlined_call_operand.vmem [shape: f32[8,20], index: 1, kind: output, shape index: {}]
  // Predicated region
  $region2: #{tile.18} parent=0 // pred_check
    _
  $region3: #{tile.18} parent=0 // pred_check_branch
    %3 = sbr.rel (0) target = $region5
  $region4: #{tile.18} parent=0 // pred_region
    _
  $region5: #{tile.18} parent=0 // pred_fallthru
    _
  %v4 = vld [vmem:[%s0] ss:$0 sm:$0xff]
  %5 = vst [vmem:[%s1] sm:$0xff] %v4

// kernel: tile.19
$region0: #{tile.19}
  %s0 = inlined_call_operand.vmem [shape: f32[8,20], index: 0, kind: input, shape index: {}]
  %s1 = inlined_call_operand.vmem [shape: f32[1,160], index: 1, kind: output, shape index: {}]
  $region1: #{tile.19} parent=0
    #allocation0 [shape = 'u8[8192]{0}', space=vmem, size = 0x2000, scoped, tag = 'scoped mem for output reshape']
    %v2 = vld [vmem:[%s0] sm:$0x1]
    %vm3 = vcmask 162816
    %4 = vst.msk [vmem:[#allocation0] sm:$0x1] %vm3, %v2
    %s5 = scalar_lea.vmem %s0, 6
    %v6 = vld [vmem:[%s5] sm:$0x1]
    %s7 = scalar_lea.vmem %s0, 6
    %v8 = vld [vmem:[%s7] sm:$0x1]
    %vm9 = vcmask 64512
    %v10 = vsel %vm9, %v8, %v6
    %11 = vrot.lane.b32.xlu0 %v10, 120
    %v12 = vpop.permute.xlu0 %11
    %vm13 = vcmask 97280
    %s14 = scalar_lea.vmem [#allocation0], 8
    %15 = vst.msk [vmem:[%s14] sm:$0x1] %vm13, %v12
    %vm16 = vcmask 1048512
    %17 = vst.msk [vmem:[#allocation0] sm:$0x1] %vm16, %v12
    %s18 = scalar_lea.vmem %s0, 5
    %v19 = vld [vmem:[%s18] sm:$0x1]
    %20 = vrot.lane.b32.xlu0 %v19, 100
    %v21 = vpop.permute.xlu0 %20
    %vm22 = vcmask 982816
    %23 = vst.msk [vmem:[#allocation0] sm:$0x1] %vm22, %v21
    %s24 = scalar_lea.vmem %s0, 4
    %v25 = vld [vmem:[%s24] sm:$0x1]
    %26 = vrot.lane.b32.xlu0 %v25, 80
    %v27 = vpop.permute.xlu0 %26
    %vm28 = vcmask 818816
    %29 = vst.msk [vmem:[#allocation0] sm:$0x1] %vm28, %v27
    %s30 = scalar_lea.vmem %s0, 3
    %v31 = vld [vmem:[%s30] sm:$0x1]
    %32 = vrot.lane.b32.xlu0 %v31, 60
    %v33 = vpop.permute.xlu0 %32
    %vm34 = vcmask 654816
    %35 = vst.msk [vmem:[#allocation0] sm:$0x1] %vm34, %v33
    %s36 = scalar_lea.vmem %s0, 2
    %v37 = vld [vmem:[%s36] sm:$0x1]
    %38 = vrot.lane.b32.xlu0 %v37, 40
    %v39 = vpop.permute.xlu0 %38
    %vm40 = vcmask 490816
    %41 = vst.msk [vmem:[#allocation0] sm:$0x1] %vm40, %v39
    %s42 = scalar_lea.vmem %s0, 1
    %v43 = vld [vmem:[%s42] sm:$0x1]
    %44 = vrot.lane.b32.xlu0 %v43, 20
    %v45 = vpop.permute.xlu0 %44
    %vm46 = vcmask 326816
    %47 = vst.msk [vmem:[#allocation0] sm:$0x1] %vm46, %v45
    %s48 = scalar_lea.vmem %s0, 7
    %v49 = vld [vmem:[%s48] sm:$0x1]
    %50 = vrot.lane.b32.xlu0 %v49, 12
    %v51 = vpop.permute.xlu0 %50
    %vm52 = vcmask 261216
    %s53 = scalar_lea.vmem [#allocation0], 8
    %54 = vst.msk [vmem:[%s53] sm:$0x1] %vm52, %v51
    %s56 = ssub.s32 2, 1
    %v57 = vld [vmem:[#allocation0] sm:%s56]
    %s59 = ssub.s32 2, 1
    %60 = vst [vmem:[%s1] sm:%s59] %v57
    %s61 = scalar_lea.vmem [#allocation0], 8
    %v62 = vld [vmem:[%s61] sm:%s56]
    %s64 = ssub.s32 2, 1
    %s65 = scalar_lea.vmem %s1, 1
    %66 = vst [vmem:[%s65] sm:%s64] %v62

// kernel: net_forward.1
$region0: #{net_forward.1}
  #allocation0 [shape = 'u32[]', space=smem, size = 0x4, offset = 0x4, fixed_abs, tag = 'smem constant byte address 0x4 - core index']
  #allocation1 [shape = 'u32[72,128]{1,0:T(1,128)}', space=vmem, size = 0x9000, scoped, tag = 'internal scratch']
  %s0 = inlined_call_operand.vmem [shape: f32[16,28,28], index: 0, kind: input, shape index: {}]
  %s1 = inlined_call_operand.vmem [shape: bf16[5,28,240], index: 1, kind: input, shape index: {}]
  %s2 = inlined_call_operand.vmem [shape: f32[1,240], index: 2, kind: input, shape index: {}]
  %s3 = inlined_call_operand.vmem [shape: bf16[5,230,160], index: 3, kind: input, shape index: {}]
  %s4 = inlined_call_operand.vmem [shape: f32[1,160], index: 4, kind: input, shape index: {}]
  %s5 = inlined_call_operand.vmem [shape: bf16[560,50], index: 5, kind: input, shape index: {}]
  %s6 = inlined_call_operand.vmem [shape: f32[1,50], index: 6, kind: input, shape index: {}]
  %s7 = inlined_call_operand.vmem [shape: f32[50,10], index: 7, kind: input, shape index: {}]
  %s8 = inlined_call_operand.vmem [shape: f32[1,10], index: 8, kind: input, shape index: {}]
  %s9 = inlined_call_operand.hbm [shape: f32[16,10], index: 9, kind: output, shape index: {}]
  %s10 = sld [smem:[#allocation0]]
  $region69: #{net_forward.1} parent=0
    _
  %s12 = ssub.s32 1, %s10
  %s13 = scalar_select 0, %s12, %s10
  $region1: #{net_forward.1} parent=0
    #allocation2 [shape = 'u8[8192]{0}', space=vmem, size = 0x2000, scoped, tag = 'output window, operand 0']
    #allocation3 [shape = 's32[2]{0}', space=sflag, size = 0x8, scoped, tag = 'scoped memory for net_forward.1']
    %14 = vsyncpa [#allocation3], 0
    %s15 = scalar_lea.sflag [#allocation3], 1
    %16 = vsyncpa %s15, 0
    loop: start=0, step=1, limit=4
    $region2: #{net_forward.1} parent=1 // loop_pre_header
      _
    $region3: #{net_forward.1} parent=1 // loop_header
      %s18 = sphi 0, %s22
      %p19 = scmp.ge.s32.totalorder %s18, 4
      %s28 = sphi 0, %s30
      %s31 = sphi 0, %s28
      %s32 = sphi 0, %s31
      %s48 = sphi 0, %s32
      %s52 = sphi 0, %s52
      %s54 = sphi 0, %s52
      %s55 = sphi 0, %s54
      %s69 = sphi 0, %s55
      %s73 = sphi 0, %s73
      %s75 = sphi 0, %s73
      %s76 = sphi 0, %s75
      %s90 = sphi 0, %s76
      %s94 = sphi 0, %s94
      %s96 = sphi 0, %s94
      %s97 = sphi 0, %s96
      %s111 = sphi 0, %s97
      %s115 = sphi 0, %s115
      %s117 = sphi 0, %s115
      %s118 = sphi 0, %s117
      %s132 = sphi 0, %s118
      %s136 = sphi 0, %s136
      %s138 = sphi 0, %s136
      %s139 = sphi 0, %s138
      %s153 = sphi 0, %s139
      %s157 = sphi 0, %s157
      %s159 = sphi 0, %s157
      %s160 = sphi 0, %s159
      %s174 = sphi 0, %s160
      %s178 = sphi 0, %s178
      %s180 = sphi 0, %s178
      %s181 = sphi 0, %s180
      %s195 = sphi 0, %s181
      %s199 = sphi 0, %s199
      %s201 = sphi 0, %s199
      %s202 = sphi 0, %s201
      %s216 = sphi 0, %s202
      %s222 = sphi 0, %s224
      %s225 = sphi 0, %s222
      %s226 = sphi 0, %s225
      %s242 = sphi 0, %s226
    $region4: #{net_forward.1} parent=1 // loop_header_branch
      %21 = sbr.rel (%p19) target = $region8
    $region5: #{net_forward.1} parent=1 // loop_body
      %s23 = ssub.s32 %s18, 1
      %s24 = ssub.s32 %s18, 2
      %s25 = sadd.s32 %s18, 1
      %s26 = ssub.s32 %s18, %s25
      %p27 = scmp.eq.s32.totalorder %s26, 0
      %s29 = sadd.s32 %s28, 1
      %s30 = scalar_select %p27, %s28, %s29
      %p33 = pneg %p27
      %p34 = scmp.eq.s32.totalorder %s18, 1
      %p35 = por %p33, %p34
      %p36 = scmp.ne.s32.totalorder %s28, %s31
      %p37 = scmp.eq.s32.totalorder %s18, 0
      %p38 = por %p36, %p37
      %p39 = scmp.ne.s32.totalorder %s28, %s31
      %p40 = scmp.eq.s32.totalorder %s23, 1
      %p41 = por %p39, %p40
      %p42 = scmp.ne.s32.totalorder %s31, %s32
      %p43 = scmp.eq.s32.totalorder %s23, 0
      %p44 = por %p42, %p43
      %p45 = scmp.ne.s32.totalorder %s31, %s32
      %p46 = scmp.eq.s32.totalorder %s24, 1
      %p47 = por %p45, %p46
      %p49 = scmp.ne.s32.totalorder %s32, %s48
      %p50 = scmp.eq.s32.totalorder %s24, 0
      %p51 = por %p49, %p50
      %s53 = sadd.s32 %s52, 1
      %p56 = scmp.eq.s32.totalorder %s18, 1
      %p57 = scmp.ne.s32.totalorder %s52, %s54
      %p58 = scmp.eq.s32.totalorder %s18, 0
      %p59 = por %p57, %p58
      %p60 = scmp.ne.s32.totalorder %s52, %s54
      %p61 = scmp.eq.s32.totalorder %s23, 1
      %p62 = por %p60, %p61
      %p63 = scmp.ne.s32.totalorder %s54, %s55
      %p64 = scmp.eq.s32.totalorder %s23, 0
      %p65 = por %p63, %p64
      %p66 = scmp.ne.s32.totalorder %s54, %s55
      %p67 = scmp.eq.s32.totalorder %s24, 1
      %p68 = por %p66, %p67
      %p70 = scmp.ne.s32.totalorder %s55, %s69
      %p71 = scmp.eq.s32.totalorder %s24, 0
      %p72 = por %p70, %p71
      %s74 = sadd.s32 %s73, 1
      %p77 = scmp.eq.s32.totalorder %s18, 1
      %p78 = scmp.ne.s32.totalorder %s73, %s75
      %p79 = scmp.eq.s32.totalorder %s18, 0
      %p80 = por %p78, %p79
      %p81 = scmp.ne.s32.totalorder %s73, %s75
      %p82 = scmp.eq.s32.totalorder %s23, 1
      %p83 = por %p81, %p82
      %p84 = scmp.ne.s32.totalorder %s75, %s76
      %p85 = scmp.eq.s32.totalorder %s23, 0
      %p86 = por %p84, %p85
      %p87 = scmp.ne.s32.totalorder %s75, %s76
      %p88 = scmp.eq.s32.totalorder %s24, 1
      %p89 = por %p87, %p88
      %p91 = scmp.ne.s32.totalorder %s76, %s90
      %p92 = scmp.eq.s32.totalorder %s24, 0
      %p93 = por %p91, %p92
      %s95 = sadd.s32 %s94, 1
      %p98 = scmp.eq.s32.totalorder %s18, 1
      %p99 = scmp.ne.s32.totalorder %s94, %s96
      %p100 = scmp.eq.s32.totalorder %s18, 0
      %p101 = por %p99, %p100
      %p102 = scmp.ne.s32.totalorder %s94, %s96
      %p103 = scmp.eq.s32.totalorder %s23, 1
      %p104 = por %p102, %p103
      %p105 = scmp.ne.s32.totalorder %s96, %s97
      %p106 = scmp.eq.s32.totalorder %s23, 0
      %p107 = por %p105, %p106
      %p108 = scmp.ne.s32.totalorder %s96, %s97
      %p109 = scmp.eq.s32.totalorder %s24, 1
      %p110 = por %p108, %p109
      %p112 = scmp.ne.s32.totalorder %s97, %s111
      %p113 = scmp.eq.s32.totalorder %s24, 0
      %p114 = por %p112, %p113
      %s116 = sadd.s32 %s115, 1
      %p119 = scmp.eq.s32.totalorder %s18, 1
      %p120 = scmp.ne.s32.totalorder %s115, %s117
      %p121 = scmp.eq.s32.totalorder %s18, 0
      %p122 = por %p120, %p121
      %p123 = scmp.ne.s32.totalorder %s115, %s117
      %p124 = scmp.eq.s32.totalorder %s23, 1
      %p125 = por %p123, %p124
      %p126 = scmp.ne.s32.totalorder %s117, %s118
      %p127 = scmp.eq.s32.totalorder %s23, 0
      %p128 = por %p126, %p127
      %p129 = scmp.ne.s32.totalorder %s117, %s118
      %p130 = scmp.eq.s32.totalorder %s24, 1
      %p131 = por %p129, %p130
      %p133 = scmp.ne.s32.totalorder %s118, %s132
      %p134 = scmp.eq.s32.totalorder %s24, 0
      %p135 = por %p133, %p134
      %s137 = sadd.s32 %s136, 1
      %p140 = scmp.eq.s32.totalorder %s18, 1
      %p141 = scmp.ne.s32.totalorder %s136, %s138
      %p142 = scmp.eq.s32.totalorder %s18, 0
      %p143 = por %p141, %p142
      %p144 = scmp.ne.s32.totalorder %s136, %s138
      %p145 = scmp.eq.s32.totalorder %s23, 1
      %p146 = por %p144, %p145
      %p147 = scmp.ne.s32.totalorder %s138, %s139
      %p148 = scmp.eq.s32.totalorder %s23, 0
      %p149 = por %p147, %p148
      %p150 = scmp.ne.s32.totalorder %s138, %s139
      %p151 = scmp.eq.s32.totalorder %s24, 1
      %p152 = por %p150, %p151
      %p154 = scmp.ne.s32.totalorder %s139, %s153
      %p155 = scmp.eq.s32.totalorder %s24, 0
      %p156 = por %p154, %p155
      %s158 = sadd.s32 %s157, 1
      %p161 = scmp.eq.s32.totalorder %s18, 1
      %p162 = scmp.ne.s32.totalorder %s157, %s159
      %p163 = scmp.eq.s32.totalorder %s18, 0
      %p164 = por %p162, %p163
      %p165 = scmp.ne.s32.totalorder %s157, %s159
      %p166 = scmp.eq.s32.totalorder %s23, 1
      %p167 = por %p165, %p166
      %p168 = scmp.ne.s32.totalorder %s159, %s160
      %p169 = scmp.eq.s32.totalorder %s23, 0
      %p170 = por %p168, %p169
      %p171 = scmp.ne.s32.totalorder %s159, %s160
      %p172 = scmp.eq.s32.totalorder %s24, 1
      %p173 = por %p171, %p172
      %p175 = scmp.ne.s32.totalorder %s160, %s174
      %p176 = scmp.eq.s32.totalorder %s24, 0
      %p177 = por %p175, %p176
      %s179 = sadd.s32 %s178, 1
      %p182 = scmp.eq.s32.totalorder %s18, 1
      %p183 = scmp.ne.s32.totalorder %s178, %s180
      %p184 = scmp.eq.s32.totalorder %s18, 0
      %p185 = por %p183, %p184
      %p186 = scmp.ne.s32.totalorder %s178, %s180
      %p187 = scmp.eq.s32.totalorder %s23, 1
      %p188 = por %p186, %p187
      %p189 = scmp.ne.s32.totalorder %s180, %s181
      %p190 = scmp.eq.s32.totalorder %s23, 0
      %p191 = por %p189, %p190
      %p192 = scmp.ne.s32.totalorder %s180, %s181
      %p193 = scmp.eq.s32.totalorder %s24, 1
      %p194 = por %p192, %p193
      %p196 = scmp.ne.s32.totalorder %s181, %s195
      %p197 = scmp.eq.s32.totalorder %s24, 0
      %p198 = por %p196, %p197
      %s200 = sadd.s32 %s199, 1
      %p203 = scmp.eq.s32.totalorder %s18, 1
      %p204 = scmp.ne.s32.totalorder %s199, %s201
      %p205 = scmp.eq.s32.totalorder %s18, 0
      %p206 = por %p204, %p205
      %p207 = scmp.ne.s32.totalorder %s199, %s201
      %p208 = scmp.eq.s32.totalorder %s23, 1
      %p209 = por %p207, %p208
      %p210 = scmp.ne.s32.totalorder %s201, %s202
      %p211 = scmp.eq.s32.totalorder %s23, 0
      %p212 = por %p210, %p211
      %p213 = scmp.ne.s32.totalorder %s201, %s202
      %p214 = scmp.eq.s32.totalorder %s24, 1
      %p215 = por %p213, %p214
      %p217 = scmp.ne.s32.totalorder %s202, %s216
      %p218 = scmp.eq.s32.totalorder %s24, 0
      %p219 = por %p217, %p218
      %s220 = ssub.s32 %s18, %s25
      %p221 = scmp.eq.s32.totalorder %s220, 0
      %s223 = sadd.s32 %s222, 1
      %s224 = scalar_select %p221, %s222, %s223
      %p227 = pneg %p221
      %p228 = scmp.eq.s32.totalorder %s18, 1
      %p229 = por %p227, %p228
      %p230 = scmp.ne.s32.totalorder %s222, %s225
      %p231 = scmp.eq.s32.totalorder %s18, 0
      %p232 = por %p230, %p231
      %p233 = scmp.ne.s32.totalorder %s222, %s225
      %p234 = scmp.eq.s32.totalorder %s23, 1
      %p235 = por %p233, %p234
      %p236 = scmp.ne.s32.totalorder %s225, %s226
      %p237 = scmp.eq.s32.totalorder %s23, 0
      %p238 = por %p236, %p237
      %p239 = scmp.ne.s32.totalorder %s225, %s226
      %p240 = scmp.eq.s32.totalorder %s24, 1
      %p241 = por %p239, %p240
      %p243 = scmp.ne.s32.totalorder %s226, %s242
      %p244 = scmp.eq.s32.totalorder %s24, 0
      %p245 = por %p243, %p244
      %p246 = scmp.le.s32.totalorder 1, %s18
      %p247 = scmp.lt.s32.totalorder %s18, 3
      %p248 = pnand %p246, %p247
      %p249 = pneg %p248
      // Predicated region
      $region9: #{net_forward.1} parent=5 // pred_check
        _
      $region10: #{net_forward.1} parent=5 // pred_check_branch
        %251 = sbr.rel (%p248) target = $region12
      $region11: #{net_forward.1} parent=5 // pred_region
        %s252 = ssub.s32 %s18, 1
        // Predicated region
        $region13: #{net_forward.1} parent=11 // pred_check
          %p253 = pneg %p65
        $region14: #{net_forward.1} parent=11 // pred_check_branch
          %255 = sbr.rel (%p253) target = $region16
        $region15: #{net_forward.1} parent=11 // pred_region
          _
        $region16: #{net_forward.1} parent=11 // pred_fallthru
          _
        // Predicated region
        $region17: #{net_forward.1} parent=11 // pred_check
          %p256 = pneg %p86
        $region18: #{net_forward.1} parent=11 // pred_check_branch
          %258 = sbr.rel (%p256) target = $region20
        $region19: #{net_forward.1} parent=11 // pred_region
          _
        $region20: #{net_forward.1} parent=11 // pred_fallthru
          _
        // Predicated region
        $region21: #{net_forward.1} parent=11 // pred_check
          %p259 = pneg %p107
        $region22: #{net_forward.1} parent=11 // pred_check_branch
          %261 = sbr.rel (%p259) target = $region24
        $region23: #{net_forward.1} parent=11 // pred_region
          _
        $region24: #{net_forward.1} parent=11 // pred_fallthru
          _
        // Predicated region
        $region25: #{net_forward.1} parent=11 // pred_check
          %p262 = pneg %p128
        $region26: #{net_forward.1} parent=11 // pred_check_branch
          %264 = sbr.rel (%p262) target = $region28
        $region27: #{net_forward.1} parent=11 // pred_region
          _
        $region28: #{net_forward.1} parent=11 // pred_fallthru
          _
        // Predicated region
        $region29: #{net_forward.1} parent=11 // pred_check
          %p265 = pneg %p149
        $region30: #{net_forward.1} parent=11 // pred_check_branch
          %267 = sbr.rel (%p265) target = $region32
        $region31: #{net_forward.1} parent=11 // pred_region
          _
        $region32: #{net_forward.1} parent=11 // pred_fallthru
          _
        // Predicated region
        $region33: #{net_forward.1} parent=11 // pred_check
          %p268 = pneg %p170
        $region34: #{net_forward.1} parent=11 // pred_check_branch
          %270 = sbr.rel (%p268) target = $region36
        $region35: #{net_forward.1} parent=11 // pred_region
          _
        $region36: #{net_forward.1} parent=11 // pred_fallthru
          _
        // Predicated region
        $region37: #{net_forward.1} parent=11 // pred_check
          %p271 = pneg %p191
        $region38: #{net_forward.1} parent=11 // pred_check_branch
          %273 = sbr.rel (%p271) target = $region40
        $region39: #{net_forward.1} parent=11 // pred_region
          _
        $region40: #{net_forward.1} parent=11 // pred_fallthru
          _
        // Predicated region
        $region41: #{net_forward.1} parent=11 // pred_check
          %p274 = pneg %p212
        $region42: #{net_forward.1} parent=11 // pred_check_branch
          %276 = sbr.rel (%p274) target = $region44
        $region43: #{net_forward.1} parent=11 // pred_region
          _
        $region44: #{net_forward.1} parent=11 // pred_fallthru
          _
      $region12: #{net_forward.1} parent=5 // pred_fallthru
        _
      %p277 = scmp.lt.s32.totalorder %s18, 2
      // Predicated region
      $region45: #{net_forward.1} parent=5 // pred_check
        %p278 = pneg %p277
      $region46: #{net_forward.1} parent=5 // pred_check_branch
        %280 = sbr.rel (%p278) target = $region48
      $region47: #{net_forward.1} parent=5 // pred_region
        // Predicated region
        $region49: #{net_forward.1} parent=47 // pred_check
          %p281 = pneg %p38
        $region50: #{net_forward.1} parent=47 // pred_check_branch
          %283 = sbr.rel (%p281) target = $region52
        $region51: #{net_forward.1} parent=47 // pred_region
          %s284 = smul.u32 8, %s18
          %p285 = scmp.lt.s32.totalorder %s284, 15
          %s286 = scalar_select %p285, %s284, 15
          %s287 = smul.addr %s286, 4
          %s288 = smul.addr %s287, 8
          %s289 = scalar_lea.vmem %s0, %s288
          %s290 = smul.u32 8, %s18
        $region52: #{net_forward.1} parent=47 // pred_fallthru
          _
      $region48: #{net_forward.1} parent=5 // pred_fallthru
        _
      %p291 = scmp.le.s32.totalorder 1, %s18
      %p292 = scmp.lt.s32.totalorder %s18, 3
      %p293 = pnand %p291, %p292
      %p294 = pneg %p293
      // Predicated region
      $region53: #{net_forward.1} parent=5 // pred_check
        _
      $region54: #{net_forward.1} parent=5 // pred_check_branch
        %296 = sbr.rel (%p293) target = $region56
      $region55: #{net_forward.1} parent=5 // pred_region
        %s297 = ssub.s32 %s18, 1
        %s298 = smul.u32 8, %s23
        %p299 = scmp.lt.s32.totalorder %s298, 15
        %s300 = scalar_select %p299, %s298, 15
        %s301 = smul.addr %s300, 4
        %s302 = smul.addr %s301, 8
        %s303 = scalar_lea.vmem %s0, %s302
        %p304 = pneg %p44
        %p305 = pneg %p41
        %p306 = pneg %p65
        %p307 = pneg %p62
        %p308 = pneg %p86
        %p309 = pneg %p83
        %p310 = pneg %p107
        %p311 = pneg %p104
        %p312 = pneg %p128
        %p313 = pneg %p125
        %p314 = pneg %p149
        %p315 = pneg %p146
        %p316 = pneg %p170
        %p317 = pneg %p167
        %p318 = pneg %p191
        %p319 = pneg %p188
        %p320 = pneg %p212
        %p321 = pneg %p209
        %p322 = pneg %p238
        %p323 = pneg %p235
        %s324 = sand.u32 %s225, 1
        %s325 = scalar_lea.sflag [#allocation3], %s324
        %s326 = sand.u32 %s225, 1
        %s327 = smul.addr %s326, 8
        %s328 = scalar_lea.vmem [#allocation2], %s327
        %s329 = smul.u32 8, %s23
        %p330 = scmp.lt.s32.totalorder %s329, 15
        %s331 = scalar_select %p330, %s329, 15
        %s332 = smul.addr %s331, 4
        %s333 = smul.addr %s332, 8
        %s334 = scalar_lea.vmem %s0, %s333
        %s335 = smul.u32 8, %s23
        %v337 = vld [vmem:[%s334] sm:$0xff]
        %v338 = vld [vmem:[%s334 + $0x8] sm:$0xff]
        %v339 = vld [vmem:[%s334 + $0x10] sm:$0xff]
        %v340 = vld [vmem:[%s334 + $0x18] sm:$0xf]
        %v341 = vld [vmem:[%s334 + $0x20] sm:$0xff]
        %v342 = vld [vmem:[%s334 + $0x28] sm:$0xff]
        %v343 = vld [vmem:[%s334 + $0x30] sm:$0xff]
        %v344 = vld [vmem:[%s334 + $0x38] sm:$0xf]
        %v345 = vld [vmem:[%s334 + $0x40] sm:$0xff]
        %v346 = vld [vmem:[%s334 + $0x48] sm:$0xff]
        %v347 = vld [vmem:[%s334 + $0x50] sm:$0xff]
        %v348 = vld [vmem:[%s334 + $0x58] sm:$0xf]
        %v349 = vld [vmem:[%s334 + $0x60] sm:$0xff]
        %v350 = vld [vmem:[%s334 + $0x68] sm:$0xff]
        %v351 = vld [vmem:[%s334 + $0x70] sm:$0xff]
        %v352 = vld [vmem:[%s334 + $0x78] sm:$0xf]
        %v353 = vld [vmem:[%s334 + $0x80] sm:$0xff]
        %v354 = vld [vmem:[%s334 + $0x88] sm:$0xff]
        %v355 = vld [vmem:[%s334 + $0x90] sm:$0xff]
        %v356 = vld [vmem:[%s334 + $0x98] sm:$0xf]
        %v357 = vld [vmem:[%s334 + $0xa0] sm:$0xff]
        %v358 = vld [vmem:[%s334 + $0xa8] sm:$0xff]
        %v359 = vld [vmem:[%s334 + $0xb0] sm:$0xff]
        %v360 = vld [vmem:[%s334 + $0xb8] sm:$0xf]
        %v361 = vld [vmem:[%s334 + $0xc0] sm:$0xff]
        %v362 = vld [vmem:[%s334 + $0xc8] sm:$0xff]
        %v363 = vld [vmem:[%s334 + $0xd0] sm:$0xff]
        %v364 = vld [vmem:[%s334 + $0xd8] sm:$0xf]
        %v365 = vld [vmem:[%s334 + $0xe0] sm:$0xff]
        %v366 = vld [vmem:[%s334 + $0xe8] sm:$0xff]
        %v367 = vld [vmem:[%s334 + $0xf0] sm:$0xff]
        %v368 = vld [vmem:[%s334 + $0xf8] sm:$0xf]
        %v369 = vld [vmem:[%s1] sm:$0xff]
        %v370 = vld [vmem:[%s1 + $0x8] sm:$0xff]
        %v371 = vld [vmem:[%s1 + $0x10] sm:$0xff]
        %v372 = vld [vmem:[%s1 + $0x18] sm:$0x33]
        %v373 = vld [vmem:[%s1 + $0x20] sm:$0xff]
        %v374 = vld [vmem:[%s1 + $0x28] sm:$0xff]
        %v375 = vld [vmem:[%s1 + $0x30] sm:$0xff]
        %v376 = vld [vmem:[%s1 + $0x38] sm:$0x33]
        %v377 = vld [vmem:[%s1 + $0x40] sm:$0xff]
        %v378 = vld [vmem:[%s1 + $0x48] sm:$0xff]
        %v379 = vld [vmem:[%s1 + $0x50] sm:$0xff]
        %v380 = vld [vmem:[%s1 + $0x58] sm:$0x33]
        %v381 = vld [vmem:[%s1 + $0x60] sm:$0xff]
        %v382 = vld [vmem:[%s1 + $0x68] sm:$0xff]
        %v383 = vld [vmem:[%s1 + $0x70] sm:$0xff]
        %v384 = vld [vmem:[%s1 + $0x78] sm:$0x33]
        %v385 = vld [vmem:[%s1 + $0x80] sm:$0xff]
        %v386 = vld [vmem:[%s1 + $0x88] sm:$0xff]
        %v387 = vld [vmem:[%s1 + $0x90] sm:$0xff]
        %v388 = vld [vmem:[%s1 + $0x98] sm:$0x33]
        %v389 = vpack.c.bf16 %v338, %v337
        %v390 = vpack.c.bf16 %v341, %v339
        %v391 = vpack.c.bf16 %v343, %v342
        %v392 = vpack.c.bf16 %v346, %v345
        %v393 = vpack.c.bf16 %v349, %v347
        %v394 = vpack.c.bf16 %v351, %v350
        %v395 = vpack.c.bf16 %v354, %v353
        %v396 = vpack.c.bf16 %v357, %v355
        %v397 = vpack.c.bf16 %v359, %v358
        %v398 = vpack.c.bf16 %v362, %v361
        %v399 = vpack.c.bf16 %v365, %v363
        %v400 = vpack.c.bf16 %v367, %v366
        %vm433 = vcmask 1046528
        %v434 = vrot.slane %v337, 1
        %v435 = vrot.slane %v338, 1
        %v436 = vsel %vm433, %v434, %v435
        %v437 = vrot.slane %v339, 1
        %v438 = vsel %vm433, %v435, %v437
        %v439 = vrot.slane %v340, 1
        %v440 = vsel %vm433, %v437, %v439
        %v441 = vrot.slane %v341, 1
        %v442 = vrot.slane %v342, 1
        %v443 = vsel %vm433, %v441, %v442
        %v444 = vrot.slane %v343, 1
        %v445 = vsel %vm433, %v442, %v444
        %v446 = vrot.slane %v344, 1
        %v447 = vsel %vm433, %v444, %v446
        %v448 = vrot.slane %v345, 1
        %v449 = vrot.slane %v346, 1
        %v450 = vsel %vm433, %v448, %v449
        %v451 = vrot.slane %v347, 1
        %v452 = vsel %vm433, %v449, %v451
        %v453 = vrot.slane %v348, 1
        %v454 = vsel %vm433, %v451, %v453
        %v455 = vrot.slane %v349, 1
        %v456 = vrot.slane %v350, 1
        %v457 = vsel %vm433, %v455, %v456
        %v458 = vrot.slane %v351, 1
        %v459 = vsel %vm433, %v456, %v458
        %v460 = vrot.slane %v352, 1
        %v461 = vsel %vm433, %v458, %v460
        %v462 = vrot.slane %v353, 1
        %v463 = vrot.slane %v354, 1
        %v464 = vsel %vm433, %v462, %v463
        %v465 = vrot.slane %v355, 1
        %v466 = vsel %vm433, %v463, %v465
        %v467 = vrot.slane %v356, 1
        %v468 = vsel %vm433, %v465, %v467
        %v469 = vrot.slane %v357, 1
        %v470 = vrot.slane %v358, 1
        %v471 = vsel %vm433, %v469, %v470
        %v472 = vrot.slane %v359, 1
        %v473 = vsel %vm433, %v470, %v472
        %v474 = vrot.slane %v360, 1
        %v475 = vsel %vm433, %v472, %v474
        %v476 = vrot.slane %v361, 1
        %v477 = vrot.slane %v362, 1
        %v478 = vsel %vm433, %v476, %v477
        %v479 = vrot.slane %v363, 1
        %v480 = vsel %vm433, %v477, %v479
        %v481 = vrot.slane %v364, 1
        %v482 = vsel %vm433, %v479, %v481
        %v483 = vrot.slane %v365, 1
        %v484 = vrot.slane %v366, 1
        %v485 = vsel %vm433, %v483, %v484
        %v486 = vrot.slane %v367, 1
        %v487 = vsel %vm433, %v484, %v486
        %v488 = vrot.slane %v368, 1
        %v489 = vsel %vm433, %v486, %v488
        %v514 = vpack.c.bf16 %v438, %v436
        %v515 = vpack.c.bf16 %v443, %v440
        %v516 = vpack.c.bf16 %v447, %v445
        %v517 = vpack.c.bf16 %v452, %v450
        %v518 = vpack.c.bf16 %v457, %v454
        %v519 = vpack.c.bf16 %v461, %v459
        %v520 = vpack.c.bf16 %v466, %v464
        %v521 = vpack.c.bf16 %v471, %v468
        %v522 = vpack.c.bf16 %v475, %v473
        %v523 = vpack.c.bf16 %v480, %v478
        %v524 = vpack.c.bf16 %v485, %v482
        %v525 = vpack.c.bf16 %v489, %v487
        %v530 = vunpack.c.l.b16 %v373
        %v531 = vunpack.c.h.b16 %v373
        %v532 = vunpack.c.l.b16 %v374
        %v533 = vunpack.c.h.b16 %v374
        %v534 = vunpack.c.l.b16 %v375
        %v535 = vunpack.c.h.b16 %v375
        %v536 = vunpack.c.l.b16 %v376
        %v537 = vunpack.c.h.b16 %v376
        %v538 = vpack.c.b16 %v532, %v530
        %v539 = vpack.c.b16 %v533, %v531
        %v540 = vpack.c.b16 %v536, %v534
        %v541 = vpack.c.b16 %v537, %v535
        %vm544 = vcmask 228352
        %v546 = vsel %vm544, %v514, 0
        %v549 = vsel %vm544, %v515, 0
        %v552 = vsel %vm544, %v516, 0
        %v555 = vsel %vm544, %v517, 0
        %v558 = vsel %vm544, %v518, 0
        %v561 = vsel %vm544, %v519, 0
        %v564 = vsel %vm544, %v520, 0
        %v567 = vsel %vm544, %v521, 0
        %v570 = vsel %vm544, %v522, 0
        %v573 = vsel %vm544, %v523, 0
        %v576 = vsel %vm544, %v524, 0
        %v579 = vsel %vm544, %v525, 0
        %vm581 = vcmask 1045504
        %v583 = vsel %vm581, %v540, 0
        %v586 = vsel %vm581, %v541, 0
        %588 = vmatpush.bf16.msra.mxu0 0
        %589 = vmatpush.bf16.msra.mxu0 0
        %590 = vmatpush.bf16.msra.mxu0 0
        %591 = vmatpush.bf16.msra.mxu0 0
        %592 = vmatpush.bf16.msra.mxu0 0
        %593 = vmatpush.bf16.msra.mxu0 0
        %594 = vmatpush.bf16.msra.mxu0 %v583
        %595 = vmatpush.bf16.msra.mxu0 %v538
        %596 = vmatmul.bf16.gmra.mxu0 %v546
        %v597 = vpop.f32.mrf.mxu0
        %v598 = vadd.f32 0.0, %v597
        %v599 = vpop.f32.mrf.mxu0
        %v600 = vadd.f32 0.0, %v599
        %601 = vmatmul.bf16.gmra.mxu0 %v549
        %v602 = vpop.f32.mrf.mxu0
        %v603 = vadd.f32 0.0, %v602
        %v604 = vpop.f32.mrf.mxu0
        %v605 = vadd.f32 0.0, %v604
        %606 = vmatmul.bf16.gmra.mxu0 %v552
        %v607 = vpop.f32.mrf.mxu0
        %v608 = vadd.f32 0.0, %v607
        %v609 = vpop.f32.mrf.mxu0
        %v610 = vadd.f32 0.0, %v609
        %611 = vmatmul.bf16.gmra.mxu0 %v555
        %v612 = vpop.f32.mrf.mxu0
        %v613 = vadd.f32 0.0, %v612
        %v614 = vpop.f32.mrf.mxu0
        %v615 = vadd.f32 0.0, %v614
        %616 = vmatmul.bf16.gmra.mxu0 %v558
        %v617 = vpop.f32.mrf.mxu0
        %v618 = vadd.f32 0.0, %v617
        %v619 = vpop.f32.mrf.mxu0
        %v620 = vadd.f32 0.0, %v619
        %621 = vmatmul.bf16.gmra.mxu0 %v561
        %v622 = vpop.f32.mrf.mxu0
        %v623 = vadd.f32 0.0, %v622
        %v624 = vpop.f32.mrf.mxu0
        %v625 = vadd.f32 0.0, %v624
        %626 = vmatmul.bf16.gmra.mxu0 %v564
        %v627 = vpop.f32.mrf.mxu0
        %v628 = vadd.f32 0.0, %v627
        %v629 = vpop.f32.mrf.mxu0
        %v630 = vadd.f32 0.0, %v629
        %631 = vmatmul.bf16.gmra.mxu0 %v567
        %v632 = vpop.f32.mrf.mxu0
        %v633 = vadd.f32 0.0, %v632
        %v634 = vpop.f32.mrf.mxu0
        %v635 = vadd.f32 0.0, %v634
        %636 = vmatmul.bf16.gmra.mxu0 %v570
        %v637 = vpop.f32.mrf.mxu0
        %v638 = vadd.f32 0.0, %v637
        %v639 = vpop.f32.mrf.mxu0
        %v640 = vadd.f32 0.0, %v639
        %641 = vmatmul.bf16.gmra.mxu0 %v573
        %v642 = vpop.f32.mrf.mxu0
        %v643 = vadd.f32 0.0, %v642
        %v644 = vpop.f32.mrf.mxu0
        %v645 = vadd.f32 0.0, %v644
        %646 = vmatmul.bf16.gmra.mxu0 %v576
        %v647 = vpop.f32.mrf.mxu0
        %v648 = vadd.f32 0.0, %v647
        %v649 = vpop.f32.mrf.mxu0
        %v650 = vadd.f32 0.0, %v649
        %651 = vmatmul.bf16.gmra.mxu0 %v579
        %v652 = vpop.f32.mrf.mxu0
        %v653 = vadd.f32 0.0, %v652
        %v654 = vpop.f32.mrf.mxu0
        %v655 = vadd.f32 0.0, %v654
        %656 = vdwg.mxu0
        %657 = vmatpush.bf16.msra.mxu0 0
        %658 = vmatpush.bf16.msra.mxu0 0
        %659 = vmatpush.bf16.msra.mxu0 0
        %660 = vmatpush.bf16.msra.mxu0 0
        %661 = vmatpush.bf16.msra.mxu0 0
        %662 = vmatpush.bf16.msra.mxu0 0
        %663 = vmatpush.bf16.msra.mxu0 %v586
        %664 = vmatpush.bf16.msra.mxu0 %v539
        %665 = vmatmul.bf16.gmra.mxu0 %v546
        %v666 = vpop.f32.mrf.mxu0
        %v667 = vadd.f32 0.0, %v666
        %v668 = vpop.f32.mrf.mxu0
        %v669 = vadd.f32 0.0, %v668
        %670 = vmatmul.bf16.gmra.mxu0 %v549
        %v671 = vpop.f32.mrf.mxu0
        %v672 = vadd.f32 0.0, %v671
        %v673 = vpop.f32.mrf.mxu0
        %v674 = vadd.f32 0.0, %v673
        %675 = vmatmul.bf16.gmra.mxu0 %v552
        %v676 = vpop.f32.mrf.mxu0
        %v677 = vadd.f32 0.0, %v676
        %v678 = vpop.f32.mrf.mxu0
        %v679 = vadd.f32 0.0, %v678
        %680 = vmatmul.bf16.gmra.mxu0 %v555
        %v681 = vpop.f32.mrf.mxu0
        %v682 = vadd.f32 0.0, %v681
        %v683 = vpop.f32.mrf.mxu0
        %v684 = vadd.f32 0.0, %v683
        %685 = vmatmul.bf16.gmra.mxu0 %v558
        %v686 = vpop.f32.mrf.mxu0
        %v687 = vadd.f32 0.0, %v686
        %v688 = vpop.f32.mrf.mxu0
        %v689 = vadd.f32 0.0, %v688
        %690 = vmatmul.bf16.gmra.mxu0 %v561
        %v691 = vpop.f32.mrf.mxu0
        %v692 = vadd.f32 0.0, %v691
        %v693 = vpop.f32.mrf.mxu0
        %v694 = vadd.f32 0.0, %v693
        %695 = vmatmul.bf16.gmra.mxu0 %v564
        %v696 = vpop.f32.mrf.mxu0
        %v697 = vadd.f32 0.0, %v696
        %v698 = vpop.f32.mrf.mxu0
        %v699 = vadd.f32 0.0, %v698
        %700 = vmatmul.bf16.gmra.mxu0 %v567
        %v701 = vpop.f32.mrf.mxu0
        %v702 = vadd.f32 0.0, %v701
        %v703 = vpop.f32.mrf.mxu0
        %v704 = vadd.f32 0.0, %v703
        %705 = vmatmul.bf16.gmra.mxu0 %v570
        %v706 = vpop.f32.mrf.mxu0
        %v707 = vadd.f32 0.0, %v706
        %v708 = vpop.f32.mrf.mxu0
        %v709 = vadd.f32 0.0, %v708
        %710 = vmatmul.bf16.gmra.mxu0 %v573
        %v711 = vpop.f32.mrf.mxu0
        %v712 = vadd.f32 0.0, %v711
        %v713 = vpop.f32.mrf.mxu0
        %v714 = vadd.f32 0.0, %v713
        %715 = vmatmul.bf16.gmra.mxu0 %v576
        %v716 = vpop.f32.mrf.mxu0
        %v717 = vadd.f32 0.0, %v716
        %v718 = vpop.f32.mrf.mxu0
        %v719 = vadd.f32 0.0, %v718
        %720 = vmatmul.bf16.gmra.mxu0 %v579
        %v721 = vpop.f32.mrf.mxu0
        %v722 = vadd.f32 0.0, %v721
        %v723 = vpop.f32.mrf.mxu0
        %v724 = vadd.f32 0.0, %v723
        %725 = vdwg.mxu0
        %v730 = vunpack.c.l.b16 %v369
        %v731 = vunpack.c.h.b16 %v369
        %v732 = vunpack.c.l.b16 %v370
        %v733 = vunpack.c.h.b16 %v370
        %v734 = vunpack.c.l.b16 %v371
        %v735 = vunpack.c.h.b16 %v371
        %v736 = vunpack.c.l.b16 %v372
        %v737 = vunpack.c.h.b16 %v372
        %v738 = vpack.c.b16 %v732, %v730
        %v739 = vpack.c.b16 %v733, %v731
        %v740 = vpack.c.b16 %v736, %v734
        %v741 = vpack.c.b16 %v737, %v735
        %v745 = vsel %vm544, %v389, 0
        %v748 = vsel %vm544, %v390, 0
        %v751 = vsel %vm544, %v391, 0
        %v754 = vsel %vm544, %v392, 0
        %v757 = vsel %vm544, %v393, 0
        %v760 = vsel %vm544, %v394, 0
        %v763 = vsel %vm544, %v395, 0
        %v766 = vsel %vm544, %v396, 0
        %v769 = vsel %vm544, %v397, 0
        %v772 = vsel %vm544, %v398, 0
        %v775 = vsel %vm544, %v399, 0
        %v778 = vsel %vm544, %v400, 0
        %v781 = vsel %vm581, %v740, 0
        %v784 = vsel %vm581, %v741, 0
        %786 = vmatpush.bf16.msra.mxu0 0
        %787 = vmatpush.bf16.msra.mxu0 0
        %788 = vmatpush.bf16.msra.mxu0 0
        %789 = vmatpush.bf16.msra.mxu0 0
        %790 = vmatpush.bf16.msra.mxu0 0
        %791 = vmatpush.bf16.msra.mxu0 0
        %792 = vmatpush.bf16.msra.mxu0 %v781
        %793 = vmatpush.bf16.msra.mxu0 %v738
        %794 = vmatmul.bf16.gmra.mxu0 %v745
        %v795 = vpop.f32.mrf.mxu0
        %v796 = vadd.f32 %v598, %v795
        %v797 = vpop.f32.mrf.mxu0
        %v798 = vadd.f32 %v600, %v797
        %799 = vmatmul.bf16.gmra.mxu0 %v748
        %v800 = vpop.f32.mrf.mxu0
        %v801 = vadd.f32 %v603, %v800
        %v802 = vpop.f32.mrf.mxu0
        %v803 = vadd.f32 %v605, %v802
        %804 = vmatmul.bf16.gmra.mxu0 %v751
        %v805 = vpop.f32.mrf.mxu0
        %v806 = vadd.f32 %v608, %v805
        %v807 = vpop.f32.mrf.mxu0
        %v808 = vadd.f32 %v610, %v807
        %809 = vmatmul.bf16.gmra.mxu0 %v754
        %v810 = vpop.f32.mrf.mxu0
        %v811 = vadd.f32 %v613, %v810
        %v812 = vpop.f32.mrf.mxu0
        %v813 = vadd.f32 %v615, %v812
        %814 = vmatmul.bf16.gmra.mxu0 %v757
        %v815 = vpop.f32.mrf.mxu0
        %v816 = vadd.f32 %v618, %v815
        %v817 = vpop.f32.mrf.mxu0
        %v818 = vadd.f32 %v620, %v817
        %819 = vmatmul.bf16.gmra.mxu0 %v760
        %v820 = vpop.f32.mrf.mxu0
        %v821 = vadd.f32 %v623, %v820
        %v822 = vpop.f32.mrf.mxu0
        %v823 = vadd.f32 %v625, %v822
        %824 = vmatmul.bf16.gmra.mxu0 %v763
        %v825 = vpop.f32.mrf.mxu0
        %v826 = vadd.f32 %v628, %v825
        %v827 = vpop.f32.mrf.mxu0
        %v828 = vadd.f32 %v630, %v827
        %829 = vmatmul.bf16.gmra.mxu0 %v766
        %v830 = vpop.f32.mrf.mxu0
        %v831 = vadd.f32 %v633, %v830
        %v832 = vpop.f32.mrf.mxu0
        %v833 = vadd.f32 %v635, %v832
        %834 = vmatmul.bf16.gmra.mxu0 %v769
        %v835 = vpop.f32.mrf.mxu0
        %v836 = vadd.f32 %v638, %v835
        %v837 = vpop.f32.mrf.mxu0
        %v838 = vadd.f32 %v640, %v837
        %839 = vmatmul.bf16.gmra.mxu0 %v772
        %v840 = vpop.f32.mrf.mxu0
        %v841 = vadd.f32 %v643, %v840
        %v842 = vpop.f32.mrf.mxu0
        %v843 = vadd.f32 %v645, %v842
        %844 = vmatmul.bf16.gmra.mxu0 %v775
        %v845 = vpop.f32.mrf.mxu0
        %v846 = vadd.f32 %v648, %v845
        %v847 = vpop.f32.mrf.mxu0
        %v848 = vadd.f32 %v650, %v847
        %849 = vmatmul.bf16.gmra.mxu0 %v778
        %v850 = vpop.f32.mrf.mxu0
        %v851 = vadd.f32 %v653, %v850
        %v852 = vpop.f32.mrf.mxu0
        %v853 = vadd.f32 %v655, %v852
        %854 = vdwg.mxu0
        %855 = vmatpush.bf16.msra.mxu0 0
        %856 = vmatpush.bf16.msra.mxu0 0
        %857 = vmatpush.bf16.msra.mxu0 0
        %858 = vmatpush.bf16.msra.mxu0 0
        %859 = vmatpush.bf16.msra.mxu0 0
        %860 = vmatpush.bf16.msra.mxu0 0
        %861 = vmatpush.bf16.msra.mxu0 %v784
        %862 = vmatpush.bf16.msra.mxu0 %v739
        %863 = vmatmul.bf16.gmra.mxu0 %v745
        %v864 = vpop.f32.mrf.mxu0
        %v865 = vadd.f32 %v667, %v864
        %v866 = vpop.f32.mrf.mxu0
        %v867 = vadd.f32 %v669, %v866
        %868 = vmatmul.bf16.gmra.mxu0 %v748
        %v869 = vpop.f32.mrf.mxu0
        %v870 = vadd.f32 %v672, %v869
        %v871 = vpop.f32.mrf.mxu0
        %v872 = vadd.f32 %v674, %v871
        %873 = vmatmul.bf16.gmra.mxu0 %v751
        %v874 = vpop.f32.mrf.mxu0
        %v875 = vadd.f32 %v677, %v874
        %v876 = vpop.f32.mrf.mxu0
        %v877 = vadd.f32 %v679, %v876
        %878 = vmatmul.bf16.gmra.mxu0 %v754
        %v879 = vpop.f32.mrf.mxu0
        %v880 = vadd.f32 %v682, %v879
        %v881 = vpop.f32.mrf.mxu0
        %v882 = vadd.f32 %v684, %v881
        %883 = vmatmul.bf16.gmra.mxu0 %v757
        %v884 = vpop.f32.mrf.mxu0
        %v885 = vadd.f32 %v687, %v884
        %v886 = vpop.f32.mrf.mxu0
        %v887 = vadd.f32 %v689, %v886
        %888 = vmatmul.bf16.gmra.mxu0 %v760
        %v889 = vpop.f32.mrf.mxu0
        %v890 = vadd.f32 %v692, %v889
        %v891 = vpop.f32.mrf.mxu0
        %v892 = vadd.f32 %v694, %v891
        %893 = vmatmul.bf16.gmra.mxu0 %v763
        %v894 = vpop.f32.mrf.mxu0
        %v895 = vadd.f32 %v697, %v894
        %v896 = vpop.f32.mrf.mxu0
        %v897 = vadd.f32 %v699, %v896
        %898 = vmatmul.bf16.gmra.mxu0 %v766
        %v899 = vpop.f32.mrf.mxu0
        %v900 = vadd.f32 %v702, %v899
        %v901 = vpop.f32.mrf.mxu0
        %v902 = vadd.f32 %v704, %v901
        %903 = vmatmul.bf16.gmra.mxu0 %v769
        %v904 = vpop.f32.mrf.mxu0
        %v905 = vadd.f32 %v707, %v904
        %v906 = vpop.f32.mrf.mxu0
        %v907 = vadd.f32 %v709, %v906
        %908 = vmatmul.bf16.gmra.mxu0 %v772
        %v909 = vpop.f32.mrf.mxu0
        %v910 = vadd.f32 %v712, %v909
        %v911 = vpop.f32.mrf.mxu0
        %v912 = vadd.f32 %v714, %v911
        %913 = vmatmul.bf16.gmra.mxu0 %v775
        %v914 = vpop.f32.mrf.mxu0
        %v915 = vadd.f32 %v717, %v914
        %v916 = vpop.f32.mrf.mxu0
        %v917 = vadd.f32 %v719, %v916
        %918 = vmatmul.bf16.gmra.mxu0 %v778
        %v919 = vpop.f32.mrf.mxu0
        %v920 = vadd.f32 %v722, %v919
        %v921 = vpop.f32.mrf.mxu0
        %v922 = vadd.f32 %v724, %v921
        %923 = vdwg.mxu0
        %v924 = vrot.slane %v337, 2
        %v925 = vrot.slane %v338, 2
        %v926 = vsel %vm581, %v924, %v925
        %v927 = vrot.slane %v339, 2
        %v928 = vsel %vm581, %v925, %v927
        %v929 = vrot.slane %v340, 2
        %v930 = vsel %vm581, %v927, %v929
        %v931 = vrot.slane %v341, 2
        %v932 = vrot.slane %v342, 2
        %v933 = vsel %vm581, %v931, %v932
        %v934 = vrot.slane %v343, 2
        %v935 = vsel %vm581, %v932, %v934
        %v936 = vrot.slane %v344, 2
        %v937 = vsel %vm581, %v934, %v936
        %v938 = vrot.slane %v345, 2
        %v939 = vrot.slane %v346, 2
        %v940 = vsel %vm581, %v938, %v939
        %v941 = vrot.slane %v347, 2
        %v942 = vsel %vm581, %v939, %v941
        %v943 = vrot.slane %v348, 2
        %v944 = vsel %vm581, %v941, %v943
        %v945 = vrot.slane %v349, 2
        %v946 = vrot.slane %v350, 2
        %v947 = vsel %vm581, %v945, %v946
        %v948 = vrot.slane %v351, 2
        %v949 = vsel %vm581, %v946, %v948
        %v950 = vrot.slane %v352, 2
        %v951 = vsel %vm581, %v948, %v950
        %v952 = vrot.slane %v353, 2
        %v953 = vrot.slane %v354, 2
        %v954 = vsel %vm581, %v952, %v953
        %v955 = vrot.slane %v355, 2
        %v956 = vsel %vm581, %v953, %v955
        %v957 = vrot.slane %v356, 2
        %v958 = vsel %vm581, %v955, %v957
        %v959 = vrot.slane %v357, 2
        %v960 = vrot.slane %v358, 2
        %v961 = vsel %vm581, %v959, %v960
        %v962 = vrot.slane %v359, 2
        %v963 = vsel %vm581, %v960, %v962
        %v964 = vrot.slane %v360, 2
        %v965 = vsel %vm581, %v962, %v964
        %v966 = vrot.slane %v361, 2
        %v967 = vrot.slane %v362, 2
        %v968 = vsel %vm581, %v966, %v967
        %v969 = vrot.slane %v363, 2
        %v970 = vsel %vm581, %v967, %v969
        %v971 = vrot.slane %v364, 2
        %v972 = vsel %vm581, %v969, %v971
        %v973 = vrot.slane %v365, 2
        %v974 = vrot.slane %v366, 2
        %v975 = vsel %vm581, %v973, %v974
        %v976 = vrot.slane %v367, 2
        %v977 = vsel %vm581, %v974, %v976
        %v978 = vrot.slane %v368, 2
        %v979 = vsel %vm581, %v976, %v978
        %v1004 = vpack.c.bf16 %v928, %v926
        %v1005 = vpack.c.bf16 %v933, %v930
        %v1006 = vpack.c.bf16 %v937, %v935
        %v1007 = vpack.c.bf16 %v942, %v940
        %v1008 = vpack.c.bf16 %v947, %v944
        %v1009 = vpack.c.bf16 %v951, %v949
        %v1010 = vpack.c.bf16 %v956, %v954
        %v1011 = vpack.c.bf16 %v961, %v958
        %v1012 = vpack.c.bf16 %v965, %v963
        %v1013 = vpack.c.bf16 %v970, %v968
        %v1014 = vpack.c.bf16 %v975, %v972
        %v1015 = vpack.c.bf16 %v979, %v977
        %v1020 = vunpack.c.l.b16 %v377
        %v1021 = vunpack.c.h.b16 %v377
        %v1022 = vunpack.c.l.b16 %v378
        %v1023 = vunpack.c.h.b16 %v378
        %v1024 = vunpack.c.l.b16 %v379
        %v1025 = vunpack.c.h.b16 %v379
        %v1026 = vunpack.c.l.b16 %v380
        %v1027 = vunpack.c.h.b16 %v380
        %v1028 = vpack.c.b16 %v1022, %v1020
        %v1029 = vpack.c.b16 %v1023, %v1021
        %v1030 = vpack.c.b16 %v1026, %v1024
        %v1031 = vpack.c.b16 %v1027, %v1025
        %v1035 = vsel %vm544, %v1004, 0
        %v1038 = vsel %vm544, %v1005, 0
        %v1041 = vsel %vm544, %v1006, 0
        %v1044 = vsel %vm544, %v1007, 0
        %v1047 = vsel %vm544, %v1008, 0
        %v1050 = vsel %vm544, %v1009, 0
        %v1053 = vsel %vm544, %v1010, 0
        %v1056 = vsel %vm544, %v1011, 0
        %v1059 = vsel %vm544, %v1012, 0
        %v1062 = vsel %vm544, %v1013, 0
        %v1065 = vsel %vm544, %v1014, 0
        %v1068 = vsel %vm544, %v1015, 0
        %v1071 = vsel %vm581, %v1030, 0
        %v1074 = vsel %vm581, %v1031, 0
        %1076 = vmatpush.bf16.msra.mxu0 0
        %1077 = vmatpush.bf16.msra.mxu0 0
        %1078 = vmatpush.bf16.msra.mxu0 0
        %1079 = vmatpush.bf16.msra.mxu0 0
        %1080 = vmatpush.bf16.msra.mxu0 0
        %1081 = vmatpush.bf16.msra.mxu0 0
        %1082 = vmatpush.bf16.msra.mxu0 %v1071
        %1083 = vmatpush.bf16.msra.mxu0 %v1028
        %1084 = vmatmul.bf16.gmra.mxu0 %v1035
        %v1085 = vpop.f32.mrf.mxu0
        %v1086 = vadd.f32 0.0, %v1085
        %v1087 = vpop.f32.mrf.mxu0
        %v1088 = vadd.f32 0.0, %v1087
        %1089 = vmatmul.bf16.gmra.mxu0 %v1038
        %v1090 = vpop.f32.mrf.mxu0
        %v1091 = vadd.f32 0.0, %v1090
        %v1092 = vpop.f32.mrf.mxu0
        %v1093 = vadd.f32 0.0, %v1092
        %1094 = vmatmul.bf16.gmra.mxu0 %v1041
        %v1095 = vpop.f32.mrf.mxu0
        %v1096 = vadd.f32 0.0, %v1095
        %v1097 = vpop.f32.mrf.mxu0
        %v1098 = vadd.f32 0.0, %v1097
        %1099 = vmatmul.bf16.gmra.mxu0 %v1044
        %v1100 = vpop.f32.mrf.mxu0
        %v1101 = vadd.f32 0.0, %v1100
        %v1102 = vpop.f32.mrf.mxu0
        %v1103 = vadd.f32 0.0, %v1102
        %1104 = vmatmul.bf16.gmra.mxu0 %v1047
        %v1105 = vpop.f32.mrf.mxu0
        %v1106 = vadd.f32 0.0, %v1105
        %v1107 = vpop.f32.mrf.mxu0
        %v1108 = vadd.f32 0.0, %v1107
        %1109 = vmatmul.bf16.gmra.mxu0 %v1050
        %v1110 = vpop.f32.mrf.mxu0
        %v1111 = vadd.f32 0.0, %v1110
        %v1112 = vpop.f32.mrf.mxu0
        %v1113 = vadd.f32 0.0, %v1112
        %1114 = vmatmul.bf16.gmra.mxu0 %v1053
        %v1115 = vpop.f32.mrf.mxu0
        %v1116 = vadd.f32 0.0, %v1115
        %v1117 = vpop.f32.mrf.mxu0
        %v1118 = vadd.f32 0.0, %v1117
        %1119 = vmatmul.bf16.gmra.mxu0 %v1056
        %v1120 = vpop.f32.mrf.mxu0
        %v1121 = vadd.f32 0.0, %v1120
        %v1122 = vpop.f32.mrf.mxu0
        %v1123 = vadd.f32 0.0, %v1122
        %1124 = vmatmul.bf16.gmra.mxu0 %v1059
        %v1125 = vpop.f32.mrf.mxu0
        %v1126 = vadd.f32 0.0, %v1125
        %v1127 = vpop.f32.mrf.mxu0
        %v1128 = vadd.f32 0.0, %v1127
        %1129 = vmatmul.bf16.gmra.mxu0 %v1062
        %v1130 = vpop.f32.mrf.mxu0
        %v1131 = vadd.f32 0.0, %v1130
        %v1132 = vpop.f32.mrf.mxu0
        %v1133 = vadd.f32 0.0, %v1132
        %1134 = vmatmul.bf16.gmra.mxu0 %v1065
        %v1135 = vpop.f32.mrf.mxu0
        %v1136 = vadd.f32 0.0, %v1135
        %v1137 = vpop.f32.mrf.mxu0
        %v1138 = vadd.f32 0.0, %v1137
        %1139 = vmatmul.bf16.gmra.mxu0 %v1068
        %v1140 = vpop.f32.mrf.mxu0
        %v1141 = vadd.f32 0.0, %v1140
        %v1142 = vpop.f32.mrf.mxu0
        %v1143 = vadd.f32 0.0, %v1142
        %1144 = vdwg.mxu0
        %1145 = vmatpush.bf16.msra.mxu0 0
        %1146 = vmatpush.bf16.msra.mxu0 0
        %1147 = vmatpush.bf16.msra.mxu0 0
        %1148 = vmatpush.bf16.msra.mxu0 0
        %1149 = vmatpush.bf16.msra.mxu0 0
        %1150 = vmatpush.bf16.msra.mxu0 0
        %1151 = vmatpush.bf16.msra.mxu0 %v1074
        %1152 = vmatpush.bf16.msra.mxu0 %v1029
        %1153 = vmatmul.bf16.gmra.mxu0 %v1035
        %v1154 = vpop.f32.mrf.mxu0
        %v1155 = vadd.f32 0.0, %v1154
        %v1156 = vpop.f32.mrf.mxu0
        %v1157 = vadd.f32 0.0, %v1156
        %1158 = vmatmul.bf16.gmra.mxu0 %v1038
        %v1159 = vpop.f32.mrf.mxu0
        %v1160 = vadd.f32 0.0, %v1159
        %v1161 = vpop.f32.mrf.mxu0
        %v1162 = vadd.f32 0.0, %v1161
        %1163 = vmatmul.bf16.gmra.mxu0 %v1041
        %v1164 = vpop.f32.mrf.mxu0
        %v1165 = vadd.f32 0.0, %v1164
        %v1166 = vpop.f32.mrf.mxu0
        %v1167 = vadd.f32 0.0, %v1166
        %1168 = vmatmul.bf16.gmra.mxu0 %v1044
        %v1169 = vpop.f32.mrf.mxu0
        %v1170 = vadd.f32 0.0, %v1169
        %v1171 = vpop.f32.mrf.mxu0
        %v1172 = vadd.f32 0.0, %v1171
        %1173 = vmatmul.bf16.gmra.mxu0 %v1047
        %v1174 = vpop.f32.mrf.mxu0
        %v1175 = vadd.f32 0.0, %v1174
        %v1176 = vpop.f32.mrf.mxu0
        %v1177 = vadd.f32 0.0, %v1176
        %1178 = vmatmul.bf16.gmra.mxu0 %v1050
        %v1179 = vpop.f32.mrf.mxu0
        %v1180 = vadd.f32 0.0, %v1179
        %v1181 = vpop.f32.mrf.mxu0
        %v1182 = vadd.f32 0.0, %v1181
        %1183 = vmatmul.bf16.gmra.mxu0 %v1053
        %v1184 = vpop.f32.mrf.mxu0
        %v1185 = vadd.f32 0.0, %v1184
        %v1186 = vpop.f32.mrf.mxu0
        %v1187 = vadd.f32 0.0, %v1186
        %1188 = vmatmul.bf16.gmra.mxu0 %v1056
        %v1189 = vpop.f32.mrf.mxu0
        %v1190 = vadd.f32 0.0, %v1189
        %v1191 = vpop.f32.mrf.mxu0
        %v1192 = vadd.f32 0.0, %v1191
        %1193 = vmatmul.bf16.gmra.mxu0 %v1059
        %v1194 = vpop.f32.mrf.mxu0
        %v1195 = vadd.f32 0.0, %v1194
        %v1196 = vpop.f32.mrf.mxu0
        %v1197 = vadd.f32 0.0, %v1196
        %1198 = vmatmul.bf16.gmra.mxu0 %v1062
        %v1199 = vpop.f32.mrf.mxu0
        %v1200 = vadd.f32 0.0, %v1199
        %v1201 = vpop.f32.mrf.mxu0
        %v1202 = vadd.f32 0.0, %v1201
        %1203 = vmatmul.bf16.gmra.mxu0 %v1065
        %v1204 = vpop.f32.mrf.mxu0
        %v1205 = vadd.f32 0.0, %v1204
        %v1206 = vpop.f32.mrf.mxu0
        %v1207 = vadd.f32 0.0, %v1206
        %1208 = vmatmul.bf16.gmra.mxu0 %v1068
        %v1209 = vpop.f32.mrf.mxu0
        %v1210 = vadd.f32 0.0, %v1209
        %v1211 = vpop.f32.mrf.mxu0
        %v1212 = vadd.f32 0.0, %v1211
        %1213 = vdwg.mxu0
        %v1214 = vadd.f32 %v796, %v1086
        %v1215 = vadd.f32 %v865, %v1155
        %v1216 = vadd.f32 %v798, %v1088
        %v1217 = vadd.f32 %v867, %v1157
        %v1218 = vadd.f32 %v801, %v1091
        %v1219 = vadd.f32 %v870, %v1160
        %v1220 = vadd.f32 %v803, %v1093
        %v1221 = vadd.f32 %v872, %v1162
        %v1222 = vadd.f32 %v806, %v1096
        %v1223 = vadd.f32 %v875, %v1165
        %v1224 = vadd.f32 %v808, %v1098
        %v1225 = vadd.f32 %v877, %v1167
        %v1226 = vadd.f32 %v811, %v1101
        %v1227 = vadd.f32 %v880, %v1170
        %v1228 = vadd.f32 %v813, %v1103
        %v1229 = vadd.f32 %v882, %v1172
        %v1230 = vadd.f32 %v816, %v1106
        %v1231 = vadd.f32 %v885, %v1175
        %v1232 = vadd.f32 %v818, %v1108
        %v1233 = vadd.f32 %v887, %v1177
        %v1234 = vadd.f32 %v821, %v1111
        %v1235 = vadd.f32 %v890, %v1180
        %v1236 = vadd.f32 %v823, %v1113
        %v1237 = vadd.f32 %v892, %v1182
        %v1238 = vadd.f32 %v826, %v1116
        %v1239 = vadd.f32 %v895, %v1185
        %v1240 = vadd.f32 %v828, %v1118
        %v1241 = vadd.f32 %v897, %v1187
        %v1242 = vadd.f32 %v831, %v1121
        %v1243 = vadd.f32 %v900, %v1190
        %v1244 = vadd.f32 %v833, %v1123
        %v1245 = vadd.f32 %v902, %v1192
        %v1246 = vadd.f32 %v836, %v1126
        %v1247 = vadd.f32 %v905, %v1195
        %v1248 = vadd.f32 %v838, %v1128
        %v1249 = vadd.f32 %v907, %v1197
        %v1250 = vadd.f32 %v841, %v1131
        %v1251 = vadd.f32 %v910, %v1200
        %v1252 = vadd.f32 %v843, %v1133
        %v1253 = vadd.f32 %v912, %v1202
        %v1254 = vadd.f32 %v846, %v1136
        %v1255 = vadd.f32 %v915, %v1205
        %v1256 = vadd.f32 %v848, %v1138
        %v1257 = vadd.f32 %v917, %v1207
        %v1258 = vadd.f32 %v851, %v1141
        %v1259 = vadd.f32 %v920, %v1210
        %v1260 = vadd.f32 %v853, %v1143
        %v1261 = vadd.f32 %v922, %v1212
        %vm1262 = vcmask 1044480
        %v1263 = vrot.slane %v337, 3
        %v1264 = vrot.slane %v338, 3
        %v1265 = vsel %vm1262, %v1263, %v1264
        %v1266 = vrot.slane %v339, 3
        %v1267 = vsel %vm1262, %v1264, %v1266
        %v1268 = vrot.slane %v340, 3
        %v1269 = vsel %vm1262, %v1266, %v1268
        %v1270 = vrot.slane %v341, 3
        %v1271 = vrot.slane %v342, 3
        %v1272 = vsel %vm1262, %v1270, %v1271
        %v1273 = vrot.slane %v343, 3
        %v1274 = vsel %vm1262, %v1271, %v1273
        %v1275 = vrot.slane %v344, 3
        %v1276 = vsel %vm1262, %v1273, %v1275
        %v1277 = vrot.slane %v345, 3
        %v1278 = vrot.slane %v346, 3
        %v1279 = vsel %vm1262, %v1277, %v1278
        %v1280 = vrot.slane %v347, 3
        %v1281 = vsel %vm1262, %v1278, %v1280
        %v1282 = vrot.slane %v348, 3
        %v1283 = vsel %vm1262, %v1280, %v1282
        %v1284 = vrot.slane %v349, 3
        %v1285 = vrot.slane %v350, 3
        %v1286 = vsel %vm1262, %v1284, %v1285
        %v1287 = vrot.slane %v351, 3
        %v1288 = vsel %vm1262, %v1285, %v1287
        %v1289 = vrot.slane %v352, 3
        %v1290 = vsel %vm1262, %v1287, %v1289
        %v1291 = vrot.slane %v353, 3
        %v1292 = vrot.slane %v354, 3
        %v1293 = vsel %vm1262, %v1291, %v1292
        %v1294 = vrot.slane %v355, 3
        %v1295 = vsel %vm1262, %v1292, %v1294
        %v1296 = vrot.slane %v356, 3
        %v1297 = vsel %vm1262, %v1294, %v1296
        %v1298 = vrot.slane %v357, 3
        %v1299 = vrot.slane %v358, 3
        %v1300 = vsel %vm1262, %v1298, %v1299
        %v1301 = vrot.slane %v359, 3
        %v1302 = vsel %vm1262, %v1299, %v1301
        %v1303 = vrot.slane %v360, 3
        %v1304 = vsel %vm1262, %v1301, %v1303
        %v1305 = vrot.slane %v361, 3
        %v1306 = vrot.slane %v362, 3
        %v1307 = vsel %vm1262, %v1305, %v1306
        %v1308 = vrot.slane %v363, 3
        %v1309 = vsel %vm1262, %v1306, %v1308
        %v1310 = vrot.slane %v364, 3
        %v1311 = vsel %vm1262, %v1308, %v1310
        %v1312 = vrot.slane %v365, 3
        %v1313 = vrot.slane %v366, 3
        %v1314 = vsel %vm1262, %v1312, %v1313
        %v1315 = vrot.slane %v367, 3
        %v1316 = vsel %vm1262, %v1313, %v1315
        %v1317 = vrot.slane %v368, 3
        %v1318 = vsel %vm1262, %v1315, %v1317
        %v1343 = vpack.c.bf16 %v1267, %v1265
        %v1344 = vpack.c.bf16 %v1272, %v1269
        %v1345 = vpack.c.bf16 %v1276, %v1274
        %v1346 = vpack.c.bf16 %v1281, %v1279
        %v1347 = vpack.c.bf16 %v1286, %v1283
        %v1348 = vpack.c.bf16 %v1290, %v1288
        %v1349 = vpack.c.bf16 %v1295, %v1293
        %v1350 = vpack.c.bf16 %v1300, %v1297
        %v1351 = vpack.c.bf16 %v1304, %v1302
        %v1352 = vpack.c.bf16 %v1309, %v1307
        %v1353 = vpack.c.bf16 %v1314, %v1311
        %v1354 = vpack.c.bf16 %v1318, %v1316
        %v1359 = vunpack.c.l.b16 %v381
        %v1360 = vunpack.c.h.b16 %v381
        %v1361 = vunpack.c.l.b16 %v382
        %v1362 = vunpack.c.h.b16 %v382
        %v1363 = vunpack.c.l.b16 %v383
        %v1364 = vunpack.c.h.b16 %v383
        %v1365 = vunpack.c.l.b16 %v384
        %v1366 = vunpack.c.h.b16 %v384
        %v1367 = vpack.c.b16 %v1361, %v1359
        %v1368 = vpack.c.b16 %v1362, %v1360
        %v1369 = vpack.c.b16 %v1365, %v1363
        %v1370 = vpack.c.b16 %v1366, %v1364
        %v1374 = vsel %vm544, %v1343, 0
        %v1377 = vsel %vm544, %v1344, 0
        %v1380 = vsel %vm544, %v1345, 0
        %v1383 = vsel %vm544, %v1346, 0
        %v1386 = vsel %vm544, %v1347, 0
        %v1389 = vsel %vm544, %v1348, 0
        %v1392 = vsel %vm544, %v1349, 0
        %v1395 = vsel %vm544, %v1350, 0
        %v1398 = vsel %vm544, %v1351, 0
        %v1401 = vsel %vm544, %v1352, 0
        %v1404 = vsel %vm544, %v1353, 0
        %v1407 = vsel %vm544, %v1354, 0
        %v1410 = vsel %vm581, %v1369, 0
        %v1413 = vsel %vm581, %v1370, 0
        %1415 = vmatpush.bf16.msra.mxu0 0
        %1416 = vmatpush.bf16.msra.mxu0 0
        %1417 = vmatpush.bf16.msra.mxu0 0
        %1418 = vmatpush.bf16.msra.mxu0 0
        %1419 = vmatpush.bf16.msra.mxu0 0
        %1420 = vmatpush.bf16.msra.mxu0 0
        %1421 = vmatpush.bf16.msra.mxu0 %v1410
        %1422 = vmatpush.bf16.msra.mxu0 %v1367
        %1423 = vmatmul.bf16.gmra.mxu0 %v1374
        %v1424 = vpop.f32.mrf.mxu0
        %v1425 = vadd.f32 0.0, %v1424
        %v1426 = vpop.f32.mrf.mxu0
        %v1427 = vadd.f32 0.0, %v1426
        %1428 = vmatmul.bf16.gmra.mxu0 %v1377
        %v1429 = vpop.f32.mrf.mxu0
        %v1430 = vadd.f32 0.0, %v1429
        %v1431 = vpop.f32.mrf.mxu0
        %v1432 = vadd.f32 0.0, %v1431
        %1433 = vmatmul.bf16.gmra.mxu0 %v1380
        %v1434 = vpop.f32.mrf.mxu0
        %v1435 = vadd.f32 0.0, %v1434
        %v1436 = vpop.f32.mrf.mxu0
        %v1437 = vadd.f32 0.0, %v1436
        %1438 = vmatmul.bf16.gmra.mxu0 %v1383
        %v1439 = vpop.f32.mrf.mxu0
        %v1440 = vadd.f32 0.0, %v1439
        %v1441 = vpop.f32.mrf.mxu0
        %v1442 = vadd.f32 0.0, %v1441
        %1443 = vmatmul.bf16.gmra.mxu0 %v1386
        %v1444 = vpop.f32.mrf.mxu0
        %v1445 = vadd.f32 0.0, %v1444
        %v1446 = vpop.f32.mrf.mxu0
        %v1447 = vadd.f32 0.0, %v1446
        %1448 = vmatmul.bf16.gmra.mxu0 %v1389
        %v1449 = vpop.f32.mrf.mxu0
        %v1450 = vadd.f32 0.0, %v1449
        %v1451 = vpop.f32.mrf.mxu0
        %v1452 = vadd.f32 0.0, %v1451
        %1453 = vmatmul.bf16.gmra.mxu0 %v1392
        %v1454 = vpop.f32.mrf.mxu0
        %v1455 = vadd.f32 0.0, %v1454
        %v1456 = vpop.f32.mrf.mxu0
        %v1457 = vadd.f32 0.0, %v1456
        %1458 = vmatmul.bf16.gmra.mxu0 %v1395
        %v1459 = vpop.f32.mrf.mxu0
        %v1460 = vadd.f32 0.0, %v1459
        %v1461 = vpop.f32.mrf.mxu0
        %v1462 = vadd.f32 0.0, %v1461
        %1463 = vmatmul.bf16.gmra.mxu0 %v1398
        %v1464 = vpop.f32.mrf.mxu0
        %v1465 = vadd.f32 0.0, %v1464
        %v1466 = vpop.f32.mrf.mxu0
        %v1467 = vadd.f32 0.0, %v1466
        %1468 = vmatmul.bf16.gmra.mxu0 %v1401
        %v1469 = vpop.f32.mrf.mxu0
        %v1470 = vadd.f32 0.0, %v1469
        %v1471 = vpop.f32.mrf.mxu0
        %v1472 = vadd.f32 0.0, %v1471
        %1473 = vmatmul.bf16.gmra.mxu0 %v1404
        %v1474 = vpop.f32.mrf.mxu0
        %v1475 = vadd.f32 0.0, %v1474
        %v1476 = vpop.f32.mrf.mxu0
        %v1477 = vadd.f32 0.0, %v1476
        %1478 = vmatmul.bf16.gmra.mxu0 %v1407
        %v1479 = vpop.f32.mrf.mxu0
        %v1480 = vadd.f32 0.0, %v1479
        %v1481 = vpop.f32.mrf.mxu0
        %v1482 = vadd.f32 0.0, %v1481
        %1483 = vdwg.mxu0
        %1484 = vmatpush.bf16.msra.mxu0 0
        %1485 = vmatpush.bf16.msra.mxu0 0
        %1486 = vmatpush.bf16.msra.mxu0 0
        %1487 = vmatpush.bf16.msra.mxu0 0
        %1488 = vmatpush.bf16.msra.mxu0 0
        %1489 = vmatpush.bf16.msra.mxu0 0
        %1490 = vmatpush.bf16.msra.mxu0 %v1413
        %1491 = vmatpush.bf16.msra.mxu0 %v1368
        %1492 = vmatmul.bf16.gmra.mxu0 %v1374
        %v1493 = vpop.f32.mrf.mxu0
        %v1494 = vadd.f32 0.0, %v1493
        %v1495 = vpop.f32.mrf.mxu0
        %v1496 = vadd.f32 0.0, %v1495
        %1497 = vmatmul.bf16.gmra.mxu0 %v1377
        %v1498 = vpop.f32.mrf.mxu0
        %v1499 = vadd.f32 0.0, %v1498
        %v1500 = vpop.f32.mrf.mxu0
        %v1501 = vadd.f32 0.0, %v1500
        %1502 = vmatmul.bf16.gmra.mxu0 %v1380
        %v1503 = vpop.f32.mrf.mxu0
        %v1504 = vadd.f32 0.0, %v1503
        %v1505 = vpop.f32.mrf.mxu0
        %v1506 = vadd.f32 0.0, %v1505
        %1507 = vmatmul.bf16.gmra.mxu0 %v1383
        %v1508 = vpop.f32.mrf.mxu0
        %v1509 = vadd.f32 0.0, %v1508
        %v1510 = vpop.f32.mrf.mxu0
        %v1511 = vadd.f32 0.0, %v1510
        %1512 = vmatmul.bf16.gmra.mxu0 %v1386
        %v1513 = vpop.f32.mrf.mxu0
        %v1514 = vadd.f32 0.0, %v1513
        %v1515 = vpop.f32.mrf.mxu0
        %v1516 = vadd.f32 0.0, %v1515
        %1517 = vmatmul.bf16.gmra.mxu0 %v1389
        %v1518 = vpop.f32.mrf.mxu0
        %v1519 = vadd.f32 0.0, %v1518
        %v1520 = vpop.f32.mrf.mxu0
        %v1521 = vadd.f32 0.0, %v1520
        %1522 = vmatmul.bf16.gmra.mxu0 %v1392
        %v1523 = vpop.f32.mrf.mxu0
        %v1524 = vadd.f32 0.0, %v1523
        %v1525 = vpop.f32.mrf.mxu0
        %v1526 = vadd.f32 0.0, %v1525
        %1527 = vmatmul.bf16.gmra.mxu0 %v1395
        %v1528 = vpop.f32.mrf.mxu0
        %v1529 = vadd.f32 0.0, %v1528
        %v1530 = vpop.f32.mrf.mxu0
        %v1531 = vadd.f32 0.0, %v1530
        %1532 = vmatmul.bf16.gmra.mxu0 %v1398
        %v1533 = vpop.f32.mrf.mxu0
        %v1534 = vadd.f32 0.0, %v1533
        %v1535 = vpop.f32.mrf.mxu0
        %v1536 = vadd.f32 0.0, %v1535
        %1537 = vmatmul.bf16.gmra.mxu0 %v1401
        %v1538 = vpop.f32.mrf.mxu0
        %v1539 = vadd.f32 0.0, %v1538
        %v1540 = vpop.f32.mrf.mxu0
        %v1541 = vadd.f32 0.0, %v1540
        %1542 = vmatmul.bf16.gmra.mxu0 %v1404
        %v1543 = vpop.f32.mrf.mxu0
        %v1544 = vadd.f32 0.0, %v1543
        %v1545 = vpop.f32.mrf.mxu0
        %v1546 = vadd.f32 0.0, %v1545
        %1547 = vmatmul.bf16.gmra.mxu0 %v1407
        %v1548 = vpop.f32.mrf.mxu0
        %v1549 = vadd.f32 0.0, %v1548
        %v1550 = vpop.f32.mrf.mxu0
        %v1551 = vadd.f32 0.0, %v1550
        %1552 = vdwg.mxu0
        %v1553 = vadd.f32 %v1214, %v1425
        %v1554 = vadd.f32 %v1215, %v1494
        %v1555 = vadd.f32 %v1216, %v1427
        %v1556 = vadd.f32 %v1217, %v1496
        %v1557 = vadd.f32 %v1218, %v1430
        %v1558 = vadd.f32 %v1219, %v1499
        %v1559 = vadd.f32 %v1220, %v1432
        %v1560 = vadd.f32 %v1221, %v1501
        %v1561 = vadd.f32 %v1222, %v1435
        %v1562 = vadd.f32 %v1223, %v1504
        %v1563 = vadd.f32 %v1224, %v1437
        %v1564 = vadd.f32 %v1225, %v1506
        %v1565 = vadd.f32 %v1226, %v1440
        %v1566 = vadd.f32 %v1227, %v1509
        %v1567 = vadd.f32 %v1228, %v1442
        %v1568 = vadd.f32 %v1229, %v1511
        %v1569 = vadd.f32 %v1230, %v1445
        %v1570 = vadd.f32 %v1231, %v1514
        %v1571 = vadd.f32 %v1232, %v1447
        %v1572 = vadd.f32 %v1233, %v1516
        %v1573 = vadd.f32 %v1234, %v1450
        %v1574 = vadd.f32 %v1235, %v1519
        %v1575 = vadd.f32 %v1236, %v1452
        %v1576 = vadd.f32 %v1237, %v1521
        %v1577 = vadd.f32 %v1238, %v1455
        %v1578 = vadd.f32 %v1239, %v1524
        %v1579 = vadd.f32 %v1240, %v1457
        %v1580 = vadd.f32 %v1241, %v1526
        %v1581 = vadd.f32 %v1242, %v1460
        %v1582 = vadd.f32 %v1243, %v1529
        %v1583 = vadd.f32 %v1244, %v1462
        %v1584 = vadd.f32 %v1245, %v1531
        %v1585 = vadd.f32 %v1246, %v1465
        %v1586 = vadd.f32 %v1247, %v1534
        %v1587 = vadd.f32 %v1248, %v1467
        %v1588 = vadd.f32 %v1249, %v1536
        %v1589 = vadd.f32 %v1250, %v1470
        %v1590 = vadd.f32 %v1251, %v1539
        %v1591 = vadd.f32 %v1252, %v1472
        %v1592 = vadd.f32 %v1253, %v1541
        %v1593 = vadd.f32 %v1254, %v1475
        %v1594 = vadd.f32 %v1255, %v1544
        %v1595 = vadd.f32 %v1256, %v1477
        %v1596 = vadd.f32 %v1257, %v1546
        %v1597 = vadd.f32 %v1258, %v1480
        %v1598 = vadd.f32 %v1259, %v1549
        %v1599 = vadd.f32 %v1260, %v1482
        %v1600 = vadd.f32 %v1261, %v1551
        %vm1601 = vcmask 1043456
        %v1602 = vrot.slane %v337, 4
        %v1603 = vrot.slane %v338, 4
        %v1604 = vsel %vm1601, %v1602, %v1603
        %v1605 = vrot.slane %v339, 4
        %v1606 = vsel %vm1601, %v1603, %v1605
        %v1607 = vrot.slane %v340, 4
        %v1608 = vsel %vm1601, %v1605, %v1607
        %v1609 = vrot.slane %v341, 4
        %v1610 = vrot.slane %v342, 4
        %v1611 = vsel %vm1601, %v1609, %v1610
        %v1612 = vrot.slane %v343, 4
        %v1613 = vsel %vm1601, %v1610, %v1612
        %v1614 = vrot.slane %v344, 4
        %v1615 = vsel %vm1601, %v1612, %v1614
        %v1616 = vrot.slane %v345, 4
        %v1617 = vrot.slane %v346, 4
        %v1618 = vsel %vm1601, %v1616, %v1617
        %v1619 = vrot.slane %v347, 4
        %v1620 = vsel %vm1601, %v1617, %v1619
        %v1621 = vrot.slane %v348, 4
        %v1622 = vsel %vm1601, %v1619, %v1621
        %v1623 = vrot.slane %v349, 4
        %v1624 = vrot.slane %v350, 4
        %v1625 = vsel %vm1601, %v1623, %v1624
        %v1626 = vrot.slane %v351, 4
        %v1627 = vsel %vm1601, %v1624, %v1626
        %v1628 = vrot.slane %v352, 4
        %v1629 = vsel %vm1601, %v1626, %v1628
        %v1630 = vrot.slane %v353, 4
        %v1631 = vrot.slane %v354, 4
        %v1632 = vsel %vm1601, %v1630, %v1631
        %v1633 = vrot.slane %v355, 4
        %v1634 = vsel %vm1601, %v1631, %v1633
        %v1635 = vrot.slane %v356, 4
        %v1636 = vsel %vm1601, %v1633, %v1635
        %v1637 = vrot.slane %v357, 4
        %v1638 = vrot.slane %v358, 4
        %v1639 = vsel %vm1601, %v1637, %v1638
        %v1640 = vrot.slane %v359, 4
        %v1641 = vsel %vm1601, %v1638, %v1640
        %v1642 = vrot.slane %v360, 4
        %v1643 = vsel %vm1601, %v1640, %v1642
        %v1644 = vrot.slane %v361, 4
        %v1645 = vrot.slane %v362, 4
        %v1646 = vsel %vm1601, %v1644, %v1645
        %v1647 = vrot.slane %v363, 4
        %v1648 = vsel %vm1601, %v1645, %v1647
        %v1649 = vrot.slane %v364, 4
        %v1650 = vsel %vm1601, %v1647, %v1649
        %v1651 = vrot.slane %v365, 4
        %v1652 = vrot.slane %v366, 4
        %v1653 = vsel %vm1601, %v1651, %v1652
        %v1654 = vrot.slane %v367, 4
        %v1655 = vsel %vm1601, %v1652, %v1654
        %v1656 = vrot.slane %v368, 4
        %v1657 = vsel %vm1601, %v1654, %v1656
        %v1682 = vpack.c.bf16 %v1606, %v1604
        %v1683 = vpack.c.bf16 %v1611, %v1608
        %v1684 = vpack.c.bf16 %v1615, %v1613
        %v1685 = vpack.c.bf16 %v1620, %v1618
        %v1686 = vpack.c.bf16 %v1625, %v1622
        %v1687 = vpack.c.bf16 %v1629, %v1627
        %v1688 = vpack.c.bf16 %v1634, %v1632
        %v1689 = vpack.c.bf16 %v1639, %v1636
        %v1690 = vpack.c.bf16 %v1643, %v1641
        %v1691 = vpack.c.bf16 %v1648, %v1646
        %v1692 = vpack.c.bf16 %v1653, %v1650
        %v1693 = vpack.c.bf16 %v1657, %v1655
        %v1698 = vunpack.c.l.b16 %v385
        %v1699 = vunpack.c.h.b16 %v385
        %v1700 = vunpack.c.l.b16 %v386
        %v1701 = vunpack.c.h.b16 %v386
        %v1702 = vunpack.c.l.b16 %v387
        %v1703 = vunpack.c.h.b16 %v387
        %v1704 = vunpack.c.l.b16 %v388
        %v1705 = vunpack.c.h.b16 %v388
        %v1706 = vpack.c.b16 %v1700, %v1698
        %v1707 = vpack.c.b16 %v1701, %v1699
        %v1708 = vpack.c.b16 %v1704, %v1702
        %v1709 = vpack.c.b16 %v1705, %v1703
        %v1713 = vsel %vm544, %v1682, 0
        %v1716 = vsel %vm544, %v1683, 0
        %v1719 = vsel %vm544, %v1684, 0
        %v1722 = vsel %vm544, %v1685, 0
        %v1725 = vsel %vm544, %v1686, 0
        %v1728 = vsel %vm544, %v1687, 0
        %v1731 = vsel %vm544, %v1688, 0
        %v1734 = vsel %vm544, %v1689, 0
        %v1737 = vsel %vm544, %v1690, 0
        %v1740 = vsel %vm544, %v1691, 0
        %v1743 = vsel %vm544, %v1692, 0
        %v1746 = vsel %vm544, %v1693, 0
        %v1749 = vsel %vm581, %v1708, 0
        %v1752 = vsel %vm581, %v1709, 0
        %1754 = vmatpush.bf16.msra.mxu0 0
        %1755 = vmatpush.bf16.msra.mxu0 0
        %1756 = vmatpush.bf16.msra.mxu0 0
        %1757 = vmatpush.bf16.msra.mxu0 0
        %1758 = vmatpush.bf16.msra.mxu0 0
        %1759 = vmatpush.bf16.msra.mxu0 0
        %1760 = vmatpush.bf16.msra.mxu0 %v1749
        %1761 = vmatpush.bf16.msra.mxu0 %v1706
        %1762 = vmatmul.bf16.gmra.mxu0 %v1713
        %v1763 = vpop.f32.mrf.mxu0
        %v1764 = vadd.f32 0.0, %v1763
        %v1765 = vpop.f32.mrf.mxu0
        %v1766 = vadd.f32 0.0, %v1765
        %1767 = vmatmul.bf16.gmra.mxu0 %v1716
        %v1768 = vpop.f32.mrf.mxu0
        %v1769 = vadd.f32 0.0, %v1768
        %v1770 = vpop.f32.mrf.mxu0
        %v1771 = vadd.f32 0.0, %v1770
        %1772 = vmatmul.bf16.gmra.mxu0 %v1719
        %v1773 = vpop.f32.mrf.mxu0
        %v1774 = vadd.f32 0.0, %v1773
        %v1775 = vpop.f32.mrf.mxu0
        %v1776 = vadd.f32 0.0, %v1775
        %1777 = vmatmul.bf16.gmra.mxu0 %v1722
        %v1778 = vpop.f32.mrf.mxu0
        %v1779 = vadd.f32 0.0, %v1778
        %v1780 = vpop.f32.mrf.mxu0
        %v1781 = vadd.f32 0.0, %v1780
        %1782 = vmatmul.bf16.gmra.mxu0 %v1725
        %v1783 = vpop.f32.mrf.mxu0
        %v1784 = vadd.f32 0.0, %v1783
        %v1785 = vpop.f32.mrf.mxu0
        %v1786 = vadd.f32 0.0, %v1785
        %1787 = vmatmul.bf16.gmra.mxu0 %v1728
        %v1788 = vpop.f32.mrf.mxu0
        %v1789 = vadd.f32 0.0, %v1788
        %v1790 = vpop.f32.mrf.mxu0
        %v1791 = vadd.f32 0.0, %v1790
        %1792 = vmatmul.bf16.gmra.mxu0 %v1731
        %v1793 = vpop.f32.mrf.mxu0
        %v1794 = vadd.f32 0.0, %v1793
        %v1795 = vpop.f32.mrf.mxu0
        %v1796 = vadd.f32 0.0, %v1795
        %1797 = vmatmul.bf16.gmra.mxu0 %v1734
        %v1798 = vpop.f32.mrf.mxu0
        %v1799 = vadd.f32 0.0, %v1798
        %v1800 = vpop.f32.mrf.mxu0
        %v1801 = vadd.f32 0.0, %v1800
        %1802 = vmatmul.bf16.gmra.mxu0 %v1737
        %v1803 = vpop.f32.mrf.mxu0
        %v1804 = vadd.f32 0.0, %v1803
        %v1805 = vpop.f32.mrf.mxu0
        %v1806 = vadd.f32 0.0, %v1805
        %1807 = vmatmul.bf16.gmra.mxu0 %v1740
        %v1808 = vpop.f32.mrf.mxu0
        %v1809 = vadd.f32 0.0, %v1808
        %v1810 = vpop.f32.mrf.mxu0
        %v1811 = vadd.f32 0.0, %v1810
        %1812 = vmatmul.bf16.gmra.mxu0 %v1743
        %v1813 = vpop.f32.mrf.mxu0
        %v1814 = vadd.f32 0.0, %v1813
        %v1815 = vpop.f32.mrf.mxu0
        %v1816 = vadd.f32 0.0, %v1815
        %1817 = vmatmul.bf16.gmra.mxu0 %v1746
        %v1818 = vpop.f32.mrf.mxu0
        %v1819 = vadd.f32 0.0, %v1818
        %v1820 = vpop.f32.mrf.mxu0
        %v1821 = vadd.f32 0.0, %v1820
        %1822 = vdwg.mxu0
        %1823 = vmatpush.bf16.msra.mxu0 0
        %1824 = vmatpush.bf16.msra.mxu0 0
        %1825 = vmatpush.bf16.msra.mxu0 0
        %1826 = vmatpush.bf16.msra.mxu0 0
        %1827 = vmatpush.bf16.msra.mxu0 0
        %1828 = vmatpush.bf16.msra.mxu0 0
        %1829 = vmatpush.bf16.msra.mxu0 %v1752
        %1830 = vmatpush.bf16.msra.mxu0 %v1707
        %1831 = vmatmul.bf16.gmra.mxu0 %v1713
        %v1832 = vpop.f32.mrf.mxu0
        %v1833 = vadd.f32 0.0, %v1832
        %v1834 = vpop.f32.mrf.mxu0
        %v1835 = vadd.f32 0.0, %v1834
        %1836 = vmatmul.bf16.gmra.mxu0 %v1716
        %v1837 = vpop.f32.mrf.mxu0
        %v1838 = vadd.f32 0.0, %v1837
        %v1839 = vpop.f32.mrf.mxu0
        %v1840 = vadd.f32 0.0, %v1839
        %1841 = vmatmul.bf16.gmra.mxu0 %v1719
        %v1842 = vpop.f32.mrf.mxu0
        %v1843 = vadd.f32 0.0, %v1842
        %v1844 = vpop.f32.mrf.mxu0
        %v1845 = vadd.f32 0.0, %v1844
        %1846 = vmatmul.bf16.gmra.mxu0 %v1722
        %v1847 = vpop.f32.mrf.mxu0
        %v1848 = vadd.f32 0.0, %v1847
        %v1849 = vpop.f32.mrf.mxu0
        %v1850 = vadd.f32 0.0, %v1849
        %1851 = vmatmul.bf16.gmra.mxu0 %v1725
        %v1852 = vpop.f32.mrf.mxu0
        %v1853 = vadd.f32 0.0, %v1852
        %v1854 = vpop.f32.mrf.mxu0
        %v1855 = vadd.f32 0.0, %v1854
        %1856 = vmatmul.bf16.gmra.mxu0 %v1728
        %v1857 = vpop.f32.mrf.mxu0
        %v1858 = vadd.f32 0.0, %v1857
        %v1859 = vpop.f32.mrf.mxu0
        %v1860 = vadd.f32 0.0, %v1859
        %1861 = vmatmul.bf16.gmra.mxu0 %v1731
        %v1862 = vpop.f32.mrf.mxu0
        %v1863 = vadd.f32 0.0, %v1862
        %v1864 = vpop.f32.mrf.mxu0
        %v1865 = vadd.f32 0.0, %v1864
        %1866 = vmatmul.bf16.gmra.mxu0 %v1734
        %v1867 = vpop.f32.mrf.mxu0
        %v1868 = vadd.f32 0.0, %v1867
        %v1869 = vpop.f32.mrf.mxu0
        %v1870 = vadd.f32 0.0, %v1869
        %1871 = vmatmul.bf16.gmra.mxu0 %v1737
        %v1872 = vpop.f32.mrf.mxu0
        %v1873 = vadd.f32 0.0, %v1872
        %v1874 = vpop.f32.mrf.mxu0
        %v1875 = vadd.f32 0.0, %v1874
        %1876 = vmatmul.bf16.gmra.mxu0 %v1740
        %v1877 = vpop.f32.mrf.mxu0
        %v1878 = vadd.f32 0.0, %v1877
        %v1879 = vpop.f32.mrf.mxu0
        %v1880 = vadd.f32 0.0, %v1879
        %1881 = vmatmul.bf16.gmra.mxu0 %v1743
        %v1882 = vpop.f32.mrf.mxu0
        %v1883 = vadd.f32 0.0, %v1882
        %v1884 = vpop.f32.mrf.mxu0
        %v1885 = vadd.f32 0.0, %v1884
        %1886 = vmatmul.bf16.gmra.mxu0 %v1746
        %v1887 = vpop.f32.mrf.mxu0
        %v1888 = vadd.f32 0.0, %v1887
        %v1889 = vpop.f32.mrf.mxu0
        %v1890 = vadd.f32 0.0, %v1889
        %1891 = vdwg.mxu0
        %v1892 = vadd.f32 %v1553, %v1764
        %v1893 = vadd.f32 %v1554, %v1833
        %v1894 = vadd.f32 %v1555, %v1766
        %v1895 = vadd.f32 %v1556, %v1835
        %v1896 = vadd.f32 %v1557, %v1769
        %v1897 = vadd.f32 %v1558, %v1838
        %v1898 = vadd.f32 %v1559, %v1771
        %v1899 = vadd.f32 %v1560, %v1840
        %v1900 = vadd.f32 %v1561, %v1774
        %v1901 = vadd.f32 %v1562, %v1843
        %v1902 = vadd.f32 %v1563, %v1776
        %v1903 = vadd.f32 %v1564, %v1845
        %v1904 = vadd.f32 %v1565, %v1779
        %v1905 = vadd.f32 %v1566, %v1848
        %v1906 = vadd.f32 %v1567, %v1781
        %v1907 = vadd.f32 %v1568, %v1850
        %v1908 = vadd.f32 %v1569, %v1784
        %v1909 = vadd.f32 %v1570, %v1853
        %v1910 = vadd.f32 %v1571, %v1786
        %v1911 = vadd.f32 %v1572, %v1855
        %v1912 = vadd.f32 %v1573, %v1789
        %v1913 = vadd.f32 %v1574, %v1858
        %v1914 = vadd.f32 %v1575, %v1791
        %v1915 = vadd.f32 %v1576, %v1860
        %v1916 = vadd.f32 %v1577, %v1794
        %v1917 = vadd.f32 %v1578, %v1863
        %v1918 = vadd.f32 %v1579, %v1796
        %v1919 = vadd.f32 %v1580, %v1865
        %v1920 = vadd.f32 %v1581, %v1799
        %v1921 = vadd.f32 %v1582, %v1868
        %v1922 = vadd.f32 %v1583, %v1801
        %v1923 = vadd.f32 %v1584, %v1870
        %v1924 = vadd.f32 %v1585, %v1804
        %v1925 = vadd.f32 %v1586, %v1873
        %v1926 = vadd.f32 %v1587, %v1806
        %v1927 = vadd.f32 %v1588, %v1875
        %v1928 = vadd.f32 %v1589, %v1809
        %v1929 = vadd.f32 %v1590, %v1878
        %v1930 = vadd.f32 %v1591, %v1811
        %v1931 = vadd.f32 %v1592, %v1880
        %v1932 = vadd.f32 %v1593, %v1814
        %v1933 = vadd.f32 %v1594, %v1883
        %v1934 = vadd.f32 %v1595, %v1816
        %v1935 = vadd.f32 %v1596, %v1885
        %v1936 = vadd.f32 %v1597, %v1819
        %v1937 = vadd.f32 %v1598, %v1888
        %v1938 = vadd.f32 %v1599, %v1821
        %v1939 = vadd.f32 %v1600, %v1890
        %v1940 = vld [vmem:[%s2] sm:$0x3]
        %v1942 = vperm.slane %v1940, 0
        %v1943 = vperm.slane %v1940, 1
        %v1946 = vadd.f32 %v1892, %v1942
        %v1947 = vadd.f32 %v1893, %v1943
        %v1948 = vadd.f32 %v1894, %v1942
        %v1949 = vadd.f32 %v1895, %v1943
        %v1950 = vadd.f32 %v1896, %v1942
        %v1951 = vadd.f32 %v1897, %v1943
        %v1952 = vadd.f32 %v1898, %v1942
        %v1953 = vadd.f32 %v1899, %v1943
        %v1954 = vadd.f32 %v1900, %v1942
        %v1955 = vadd.f32 %v1901, %v1943
        %v1956 = vadd.f32 %v1902, %v1942
        %v1957 = vadd.f32 %v1903, %v1943
        %v1958 = vadd.f32 %v1904, %v1942
        %v1959 = vadd.f32 %v1905, %v1943
        %v1960 = vadd.f32 %v1906, %v1942
        %v1961 = vadd.f32 %v1907, %v1943
        %v1962 = vadd.f32 %v1908, %v1942
        %v1963 = vadd.f32 %v1909, %v1943
        %v1964 = vadd.f32 %v1910, %v1942
        %v1965 = vadd.f32 %v1911, %v1943
        %v1966 = vadd.f32 %v1912, %v1942
        %v1967 = vadd.f32 %v1913, %v1943
        %v1968 = vadd.f32 %v1914, %v1942
        %v1969 = vadd.f32 %v1915, %v1943
        %v1970 = vadd.f32 %v1916, %v1942
        %v1971 = vadd.f32 %v1917, %v1943
        %v1972 = vadd.f32 %v1918, %v1942
        %v1973 = vadd.f32 %v1919, %v1943
        %v1974 = vadd.f32 %v1920, %v1942
        %v1975 = vadd.f32 %v1921, %v1943
        %v1976 = vadd.f32 %v1922, %v1942
        %v1977 = vadd.f32 %v1923, %v1943
        %v1978 = vadd.f32 %v1924, %v1942
        %v1979 = vadd.f32 %v1925, %v1943
        %v1980 = vadd.f32 %v1926, %v1942
        %v1981 = vadd.f32 %v1927, %v1943
        %v1982 = vadd.f32 %v1928, %v1942
        %v1983 = vadd.f32 %v1929, %v1943
        %v1984 = vadd.f32 %v1930, %v1942
        %v1985 = vadd.f32 %v1931, %v1943
        %v1986 = vadd.f32 %v1932, %v1942
        %v1987 = vadd.f32 %v1933, %v1943
        %v1988 = vadd.f32 %v1934, %v1942
        %v1989 = vadd.f32 %v1935, %v1943
        %v1990 = vadd.f32 %v1936, %v1942
        %v1991 = vadd.f32 %v1937, %v1943
        %v1992 = vadd.f32 %v1938, %v1942
        %v1993 = vadd.f32 %v1939, %v1943
        %v2042 = vrot.slane %v1947, 6
        %v2043 = vrot.slane %v1949, 6
        %v2044 = vrot.slane %v1951, 6
        %v2045 = vrot.slane %v1953, 6
        %v2046 = vrot.slane %v1955, 6
        %v2047 = vrot.slane %v1957, 6
        %v2048 = vrot.slane %v1959, 6
        %v2049 = vrot.slane %v1961, 6
        %v2050 = vrot.slane %v1963, 6
        %v2051 = vrot.slane %v1965, 6
        %v2052 = vrot.slane %v1967, 6
        %v2053 = vrot.slane %v1969, 6
        %v2054 = vrot.slane %v1971, 6
        %v2055 = vrot.slane %v1973, 6
        %v2056 = vrot.slane %v1975, 6
        %v2057 = vrot.slane %v1977, 6
        %v2058 = vrot.slane %v1979, 6
        %v2059 = vrot.slane %v1981, 6
        %v2060 = vrot.slane %v1983, 6
        %v2061 = vrot.slane %v1985, 6
        %v2062 = vrot.slane %v1987, 6
        %v2063 = vrot.slane %v1989, 6
        %v2064 = vrot.slane %v1991, 6
        %v2065 = vrot.slane %v1993, 6
        %vm2066 = vcmask 1041408
        %v2067 = vsel %vm2066, %v1946, %v2042
        %vm2068 = vcmask 1043458
        %v2069 = vsel %vm2068, %v1946, %v2042
        %v2070 = vrot.slane %v2069, 2
        %vm2071 = vcmask 1045508
        %v2072 = vsel %vm2071, %v1946, %v2042
        %v2073 = vrot.slane %v2072, 4
        %v2074 = vsel %vm581, %v2042, %v1946
        %v2075 = vrot.slane %v2074, 6
        %v2076 = vsel %vm2066, %v1948, %v2043
        %v2077 = vsel %vm2068, %v1948, %v2043
        %v2078 = vrot.slane %v2077, 2
        %v2079 = vsel %vm2071, %v1948, %v2043
        %v2080 = vrot.slane %v2079, 4
        %v2081 = vsel %vm581, %v2043, %v1948
        %v2082 = vrot.slane %v2081, 6
        %v2083 = vsel %vm2066, %v1950, %v2044
        %v2084 = vsel %vm2068, %v1950, %v2044
        %v2085 = vrot.slane %v2084, 2
        %v2086 = vsel %vm2071, %v1950, %v2044
        %v2087 = vrot.slane %v2086, 4
        %v2088 = vsel %vm581, %v2044, %v1950
        %v2089 = vrot.slane %v2088, 6
        %v2090 = vsel %vm2066, %v1952, %v2045
        %v2091 = vsel %vm2068, %v1952, %v2045
        %v2092 = vrot.slane %v2091, 2
        %v2093 = vsel %vm2071, %v1952, %v2045
        %v2094 = vrot.slane %v2093, 4
        %v2095 = vsel %vm581, %v2045, %v1952
        %v2096 = vrot.slane %v2095, 6
        %v2097 = vsel %vm2066, %v1954, %v2046
        %v2098 = vsel %vm2068, %v1954, %v2046
        %v2099 = vrot.slane %v2098, 2
        %v2100 = vsel %vm2071, %v1954, %v2046
        %v2101 = vrot.slane %v2100, 4
        %v2102 = vsel %vm581, %v2046, %v1954
        %v2103 = vrot.slane %v2102, 6
        %v2104 = vsel %vm2066, %v1956, %v2047
        %v2105 = vsel %vm2068, %v1956, %v2047
        %v2106 = vrot.slane %v2105, 2
        %v2107 = vsel %vm2071, %v1956, %v2047
        %v2108 = vrot.slane %v2107, 4
        %v2109 = vsel %vm581, %v2047, %v1956
        %v2110 = vrot.slane %v2109, 6
        %v2111 = vsel %vm2066, %v1958, %v2048
        %v2112 = vsel %vm2068, %v1958, %v2048
        %v2113 = vrot.slane %v2112, 2
        %v2114 = vsel %vm2071, %v1958, %v2048
        %v2115 = vrot.slane %v2114, 4
        %v2116 = vsel %vm581, %v2048, %v1958
        %v2117 = vrot.slane %v2116, 6
        %v2118 = vsel %vm2066, %v1960, %v2049
        %v2119 = vsel %vm2068, %v1960, %v2049
        %v2120 = vrot.slane %v2119, 2
        %v2121 = vsel %vm2071, %v1960, %v2049
        %v2122 = vrot.slane %v2121, 4
        %v2123 = vsel %vm581, %v2049, %v1960
        %v2124 = vrot.slane %v2123, 6
        %v2125 = vsel %vm2066, %v1962, %v2050
        %v2126 = vsel %vm2068, %v1962, %v2050
        %v2127 = vrot.slane %v2126, 2
        %v2128 = vsel %vm2071, %v1962, %v2050
        %v2129 = vrot.slane %v2128, 4
        %v2130 = vsel %vm581, %v2050, %v1962
        %v2131 = vrot.slane %v2130, 6
        %v2132 = vsel %vm2066, %v1964, %v2051
        %v2133 = vsel %vm2068, %v1964, %v2051
        %v2134 = vrot.slane %v2133, 2
        %v2135 = vsel %vm2071, %v1964, %v2051
        %v2136 = vrot.slane %v2135, 4
        %v2137 = vsel %vm581, %v2051, %v1964
        %v2138 = vrot.slane %v2137, 6
        %v2139 = vsel %vm2066, %v1966, %v2052
        %v2140 = vsel %vm2068, %v1966, %v2052
        %v2141 = vrot.slane %v2140, 2
        %v2142 = vsel %vm2071, %v1966, %v2052
        %v2143 = vrot.slane %v2142, 4
        %v2144 = vsel %vm581, %v2052, %v1966
        %v2145 = vrot.slane %v2144, 6
        %v2146 = vsel %vm2066, %v1968, %v2053
        %v2147 = vsel %vm2068, %v1968, %v2053
        %v2148 = vrot.slane %v2147, 2
        %v2149 = vsel %vm2071, %v1968, %v2053
        %v2150 = vrot.slane %v2149, 4
        %v2151 = vsel %vm581, %v2053, %v1968
        %v2152 = vrot.slane %v2151, 6
        %v2153 = vsel %vm2066, %v1970, %v2054
        %v2154 = vsel %vm2068, %v1970, %v2054
        %v2155 = vrot.slane %v2154, 2
        %v2156 = vsel %vm2071, %v1970, %v2054
        %v2157 = vrot.slane %v2156, 4
        %v2158 = vsel %vm581, %v2054, %v1970
        %v2159 = vrot.slane %v2158, 6
        %v2160 = vsel %vm2066, %v1972, %v2055
        %v2161 = vsel %vm2068, %v1972, %v2055
        %v2162 = vrot.slane %v2161, 2
        %v2163 = vsel %vm2071, %v1972, %v2055
        %v2164 = vrot.slane %v2163, 4
        %v2165 = vsel %vm581, %v2055, %v1972
        %v2166 = vrot.slane %v2165, 6
        %v2167 = vsel %vm2066, %v1974, %v2056
        %v2168 = vsel %vm2068, %v1974, %v2056
        %v2169 = vrot.slane %v2168, 2
        %v2170 = vsel %vm2071, %v1974, %v2056
        %v2171 = vrot.slane %v2170, 4
        %v2172 = vsel %vm581, %v2056, %v1974
        %v2173 = vrot.slane %v2172, 6
        %v2174 = vsel %vm2066, %v1976, %v2057
        %v2175 = vsel %vm2068, %v1976, %v2057
        %v2176 = vrot.slane %v2175, 2
        %v2177 = vsel %vm2071, %v1976, %v2057
        %v2178 = vrot.slane %v2177, 4
        %v2179 = vsel %vm581, %v2057, %v1976
        %v2180 = vrot.slane %v2179, 6
        %v2181 = vsel %vm2066, %v1978, %v2058
        %v2182 = vsel %vm2068, %v1978, %v2058
        %v2183 = vrot.slane %v2182, 2
        %v2184 = vsel %vm2071, %v1978, %v2058
        %v2185 = vrot.slane %v2184, 4
        %v2186 = vsel %vm581, %v2058, %v1978
        %v2187 = vrot.slane %v2186, 6
        %v2188 = vsel %vm2066, %v1980, %v2059
        %v2189 = vsel %vm2068, %v1980, %v2059
        %v2190 = vrot.slane %v2189, 2
        %v2191 = vsel %vm2071, %v1980, %v2059
        %v2192 = vrot.slane %v2191, 4
        %v2193 = vsel %vm581, %v2059, %v1980
        %v2194 = vrot.slane %v2193, 6
        %v2195 = vsel %vm2066, %v1982, %v2060
        %v2196 = vsel %vm2068, %v1982, %v2060
        %v2197 = vrot.slane %v2196, 2
        %v2198 = vsel %vm2071, %v1982, %v2060
        %v2199 = vrot.slane %v2198, 4
        %v2200 = vsel %vm581, %v2060, %v1982
        %v2201 = vrot.slane %v2200, 6
        %v2202 = vsel %vm2066, %v1984, %v2061
        %v2203 = vsel %vm2068, %v1984, %v2061
        %v2204 = vrot.slane %v2203, 2
        %v2205 = vsel %vm2071, %v1984, %v2061
        %v2206 = vrot.slane %v2205, 4
        %v2207 = vsel %vm581, %v2061, %v1984
        %v2208 = vrot.slane %v2207, 6
        %v2209 = vsel %vm2066, %v1986, %v2062
        %v2210 = vsel %vm2068, %v1986, %v2062
        %v2211 = vrot.slane %v2210, 2
        %v2212 = vsel %vm2071, %v1986, %v2062
        %v2213 = vrot.slane %v2212, 4
        %v2214 = vsel %vm581, %v2062, %v1986
        %v2215 = vrot.slane %v2214, 6
        %v2216 = vsel %vm2066, %v1988, %v2063
        %v2217 = vsel %vm2068, %v1988, %v2063
        %v2218 = vrot.slane %v2217, 2
        %v2219 = vsel %vm2071, %v1988, %v2063
        %v2220 = vrot.slane %v2219, 4
        %v2221 = vsel %vm581, %v2063, %v1988
        %v2222 = vrot.slane %v2221, 6
        %v2223 = vsel %vm2066, %v1990, %v2064
        %v2224 = vsel %vm2068, %v1990, %v2064
        %v2225 = vrot.slane %v2224, 2
        %v2226 = vsel %vm2071, %v1990, %v2064
        %v2227 = vrot.slane %v2226, 4
        %v2228 = vsel %vm581, %v2064, %v1990
        %v2229 = vrot.slane %v2228, 6
        %v2230 = vsel %vm2066, %v1992, %v2065
        %v2231 = vsel %vm2068, %v1992, %v2065
        %v2232 = vrot.slane %v2231, 2
        %v2233 = vsel %vm2071, %v1992, %v2065
        %v2234 = vrot.slane %v2233, 4
        %v2235 = vsel %vm581, %v2065, %v1992
        %v2236 = vrot.slane %v2235, 6
        %v2333 = vrot.slane %v2067, 7
        %v2334 = vrot.slane %v2333, 2
        %v2335 = vrot.slane %v2070, 7
        %v2336 = vrot.slane %v2335, 2
        %v2337 = vrot.slane %v2073, 7
        %v2338 = vrot.slane %v2337, 2
        %v2339 = vrot.slane %v2075, 7
        %v2340 = vrot.slane %v2339, 2
        %v2341 = vrot.slane %v2076, 7
        %v2342 = vrot.slane %v2341, 2
        %v2343 = vrot.slane %v2078, 7
        %v2344 = vrot.slane %v2343, 2
        %v2345 = vrot.slane %v2080, 7
        %v2346 = vrot.slane %v2345, 2
        %v2347 = vrot.slane %v2082, 7
        %v2348 = vrot.slane %v2347, 2
        %v2349 = vrot.slane %v2083, 7
        %v2350 = vrot.slane %v2349, 2
        %v2351 = vrot.slane %v2085, 7
        %v2352 = vrot.slane %v2351, 2
        %v2353 = vrot.slane %v2087, 7
        %v2354 = vrot.slane %v2353, 2
        %v2355 = vrot.slane %v2089, 7
        %v2356 = vrot.slane %v2355, 2
        %v2357 = vrot.slane %v2090, 7
        %v2358 = vrot.slane %v2357, 2
        %v2359 = vrot.slane %v2092, 7
        %v2360 = vrot.slane %v2359, 2
        %v2361 = vrot.slane %v2094, 7
        %v2362 = vrot.slane %v2361, 2
        %v2363 = vrot.slane %v2096, 7
        %v2364 = vrot.slane %v2363, 2
        %v2365 = vrot.slane %v2097, 7
        %v2366 = vrot.slane %v2365, 2
        %v2367 = vrot.slane %v2099, 7
        %v2368 = vrot.slane %v2367, 2
        %v2369 = vrot.slane %v2101, 7
        %v2370 = vrot.slane %v2369, 2
        %v2371 = vrot.slane %v2103, 7
        %v2372 = vrot.slane %v2371, 2
        %v2373 = vrot.slane %v2104, 7
        %v2374 = vrot.slane %v2373, 2
        %v2375 = vrot.slane %v2106, 7
        %v2376 = vrot.slane %v2375, 2
        %v2377 = vrot.slane %v2108, 7
        %v2378 = vrot.slane %v2377, 2
        %v2379 = vrot.slane %v2110, 7
        %v2380 = vrot.slane %v2379, 2
        %v2381 = vrot.slane %v2111, 7
        %v2382 = vrot.slane %v2381, 2
        %v2383 = vrot.slane %v2113, 7
        %v2384 = vrot.slane %v2383, 2
        %v2385 = vrot.slane %v2115, 7
        %v2386 = vrot.slane %v2385, 2
        %v2387 = vrot.slane %v2117, 7
        %v2388 = vrot.slane %v2387, 2
        %v2389 = vrot.slane %v2118, 7
        %v2390 = vrot.slane %v2389, 2
        %v2391 = vrot.slane %v2120, 7
        %v2392 = vrot.slane %v2391, 2
        %v2393 = vrot.slane %v2122, 7
        %v2394 = vrot.slane %v2393, 2
        %v2395 = vrot.slane %v2124, 7
        %v2396 = vrot.slane %v2395, 2
        %v2397 = vrot.slane %v2125, 7
        %v2398 = vrot.slane %v2397, 2
        %v2399 = vrot.slane %v2127, 7
        %v2400 = vrot.slane %v2399, 2
        %v2401 = vrot.slane %v2129, 7
        %v2402 = vrot.slane %v2401, 2
        %v2403 = vrot.slane %v2131, 7
        %v2404 = vrot.slane %v2403, 2
        %v2405 = vrot.slane %v2132, 7
        %v2406 = vrot.slane %v2405, 2
        %v2407 = vrot.slane %v2134, 7
        %v2408 = vrot.slane %v2407, 2
        %v2409 = vrot.slane %v2136, 7
        %v2410 = vrot.slane %v2409, 2
        %v2411 = vrot.slane %v2138, 7
        %v2412 = vrot.slane %v2411, 2
        %v2413 = vrot.slane %v2139, 7
        %v2414 = vrot.slane %v2413, 2
        %v2415 = vrot.slane %v2141, 7
        %v2416 = vrot.slane %v2415, 2
        %v2417 = vrot.slane %v2143, 7
        %v2418 = vrot.slane %v2417, 2
        %v2419 = vrot.slane %v2145, 7
        %v2420 = vrot.slane %v2419, 2
        %v2421 = vrot.slane %v2146, 7
        %v2422 = vrot.slane %v2421, 2
        %v2423 = vrot.slane %v2148, 7
        %v2424 = vrot.slane %v2423, 2
        %v2425 = vrot.slane %v2150, 7
        %v2426 = vrot.slane %v2425, 2
        %v2427 = vrot.slane %v2152, 7
        %v2428 = vrot.slane %v2427, 2
        %v2429 = vrot.slane %v2153, 7
        %v2430 = vrot.slane %v2429, 2
        %v2431 = vrot.slane %v2155, 7
        %v2432 = vrot.slane %v2431, 2
        %v2433 = vrot.slane %v2157, 7
        %v2434 = vrot.slane %v2433, 2
        %v2435 = vrot.slane %v2159, 7
        %v2436 = vrot.slane %v2435, 2
        %v2437 = vrot.slane %v2160, 7
        %v2438 = vrot.slane %v2437, 2
        %v2439 = vrot.slane %v2162, 7
        %v2440 = vrot.slane %v2439, 2
        %v2441 = vrot.slane %v2164, 7
        %v2442 = vrot.slane %v2441, 2
        %v2443 = vrot.slane %v2166, 7
        %v2444 = vrot.slane %v2443, 2
        %v2445 = vrot.slane %v2167, 7
        %v2446 = vrot.slane %v2445, 2
        %v2447 = vrot.slane %v2169, 7
        %v2448 = vrot.slane %v2447, 2
        %v2449 = vrot.slane %v2171, 7
        %v2450 = vrot.slane %v2449, 2
        %v2451 = vrot.slane %v2173, 7
        %v2452 = vrot.slane %v2451, 2
        %v2453 = vrot.slane %v2174, 7
        %v2454 = vrot.slane %v2453, 2
        %v2455 = vrot.slane %v2176, 7
        %v2456 = vrot.slane %v2455, 2
        %v2457 = vrot.slane %v2178, 7
        %v2458 = vrot.slane %v2457, 2
        %v2459 = vrot.slane %v2180, 7
        %v2460 = vrot.slane %v2459, 2
        %v2461 = vrot.slane %v2181, 7
        %v2462 = vrot.slane %v2461, 2
        %v2463 = vrot.slane %v2183, 7
        %v2464 = vrot.slane %v2463, 2
        %v2465 = vrot.slane %v2185, 7
        %v2466 = vrot.slane %v2465, 2
        %v2467 = vrot.slane %v2187, 7
        %v2468 = vrot.slane %v2467, 2
        %v2469 = vrot.slane %v2188, 7
        %v2470 = vrot.slane %v2469, 2
        %v2471 = vrot.slane %v2190, 7
        %v2472 = vrot.slane %v2471, 2
        %v2473 = vrot.slane %v2192, 7
        %v2474 = vrot.slane %v2473, 2
        %v2475 = vrot.slane %v2194, 7
        %v2476 = vrot.slane %v2475, 2
        %v2477 = vrot.slane %v2195, 7
        %v2478 = vrot.slane %v2477, 2
        %v2479 = vrot.slane %v2197, 7
        %v2480 = vrot.slane %v2479, 2
        %v2481 = vrot.slane %v2199, 7
        %v2482 = vrot.slane %v2481, 2
        %v2483 = vrot.slane %v2201, 7
        %v2484 = vrot.slane %v2483, 2
        %v2485 = vrot.slane %v2202, 7
        %v2486 = vrot.slane %v2485, 2
        %v2487 = vrot.slane %v2204, 7
        %v2488 = vrot.slane %v2487, 2
        %v2489 = vrot.slane %v2206, 7
        %v2490 = vrot.slane %v2489, 2
        %v2491 = vrot.slane %v2208, 7
        %v2492 = vrot.slane %v2491, 2
        %v2493 = vrot.slane %v2209, 7
        %v2494 = vrot.slane %v2493, 2
        %v2495 = vrot.slane %v2211, 7
        %v2496 = vrot.slane %v2495, 2
        %v2497 = vrot.slane %v2213, 7
        %v2498 = vrot.slane %v2497, 2
        %v2499 = vrot.slane %v2215, 7
        %v2500 = vrot.slane %v2499, 2
        %v2501 = vrot.slane %v2216, 7
        %v2502 = vrot.slane %v2501, 2
        %v2503 = vrot.slane %v2218, 7
        %v2504 = vrot.slane %v2503, 2
        %v2505 = vrot.slane %v2220, 7
        %v2506 = vrot.slane %v2505, 2
        %v2507 = vrot.slane %v2222, 7
        %v2508 = vrot.slane %v2507, 2
        %v2509 = vrot.slane %v2223, 7
        %v2510 = vrot.slane %v2509, 2
        %v2511 = vrot.slane %v2225, 7
        %v2512 = vrot.slane %v2511, 2
        %v2513 = vrot.slane %v2227, 7
        %v2514 = vrot.slane %v2513, 2
        %v2515 = vrot.slane %v2229, 7
        %v2516 = vrot.slane %v2515, 2
        %v2517 = vrot.slane %v2230, 7
        %v2518 = vrot.slane %v2517, 2
        %v2519 = vrot.slane %v2232, 7
        %v2520 = vrot.slane %v2519, 2
        %v2521 = vrot.slane %v2234, 7
        %v2522 = vrot.slane %v2521, 2
        %v2523 = vrot.slane %v2236, 7
        %v2524 = vrot.slane %v2523, 2
        %v2621 = vmax.f32 %v2067, %v2334
        %v2622 = vmax.f32 %v2070, %v2336
        %v2623 = vmax.f32 %v2073, %v2338
        %v2624 = vmax.f32 %v2075, %v2340
        %v2625 = vmax.f32 %v2076, %v2342
        %v2626 = vmax.f32 %v2078, %v2344
        %v2627 = vmax.f32 %v2080, %v2346
        %v2628 = vmax.f32 %v2082, %v2348
        %v2629 = vmax.f32 %v2083, %v2350
        %v2630 = vmax.f32 %v2085, %v2352
        %v2631 = vmax.f32 %v2087, %v2354
        %v2632 = vmax.f32 %v2089, %v2356
        %v2633 = vmax.f32 %v2090, %v2358
        %v2634 = vmax.f32 %v2092, %v2360
        %v2635 = vmax.f32 %v2094, %v2362
        %v2636 = vmax.f32 %v2096, %v2364
        %v2637 = vmax.f32 %v2097, %v2366
        %v2638 = vmax.f32 %v2099, %v2368
        %v2639 = vmax.f32 %v2101, %v2370
        %v2640 = vmax.f32 %v2103, %v2372
        %v2641 = vmax.f32 %v2104, %v2374
        %v2642 = vmax.f32 %v2106, %v2376
        %v2643 = vmax.f32 %v2108, %v2378
        %v2644 = vmax.f32 %v2110, %v2380
        %v2645 = vmax.f32 %v2111, %v2382
        %v2646 = vmax.f32 %v2113, %v2384
        %v2647 = vmax.f32 %v2115, %v2386
        %v2648 = vmax.f32 %v2117, %v2388
        %v2649 = vmax.f32 %v2118, %v2390
        %v2650 = vmax.f32 %v2120, %v2392
        %v2651 = vmax.f32 %v2122, %v2394
        %v2652 = vmax.f32 %v2124, %v2396
        %v2653 = vmax.f32 %v2125, %v2398
        %v2654 = vmax.f32 %v2127, %v2400
        %v2655 = vmax.f32 %v2129, %v2402
        %v2656 = vmax.f32 %v2131, %v2404
        %v2657 = vmax.f32 %v2132, %v2406
        %v2658 = vmax.f32 %v2134, %v2408
        %v2659 = vmax.f32 %v2136, %v2410
        %v2660 = vmax.f32 %v2138, %v2412
        %v2661 = vmax.f32 %v2139, %v2414
        %v2662 = vmax.f32 %v2141, %v2416
        %v2663 = vmax.f32 %v2143, %v2418
        %v2664 = vmax.f32 %v2145, %v2420
        %v2665 = vmax.f32 %v2146, %v2422
        %v2666 = vmax.f32 %v2148, %v2424
        %v2667 = vmax.f32 %v2150, %v2426
        %v2668 = vmax.f32 %v2152, %v2428
        %v2669 = vmax.f32 %v2153, %v2430
        %v2670 = vmax.f32 %v2155, %v2432
        %v2671 = vmax.f32 %v2157, %v2434
        %v2672 = vmax.f32 %v2159, %v2436
        %v2673 = vmax.f32 %v2160, %v2438
        %v2674 = vmax.f32 %v2162, %v2440
        %v2675 = vmax.f32 %v2164, %v2442
        %v2676 = vmax.f32 %v2166, %v2444
        %v2677 = vmax.f32 %v2167, %v2446
        %v2678 = vmax.f32 %v2169, %v2448
        %v2679 = vmax.f32 %v2171, %v2450
        %v2680 = vmax.f32 %v2173, %v2452
        %v2681 = vmax.f32 %v2174, %v2454
        %v2682 = vmax.f32 %v2176, %v2456
        %v2683 = vmax.f32 %v2178, %v2458
        %v2684 = vmax.f32 %v2180, %v2460
        %v2685 = vmax.f32 %v2181, %v2462
        %v2686 = vmax.f32 %v2183, %v2464
        %v2687 = vmax.f32 %v2185, %v2466
        %v2688 = vmax.f32 %v2187, %v2468
        %v2689 = vmax.f32 %v2188, %v2470
        %v2690 = vmax.f32 %v2190, %v2472
        %v2691 = vmax.f32 %v2192, %v2474
        %v2692 = vmax.f32 %v2194, %v2476
        %v2693 = vmax.f32 %v2195, %v2478
        %v2694 = vmax.f32 %v2197, %v2480
        %v2695 = vmax.f32 %v2199, %v2482
        %v2696 = vmax.f32 %v2201, %v2484
        %v2697 = vmax.f32 %v2202, %v2486
        %v2698 = vmax.f32 %v2204, %v2488
        %v2699 = vmax.f32 %v2206, %v2490
        %v2700 = vmax.f32 %v2208, %v2492
        %v2701 = vmax.f32 %v2209, %v2494
        %v2702 = vmax.f32 %v2211, %v2496
        %v2703 = vmax.f32 %v2213, %v2498
        %v2704 = vmax.f32 %v2215, %v2500
        %v2705 = vmax.f32 %v2216, %v2502
        %v2706 = vmax.f32 %v2218, %v2504
        %v2707 = vmax.f32 %v2220, %v2506
        %v2708 = vmax.f32 %v2222, %v2508
        %v2709 = vmax.f32 %v2223, %v2510
        %v2710 = vmax.f32 %v2225, %v2512
        %v2711 = vmax.f32 %v2227, %v2514
        %v2712 = vmax.f32 %v2229, %v2516
        %v2713 = vmax.f32 %v2230, %v2518
        %v2714 = vmax.f32 %v2232, %v2520
        %v2715 = vmax.f32 %v2234, %v2522
        %v2716 = vmax.f32 %v2236, %v2524
        %2813 = vrot.lane.b32.xlu0 %v2621, 118
        %v2814 = vpop.permute.xlu0 %2813
        %2815 = vrot.lane.b32.xlu0 %v2622, 118
        %v2816 = vpop.permute.xlu0 %2815
        %2817 = vrot.lane.b32.xlu0 %v2623, 118
        %v2818 = vpop.permute.xlu0 %2817
        %2819 = vrot.lane.b32.xlu0 %v2624, 118
        %v2820 = vpop.permute.xlu0 %2819
        %2821 = vrot.lane.b32.xlu0 %v2625, 118
        %v2822 = vpop.permute.xlu0 %2821
        %2823 = vrot.lane.b32.xlu0 %v2626, 118
        %v2824 = vpop.permute.xlu0 %2823
        %2825 = vrot.lane.b32.xlu0 %v2627, 118
        %v2826 = vpop.permute.xlu0 %2825
        %2827 = vrot.lane.b32.xlu0 %v2628, 118
        %v2828 = vpop.permute.xlu0 %2827
        %2829 = vrot.lane.b32.xlu0 %v2629, 118
        %v2830 = vpop.permute.xlu0 %2829
        %2831 = vrot.lane.b32.xlu0 %v2630, 118
        %v2832 = vpop.permute.xlu0 %2831
        %2833 = vrot.lane.b32.xlu0 %v2631, 118
        %v2834 = vpop.permute.xlu0 %2833
        %2835 = vrot.lane.b32.xlu0 %v2632, 118
        %v2836 = vpop.permute.xlu0 %2835
        %2837 = vrot.lane.b32.xlu0 %v2633, 118
        %v2838 = vpop.permute.xlu0 %2837
        %2839 = vrot.lane.b32.xlu0 %v2634, 118
        %v2840 = vpop.permute.xlu0 %2839
        %2841 = vrot.lane.b32.xlu0 %v2635, 118
        %v2842 = vpop.permute.xlu0 %2841
        %2843 = vrot.lane.b32.xlu0 %v2636, 118
        %v2844 = vpop.permute.xlu0 %2843
        %2845 = vrot.lane.b32.xlu0 %v2637, 118
        %v2846 = vpop.permute.xlu0 %2845
        %2847 = vrot.lane.b32.xlu0 %v2638, 118
        %v2848 = vpop.permute.xlu0 %2847
        %2849 = vrot.lane.b32.xlu0 %v2639, 118
        %v2850 = vpop.permute.xlu0 %2849
        %2851 = vrot.lane.b32.xlu0 %v2640, 118
        %v2852 = vpop.permute.xlu0 %2851
        %2853 = vrot.lane.b32.xlu0 %v2641, 118
        %v2854 = vpop.permute.xlu0 %2853
        %2855 = vrot.lane.b32.xlu0 %v2642, 118
        %v2856 = vpop.permute.xlu0 %2855
        %2857 = vrot.lane.b32.xlu0 %v2643, 118
        %v2858 = vpop.permute.xlu0 %2857
        %2859 = vrot.lane.b32.xlu0 %v2644, 118
        %v2860 = vpop.permute.xlu0 %2859
        %2861 = vrot.lane.b32.xlu0 %v2645, 118
        %v2862 = vpop.permute.xlu0 %2861
        %2863 = vrot.lane.b32.xlu0 %v2646, 118
        %v2864 = vpop.permute.xlu0 %2863
        %2865 = vrot.lane.b32.xlu0 %v2647, 118
        %v2866 = vpop.permute.xlu0 %2865
        %2867 = vrot.lane.b32.xlu0 %v2648, 118
        %v2868 = vpop.permute.xlu0 %2867
        %2869 = vrot.lane.b32.xlu0 %v2649, 118
        %v2870 = vpop.permute.xlu0 %2869
        %2871 = vrot.lane.b32.xlu0 %v2650, 118
        %v2872 = vpop.permute.xlu0 %2871
        %2873 = vrot.lane.b32.xlu0 %v2651, 118
        %v2874 = vpop.permute.xlu0 %2873
        %2875 = vrot.lane.b32.xlu0 %v2652, 118
        %v2876 = vpop.permute.xlu0 %2875
        %2877 = vrot.lane.b32.xlu0 %v2653, 118
        %v2878 = vpop.permute.xlu0 %2877
        %2879 = vrot.lane.b32.xlu0 %v2654, 118
        %v2880 = vpop.permute.xlu0 %2879
        %2881 = vrot.lane.b32.xlu0 %v2655, 118
        %v2882 = vpop.permute.xlu0 %2881
        %2883 = vrot.lane.b32.xlu0 %v2656, 118
        %v2884 = vpop.permute.xlu0 %2883
        %2885 = vrot.lane.b32.xlu0 %v2657, 118
        %v2886 = vpop.permute.xlu0 %2885
        %2887 = vrot.lane.b32.xlu0 %v2658, 118
        %v2888 = vpop.permute.xlu0 %2887
        %2889 = vrot.lane.b32.xlu0 %v2659, 118
        %v2890 = vpop.permute.xlu0 %2889
        %2891 = vrot.lane.b32.xlu0 %v2660, 118
        %v2892 = vpop.permute.xlu0 %2891
        %2893 = vrot.lane.b32.xlu0 %v2661, 118
        %v2894 = vpop.permute.xlu0 %2893
        %2895 = vrot.lane.b32.xlu0 %v2662, 118
        %v2896 = vpop.permute.xlu0 %2895
        %2897 = vrot.lane.b32.xlu0 %v2663, 118
        %v2898 = vpop.permute.xlu0 %2897
        %2899 = vrot.lane.b32.xlu0 %v2664, 118
        %v2900 = vpop.permute.xlu0 %2899
        %2901 = vrot.lane.b32.xlu0 %v2665, 118
        %v2902 = vpop.permute.xlu0 %2901
        %2903 = vrot.lane.b32.xlu0 %v2666, 118
        %v2904 = vpop.permute.xlu0 %2903
        %2905 = vrot.lane.b32.xlu0 %v2667, 118
        %v2906 = vpop.permute.xlu0 %2905
        %2907 = vrot.lane.b32.xlu0 %v2668, 118
        %v2908 = vpop.permute.xlu0 %2907
        %2909 = vrot.lane.b32.xlu0 %v2669, 118
        %v2910 = vpop.permute.xlu0 %2909
        %2911 = vrot.lane.b32.xlu0 %v2670, 118
        %v2912 = vpop.permute.xlu0 %2911
        %2913 = vrot.lane.b32.xlu0 %v2671, 118
        %v2914 = vpop.permute.xlu0 %2913
        %2915 = vrot.lane.b32.xlu0 %v2672, 118
        %v2916 = vpop.permute.xlu0 %2915
        %2917 = vrot.lane.b32.xlu0 %v2673, 118
        %v2918 = vpop.permute.xlu0 %2917
        %2919 = vrot.lane.b32.xlu0 %v2674, 118
        %v2920 = vpop.permute.xlu0 %2919
        %2921 = vrot.lane.b32.xlu0 %v2675, 118
        %v2922 = vpop.permute.xlu0 %2921
        %2923 = vrot.lane.b32.xlu0 %v2676, 118
        %v2924 = vpop.permute.xlu0 %2923
        %2925 = vrot.lane.b32.xlu0 %v2677, 118
        %v2926 = vpop.permute.xlu0 %2925
        %2927 = vrot.lane.b32.xlu0 %v2678, 118
        %v2928 = vpop.permute.xlu0 %2927
        %2929 = vrot.lane.b32.xlu0 %v2679, 118
        %v2930 = vpop.permute.xlu0 %2929
        %2931 = vrot.lane.b32.xlu0 %v2680, 118
        %v2932 = vpop.permute.xlu0 %2931
        %2933 = vrot.lane.b32.xlu0 %v2681, 118
        %v2934 = vpop.permute.xlu0 %2933
        %2935 = vrot.lane.b32.xlu0 %v2682, 118
        %v2936 = vpop.permute.xlu0 %2935
        %2937 = vrot.lane.b32.xlu0 %v2683, 118
        %v2938 = vpop.permute.xlu0 %2937
        %2939 = vrot.lane.b32.xlu0 %v2684, 118
        %v2940 = vpop.permute.xlu0 %2939
        %2941 = vrot.lane.b32.xlu0 %v2685, 118
        %v2942 = vpop.permute.xlu0 %2941
        %2943 = vrot.lane.b32.xlu0 %v2686, 118
        %v2944 = vpop.permute.xlu0 %2943
        %2945 = vrot.lane.b32.xlu0 %v2687, 118
        %v2946 = vpop.permute.xlu0 %2945
        %2947 = vrot.lane.b32.xlu0 %v2688, 118
        %v2948 = vpop.permute.xlu0 %2947
        %2949 = vrot.lane.b32.xlu0 %v2689, 118
        %v2950 = vpop.permute.xlu0 %2949
        %2951 = vrot.lane.b32.xlu0 %v2690, 118
        %v2952 = vpop.permute.xlu0 %2951
        %2953 = vrot.lane.b32.xlu0 %v2691, 118
        %v2954 = vpop.permute.xlu0 %2953
        %2955 = vrot.lane.b32.xlu0 %v2692, 118
        %v2956 = vpop.permute.xlu0 %2955
        %2957 = vrot.lane.b32.xlu0 %v2693, 118
        %v2958 = vpop.permute.xlu0 %2957
        %2959 = vrot.lane.b32.xlu0 %v2694, 118
        %v2960 = vpop.permute.xlu0 %2959
        %2961 = vrot.lane.b32.xlu0 %v2695, 118
        %v2962 = vpop.permute.xlu0 %2961
        %2963 = vrot.lane.b32.xlu0 %v2696, 118
        %v2964 = vpop.permute.xlu0 %2963
        %2965 = vrot.lane.b32.xlu0 %v2697, 118
        %v2966 = vpop.permute.xlu0 %2965
        %2967 = vrot.lane.b32.xlu0 %v2698, 118
        %v2968 = vpop.permute.xlu0 %2967
        %2969 = vrot.lane.b32.xlu0 %v2699, 118
        %v2970 = vpop.permute.xlu0 %2969
        %2971 = vrot.lane.b32.xlu0 %v2700, 118
        %v2972 = vpop.permute.xlu0 %2971
        %2973 = vrot.lane.b32.xlu0 %v2701, 118
        %v2974 = vpop.permute.xlu0 %2973
        %2975 = vrot.lane.b32.xlu0 %v2702, 118
        %v2976 = vpop.permute.xlu0 %2975
        %2977 = vrot.lane.b32.xlu0 %v2703, 118
        %v2978 = vpop.permute.xlu0 %2977
        %2979 = vrot.lane.b32.xlu0 %v2704, 118
        %v2980 = vpop.permute.xlu0 %2979
        %2981 = vrot.lane.b32.xlu0 %v2705, 118
        %v2982 = vpop.permute.xlu0 %2981
        %2983 = vrot.lane.b32.xlu0 %v2706, 118
        %v2984 = vpop.permute.xlu0 %2983
        %2985 = vrot.lane.b32.xlu0 %v2707, 118
        %v2986 = vpop.permute.xlu0 %2985
        %2987 = vrot.lane.b32.xlu0 %v2708, 118
        %v2988 = vpop.permute.xlu0 %2987
        %2989 = vrot.lane.b32.xlu0 %v2709, 118
        %v2990 = vpop.permute.xlu0 %2989
        %2991 = vrot.lane.b32.xlu0 %v2710, 118
        %v2992 = vpop.permute.xlu0 %2991
        %2993 = vrot.lane.b32.xlu0 %v2711, 118
        %v2994 = vpop.permute.xlu0 %2993
        %2995 = vrot.lane.b32.xlu0 %v2712, 118
        %v2996 = vpop.permute.xlu0 %2995
        %2997 = vrot.lane.b32.xlu0 %v2713, 118
        %v2998 = vpop.permute.xlu0 %2997
        %2999 = vrot.lane.b32.xlu0 %v2714, 118
        %v3000 = vpop.permute.xlu0 %2999
        %3001 = vrot.lane.b32.xlu0 %v2715, 118
        %v3002 = vpop.permute.xlu0 %3001
        %3003 = vrot.lane.b32.xlu0 %v2716, 118
        %v3004 = vpop.permute.xlu0 %3003
        %v3005 = vrot.slane %v2814, 2
        %v3006 = vrot.slane %v2816, 2
        %v3007 = vrot.slane %v2818, 2
        %v3008 = vrot.slane %v2820, 2
        %v3009 = vrot.slane %v2822, 2
        %v3010 = vrot.slane %v2824, 2
        %v3011 = vrot.slane %v2826, 2
        %v3012 = vrot.slane %v2828, 2
        %v3013 = vrot.slane %v2830, 2
        %v3014 = vrot.slane %v2832, 2
        %v3015 = vrot.slane %v2834, 2
        %v3016 = vrot.slane %v2836, 2
        %v3017 = vrot.slane %v2838, 2
        %v3018 = vrot.slane %v2840, 2
        %v3019 = vrot.slane %v2842, 2
        %v3020 = vrot.slane %v2844, 2
        %v3021 = vrot.slane %v2846, 2
        %v3022 = vrot.slane %v2848, 2
        %v3023 = vrot.slane %v2850, 2
        %v3024 = vrot.slane %v2852, 2
        %v3025 = vrot.slane %v2854, 2
        %v3026 = vrot.slane %v2856, 2
        %v3027 = vrot.slane %v2858, 2
        %v3028 = vrot.slane %v2860, 2
        %v3029 = vrot.slane %v2862, 2
        %v3030 = vrot.slane %v2864, 2
        %v3031 = vrot.slane %v2866, 2
        %v3032 = vrot.slane %v2868, 2
        %v3033 = vrot.slane %v2870, 2
        %v3034 = vrot.slane %v2872, 2
        %v3035 = vrot.slane %v2874, 2
        %v3036 = vrot.slane %v2876, 2
        %v3037 = vrot.slane %v2878, 2
        %v3038 = vrot.slane %v2880, 2
        %v3039 = vrot.slane %v2882, 2
        %v3040 = vrot.slane %v2884, 2
        %v3041 = vrot.slane %v2886, 2
        %v3042 = vrot.slane %v2888, 2
        %v3043 = vrot.slane %v2890, 2
        %v3044 = vrot.slane %v2892, 2
        %v3045 = vrot.slane %v2894, 2
        %v3046 = vrot.slane %v2896, 2
        %v3047 = vrot.slane %v2898, 2
        %v3048 = vrot.slane %v2900, 2
        %v3049 = vrot.slane %v2902, 2
        %v3050 = vrot.slane %v2904, 2
        %v3051 = vrot.slane %v2906, 2
        %v3052 = vrot.slane %v2908, 2
        %v3053 = vrot.slane %v2910, 2
        %v3054 = vrot.slane %v2912, 2
        %v3055 = vrot.slane %v2914, 2
        %v3056 = vrot.slane %v2916, 2
        %v3057 = vrot.slane %v2918, 2
        %v3058 = vrot.slane %v2920, 2
        %v3059 = vrot.slane %v2922, 2
        %v3060 = vrot.slane %v2924, 2
        %v3061 = vrot.slane %v2926, 2
        %v3062 = vrot.slane %v2928, 2
        %v3063 = vrot.slane %v2930, 2
        %v3064 = vrot.slane %v2932, 2
        %v3065 = vrot.slane %v2934, 2
        %v3066 = vrot.slane %v2936, 2
        %v3067 = vrot.slane %v2938, 2
        %v3068 = vrot.slane %v2940, 2
        %v3069 = vrot.slane %v2942, 2
        %v3070 = vrot.slane %v2944, 2
        %v3071 = vrot.slane %v2946, 2
        %v3072 = vrot.slane %v2948, 2
        %v3073 = vrot.slane %v2950, 2
        %v3074 = vrot.slane %v2952, 2
        %v3075 = vrot.slane %v2954, 2
        %v3076 = vrot.slane %v2956, 2
        %v3077 = vrot.slane %v2958, 2
        %v3078 = vrot.slane %v2960, 2
        %v3079 = vrot.slane %v2962, 2
        %v3080 = vrot.slane %v2964, 2
        %v3081 = vrot.slane %v2966, 2
        %v3082 = vrot.slane %v2968, 2
        %v3083 = vrot.slane %v2970, 2
        %v3084 = vrot.slane %v2972, 2
        %v3085 = vrot.slane %v2974, 2
        %v3086 = vrot.slane %v2976, 2
        %v3087 = vrot.slane %v2978, 2
        %v3088 = vrot.slane %v2980, 2
        %v3089 = vrot.slane %v2982, 2
        %v3090 = vrot.slane %v2984, 2
        %v3091 = vrot.slane %v2986, 2
        %v3092 = vrot.slane %v2988, 2
        %v3093 = vrot.slane %v2990, 2
        %v3094 = vrot.slane %v2992, 2
        %v3095 = vrot.slane %v2994, 2
        %v3096 = vrot.slane %v2996, 2
        %v3097 = vrot.slane %v2998, 2
        %v3098 = vrot.slane %v3000, 2
        %v3099 = vrot.slane %v3002, 2
        %v3100 = vrot.slane %v3004, 2
        %vm3101 = vcmask 965632
        %v3102 = vsel %vm3101, %v2814, %v3005
        %v3103 = vsel %vm3101, %v2816, %v3006
        %v3104 = vsel %vm3101, %v2818, %v3007
        %v3105 = vsel %vm3101, %v2820, %v3008
        %v3106 = vsel %vm3101, %v2822, %v3009
        %v3107 = vsel %vm3101, %v2824, %v3010
        %v3108 = vsel %vm3101, %v2826, %v3011
        %v3109 = vsel %vm3101, %v2828, %v3012
        %v3110 = vsel %vm3101, %v2830, %v3013
        %v3111 = vsel %vm3101, %v2832, %v3014
        %v3112 = vsel %vm3101, %v2834, %v3015
        %v3113 = vsel %vm3101, %v2836, %v3016
        %v3114 = vsel %vm3101, %v2838, %v3017
        %v3115 = vsel %vm3101, %v2840, %v3018
        %v3116 = vsel %vm3101, %v2842, %v3019
        %v3117 = vsel %vm3101, %v2844, %v3020
        %v3118 = vsel %vm3101, %v2846, %v3021
        %v3119 = vsel %vm3101, %v2848, %v3022
        %v3120 = vsel %vm3101, %v2850, %v3023
        %v3121 = vsel %vm3101, %v2852, %v3024
        %v3122 = vsel %vm3101, %v2854, %v3025
        %v3123 = vsel %vm3101, %v2856, %v3026
        %v3124 = vsel %vm3101, %v2858, %v3027
        %v3125 = vsel %vm3101, %v2860, %v3028
        %v3126 = vsel %vm3101, %v2862, %v3029
        %v3127 = vsel %vm3101, %v2864, %v3030
        %v3128 = vsel %vm3101, %v2866, %v3031
        %v3129 = vsel %vm3101, %v2868, %v3032
        %v3130 = vsel %vm3101, %v2870, %v3033
        %v3131 = vsel %vm3101, %v2872, %v3034
        %v3132 = vsel %vm3101, %v2874, %v3035
        %v3133 = vsel %vm3101, %v2876, %v3036
        %v3134 = vsel %vm3101, %v2878, %v3037
        %v3135 = vsel %vm3101, %v2880, %v3038
        %v3136 = vsel %vm3101, %v2882, %v3039
        %v3137 = vsel %vm3101, %v2884, %v3040
        %v3138 = vsel %vm3101, %v2886, %v3041
        %v3139 = vsel %vm3101, %v2888, %v3042
        %v3140 = vsel %vm3101, %v2890, %v3043
        %v3141 = vsel %vm3101, %v2892, %v3044
        %v3142 = vsel %vm3101, %v2894, %v3045
        %v3143 = vsel %vm3101, %v2896, %v3046
        %v3144 = vsel %vm3101, %v2898, %v3047
        %v3145 = vsel %vm3101, %v2900, %v3048
        %v3146 = vsel %vm3101, %v2902, %v3049
        %v3147 = vsel %vm3101, %v2904, %v3050
        %v3148 = vsel %vm3101, %v2906, %v3051
        %v3149 = vsel %vm3101, %v2908, %v3052
        %v3150 = vsel %vm3101, %v2910, %v3053
        %v3151 = vsel %vm3101, %v2912, %v3054
        %v3152 = vsel %vm3101, %v2914, %v3055
        %v3153 = vsel %vm3101, %v2916, %v3056
        %v3154 = vsel %vm3101, %v2918, %v3057
        %v3155 = vsel %vm3101, %v2920, %v3058
        %v3156 = vsel %vm3101, %v2922, %v3059
        %v3157 = vsel %vm3101, %v2924, %v3060
        %v3158 = vsel %vm3101, %v2926, %v3061
        %v3159 = vsel %vm3101, %v2928, %v3062
        %v3160 = vsel %vm3101, %v2930, %v3063
        %v3161 = vsel %vm3101, %v2932, %v3064
        %v3162 = vsel %vm3101, %v2934, %v3065
        %v3163 = vsel %vm3101, %v2936, %v3066
        %v3164 = vsel %vm3101, %v2938, %v3067
        %v3165 = vsel %vm3101, %v2940, %v3068
        %v3166 = vsel %vm3101, %v2942, %v3069
        %v3167 = vsel %vm3101, %v2944, %v3070
        %v3168 = vsel %vm3101, %v2946, %v3071
        %v3169 = vsel %vm3101, %v2948, %v3072
        %v3170 = vsel %vm3101, %v2950, %v3073
        %v3171 = vsel %vm3101, %v2952, %v3074
        %v3172 = vsel %vm3101, %v2954, %v3075
        %v3173 = vsel %vm3101, %v2956, %v3076
        %v3174 = vsel %vm3101, %v2958, %v3077
        %v3175 = vsel %vm3101, %v2960, %v3078
        %v3176 = vsel %vm3101, %v2962, %v3079
        %v3177 = vsel %vm3101, %v2964, %v3080
        %v3178 = vsel %vm3101, %v2966, %v3081
        %v3179 = vsel %vm3101, %v2968, %v3082
        %v3180 = vsel %vm3101, %v2970, %v3083
        %v3181 = vsel %vm3101, %v2972, %v3084
        %v3182 = vsel %vm3101, %v2974, %v3085
        %v3183 = vsel %vm3101, %v2976, %v3086
        %v3184 = vsel %vm3101, %v2978, %v3087
        %v3185 = vsel %vm3101, %v2980, %v3088
        %v3186 = vsel %vm3101, %v2982, %v3089
        %v3187 = vsel %vm3101, %v2984, %v3090
        %v3188 = vsel %vm3101, %v2986, %v3091
        %v3189 = vsel %vm3101, %v2988, %v3092
        %v3190 = vsel %vm3101, %v2990, %v3093
        %v3191 = vsel %vm3101, %v2992, %v3094
        %v3192 = vsel %vm3101, %v2994, %v3095
        %v3193 = vsel %vm3101, %v2996, %v3096
        %v3194 = vsel %vm3101, %v2998, %v3097
        %v3195 = vsel %vm3101, %v3000, %v3098
        %v3196 = vsel %vm3101, %v3002, %v3099
        %v3197 = vsel %vm3101, %v3004, %v3100
        %v3294 = vmax.f32 %v2621, %v3102
        %v3295 = vmax.f32 %v2622, %v3103
        %v3296 = vmax.f32 %v2623, %v3104
        %v3297 = vmax.f32 %v2624, %v3105
        %v3298 = vmax.f32 %v2625, %v3106
        %v3299 = vmax.f32 %v2626, %v3107
        %v3300 = vmax.f32 %v2627, %v3108
        %v3301 = vmax.f32 %v2628, %v3109
        %v3302 = vmax.f32 %v2629, %v3110
        %v3303 = vmax.f32 %v2630, %v3111
        %v3304 = vmax.f32 %v2631, %v3112
        %v3305 = vmax.f32 %v2632, %v3113
        %v3306 = vmax.f32 %v2633, %v3114
        %v3307 = vmax.f32 %v2634, %v3115
        %v3308 = vmax.f32 %v2635, %v3116
        %v3309 = vmax.f32 %v2636, %v3117
        %v3310 = vmax.f32 %v2637, %v3118
        %v3311 = vmax.f32 %v2638, %v3119
        %v3312 = vmax.f32 %v2639, %v3120
        %v3313 = vmax.f32 %v2640, %v3121
        %v3314 = vmax.f32 %v2641, %v3122
        %v3315 = vmax.f32 %v2642, %v3123
        %v3316 = vmax.f32 %v2643, %v3124
        %v3317 = vmax.f32 %v2644, %v3125
        %v3318 = vmax.f32 %v2645, %v3126
        %v3319 = vmax.f32 %v2646, %v3127
        %v3320 = vmax.f32 %v2647, %v3128
        %v3321 = vmax.f32 %v2648, %v3129
        %v3322 = vmax.f32 %v2649, %v3130
        %v3323 = vmax.f32 %v2650, %v3131
        %v3324 = vmax.f32 %v2651, %v3132
        %v3325 = vmax.f32 %v2652, %v3133
        %v3326 = vmax.f32 %v2653, %v3134
        %v3327 = vmax.f32 %v2654, %v3135
        %v3328 = vmax.f32 %v2655, %v3136
        %v3329 = vmax.f32 %v2656, %v3137
        %v3330 = vmax.f32 %v2657, %v3138
        %v3331 = vmax.f32 %v2658, %v3139
        %v3332 = vmax.f32 %v2659, %v3140
        %v3333 = vmax.f32 %v2660, %v3141
        %v3334 = vmax.f32 %v2661, %v3142
        %v3335 = vmax.f32 %v2662, %v3143
        %v3336 = vmax.f32 %v2663, %v3144
        %v3337 = vmax.f32 %v2664, %v3145
        %v3338 = vmax.f32 %v2665, %v3146
        %v3339 = vmax.f32 %v2666, %v3147
        %v3340 = vmax.f32 %v2667, %v3148
        %v3341 = vmax.f32 %v2668, %v3149
        %v3342 = vmax.f32 %v2669, %v3150
        %v3343 = vmax.f32 %v2670, %v3151
        %v3344 = vmax.f32 %v2671, %v3152
        %v3345 = vmax.f32 %v2672, %v3153
        %v3346 = vmax.f32 %v2673, %v3154
        %v3347 = vmax.f32 %v2674, %v3155
        %v3348 = vmax.f32 %v2675, %v3156
        %v3349 = vmax.f32 %v2676, %v3157
        %v3350 = vmax.f32 %v2677, %v3158
        %v3351 = vmax.f32 %v2678, %v3159
        %v3352 = vmax.f32 %v2679, %v3160
        %v3353 = vmax.f32 %v2680, %v3161
        %v3354 = vmax.f32 %v2681, %v3162
        %v3355 = vmax.f32 %v2682, %v3163
        %v3356 = vmax.f32 %v2683, %v3164
        %v3357 = vmax.f32 %v2684, %v3165
        %v3358 = vmax.f32 %v2685, %v3166
        %v3359 = vmax.f32 %v2686, %v3167
        %v3360 = vmax.f32 %v2687, %v3168
        %v3361 = vmax.f32 %v2688, %v3169
        %v3362 = vmax.f32 %v2689, %v3170
        %v3363 = vmax.f32 %v2690, %v3171
        %v3364 = vmax.f32 %v2691, %v3172
        %v3365 = vmax.f32 %v2692, %v3173
        %v3366 = vmax.f32 %v2693, %v3174
        %v3367 = vmax.f32 %v2694, %v3175
        %v3368 = vmax.f32 %v2695, %v3176
        %v3369 = vmax.f32 %v2696, %v3177
        %v3370 = vmax.f32 %v2697, %v3178
        %v3371 = vmax.f32 %v2698, %v3179
        %v3372 = vmax.f32 %v2699, %v3180
        %v3373 = vmax.f32 %v2700, %v3181
        %v3374 = vmax.f32 %v2701, %v3182
        %v3375 = vmax.f32 %v2702, %v3183
        %v3376 = vmax.f32 %v2703, %v3184
        %v3377 = vmax.f32 %v2704, %v3185
        %v3378 = vmax.f32 %v2705, %v3186
        %v3379 = vmax.f32 %v2706, %v3187
        %v3380 = vmax.f32 %v2707, %v3188
        %v3381 = vmax.f32 %v2708, %v3189
        %v3382 = vmax.f32 %v2709, %v3190
        %v3383 = vmax.f32 %v2710, %v3191
        %v3384 = vmax.f32 %v2711, %v3192
        %v3385 = vmax.f32 %v2712, %v3193
        %v3386 = vmax.f32 %v2713, %v3194
        %v3387 = vmax.f32 %v2714, %v3195
        %v3388 = vmax.f32 %v2715, %v3196
        %v3389 = vmax.f32 %v2716, %v3197
        %v3390 = vmax.f32 %v3294, 0.0
        %v3391 = vmax.f32 %v3295, 0.0
        %v3392 = vmax.f32 %v3296, 0.0
        %v3393 = vmax.f32 %v3297, 0.0
        %v3394 = vmax.f32 %v3298, 0.0
        %v3395 = vmax.f32 %v3299, 0.0
        %v3396 = vmax.f32 %v3300, 0.0
        %v3397 = vmax.f32 %v3301, 0.0
        %v3398 = vmax.f32 %v3302, 0.0
        %v3399 = vmax.f32 %v3303, 0.0
        %v3400 = vmax.f32 %v3304, 0.0
        %v3401 = vmax.f32 %v3305, 0.0
        %v3402 = vmax.f32 %v3306, 0.0
        %v3403 = vmax.f32 %v3307, 0.0
        %v3404 = vmax.f32 %v3308, 0.0
        %v3405 = vmax.f32 %v3309, 0.0
        %v3406 = vmax.f32 %v3310, 0.0
        %v3407 = vmax.f32 %v3311, 0.0
        %v3408 = vmax.f32 %v3312, 0.0
        %v3409 = vmax.f32 %v3313, 0.0
        %v3410 = vmax.f32 %v3314, 0.0
        %v3411 = vmax.f32 %v3315, 0.0
        %v3412 = vmax.f32 %v3316, 0.0
        %v3413 = vmax.f32 %v3317, 0.0
        %v3414 = vmax.f32 %v3318, 0.0
        %v3415 = vmax.f32 %v3319, 0.0
        %v3416 = vmax.f32 %v3320, 0.0
        %v3417 = vmax.f32 %v3321, 0.0
        %v3418 = vmax.f32 %v3322, 0.0
        %v3419 = vmax.f32 %v3323, 0.0
        %v3420 = vmax.f32 %v3324, 0.0
        %v3421 = vmax.f32 %v3325, 0.0
        %v3422 = vmax.f32 %v3326, 0.0
        %v3423 = vmax.f32 %v3327, 0.0
        %v3424 = vmax.f32 %v3328, 0.0
        %v3425 = vmax.f32 %v3329, 0.0
        %v3426 = vmax.f32 %v3330, 0.0
        %v3427 = vmax.f32 %v3331, 0.0
        %v3428 = vmax.f32 %v3332, 0.0
        %v3429 = vmax.f32 %v3333, 0.0
        %v3430 = vmax.f32 %v3334, 0.0
        %v3431 = vmax.f32 %v3335, 0.0
        %v3432 = vmax.f32 %v3336, 0.0
        %v3433 = vmax.f32 %v3337, 0.0
        %v3434 = vmax.f32 %v3338, 0.0
        %v3435 = vmax.f32 %v3339, 0.0
        %v3436 = vmax.f32 %v3340, 0.0
        %v3437 = vmax.f32 %v3341, 0.0
        %v3438 = vmax.f32 %v3342, 0.0
        %v3439 = vmax.f32 %v3343, 0.0
        %v3440 = vmax.f32 %v3344, 0.0
        %v3441 = vmax.f32 %v3345, 0.0
        %v3442 = vmax.f32 %v3346, 0.0
        %v3443 = vmax.f32 %v3347, 0.0
        %v3444 = vmax.f32 %v3348, 0.0
        %v3445 = vmax.f32 %v3349, 0.0
        %v3446 = vmax.f32 %v3350, 0.0
        %v3447 = vmax.f32 %v3351, 0.0
        %v3448 = vmax.f32 %v3352, 0.0
        %v3449 = vmax.f32 %v3353, 0.0
        %v3450 = vmax.f32 %v3354, 0.0
        %v3451 = vmax.f32 %v3355, 0.0
        %v3452 = vmax.f32 %v3356, 0.0
        %v3453 = vmax.f32 %v3357, 0.0
        %v3454 = vmax.f32 %v3358, 0.0
        %v3455 = vmax.f32 %v3359, 0.0
        %v3456 = vmax.f32 %v3360, 0.0
        %v3457 = vmax.f32 %v3361, 0.0
        %v3458 = vmax.f32 %v3362, 0.0
        %v3459 = vmax.f32 %v3363, 0.0
        %v3460 = vmax.f32 %v3364, 0.0
        %v3461 = vmax.f32 %v3365, 0.0
        %v3462 = vmax.f32 %v3366, 0.0
        %v3463 = vmax.f32 %v3367, 0.0
        %v3464 = vmax.f32 %v3368, 0.0
        %v3465 = vmax.f32 %v3369, 0.0
        %v3466 = vmax.f32 %v3370, 0.0
        %v3467 = vmax.f32 %v3371, 0.0
        %v3468 = vmax.f32 %v3372, 0.0
        %v3469 = vmax.f32 %v3373, 0.0
        %v3470 = vmax.f32 %v3374, 0.0
        %v3471 = vmax.f32 %v3375, 0.0
        %v3472 = vmax.f32 %v3376, 0.0
        %v3473 = vmax.f32 %v3377, 0.0
        %v3474 = vmax.f32 %v3378, 0.0
        %v3475 = vmax.f32 %v3379, 0.0
        %v3476 = vmax.f32 %v3380, 0.0
        %v3477 = vmax.f32 %v3381, 0.0
        %v3478 = vmax.f32 %v3382, 0.0
        %v3479 = vmax.f32 %v3383, 0.0
        %v3480 = vmax.f32 %v3384, 0.0
        %v3481 = vmax.f32 %v3385, 0.0
        %v3482 = vmax.f32 %v3386, 0.0
        %v3483 = vmax.f32 %v3387, 0.0
        %v3484 = vmax.f32 %v3388, 0.0
        %v3485 = vmax.f32 %v3389, 0.0
        %v3582 = vperm.slane %v3390, 0
        %v3583 = vperm.slane %v3390, 2
        %v3584 = vperm.slane %v3391, 0
        %v3585 = vperm.slane %v3391, 2
        %v3586 = vperm.slane %v3392, 0
        %v3587 = vperm.slane %v3392, 2
        %v3588 = vperm.slane %v3393, 0
        %v3589 = vperm.slane %v3393, 2
        %v3590 = vperm.slane %v3394, 0
        %v3591 = vperm.slane %v3394, 2
        %v3592 = vperm.slane %v3395, 0
        %v3593 = vperm.slane %v3395, 2
        %v3594 = vperm.slane %v3396, 0
        %v3595 = vperm.slane %v3396, 2
        %v3596 = vperm.slane %v3397, 0
        %v3597 = vperm.slane %v3397, 2
        %v3598 = vperm.slane %v3398, 0
        %v3599 = vperm.slane %v3398, 2
        %v3600 = vperm.slane %v3399, 0
        %v3601 = vperm.slane %v3399, 2
        %v3602 = vperm.slane %v3400, 0
        %v3603 = vperm.slane %v3400, 2
        %v3604 = vperm.slane %v3401, 0
        %v3605 = vperm.slane %v3401, 2
        %v3606 = vperm.slane %v3402, 0
        %v3607 = vperm.slane %v3402, 2
        %v3608 = vperm.slane %v3403, 0
        %v3609 = vperm.slane %v3403, 2
        %v3610 = vperm.slane %v3404, 0
        %v3611 = vperm.slane %v3404, 2
        %v3612 = vperm.slane %v3405, 0
        %v3613 = vperm.slane %v3405, 2
        %v3614 = vperm.slane %v3406, 0
        %v3615 = vperm.slane %v3406, 2
        %v3616 = vperm.slane %v3407, 0
        %v3617 = vperm.slane %v3407, 2
        %v3618 = vperm.slane %v3408, 0
        %v3619 = vperm.slane %v3408, 2
        %v3620 = vperm.slane %v3409, 0
        %v3621 = vperm.slane %v3409, 2
        %v3622 = vperm.slane %v3410, 0
        %v3623 = vperm.slane %v3410, 2
        %v3624 = vperm.slane %v3411, 0
        %v3625 = vperm.slane %v3411, 2
        %v3626 = vperm.slane %v3412, 0
        %v3627 = vperm.slane %v3412, 2
        %v3628 = vperm.slane %v3413, 0
        %v3629 = vperm.slane %v3413, 2
        %v3630 = vperm.slane %v3414, 0
        %v3631 = vperm.slane %v3414, 2
        %v3632 = vperm.slane %v3415, 0
        %v3633 = vperm.slane %v3415, 2
        %v3634 = vperm.slane %v3416, 0
        %v3635 = vperm.slane %v3416, 2
        %v3636 = vperm.slane %v3417, 0
        %v3637 = vperm.slane %v3417, 2
        %v3638 = vperm.slane %v3418, 0
        %v3639 = vperm.slane %v3418, 2
        %v3640 = vperm.slane %v3419, 0
        %v3641 = vperm.slane %v3419, 2
        %v3642 = vperm.slane %v3420, 0
        %v3643 = vperm.slane %v3420, 2
        %v3644 = vperm.slane %v3421, 0
        %v3645 = vperm.slane %v3421, 2
        %v3646 = vperm.slane %v3422, 0
        %v3647 = vperm.slane %v3422, 2
        %v3648 = vperm.slane %v3423, 0
        %v3649 = vperm.slane %v3423, 2
        %v3650 = vperm.slane %v3424, 0
        %v3651 = vperm.slane %v3424, 2
        %v3652 = vperm.slane %v3425, 0
        %v3653 = vperm.slane %v3425, 2
        %v3654 = vperm.slane %v3426, 0
        %v3655 = vperm.slane %v3426, 2
        %v3656 = vperm.slane %v3427, 0
        %v3657 = vperm.slane %v3427, 2
        %v3658 = vperm.slane %v3428, 0
        %v3659 = vperm.slane %v3428, 2
        %v3660 = vperm.slane %v3429, 0
        %v3661 = vperm.slane %v3429, 2
        %v3662 = vperm.slane %v3430, 0
        %v3663 = vperm.slane %v3430, 2
        %v3664 = vperm.slane %v3431, 0
        %v3665 = vperm.slane %v3431, 2
        %v3666 = vperm.slane %v3432, 0
        %v3667 = vperm.slane %v3432, 2
        %v3668 = vperm.slane %v3433, 0
        %v3669 = vperm.slane %v3433, 2
        %v3670 = vperm.slane %v3434, 0
        %v3671 = vperm.slane %v3434, 2
        %v3672 = vperm.slane %v3435, 0
        %v3673 = vperm.slane %v3435, 2
        %v3674 = vperm.slane %v3436, 0
        %v3675 = vperm.slane %v3436, 2
        %v3676 = vperm.slane %v3437, 0
        %v3677 = vperm.slane %v3437, 2
        %v3678 = vperm.slane %v3438, 0
        %v3679 = vperm.slane %v3438, 2
        %v3680 = vperm.slane %v3439, 0
        %v3681 = vperm.slane %v3439, 2
        %v3682 = vperm.slane %v3440, 0
        %v3683 = vperm.slane %v3440, 2
        %v3684 = vperm.slane %v3441, 0
        %v3685 = vperm.slane %v3441, 2
        %v3686 = vperm.slane %v3442, 0
        %v3687 = vperm.slane %v3442, 2
        %v3688 = vperm.slane %v3443, 0
        %v3689 = vperm.slane %v3443, 2
        %v3690 = vperm.slane %v3444, 0
        %v3691 = vperm.slane %v3444, 2
        %v3692 = vperm.slane %v3445, 0
        %v3693 = vperm.slane %v3445, 2
        %v3694 = vperm.slane %v3446, 0
        %v3695 = vperm.slane %v3446, 2
        %v3696 = vperm.slane %v3447, 0
        %v3697 = vperm.slane %v3447, 2
        %v3698 = vperm.slane %v3448, 0
        %v3699 = vperm.slane %v3448, 2
        %v3700 = vperm.slane %v3449, 0
        %v3701 = vperm.slane %v3449, 2
        %v3702 = vperm.slane %v3450, 0
        %v3703 = vperm.slane %v3450, 2
        %v3704 = vperm.slane %v3451, 0
        %v3705 = vperm.slane %v3451, 2
        %v3706 = vperm.slane %v3452, 0
        %v3707 = vperm.slane %v3452, 2
        %v3708 = vperm.slane %v3453, 0
        %v3709 = vperm.slane %v3453, 2
        %v3710 = vperm.slane %v3454, 0
        %v3711 = vperm.slane %v3454, 2
        %v3712 = vperm.slane %v3455, 0
        %v3713 = vperm.slane %v3455, 2
        %v3714 = vperm.slane %v3456, 0
        %v3715 = vperm.slane %v3456, 2
        %v3716 = vperm.slane %v3457, 0
        %v3717 = vperm.slane %v3457, 2
        %v3718 = vperm.slane %v3458, 0
        %v3719 = vperm.slane %v3458, 2
        %v3720 = vperm.slane %v3459, 0
        %v3721 = vperm.slane %v3459, 2
        %v3722 = vperm.slane %v3460, 0
        %v3723 = vperm.slane %v3460, 2
        %v3724 = vperm.slane %v3461, 0
        %v3725 = vperm.slane %v3461, 2
        %v3726 = vperm.slane %v3462, 0
        %v3727 = vperm.slane %v3462, 2
        %v3728 = vperm.slane %v3463, 0
        %v3729 = vperm.slane %v3463, 2
        %v3730 = vperm.slane %v3464, 0
        %v3731 = vperm.slane %v3464, 2
        %v3732 = vperm.slane %v3465, 0
        %v3733 = vperm.slane %v3465, 2
        %v3734 = vperm.slane %v3466, 0
        %v3735 = vperm.slane %v3466, 2
        %v3736 = vperm.slane %v3467, 0
        %v3737 = vperm.slane %v3467, 2
        %v3738 = vperm.slane %v3468, 0
        %v3739 = vperm.slane %v3468, 2
        %v3740 = vperm.slane %v3469, 0
        %v3741 = vperm.slane %v3469, 2
        %v3742 = vperm.slane %v3470, 0
        %v3743 = vperm.slane %v3470, 2
        %v3744 = vperm.slane %v3471, 0
        %v3745 = vperm.slane %v3471, 2
        %v3746 = vperm.slane %v3472, 0
        %v3747 = vperm.slane %v3472, 2
        %v3748 = vperm.slane %v3473, 0
        %v3749 = vperm.slane %v3473, 2
        %v3750 = vperm.slane %v3474, 0
        %v3751 = vperm.slane %v3474, 2
        %v3752 = vperm.slane %v3475, 0
        %v3753 = vperm.slane %v3475, 2
        %v3754 = vperm.slane %v3476, 0
        %v3755 = vperm.slane %v3476, 2
        %v3756 = vperm.slane %v3477, 0
        %v3757 = vperm.slane %v3477, 2
        %v3758 = vperm.slane %v3478, 0
        %v3759 = vperm.slane %v3478, 2
        %v3760 = vperm.slane %v3479, 0
        %v3761 = vperm.slane %v3479, 2
        %v3762 = vperm.slane %v3480, 0
        %v3763 = vperm.slane %v3480, 2
        %v3764 = vperm.slane %v3481, 0
        %v3765 = vperm.slane %v3481, 2
        %v3766 = vperm.slane %v3482, 0
        %v3767 = vperm.slane %v3482, 2
        %v3768 = vperm.slane %v3483, 0
        %v3769 = vperm.slane %v3483, 2
        %v3770 = vperm.slane %v3484, 0
        %v3771 = vperm.slane %v3484, 2
        %v3772 = vperm.slane %v3485, 0
        %v3773 = vperm.slane %v3485, 2
        %v3966 = vpack.c.bf16 %v3583, %v3582
        %v3967 = vpack.c.bf16 %v3585, %v3584
        %v3968 = vpack.c.bf16 %v3587, %v3586
        %v3969 = vpack.c.bf16 %v3589, %v3588
        %v3970 = vpack.c.bf16 %v3591, %v3590
        %v3971 = vpack.c.bf16 %v3593, %v3592
        %v3972 = vpack.c.bf16 %v3595, %v3594
        %v3973 = vpack.c.bf16 %v3597, %v3596
        %v3974 = vpack.c.bf16 %v3599, %v3598
        %v3975 = vpack.c.bf16 %v3601, %v3600
        %v3976 = vpack.c.bf16 %v3603, %v3602
        %v3977 = vpack.c.bf16 %v3605, %v3604
        %v3978 = vpack.c.bf16 %v3607, %v3606
        %v3979 = vpack.c.bf16 %v3609, %v3608
        %v3980 = vpack.c.bf16 %v3611, %v3610
        %v3981 = vpack.c.bf16 %v3613, %v3612
        %v3982 = vpack.c.bf16 %v3615, %v3614
        %v3983 = vpack.c.bf16 %v3617, %v3616
        %v3984 = vpack.c.bf16 %v3619, %v3618
        %v3985 = vpack.c.bf16 %v3621, %v3620
        %v3986 = vpack.c.bf16 %v3623, %v3622
        %v3987 = vpack.c.bf16 %v3625, %v3624
        %v3988 = vpack.c.bf16 %v3627, %v3626
        %v3989 = vpack.c.bf16 %v3629, %v3628
        %v3990 = vpack.c.bf16 %v3631, %v3630
        %v3991 = vpack.c.bf16 %v3633, %v3632
        %v3992 = vpack.c.bf16 %v3635, %v3634
        %v3993 = vpack.c.bf16 %v3637, %v3636
        %v3994 = vpack.c.bf16 %v3639, %v3638
        %v3995 = vpack.c.bf16 %v3641, %v3640
        %v3996 = vpack.c.bf16 %v3643, %v3642
        %v3997 = vpack.c.bf16 %v3645, %v3644
        %v3998 = vpack.c.bf16 %v3647, %v3646
        %v3999 = vpack.c.bf16 %v3649, %v3648
        %v4000 = vpack.c.bf16 %v3651, %v3650
        %v4001 = vpack.c.bf16 %v3653, %v3652
        %v4002 = vpack.c.bf16 %v3655, %v3654
        %v4003 = vpack.c.bf16 %v3657, %v3656
        %v4004 = vpack.c.bf16 %v3659, %v3658
        %v4005 = vpack.c.bf16 %v3661, %v3660
        %v4006 = vpack.c.bf16 %v3663, %v3662
        %v4007 = vpack.c.bf16 %v3665, %v3664
        %v4008 = vpack.c.bf16 %v3667, %v3666
        %v4009 = vpack.c.bf16 %v3669, %v3668
        %v4010 = vpack.c.bf16 %v3671, %v3670
        %v4011 = vpack.c.bf16 %v3673, %v3672
        %v4012 = vpack.c.bf16 %v3675, %v3674
        %v4013 = vpack.c.bf16 %v3677, %v3676
        %v4014 = vpack.c.bf16 %v3679, %v3678
        %v4015 = vpack.c.bf16 %v3681, %v3680
        %v4016 = vpack.c.bf16 %v3683, %v3682
        %v4017 = vpack.c.bf16 %v3685, %v3684
        %v4018 = vpack.c.bf16 %v3687, %v3686
        %v4019 = vpack.c.bf16 %v3689, %v3688
        %v4020 = vpack.c.bf16 %v3691, %v3690
        %v4021 = vpack.c.bf16 %v3693, %v3692
        %v4022 = vpack.c.bf16 %v3695, %v3694
        %v4023 = vpack.c.bf16 %v3697, %v3696
        %v4024 = vpack.c.bf16 %v3699, %v3698
        %v4025 = vpack.c.bf16 %v3701, %v3700
        %v4026 = vpack.c.bf16 %v3703, %v3702
        %v4027 = vpack.c.bf16 %v3705, %v3704
        %v4028 = vpack.c.bf16 %v3707, %v3706
        %v4029 = vpack.c.bf16 %v3709, %v3708
        %v4030 = vpack.c.bf16 %v3711, %v3710
        %v4031 = vpack.c.bf16 %v3713, %v3712
        %v4032 = vpack.c.bf16 %v3715, %v3714
        %v4033 = vpack.c.bf16 %v3717, %v3716
        %v4034 = vpack.c.bf16 %v3719, %v3718
        %v4035 = vpack.c.bf16 %v3721, %v3720
        %v4036 = vpack.c.bf16 %v3723, %v3722
        %v4037 = vpack.c.bf16 %v3725, %v3724
        %v4038 = vpack.c.bf16 %v3727, %v3726
        %v4039 = vpack.c.bf16 %v3729, %v3728
        %v4040 = vpack.c.bf16 %v3731, %v3730
        %v4041 = vpack.c.bf16 %v3733, %v3732
        %v4042 = vpack.c.bf16 %v3735, %v3734
        %v4043 = vpack.c.bf16 %v3737, %v3736
        %v4044 = vpack.c.bf16 %v3739, %v3738
        %v4045 = vpack.c.bf16 %v3741, %v3740
        %v4046 = vpack.c.bf16 %v3743, %v3742
        %v4047 = vpack.c.bf16 %v3745, %v3744
        %v4048 = vpack.c.bf16 %v3747, %v3746
        %v4049 = vpack.c.bf16 %v3749, %v3748
        %v4050 = vpack.c.bf16 %v3751, %v3750
        %v4051 = vpack.c.bf16 %v3753, %v3752
        %v4052 = vpack.c.bf16 %v3755, %v3754
        %v4053 = vpack.c.bf16 %v3757, %v3756
        %v4054 = vpack.c.bf16 %v3759, %v3758
        %v4055 = vpack.c.bf16 %v3761, %v3760
        %v4056 = vpack.c.bf16 %v3763, %v3762
        %v4057 = vpack.c.bf16 %v3765, %v3764
        %v4058 = vpack.c.bf16 %v3767, %v3766
        %v4059 = vpack.c.bf16 %v3769, %v3768
        %v4060 = vpack.c.bf16 %v3771, %v3770
        %v4061 = vpack.c.bf16 %v3773, %v3772
        %v4062 = vld [vmem:[%s3] sm:$0xff]
        %v4063 = vld [vmem:[%s3 + $0x8] sm:$0xff]
        %v4064 = vld [vmem:[%s3 + $0x10] sm:$0xff]
        %v4065 = vld [vmem:[%s3 + $0x18] sm:$0xff]
        %v4066 = vld [vmem:[%s3 + $0x20] sm:$0xff]
        %v4067 = vld [vmem:[%s3 + $0x28] sm:$0xff]
        %v4068 = vld [vmem:[%s3 + $0x30] sm:$0xff]
        %v4069 = vld [vmem:[%s3 + $0x38] sm:$0xff]
        %v4070 = vld [vmem:[%s3 + $0x40] sm:$0xff]
        %v4071 = vld [vmem:[%s3 + $0x48] sm:$0xff]
        %v4072 = vld [vmem:[%s3 + $0x50] sm:$0xff]
        %v4073 = vld [vmem:[%s3 + $0x58] sm:$0xff]
        %v4074 = vld [vmem:[%s3 + $0x60] sm:$0xff]
        %v4075 = vld [vmem:[%s3 + $0x68] sm:$0xff]
        %v4076 = vld [vmem:[%s3 + $0x70] sm:$0xff]
        %v4077 = vld [vmem:[%s3 + $0x78] sm:$0xff]
        %v4078 = vld [vmem:[%s3 + $0x80] sm:$0xff]
        %v4079 = vld [vmem:[%s3 + $0x88] sm:$0xff]
        %v4080 = vld [vmem:[%s3 + $0x90] sm:$0xff]
        %v4081 = vld [vmem:[%s3 + $0x98] sm:$0xff]
        %v4082 = vld [vmem:[%s3 + $0xa0] sm:$0xff]
        %v4083 = vld [vmem:[%s3 + $0xa8] sm:$0xff]
        %v4084 = vld [vmem:[%s3 + $0xb0] sm:$0xff]
        %v4085 = vld [vmem:[%s3 + $0xb8] sm:$0xff]
        %v4086 = vld [vmem:[%s3 + $0xc0] sm:$0xff]
        %v4087 = vld [vmem:[%s3 + $0xc8] sm:$0xff]
        %v4088 = vld [vmem:[%s3 + $0xd0] sm:$0xff]
        %v4089 = vld [vmem:[%s3 + $0xd8] sm:$0xff]
        %v4090 = vld [vmem:[%s3 + $0xe0] sm:$0x77]
        %v4091 = vld [vmem:[%s3 + $0xe8] sm:$0xff]
        %v4092 = vld [vmem:[%s3 + $0xf0] sm:$0xff]
        %v4093 = vld [vmem:[%s3 + $0xf8] sm:$0xff]
        %v4094 = vld [vmem:[%s3 + $0x100] sm:$0xff]
        %v4095 = vld [vmem:[%s3 + $0x108] sm:$0xff]
        %v4096 = vld [vmem:[%s3 + $0x110] sm:$0xff]
        %v4097 = vld [vmem:[%s3 + $0x118] sm:$0xff]
        %v4098 = vld [vmem:[%s3 + $0x120] sm:$0xff]
        %v4099 = vld [vmem:[%s3 + $0x128] sm:$0xff]
        %v4100 = vld [vmem:[%s3 + $0x130] sm:$0xff]
        %v4101 = vld [vmem:[%s3 + $0x138] sm:$0xff]
        %v4102 = vld [vmem:[%s3 + $0x140] sm:$0xff]
        %v4103 = vld [vmem:[%s3 + $0x148] sm:$0xff]
        %v4104 = vld [vmem:[%s3 + $0x150] sm:$0xff]
        %v4105 = vld [vmem:[%s3 + $0x158] sm:$0xff]
        %v4106 = vld [vmem:[%s3 + $0x160] sm:$0xff]
        %v4107 = vld [vmem:[%s3 + $0x168] sm:$0xff]
        %v4108 = vld [vmem:[%s3 + $0x170] sm:$0xff]
        %v4109 = vld [vmem:[%s3 + $0x178] sm:$0xff]
        %v4110 = vld [vmem:[%s3 + $0x180] sm:$0xff]
        %v4111 = vld [vmem:[%s3 + $0x188] sm:$0xff]
        %v4112 = vld [vmem:[%s3 + $0x190] sm:$0xff]
        %v4113 = vld [vmem:[%s3 + $0x198] sm:$0xff]
        %v4114 = vld [vmem:[%s3 + $0x1a0] sm:$0xff]
        %v4115 = vld [vmem:[%s3 + $0x1a8] sm:$0xff]
        %v4116 = vld [vmem:[%s3 + $0x1b0] sm:$0xff]
        %v4117 = vld [vmem:[%s3 + $0x1b8] sm:$0xff]
        %v4118 = vld [vmem:[%s3 + $0x1c0] sm:$0xff]
        %v4119 = vld [vmem:[%s3 + $0x1c8] sm:$0x77]
        %v4120 = vld [vmem:[%s3 + $0x1d0] sm:$0xff]
        %v4121 = vld [vmem:[%s3 + $0x1d8] sm:$0xff]
        %v4122 = vld [vmem:[%s3 + $0x1e0] sm:$0xff]
        %v4123 = vld [vmem:[%s3 + $0x1e8] sm:$0xff]
        %v4124 = vld [vmem:[%s3 + $0x1f0] sm:$0xff]
        %v4125 = vld [vmem:[%s3 + $0x1f8] sm:$0xff]
        %v4126 = vld [vmem:[%s3 + $0x200] sm:$0xff]
        %v4127 = vld [vmem:[%s3 + $0x208] sm:$0xff]
        %v4128 = vld [vmem:[%s3 + $0x210] sm:$0xff]
        %v4129 = vld [vmem:[%s3 + $0x218] sm:$0xff]
        %v4130 = vld [vmem:[%s3 + $0x220] sm:$0xff]
        %v4131 = vld [vmem:[%s3 + $0x228] sm:$0xff]
        %v4132 = vld [vmem:[%s3 + $0x230] sm:$0xff]
        %v4133 = vld [vmem:[%s3 + $0x238] sm:$0xff]
        %v4134 = vld [vmem:[%s3 + $0x240] sm:$0xff]
        %v4135 = vld [vmem:[%s3 + $0x248] sm:$0xff]
        %v4136 = vld [vmem:[%s3 + $0x250] sm:$0xff]
        %v4137 = vld [vmem:[%s3 + $0x258] sm:$0xff]
        %v4138 = vld [vmem:[%s3 + $0x260] sm:$0xff]
        %v4139 = vld [vmem:[%s3 + $0x268] sm:$0xff]
        %v4140 = vld [vmem:[%s3 + $0x270] sm:$0xff]
        %v4141 = vld [vmem:[%s3 + $0x278] sm:$0xff]
        %v4142 = vld [vmem:[%s3 + $0x280] sm:$0xff]
        %v4143 = vld [vmem:[%s3 + $0x288] sm:$0xff]
        %v4144 = vld [vmem:[%s3 + $0x290] sm:$0xff]
        %v4145 = vld [vmem:[%s3 + $0x298] sm:$0xff]
        %v4146 = vld [vmem:[%s3 + $0x2a0] sm:$0xff]
        %v4147 = vld [vmem:[%s3 + $0x2a8] sm:$0xff]
        %v4148 = vld [vmem:[%s3 + $0x2b0] sm:$0x77]
        %v4149 = vld [vmem:[%s3 + $0x2b8] sm:$0xff]
        %v4150 = vld [vmem:[%s3 + $0x2c0] sm:$0xff]
        %v4151 = vld [vmem:[%s3 + $0x2c8] sm:$0xff]
        %v4152 = vld [vmem:[%s3 + $0x2d0] sm:$0xff]
        %v4153 = vld [vmem:[%s3 + $0x2d8] sm:$0xff]
        %v4154 = vld [vmem:[%s3 + $0x2e0] sm:$0xff]
        %v4155 = vld [vmem:[%s3 + $0x2e8] sm:$0xff]
        %v4156 = vld [vmem:[%s3 + $0x2f0] sm:$0xff]
        %v4157 = vld [vmem:[%s3 + $0x2f8] sm:$0xff]
        %v4158 = vld [vmem:[%s3 + $0x300] sm:$0xff]
        %v4159 = vld [vmem:[%s3 + $0x308] sm:$0xff]
        %v4160 = vld [vmem:[%s3 + $0x310] sm:$0xff]
        %v4161 = vld [vmem:[%s3 + $0x318] sm:$0xff]
        %v4162 = vld [vmem:[%s3 + $0x320] sm:$0xff]
        %v4163 = vld [vmem:[%s3 + $0x328] sm:$0xff]
        %v4164 = vld [vmem:[%s3 + $0x330] sm:$0xff]
        %v4165 = vld [vmem:[%s3 + $0x338] sm:$0xff]
        %v4166 = vld [vmem:[%s3 + $0x340] sm:$0xff]
        %v4167 = vld [vmem:[%s3 + $0x348] sm:$0xff]
        %v4168 = vld [vmem:[%s3 + $0x350] sm:$0xff]
        %v4169 = vld [vmem:[%s3 + $0x358] sm:$0xff]
        %v4170 = vld [vmem:[%s3 + $0x360] sm:$0xff]
        %v4171 = vld [vmem:[%s3 + $0x368] sm:$0xff]
        %v4172 = vld [vmem:[%s3 + $0x370] sm:$0xff]
        %v4173 = vld [vmem:[%s3 + $0x378] sm:$0xff]
        %v4174 = vld [vmem:[%s3 + $0x380] sm:$0xff]
        %v4175 = vld [vmem:[%s3 + $0x388] sm:$0xff]
        %v4176 = vld [vmem:[%s3 + $0x390] sm:$0xff]
        %v4177 = vld [vmem:[%s3 + $0x398] sm:$0x77]
        %v4178 = vld [vmem:[%s3 + $0x3a0] sm:$0xff]
        %v4179 = vld [vmem:[%s3 + $0x3a8] sm:$0xff]
        %v4180 = vld [vmem:[%s3 + $0x3b0] sm:$0xff]
        %v4181 = vld [vmem:[%s3 + $0x3b8] sm:$0xff]
        %v4182 = vld [vmem:[%s3 + $0x3c0] sm:$0xff]
        %v4183 = vld [vmem:[%s3 + $0x3c8] sm:$0xff]
        %v4184 = vld [vmem:[%s3 + $0x3d0] sm:$0xff]
        %v4185 = vld [vmem:[%s3 + $0x3d8] sm:$0xff]
        %v4186 = vld [vmem:[%s3 + $0x3e0] sm:$0xff]
        %v4187 = vld [vmem:[%s3 + $0x3e8] sm:$0xff]
        %v4188 = vld [vmem:[%s3 + $0x3f0] sm:$0xff]
        %v4189 = vld [vmem:[%s3 + $0x3f8] sm:$0xff]
        %v4190 = vld [vmem:[%s3 + $0x400] sm:$0xff]
        %v4191 = vld [vmem:[%s3 + $0x408] sm:$0xff]
        %v4192 = vld [vmem:[%s3 + $0x410] sm:$0xff]
        %v4193 = vld [vmem:[%s3 + $0x418] sm:$0xff]
        %v4194 = vld [vmem:[%s3 + $0x420] sm:$0xff]
        %v4195 = vld [vmem:[%s3 + $0x428] sm:$0xff]
        %v4196 = vld [vmem:[%s3 + $0x430] sm:$0xff]
        %v4197 = vld [vmem:[%s3 + $0x438] sm:$0xff]
        %v4198 = vld [vmem:[%s3 + $0x440] sm:$0xff]
        %v4199 = vld [vmem:[%s3 + $0x448] sm:$0xff]
        %v4200 = vld [vmem:[%s3 + $0x450] sm:$0xff]
        %v4201 = vld [vmem:[%s3 + $0x458] sm:$0xff]
        %v4202 = vld [vmem:[%s3 + $0x460] sm:$0xff]
        %v4203 = vld [vmem:[%s3 + $0x468] sm:$0xff]
        %v4204 = vld [vmem:[%s3 + $0x470] sm:$0xff]
        %v4205 = vld [vmem:[%s3 + $0x478] sm:$0xff]
        %v4206 = vld [vmem:[%s3 + $0x480] sm:$0x77]
        %v4271 = vunpack.c.l.b16 %v3967
        %v4272 = vunpack.c.h.b16 %v3967
        %v4273 = vunpack.c.l.b16 %v3968
        %v4274 = vunpack.c.h.b16 %v3968
        %v4275 = vunpack.c.l.b16 %v3969
        %v4276 = vunpack.c.h.b16 %v3969
        %v4277 = vunpack.c.l.b16 %v3970
        %v4278 = vunpack.c.h.b16 %v3970
        %v4279 = vunpack.c.l.b16 %v3971
        %v4280 = vunpack.c.h.b16 %v3971
        %v4281 = vunpack.c.l.b16 %v3972
        %v4282 = vunpack.c.h.b16 %v3972
        %v4283 = vunpack.c.l.b16 %v3973
        %v4284 = vunpack.c.h.b16 %v3973
        %v4285 = vunpack.c.l.b16 %v3974
        %v4286 = vunpack.c.h.b16 %v3974
        %v4287 = vunpack.c.l.b16 %v3979
        %v4288 = vunpack.c.h.b16 %v3979
        %v4289 = vunpack.c.l.b16 %v3980
        %v4290 = vunpack.c.h.b16 %v3980
        %v4291 = vunpack.c.l.b16 %v3981
        %v4292 = vunpack.c.h.b16 %v3981
        %v4293 = vunpack.c.l.b16 %v3982
        %v4294 = vunpack.c.h.b16 %v3982
        %v4295 = vunpack.c.l.b16 %v3983
        %v4296 = vunpack.c.h.b16 %v3983
        %v4297 = vunpack.c.l.b16 %v3984
        %v4298 = vunpack.c.h.b16 %v3984
        %v4299 = vunpack.c.l.b16 %v3985
        %v4300 = vunpack.c.h.b16 %v3985
        %v4301 = vunpack.c.l.b16 %v3986
        %v4302 = vunpack.c.h.b16 %v3986
        %v4303 = vunpack.c.l.b16 %v3991
        %v4304 = vunpack.c.h.b16 %v3991
        %v4305 = vunpack.c.l.b16 %v3992
        %v4306 = vunpack.c.h.b16 %v3992
        %v4307 = vunpack.c.l.b16 %v3993
        %v4308 = vunpack.c.h.b16 %v3993
        %v4309 = vunpack.c.l.b16 %v3994
        %v4310 = vunpack.c.h.b16 %v3994
        %v4311 = vunpack.c.l.b16 %v3995
        %v4312 = vunpack.c.h.b16 %v3995
        %v4313 = vunpack.c.l.b16 %v3996
        %v4314 = vunpack.c.h.b16 %v3996
        %v4315 = vunpack.c.l.b16 %v3997
        %v4316 = vunpack.c.h.b16 %v3997
        %v4317 = vunpack.c.l.b16 %v3998
        %v4318 = vunpack.c.h.b16 %v3998
        %v4319 = vunpack.c.l.b16 %v4003
        %v4320 = vunpack.c.h.b16 %v4003
        %v4321 = vunpack.c.l.b16 %v4004
        %v4322 = vunpack.c.h.b16 %v4004
        %v4323 = vunpack.c.l.b16 %v4005
        %v4324 = vunpack.c.h.b16 %v4005
        %v4325 = vunpack.c.l.b16 %v4006
        %v4326 = vunpack.c.h.b16 %v4006
        %v4327 = vunpack.c.l.b16 %v4007
        %v4328 = vunpack.c.h.b16 %v4007
        %v4329 = vunpack.c.l.b16 %v4008
        %v4330 = vunpack.c.h.b16 %v4008
        %v4331 = vunpack.c.l.b16 %v4009
        %v4332 = vunpack.c.h.b16 %v4009
        %v4333 = vunpack.c.l.b16 %v4010
        %v4334 = vunpack.c.h.b16 %v4010
        %v4335 = vunpack.c.l.b16 %v4015
        %v4336 = vunpack.c.h.b16 %v4015
        %v4337 = vunpack.c.l.b16 %v4016
        %v4338 = vunpack.c.h.b16 %v4016
        %v4339 = vunpack.c.l.b16 %v4017
        %v4340 = vunpack.c.h.b16 %v4017
        %v4341 = vunpack.c.l.b16 %v4018
        %v4342 = vunpack.c.h.b16 %v4018
        %v4343 = vunpack.c.l.b16 %v4019
        %v4344 = vunpack.c.h.b16 %v4019
        %v4345 = vunpack.c.l.b16 %v4020
        %v4346 = vunpack.c.h.b16 %v4020
        %v4347 = vunpack.c.l.b16 %v4021
        %v4348 = vunpack.c.h.b16 %v4021
        %v4349 = vunpack.c.l.b16 %v4022
        %v4350 = vunpack.c.h.b16 %v4022
        %v4351 = vunpack.c.l.b16 %v4027
        %v4352 = vunpack.c.h.b16 %v4027
        %v4353 = vunpack.c.l.b16 %v4028
        %v4354 = vunpack.c.h.b16 %v4028
        %v4355 = vunpack.c.l.b16 %v4029
        %v4356 = vunpack.c.h.b16 %v4029
        %v4357 = vunpack.c.l.b16 %v4030
        %v4358 = vunpack.c.h.b16 %v4030
        %v4359 = vunpack.c.l.b16 %v4031
        %v4360 = vunpack.c.h.b16 %v4031
        %v4361 = vunpack.c.l.b16 %v4032
        %v4362 = vunpack.c.h.b16 %v4032
        %v4363 = vunpack.c.l.b16 %v4033
        %v4364 = vunpack.c.h.b16 %v4033
        %v4365 = vunpack.c.l.b16 %v4034
        %v4366 = vunpack.c.h.b16 %v4034
        %v4367 = vunpack.c.l.b16 %v4039
        %v4368 = vunpack.c.h.b16 %v4039
        %v4369 = vunpack.c.l.b16 %v4040
        %v4370 = vunpack.c.h.b16 %v4040
        %v4371 = vunpack.c.l.b16 %v4041
        %v4372 = vunpack.c.h.b16 %v4041
        %v4373 = vunpack.c.l.b16 %v4042
        %v4374 = vunpack.c.h.b16 %v4042
        %v4375 = vunpack.c.l.b16 %v4043
        %v4376 = vunpack.c.h.b16 %v4043
        %v4377 = vunpack.c.l.b16 %v4044
        %v4378 = vunpack.c.h.b16 %v4044
        %v4379 = vunpack.c.l.b16 %v4045
        %v4380 = vunpack.c.h.b16 %v4045
        %v4381 = vunpack.c.l.b16 %v4046
        %v4382 = vunpack.c.h.b16 %v4046
        %v4383 = vunpack.c.l.b16 %v4051
        %v4384 = vunpack.c.h.b16 %v4051
        %v4385 = vunpack.c.l.b16 %v4052
        %v4386 = vunpack.c.h.b16 %v4052
        %v4387 = vunpack.c.l.b16 %v4053
        %v4388 = vunpack.c.h.b16 %v4053
        %v4389 = vunpack.c.l.b16 %v4054
        %v4390 = vunpack.c.h.b16 %v4054
        %v4391 = vunpack.c.l.b16 %v4055
        %v4392 = vunpack.c.h.b16 %v4055
        %v4393 = vunpack.c.l.b16 %v4056
        %v4394 = vunpack.c.h.b16 %v4056
        %v4395 = vunpack.c.l.b16 %v4057
        %v4396 = vunpack.c.h.b16 %v4057
        %v4397 = vunpack.c.l.b16 %v4058
        %v4398 = vunpack.c.h.b16 %v4058
        %v4399 = vpack.c.b16 %v4271, %v4271
        %v4400 = vpack.c.b16 %v4272, %v4272
        %v4401 = vpack.c.b16 %v4273, %v4273
        %v4402 = vpack.c.b16 %v4274, %v4274
        %v4403 = vpack.c.b16 %v4275, %v4275
        %v4404 = vpack.c.b16 %v4276, %v4276
        %v4405 = vpack.c.b16 %v4277, %v4277
        %v4406 = vpack.c.b16 %v4278, %v4278
        %v4407 = vpack.c.b16 %v4279, %v4279
        %v4408 = vpack.c.b16 %v4280, %v4280
        %v4409 = vpack.c.b16 %v4281, %v4281
        %v4410 = vpack.c.b16 %v4282, %v4282
        %v4411 = vpack.c.b16 %v4283, %v4283
        %v4412 = vpack.c.b16 %v4284, %v4284
        %v4413 = vpack.c.b16 %v4285, %v4285
        %v4414 = vpack.c.b16 %v4286, %v4286
        %v4415 = vpack.c.b16 %v4287, %v4287
        %v4416 = vpack.c.b16 %v4288, %v4288
        %v4417 = vpack.c.b16 %v4289, %v4289
        %v4418 = vpack.c.b16 %v4290, %v4290
        %v4419 = vpack.c.b16 %v4291, %v4291
        %v4420 = vpack.c.b16 %v4292, %v4292
        %v4421 = vpack.c.b16 %v4293, %v4293
        %v4422 = vpack.c.b16 %v4294, %v4294
        %v4423 = vpack.c.b16 %v4295, %v4295
        %v4424 = vpack.c.b16 %v4296, %v4296
        %v4425 = vpack.c.b16 %v4297, %v4297
        %v4426 = vpack.c.b16 %v4298, %v4298
        %v4427 = vpack.c.b16 %v4299, %v4299
        %v4428 = vpack.c.b16 %v4300, %v4300
        %v4429 = vpack.c.b16 %v4301, %v4301
        %v4430 = vpack.c.b16 %v4302, %v4302
        %v4431 = vpack.c.b16 %v4303, %v4303
        %v4432 = vpack.c.b16 %v4304, %v4304
        %v4433 = vpack.c.b16 %v4305, %v4305
        %v4434 = vpack.c.b16 %v4306, %v4306
        %v4435 = vpack.c.b16 %v4307, %v4307
        %v4436 = vpack.c.b16 %v4308, %v4308
        %v4437 = vpack.c.b16 %v4309, %v4309
        %v4438 = vpack.c.b16 %v4310, %v4310
        %v4439 = vpack.c.b16 %v4311, %v4311
        %v4440 = vpack.c.b16 %v4312, %v4312
        %v4441 = vpack.c.b16 %v4313, %v4313
        %v4442 = vpack.c.b16 %v4314, %v4314
        %v4443 = vpack.c.b16 %v4315, %v4315
        %v4444 = vpack.c.b16 %v4316, %v4316
        %v4445 = vpack.c.b16 %v4317, %v4317
        %v4446 = vpack.c.b16 %v4318, %v4318
        %v4447 = vpack.c.b16 %v4319, %v4319
        %v4448 = vpack.c.b16 %v4320, %v4320
        %v4449 = vpack.c.b16 %v4321, %v4321
        %v4450 = vpack.c.b16 %v4322, %v4322
        %v4451 = vpack.c.b16 %v4323, %v4323
        %v4452 = vpack.c.b16 %v4324, %v4324
        %v4453 = vpack.c.b16 %v4325, %v4325
        %v4454 = vpack.c.b16 %v4326, %v4326
        %v4455 = vpack.c.b16 %v4327, %v4327
        %v4456 = vpack.c.b16 %v4328, %v4328
        %v4457 = vpack.c.b16 %v4329, %v4329
        %v4458 = vpack.c.b16 %v4330, %v4330
        %v4459 = vpack.c.b16 %v4331, %v4331
        %v4460 = vpack.c.b16 %v4332, %v4332
        %v4461 = vpack.c.b16 %v4333, %v4333
        %v4462 = vpack.c.b16 %v4334, %v4334
        %v4463 = vpack.c.b16 %v4335, %v4335
        %v4464 = vpack.c.b16 %v4336, %v4336
        %v4465 = vpack.c.b16 %v4337, %v4337
        %v4466 = vpack.c.b16 %v4338, %v4338
        %v4467 = vpack.c.b16 %v4339, %v4339
        %v4468 = vpack.c.b16 %v4340, %v4340
        %v4469 = vpack.c.b16 %v4341, %v4341
        %v4470 = vpack.c.b16 %v4342, %v4342
        %v4471 = vpack.c.b16 %v4343, %v4343
        %v4472 = vpack.c.b16 %v4344, %v4344
        %v4473 = vpack.c.b16 %v4345, %v4345
        %v4474 = vpack.c.b16 %v4346, %v4346
        %v4475 = vpack.c.b16 %v4347, %v4347
        %v4476 = vpack.c.b16 %v4348, %v4348
        %v4477 = vpack.c.b16 %v4349, %v4349
        %v4478 = vpack.c.b16 %v4350, %v4350
        %v4479 = vpack.c.b16 %v4351, %v4351
        %v4480 = vpack.c.b16 %v4352, %v4352
        %v4481 = vpack.c.b16 %v4353, %v4353
        %v4482 = vpack.c.b16 %v4354, %v4354
        %v4483 = vpack.c.b16 %v4355, %v4355
        %v4484 = vpack.c.b16 %v4356, %v4356
        %v4485 = vpack.c.b16 %v4357, %v4357
        %v4486 = vpack.c.b16 %v4358, %v4358
        %v4487 = vpack.c.b16 %v4359, %v4359
        %v4488 = vpack.c.b16 %v4360, %v4360
        %v4489 = vpack.c.b16 %v4361, %v4361
        %v4490 = vpack.c.b16 %v4362, %v4362
        %v4491 = vpack.c.b16 %v4363, %v4363
        %v4492 = vpack.c.b16 %v4364, %v4364
        %v4493 = vpack.c.b16 %v4365, %v4365
        %v4494 = vpack.c.b16 %v4366, %v4366
        %v4495 = vpack.c.b16 %v4367, %v4367
        %v4496 = vpack.c.b16 %v4368, %v4368
        %v4497 = vpack.c.b16 %v4369, %v4369
        %v4498 = vpack.c.b16 %v4370, %v4370
        %v4499 = vpack.c.b16 %v4371, %v4371
        %v4500 = vpack.c.b16 %v4372, %v4372
        %v4501 = vpack.c.b16 %v4373, %v4373
        %v4502 = vpack.c.b16 %v4374, %v4374
        %v4503 = vpack.c.b16 %v4375, %v4375
        %v4504 = vpack.c.b16 %v4376, %v4376
        %v4505 = vpack.c.b16 %v4377, %v4377
        %v4506 = vpack.c.b16 %v4378, %v4378
        %v4507 = vpack.c.b16 %v4379, %v4379
        %v4508 = vpack.c.b16 %v4380, %v4380
        %v4509 = vpack.c.b16 %v4381, %v4381
        %v4510 = vpack.c.b16 %v4382, %v4382
        %v4511 = vpack.c.b16 %v4383, %v4383
        %v4512 = vpack.c.b16 %v4384, %v4384
        %v4513 = vpack.c.b16 %v4385, %v4385
        %v4514 = vpack.c.b16 %v4386, %v4386
        %v4515 = vpack.c.b16 %v4387, %v4387
        %v4516 = vpack.c.b16 %v4388, %v4388
        %v4517 = vpack.c.b16 %v4389, %v4389
        %v4518 = vpack.c.b16 %v4390, %v4390
        %v4519 = vpack.c.b16 %v4391, %v4391
        %v4520 = vpack.c.b16 %v4392, %v4392
        %v4521 = vpack.c.b16 %v4393, %v4393
        %v4522 = vpack.c.b16 %v4394, %v4394
        %v4523 = vpack.c.b16 %v4395, %v4395
        %v4524 = vpack.c.b16 %v4396, %v4396
        %v4525 = vpack.c.b16 %v4397, %v4397
        %v4526 = vpack.c.b16 %v4398, %v4398
        %v4527 = vunpack.c.l.b16 %v4399
        %v4528 = vunpack.c.l.b16 %v4400
        %v4529 = vunpack.c.l.b16 %v4401
        %v4530 = vunpack.c.l.b16 %v4402
        %v4531 = vunpack.c.l.b16 %v4403
        %v4532 = vunpack.c.l.b16 %v4404
        %v4533 = vunpack.c.l.b16 %v4405
        %v4534 = vunpack.c.l.b16 %v4406
        %v4535 = vunpack.c.l.b16 %v4407
        %v4536 = vunpack.c.l.b16 %v4408
        %v4537 = vunpack.c.l.b16 %v4409
        %v4538 = vunpack.c.l.b16 %v4410
        %v4539 = vunpack.c.l.b16 %v4411
        %v4540 = vunpack.c.l.b16 %v4412
        %v4541 = vunpack.c.l.b16 %v4413
        %v4542 = vunpack.c.l.b16 %v4414
        %v4543 = vunpack.c.l.b16 %v4415
        %v4544 = vunpack.c.l.b16 %v4416
        %v4545 = vunpack.c.l.b16 %v4417
        %v4546 = vunpack.c.l.b16 %v4418
        %v4547 = vunpack.c.l.b16 %v4419
        %v4548 = vunpack.c.l.b16 %v4420
        %v4549 = vunpack.c.l.b16 %v4421
        %v4550 = vunpack.c.l.b16 %v4422
        %v4551 = vunpack.c.l.b16 %v4423
        %v4552 = vunpack.c.l.b16 %v4424
        %v4553 = vunpack.c.l.b16 %v4425
        %v4554 = vunpack.c.l.b16 %v4426
        %v4555 = vunpack.c.l.b16 %v4427
        %v4556 = vunpack.c.l.b16 %v4428
        %v4557 = vunpack.c.l.b16 %v4429
        %v4558 = vunpack.c.l.b16 %v4430
        %v4559 = vunpack.c.l.b16 %v4431
        %v4560 = vunpack.c.l.b16 %v4432
        %v4561 = vunpack.c.l.b16 %v4433
        %v4562 = vunpack.c.l.b16 %v4434
        %v4563 = vunpack.c.l.b16 %v4435
        %v4564 = vunpack.c.l.b16 %v4436
        %v4565 = vunpack.c.l.b16 %v4437
        %v4566 = vunpack.c.l.b16 %v4438
        %v4567 = vunpack.c.l.b16 %v4439
        %v4568 = vunpack.c.l.b16 %v4440
        %v4569 = vunpack.c.l.b16 %v4441
        %v4570 = vunpack.c.l.b16 %v4442
        %v4571 = vunpack.c.l.b16 %v4443
        %v4572 = vunpack.c.l.b16 %v4444
        %v4573 = vunpack.c.l.b16 %v4445
        %v4574 = vunpack.c.l.b16 %v4446
        %v4575 = vunpack.c.l.b16 %v4447
        %v4576 = vunpack.c.l.b16 %v4448
        %v4577 = vunpack.c.l.b16 %v4449
        %v4578 = vunpack.c.l.b16 %v4450
        %v4579 = vunpack.c.l.b16 %v4451
        %v4580 = vunpack.c.l.b16 %v4452
        %v4581 = vunpack.c.l.b16 %v4453
        %v4582 = vunpack.c.l.b16 %v4454
        %v4583 = vunpack.c.l.b16 %v4455
        %v4584 = vunpack.c.l.b16 %v4456
        %v4585 = vunpack.c.l.b16 %v4457
        %v4586 = vunpack.c.l.b16 %v4458
        %v4587 = vunpack.c.l.b16 %v4459
        %v4588 = vunpack.c.l.b16 %v4460
        %v4589 = vunpack.c.l.b16 %v4461
        %v4590 = vunpack.c.l.b16 %v4462
        %v4591 = vunpack.c.l.b16 %v4463
        %v4592 = vunpack.c.l.b16 %v4464
        %v4593 = vunpack.c.l.b16 %v4465
        %v4594 = vunpack.c.l.b16 %v4466
        %v4595 = vunpack.c.l.b16 %v4467
        %v4596 = vunpack.c.l.b16 %v4468
        %v4597 = vunpack.c.l.b16 %v4469
        %v4598 = vunpack.c.l.b16 %v4470
        %v4599 = vunpack.c.l.b16 %v4471
        %v4600 = vunpack.c.l.b16 %v4472
        %v4601 = vunpack.c.l.b16 %v4473
        %v4602 = vunpack.c.l.b16 %v4474
        %v4603 = vunpack.c.l.b16 %v4475
        %v4604 = vunpack.c.l.b16 %v4476
        %v4605 = vunpack.c.l.b16 %v4477
        %v4606 = vunpack.c.l.b16 %v4478
        %v4607 = vunpack.c.l.b16 %v4479
        %v4608 = vunpack.c.l.b16 %v4480
        %v4609 = vunpack.c.l.b16 %v4481
        %v4610 = vunpack.c.l.b16 %v4482
        %v4611 = vunpack.c.l.b16 %v4483
        %v4612 = vunpack.c.l.b16 %v4484
        %v4613 = vunpack.c.l.b16 %v4485
        %v4614 = vunpack.c.l.b16 %v4486
        %v4615 = vunpack.c.l.b16 %v4487
        %v4616 = vunpack.c.l.b16 %v4488
        %v4617 = vunpack.c.l.b16 %v4489
        %v4618 = vunpack.c.l.b16 %v4490
        %v4619 = vunpack.c.l.b16 %v4491
        %v4620 = vunpack.c.l.b16 %v4492
        %v4621 = vunpack.c.l.b16 %v4493
        %v4622 = vunpack.c.l.b16 %v4494
        %v4623 = vunpack.c.l.b16 %v4495
        %v4624 = vunpack.c.l.b16 %v4496
        %v4625 = vunpack.c.l.b16 %v4497
        %v4626 = vunpack.c.l.b16 %v4498
        %v4627 = vunpack.c.l.b16 %v4499
        %v4628 = vunpack.c.l.b16 %v4500
        %v4629 = vunpack.c.l.b16 %v4501
        %v4630 = vunpack.c.l.b16 %v4502
        %v4631 = vunpack.c.l.b16 %v4503
        %v4632 = vunpack.c.l.b16 %v4504
        %v4633 = vunpack.c.l.b16 %v4505
        %v4634 = vunpack.c.l.b16 %v4506
        %v4635 = vunpack.c.l.b16 %v4507
        %v4636 = vunpack.c.l.b16 %v4508
        %v4637 = vunpack.c.l.b16 %v4509
        %v4638 = vunpack.c.l.b16 %v4510
        %v4639 = vunpack.c.l.b16 %v4511
        %v4640 = vunpack.c.l.b16 %v4512
        %v4641 = vunpack.c.l.b16 %v4513
        %v4642 = vunpack.c.l.b16 %v4514
        %v4643 = vunpack.c.l.b16 %v4515
        %v4644 = vunpack.c.l.b16 %v4516
        %v4645 = vunpack.c.l.b16 %v4517
        %v4646 = vunpack.c.l.b16 %v4518
        %v4647 = vunpack.c.l.b16 %v4519
        %v4648 = vunpack.c.l.b16 %v4520
        %v4649 = vunpack.c.l.b16 %v4521
        %v4650 = vunpack.c.l.b16 %v4522
        %v4651 = vunpack.c.l.b16 %v4523
        %v4652 = vunpack.c.l.b16 %v4524
        %v4653 = vunpack.c.l.b16 %v4525
        %v4654 = vunpack.c.l.b16 %v4526
        %v4655 = vrot.slane %v4529, 7
        %vm4656 = vcmask 1041409
        %v4657 = vsel %vm4656, %v4655, %v4527
        %v4658 = vrot.slane %v4531, 6
        %vm4659 = vcmask 1042434
        %v4660 = vsel %vm4659, %v4658, %v4657
        %v4661 = vrot.slane %v4533, 5
        %vm4662 = vcmask 1043459
        %v4663 = vsel %vm4662, %v4661, %v4660
        %v4664 = vrot.slane %v4535, 4
        %vm4665 = vcmask 1044484
        %v4666 = vsel %vm4665, %v4664, %v4663
        %v4667 = vrot.slane %v4537, 3
        %vm4668 = vcmask 1045509
        %v4669 = vsel %vm4668, %v4667, %v4666
        %v4670 = vrot.slane %v4539, 2
        %vm4671 = vcmask 1046534
        %v4672 = vsel %vm4671, %v4670, %v4669
        %v4673 = vrot.slane %v4541, 1
        %vm4674 = vcmask 1047559
        %v4675 = vsel %vm4674, %v4673, %v4672
        %v4676 = vrot.slane %v4530, 7
        %v4677 = vsel %vm4656, %v4676, %v4528
        %v4678 = vrot.slane %v4532, 6
        %v4679 = vsel %vm4659, %v4678, %v4677
        %v4680 = vrot.slane %v4534, 5
        %v4681 = vsel %vm4662, %v4680, %v4679
        %v4682 = vrot.slane %v4536, 4
        %v4683 = vsel %vm4665, %v4682, %v4681
        %v4684 = vrot.slane %v4538, 3
        %v4685 = vsel %vm4668, %v4684, %v4683
        %v4686 = vrot.slane %v4540, 2
        %v4687 = vsel %vm4671, %v4686, %v4685
        %v4688 = vrot.slane %v4542, 1
        %v4689 = vsel %vm4674, %v4688, %v4687
        %v4690 = vrot.slane %v4545, 7
        %v4691 = vsel %vm4656, %v4690, %v4543
        %v4692 = vrot.slane %v4547, 6
        %v4693 = vsel %vm4659, %v4692, %v4691
        %v4694 = vrot.slane %v4549, 5
        %v4695 = vsel %vm4662, %v4694, %v4693
        %v4696 = vrot.slane %v4551, 4
        %v4697 = vsel %vm4665, %v4696, %v4695
        %v4698 = vrot.slane %v4553, 3
        %v4699 = vsel %vm4668, %v4698, %v4697
        %v4700 = vrot.slane %v4555, 2
        %v4701 = vsel %vm4671, %v4700, %v4699
        %v4702 = vrot.slane %v4557, 1
        %v4703 = vsel %vm4674, %v4702, %v4701
        %v4704 = vrot.slane %v4546, 7
        %v4705 = vsel %vm4656, %v4704, %v4544
        %v4706 = vrot.slane %v4548, 6
        %v4707 = vsel %vm4659, %v4706, %v4705
        %v4708 = vrot.slane %v4550, 5
        %v4709 = vsel %vm4662, %v4708, %v4707
        %v4710 = vrot.slane %v4552, 4
        %v4711 = vsel %vm4665, %v4710, %v4709
        %v4712 = vrot.slane %v4554, 3
        %v4713 = vsel %vm4668, %v4712, %v4711
        %v4714 = vrot.slane %v4556, 2
        %v4715 = vsel %vm4671, %v4714, %v4713
        %v4716 = vrot.slane %v4558, 1
        %v4717 = vsel %vm4674, %v4716, %v4715
        %v4718 = vrot.slane %v4561, 7
        %v4719 = vsel %vm4656, %v4718, %v4559
        %v4720 = vrot.slane %v4563, 6
        %v4721 = vsel %vm4659, %v4720, %v4719
        %v4722 = vrot.slane %v4565, 5
        %v4723 = vsel %vm4662, %v4722, %v4721
        %v4724 = vrot.slane %v4567, 4
        %v4725 = vsel %vm4665, %v4724, %v4723
        %v4726 = vrot.slane %v4569, 3
        %v4727 = vsel %vm4668, %v4726, %v4725
        %v4728 = vrot.slane %v4571, 2
        %v4729 = vsel %vm4671, %v4728, %v4727
        %v4730 = vrot.slane %v4573, 1
        %v4731 = vsel %vm4674, %v4730, %v4729
        %v4732 = vrot.slane %v4562, 7
        %v4733 = vsel %vm4656, %v4732, %v4560
        %v4734 = vrot.slane %v4564, 6
        %v4735 = vsel %vm4659, %v4734, %v4733
        %v4736 = vrot.slane %v4566, 5
        %v4737 = vsel %vm4662, %v4736, %v4735
        %v4738 = vrot.slane %v4568, 4
        %v4739 = vsel %vm4665, %v4738, %v4737
        %v4740 = vrot.slane %v4570, 3
        %v4741 = vsel %vm4668, %v4740, %v4739
        %v4742 = vrot.slane %v4572, 2
        %v4743 = vsel %vm4671, %v4742, %v4741
        %v4744 = vrot.slane %v4574, 1
        %v4745 = vsel %vm4674, %v4744, %v4743
        %v4746 = vrot.slane %v4577, 7
        %v4747 = vsel %vm4656, %v4746, %v4575
        %v4748 = vrot.slane %v4579, 6
        %v4749 = vsel %vm4659, %v4748, %v4747
        %v4750 = vrot.slane %v4581, 5
        %v4751 = vsel %vm4662, %v4750, %v4749
        %v4752 = vrot.slane %v4583, 4
        %v4753 = vsel %vm4665, %v4752, %v4751
        %v4754 = vrot.slane %v4585, 3
        %v4755 = vsel %vm4668, %v4754, %v4753
        %v4756 = vrot.slane %v4587, 2
        %v4757 = vsel %vm4671, %v4756, %v4755
        %v4758 = vrot.slane %v4589, 1
        %v4759 = vsel %vm4674, %v4758, %v4757
        %v4760 = vrot.slane %v4578, 7
        %v4761 = vsel %vm4656, %v4760, %v4576
        %v4762 = vrot.slane %v4580, 6
        %v4763 = vsel %vm4659, %v4762, %v4761
        %v4764 = vrot.slane %v4582, 5
        %v4765 = vsel %vm4662, %v4764, %v4763
        %v4766 = vrot.slane %v4584, 4
        %v4767 = vsel %vm4665, %v4766, %v4765
        %v4768 = vrot.slane %v4586, 3
        %v4769 = vsel %vm4668, %v4768, %v4767
        %v4770 = vrot.slane %v4588, 2
        %v4771 = vsel %vm4671, %v4770, %v4769
        %v4772 = vrot.slane %v4590, 1
        %v4773 = vsel %vm4674, %v4772, %v4771
        %v4774 = vrot.slane %v4593, 7
        %v4775 = vsel %vm4656, %v4774, %v4591
        %v4776 = vrot.slane %v4595, 6
        %v4777 = vsel %vm4659, %v4776, %v4775
        %v4778 = vrot.slane %v4597, 5
        %v4779 = vsel %vm4662, %v4778, %v4777
        %v4780 = vrot.slane %v4599, 4
        %v4781 = vsel %vm4665, %v4780, %v4779
        %v4782 = vrot.slane %v4601, 3
        %v4783 = vsel %vm4668, %v4782, %v4781
        %v4784 = vrot.slane %v4603, 2
        %v4785 = vsel %vm4671, %v4784, %v4783
        %v4786 = vrot.slane %v4605, 1
        %v4787 = vsel %vm4674, %v4786, %v4785
        %v4788 = vrot.slane %v4594, 7
        %v4789 = vsel %vm4656, %v4788, %v4592
        %v4790 = vrot.slane %v4596, 6
        %v4791 = vsel %vm4659, %v4790, %v4789
        %v4792 = vrot.slane %v4598, 5
        %v4793 = vsel %vm4662, %v4792, %v4791
        %v4794 = vrot.slane %v4600, 4
        %v4795 = vsel %vm4665, %v4794, %v4793
        %v4796 = vrot.slane %v4602, 3
        %v4797 = vsel %vm4668, %v4796, %v4795
        %v4798 = vrot.slane %v4604, 2
        %v4799 = vsel %vm4671, %v4798, %v4797
        %v4800 = vrot.slane %v4606, 1
        %v4801 = vsel %vm4674, %v4800, %v4799
        %v4802 = vrot.slane %v4609, 7
        %v4803 = vsel %vm4656, %v4802, %v4607
        %v4804 = vrot.slane %v4611, 6
        %v4805 = vsel %vm4659, %v4804, %v4803
        %v4806 = vrot.slane %v4613, 5
        %v4807 = vsel %vm4662, %v4806, %v4805
        %v4808 = vrot.slane %v4615, 4
        %v4809 = vsel %vm4665, %v4808, %v4807
        %v4810 = vrot.slane %v4617, 3
        %v4811 = vsel %vm4668, %v4810, %v4809
        %v4812 = vrot.slane %v4619, 2
        %v4813 = vsel %vm4671, %v4812, %v4811
        %v4814 = vrot.slane %v4621, 1
        %v4815 = vsel %vm4674, %v4814, %v4813
        %v4816 = vrot.slane %v4610, 7
        %v4817 = vsel %vm4656, %v4816, %v4608
        %v4818 = vrot.slane %v4612, 6
        %v4819 = vsel %vm4659, %v4818, %v4817
        %v4820 = vrot.slane %v4614, 5
        %v4821 = vsel %vm4662, %v4820, %v4819
        %v4822 = vrot.slane %v4616, 4
        %v4823 = vsel %vm4665, %v4822, %v4821
        %v4824 = vrot.slane %v4618, 3
        %v4825 = vsel %vm4668, %v4824, %v4823
        %v4826 = vrot.slane %v4620, 2
        %v4827 = vsel %vm4671, %v4826, %v4825
        %v4828 = vrot.slane %v4622, 1
        %v4829 = vsel %vm4674, %v4828, %v4827
        %v4830 = vrot.slane %v4625, 7
        %v4831 = vsel %vm4656, %v4830, %v4623
        %v4832 = vrot.slane %v4627, 6
        %v4833 = vsel %vm4659, %v4832, %v4831
        %v4834 = vrot.slane %v4629, 5
        %v4835 = vsel %vm4662, %v4834, %v4833
        %v4836 = vrot.slane %v4631, 4
        %v4837 = vsel %vm4665, %v4836, %v4835
        %v4838 = vrot.slane %v4633, 3
        %v4839 = vsel %vm4668, %v4838, %v4837
        %v4840 = vrot.slane %v4635, 2
        %v4841 = vsel %vm4671, %v4840, %v4839
        %v4842 = vrot.slane %v4637, 1
        %v4843 = vsel %vm4674, %v4842, %v4841
        %v4844 = vrot.slane %v4626, 7
        %v4845 = vsel %vm4656, %v4844, %v4624
        %v4846 = vrot.slane %v4628, 6
        %v4847 = vsel %vm4659, %v4846, %v4845
        %v4848 = vrot.slane %v4630, 5
        %v4849 = vsel %vm4662, %v4848, %v4847
        %v4850 = vrot.slane %v4632, 4
        %v4851 = vsel %vm4665, %v4850, %v4849
        %v4852 = vrot.slane %v4634, 3
        %v4853 = vsel %vm4668, %v4852, %v4851
        %v4854 = vrot.slane %v4636, 2
        %v4855 = vsel %vm4671, %v4854, %v4853
        %v4856 = vrot.slane %v4638, 1
        %v4857 = vsel %vm4674, %v4856, %v4855
        %v4858 = vrot.slane %v4641, 7
        %v4859 = vsel %vm4656, %v4858, %v4639
        %v4860 = vrot.slane %v4643, 6
        %v4861 = vsel %vm4659, %v4860, %v4859
        %v4862 = vrot.slane %v4645, 5
        %v4863 = vsel %vm4662, %v4862, %v4861
        %v4864 = vrot.slane %v4647, 4
        %v4865 = vsel %vm4665, %v4864, %v4863
        %v4866 = vrot.slane %v4649, 3
        %v4867 = vsel %vm4668, %v4866, %v4865
        %v4868 = vrot.slane %v4651, 2
        %v4869 = vsel %vm4671, %v4868, %v4867
        %v4870 = vrot.slane %v4653, 1
        %v4871 = vsel %vm4674, %v4870, %v4869
        %v4872 = vrot.slane %v4642, 7
        %v4873 = vsel %vm4656, %v4872, %v4640
        %v4874 = vrot.slane %v4644, 6
        %v4875 = vsel %vm4659, %v4874, %v4873
        %v4876 = vrot.slane %v4646, 5
        %v4877 = vsel %vm4662, %v4876, %v4875
        %v4878 = vrot.slane %v4648, 4
        %v4879 = vsel %vm4665, %v4878, %v4877
        %v4880 = vrot.slane %v4650, 3
        %v4881 = vsel %vm4668, %v4880, %v4879
        %v4882 = vrot.slane %v4652, 2
        %v4883 = vsel %vm4671, %v4882, %v4881
        %v4884 = vrot.slane %v4654, 1
        %v4885 = vsel %vm4674, %v4884, %v4883
        %v4886 = vpack.c.b16 %v4703, %v4675
        %v4887 = vpack.c.b16 %v4717, %v4689
        %v4888 = vpack.c.b16 %v4759, %v4731
        %v4889 = vpack.c.b16 %v4773, %v4745
        %v4890 = vpack.c.b16 %v4815, %v4787
        %v4891 = vpack.c.b16 %v4829, %v4801
        %v4892 = vpack.c.b16 %v4871, %v4843
        %v4893 = vpack.c.b16 %v4885, %v4857
        %v4927 = vunpack.c.l.b16 %v4091
        %v4928 = vunpack.c.h.b16 %v4091
        %v4929 = vunpack.c.l.b16 %v4092
        %v4930 = vunpack.c.h.b16 %v4092
        %v4931 = vunpack.c.l.b16 %v4093
        %v4932 = vunpack.c.h.b16 %v4093
        %v4933 = vunpack.c.l.b16 %v4094
        %v4934 = vunpack.c.h.b16 %v4094
        %v4935 = vunpack.c.l.b16 %v4095
        %v4936 = vunpack.c.h.b16 %v4095
        %v4937 = vunpack.c.l.b16 %v4096
        %v4938 = vunpack.c.h.b16 %v4096
        %v4939 = vunpack.c.l.b16 %v4097
        %v4940 = vunpack.c.h.b16 %v4097
        %v4941 = vunpack.c.l.b16 %v4098
        %v4942 = vunpack.c.h.b16 %v4098
        %v4943 = vunpack.c.l.b16 %v4099
        %v4944 = vunpack.c.h.b16 %v4099
        %v4945 = vunpack.c.l.b16 %v4100
        %v4946 = vunpack.c.h.b16 %v4100
        %v4947 = vunpack.c.l.b16 %v4101
        %v4948 = vunpack.c.h.b16 %v4101
        %v4949 = vunpack.c.l.b16 %v4102
        %v4950 = vunpack.c.h.b16 %v4102
        %v4951 = vunpack.c.l.b16 %v4103
        %v4952 = vunpack.c.h.b16 %v4103
        %v4953 = vunpack.c.l.b16 %v4104
        %v4954 = vunpack.c.h.b16 %v4104
        %v4955 = vunpack.c.l.b16 %v4105
        %v4956 = vunpack.c.h.b16 %v4105
        %v4957 = vunpack.c.l.b16 %v4106
        %v4958 = vunpack.c.h.b16 %v4106
        %v4959 = vunpack.c.l.b16 %v4107
        %v4960 = vunpack.c.h.b16 %v4107
        %v4961 = vunpack.c.l.b16 %v4108
        %v4962 = vunpack.c.h.b16 %v4108
        %v4963 = vunpack.c.l.b16 %v4109
        %v4964 = vunpack.c.h.b16 %v4109
        %v4965 = vunpack.c.l.b16 %v4110
        %v4966 = vunpack.c.h.b16 %v4110
        %v4967 = vunpack.c.l.b16 %v4111
        %v4968 = vunpack.c.h.b16 %v4111
        %v4969 = vunpack.c.l.b16 %v4112
        %v4970 = vunpack.c.h.b16 %v4112
        %v4971 = vunpack.c.l.b16 %v4113
        %v4972 = vunpack.c.h.b16 %v4113
        %v4973 = vunpack.c.l.b16 %v4114
        %v4974 = vunpack.c.h.b16 %v4114
        %v4975 = vunpack.c.l.b16 %v4115
        %v4976 = vunpack.c.h.b16 %v4115
        %v4977 = vunpack.c.l.b16 %v4116
        %v4978 = vunpack.c.h.b16 %v4116
        %v4979 = vunpack.c.l.b16 %v4117
        %v4980 = vunpack.c.h.b16 %v4117
        %v4981 = vunpack.c.l.b16 %v4118
        %v4982 = vunpack.c.h.b16 %v4118
        %v4983 = vunpack.c.l.b16 %v4119
        %v4984 = vunpack.c.h.b16 %v4119
        %v4985 = vpack.c.b16 %v4929, %v4927
        %v4986 = vpack.c.b16 %v4930, %v4928
        %v4987 = vpack.c.b16 %v4933, %v4931
        %v4988 = vpack.c.b16 %v4934, %v4932
        %v4989 = vpack.c.b16 %v4937, %v4935
        %v4990 = vpack.c.b16 %v4938, %v4936
        %v4991 = vpack.c.b16 %v4941, %v4939
        %v4992 = vpack.c.b16 %v4942, %v4940
        %v4993 = vpack.c.b16 %v4945, %v4943
        %v4994 = vpack.c.b16 %v4946, %v4944
        %v4995 = vpack.c.b16 %v4949, %v4947
        %v4996 = vpack.c.b16 %v4950, %v4948
        %v4997 = vpack.c.b16 %v4953, %v4951
        %v4998 = vpack.c.b16 %v4954, %v4952
        %v4999 = vpack.c.b16 %v4957, %v4955
        %v5000 = vpack.c.b16 %v4958, %v4956
        %v5001 = vpack.c.b16 %v4961, %v4959
        %v5002 = vpack.c.b16 %v4962, %v4960
        %v5003 = vpack.c.b16 %v4965, %v4963
        %v5004 = vpack.c.b16 %v4966, %v4964
        %v5005 = vpack.c.b16 %v4969, %v4967
        %v5006 = vpack.c.b16 %v4970, %v4968
        %v5007 = vpack.c.b16 %v4973, %v4971
        %v5008 = vpack.c.b16 %v4974, %v4972
        %v5009 = vpack.c.b16 %v4977, %v4975
        %v5010 = vpack.c.b16 %v4978, %v4976
        %v5011 = vpack.c.b16 %v4981, %v4979
        %v5012 = vpack.c.b16 %v4982, %v4980
        %v5013 = vpack.c.b16 %v4983, %v4983
        %v5014 = vpack.c.b16 %v4984, %v4984
        %vm5043 = vcmask 834560
        %v5045 = vsel %vm5043, %v4887, 0
        %v5048 = vsel %vm5043, %v4889, 0
        %v5051 = vsel %vm5043, %v4891, 0
        %v5054 = vsel %vm5043, %v4893, 0
        %vm5056 = vcmask 1042432
        %v5058 = vsel %vm5056, %v5013, 0
        %v5061 = vsel %vm5056, %v5014, 0
        %5063 = vmatpush.bf16.msra.mxu0 %v4999
        %5064 = vmatpush.bf16.msra.mxu0 %v4997
        %5065 = vmatpush.bf16.msra.mxu0 %v4995
        %5066 = vmatpush.bf16.msra.mxu0 %v4993
        %5067 = vmatpush.bf16.msra.mxu0 %v4991
        %5068 = vmatpush.bf16.msra.mxu0 %v4989
        %5069 = vmatpush.bf16.msra.mxu0 %v4987
        %5070 = vmatpush.bf16.msra.mxu0 %v4985
        %5071 = vmatmul.bf16.gmra.mxu0 %v4886
        %v5072 = vpop.f32.mrf.mxu0
        %v5073 = vadd.f32 0.0, %v5072
        %v5074 = vpop.f32.mrf.mxu0
        %v5075 = vadd.f32 0.0, %v5074
        %5076 = vmatmul.bf16.gmra.mxu0 %v4888
        %v5077 = vpop.f32.mrf.mxu0
        %v5078 = vadd.f32 0.0, %v5077
        %v5079 = vpop.f32.mrf.mxu0
        %v5080 = vadd.f32 0.0, %v5079
        %5081 = vmatmul.bf16.gmra.mxu0 %v4890
        %v5082 = vpop.f32.mrf.mxu0
        %v5083 = vadd.f32 0.0, %v5082
        %v5084 = vpop.f32.mrf.mxu0
        %v5085 = vadd.f32 0.0, %v5084
        %5086 = vmatmul.bf16.gmra.mxu0 %v4892
        %v5087 = vpop.f32.mrf.mxu0
        %v5088 = vadd.f32 0.0, %v5087
        %v5089 = vpop.f32.mrf.mxu0
        %v5090 = vadd.f32 0.0, %v5089
        %5091 = vdwg.mxu0
        %5092 = vmatpush.bf16.msra.mxu0 0
        %5093 = vmatpush.bf16.msra.mxu0 %v5058
        %5094 = vmatpush.bf16.msra.mxu0 %v5011
        %5095 = vmatpush.bf16.msra.mxu0 %v5009
        %5096 = vmatpush.bf16.msra.mxu0 %v5007
        %5097 = vmatpush.bf16.msra.mxu0 %v5005
        %5098 = vmatpush.bf16.msra.mxu0 %v5003
        %5099 = vmatpush.bf16.msra.mxu0 %v5001
        %5100 = vmatmul.bf16.gmra.mxu0 %v5045
        %v5101 = vpop.f32.mrf.mxu0
        %v5102 = vadd.f32 %v5073, %v5101
        %v5103 = vpop.f32.mrf.mxu0
        %v5104 = vadd.f32 %v5075, %v5103
        %5105 = vmatmul.bf16.gmra.mxu0 %v5048
        %v5106 = vpop.f32.mrf.mxu0
        %v5107 = vadd.f32 %v5078, %v5106
        %v5108 = vpop.f32.mrf.mxu0
        %v5109 = vadd.f32 %v5080, %v5108
        %5110 = vmatmul.bf16.gmra.mxu0 %v5051
        %v5111 = vpop.f32.mrf.mxu0
        %v5112 = vadd.f32 %v5083, %v5111
        %v5113 = vpop.f32.mrf.mxu0
        %v5114 = vadd.f32 %v5085, %v5113
        %5115 = vmatmul.bf16.gmra.mxu0 %v5054
        %v5116 = vpop.f32.mrf.mxu0
        %v5117 = vadd.f32 %v5088, %v5116
        %v5118 = vpop.f32.mrf.mxu0
        %v5119 = vadd.f32 %v5090, %v5118
        %5120 = vdwg.mxu0
        %5121 = vmatpush.bf16.msra.mxu0 %v5000
        %5122 = vmatpush.bf16.msra.mxu0 %v4998
        %5123 = vmatpush.bf16.msra.mxu0 %v4996
        %5124 = vmatpush.bf16.msra.mxu0 %v4994
        %5125 = vmatpush.bf16.msra.mxu0 %v4992
        %5126 = vmatpush.bf16.msra.mxu0 %v4990
        %5127 = vmatpush.bf16.msra.mxu0 %v4988
        %5128 = vmatpush.bf16.msra.mxu0 %v4986
        %5129 = vmatmul.bf16.gmra.mxu0 %v4886
        %v5130 = vpop.f32.mrf.mxu0
        %v5131 = vadd.f32 0.0, %v5130
        %v5132 = vpop.f32.mrf.mxu0
        %v5133 = vadd.f32 0.0, %v5132
        %5134 = vmatmul.bf16.gmra.mxu0 %v4888
        %v5135 = vpop.f32.mrf.mxu0
        %v5136 = vadd.f32 0.0, %v5135
        %v5137 = vpop.f32.mrf.mxu0
        %v5138 = vadd.f32 0.0, %v5137
        %5139 = vmatmul.bf16.gmra.mxu0 %v4890
        %v5140 = vpop.f32.mrf.mxu0
        %v5141 = vadd.f32 0.0, %v5140
        %v5142 = vpop.f32.mrf.mxu0
        %v5143 = vadd.f32 0.0, %v5142
        %5144 = vmatmul.bf16.gmra.mxu0 %v4892
        %v5145 = vpop.f32.mrf.mxu0
        %v5146 = vadd.f32 0.0, %v5145
        %v5147 = vpop.f32.mrf.mxu0
        %v5148 = vadd.f32 0.0, %v5147
        %5149 = vdwg.mxu0
        %5150 = vmatpush.bf16.msra.mxu0 0
        %5151 = vmatpush.bf16.msra.mxu0 %v5061
        %5152 = vmatpush.bf16.msra.mxu0 %v5012
        %5153 = vmatpush.bf16.msra.mxu0 %v5010
        %5154 = vmatpush.bf16.msra.mxu0 %v5008
        %5155 = vmatpush.bf16.msra.mxu0 %v5006
        %5156 = vmatpush.bf16.msra.mxu0 %v5004
        %5157 = vmatpush.bf16.msra.mxu0 %v5002
        %5158 = vmatmul.bf16.gmra.mxu0 %v5045
        %v5159 = vpop.f32.mrf.mxu0
        %v5160 = vadd.f32 %v5131, %v5159
        %v5161 = vpop.f32.mrf.mxu0
        %v5162 = vadd.f32 %v5133, %v5161
        %5163 = vmatmul.bf16.gmra.mxu0 %v5048
        %v5164 = vpop.f32.mrf.mxu0
        %v5165 = vadd.f32 %v5136, %v5164
        %v5166 = vpop.f32.mrf.mxu0
        %v5167 = vadd.f32 %v5138, %v5166
        %5168 = vmatmul.bf16.gmra.mxu0 %v5051
        %v5169 = vpop.f32.mrf.mxu0
        %v5170 = vadd.f32 %v5141, %v5169
        %v5171 = vpop.f32.mrf.mxu0
        %v5172 = vadd.f32 %v5143, %v5171
        %5173 = vmatmul.bf16.gmra.mxu0 %v5054
        %v5174 = vpop.f32.mrf.mxu0
        %v5175 = vadd.f32 %v5146, %v5174
        %v5176 = vpop.f32.mrf.mxu0
        %v5177 = vadd.f32 %v5148, %v5176
        %5178 = vdwg.mxu0
        %v5187 = vunpack.c.l.b16 %v3966
        %v5188 = vunpack.c.h.b16 %v3966
        %v5189 = vunpack.c.l.b16 %v3978
        %v5190 = vunpack.c.h.b16 %v3978
        %v5191 = vunpack.c.l.b16 %v3990
        %v5192 = vunpack.c.h.b16 %v3990
        %v5193 = vunpack.c.l.b16 %v4002
        %v5194 = vunpack.c.h.b16 %v4002
        %v5195 = vunpack.c.l.b16 %v4014
        %v5196 = vunpack.c.h.b16 %v4014
        %v5197 = vunpack.c.l.b16 %v4026
        %v5198 = vunpack.c.h.b16 %v4026
        %v5199 = vunpack.c.l.b16 %v4038
        %v5200 = vunpack.c.h.b16 %v4038
        %v5201 = vunpack.c.l.b16 %v4050
        %v5202 = vunpack.c.h.b16 %v4050
        %v5203 = vpack.c.b16 %v5187, %v5187
        %v5204 = vpack.c.b16 %v5188, %v5188
        %v5205 = vpack.c.b16 %v5189, %v5189
        %v5206 = vpack.c.b16 %v5190, %v5190
        %v5207 = vpack.c.b16 %v5191, %v5191
        %v5208 = vpack.c.b16 %v5192, %v5192
        %v5209 = vpack.c.b16 %v5193, %v5193
        %v5210 = vpack.c.b16 %v5194, %v5194
        %v5211 = vpack.c.b16 %v5195, %v5195
        %v5212 = vpack.c.b16 %v5196, %v5196
        %v5213 = vpack.c.b16 %v5197, %v5197
        %v5214 = vpack.c.b16 %v5198, %v5198
        %v5215 = vpack.c.b16 %v5199, %v5199
        %v5216 = vpack.c.b16 %v5200, %v5200
        %v5217 = vpack.c.b16 %v5201, %v5201
        %v5218 = vpack.c.b16 %v5202, %v5202
        %v5219 = vunpack.c.l.b16 %v5203
        %v5220 = vunpack.c.l.b16 %v5204
        %v5221 = vunpack.c.l.b16 %v5205
        %v5222 = vunpack.c.l.b16 %v5206
        %v5223 = vunpack.c.l.b16 %v5207
        %v5224 = vunpack.c.l.b16 %v5208
        %v5225 = vunpack.c.l.b16 %v5209
        %v5226 = vunpack.c.l.b16 %v5210
        %v5227 = vunpack.c.l.b16 %v5211
        %v5228 = vunpack.c.l.b16 %v5212
        %v5229 = vunpack.c.l.b16 %v5213
        %v5230 = vunpack.c.l.b16 %v5214
        %v5231 = vunpack.c.l.b16 %v5215
        %v5232 = vunpack.c.l.b16 %v5216
        %v5233 = vunpack.c.l.b16 %v5217
        %v5234 = vunpack.c.l.b16 %v5218
        %v5235 = vrot.slane %v4527, 7
        %v5236 = vsel %vm4656, %v5235, %v5219
        %v5237 = vrot.slane %v4529, 6
        %v5238 = vsel %vm4659, %v5237, %v5236
        %v5239 = vrot.slane %v4531, 5
        %v5240 = vsel %vm4662, %v5239, %v5238
        %v5241 = vrot.slane %v4533, 4
        %v5242 = vsel %vm4665, %v5241, %v5240
        %v5243 = vrot.slane %v4535, 3
        %v5244 = vsel %vm4668, %v5243, %v5242
        %v5245 = vrot.slane %v4537, 2
        %v5246 = vsel %vm4671, %v5245, %v5244
        %v5247 = vrot.slane %v4539, 1
        %v5248 = vsel %vm4674, %v5247, %v5246
        %v5249 = vrot.slane %v4528, 7
        %v5250 = vsel %vm4656, %v5249, %v5220
        %v5251 = vrot.slane %v4530, 6
        %v5252 = vsel %vm4659, %v5251, %v5250
        %v5253 = vrot.slane %v4532, 5
        %v5254 = vsel %vm4662, %v5253, %v5252
        %v5255 = vrot.slane %v4534, 4
        %v5256 = vsel %vm4665, %v5255, %v5254
        %v5257 = vrot.slane %v4536, 3
        %v5258 = vsel %vm4668, %v5257, %v5256
        %v5259 = vrot.slane %v4538, 2
        %v5260 = vsel %vm4671, %v5259, %v5258
        %v5261 = vrot.slane %v4540, 1
        %v5262 = vsel %vm4674, %v5261, %v5260
        %v5263 = vrot.slane %v4543, 7
        %v5264 = vsel %vm4656, %v5263, %v5221
        %v5265 = vrot.slane %v4545, 6
        %v5266 = vsel %vm4659, %v5265, %v5264
        %v5267 = vrot.slane %v4547, 5
        %v5268 = vsel %vm4662, %v5267, %v5266
        %v5269 = vrot.slane %v4549, 4
        %v5270 = vsel %vm4665, %v5269, %v5268
        %v5271 = vrot.slane %v4551, 3
        %v5272 = vsel %vm4668, %v5271, %v5270
        %v5273 = vrot.slane %v4553, 2
        %v5274 = vsel %vm4671, %v5273, %v5272
        %v5275 = vrot.slane %v4555, 1
        %v5276 = vsel %vm4674, %v5275, %v5274
        %v5277 = vrot.slane %v4544, 7
        %v5278 = vsel %vm4656, %v5277, %v5222
        %v5279 = vrot.slane %v4546, 6
        %v5280 = vsel %vm4659, %v5279, %v5278
        %v5281 = vrot.slane %v4548, 5
        %v5282 = vsel %vm4662, %v5281, %v5280
        %v5283 = vrot.slane %v4550, 4
        %v5284 = vsel %vm4665, %v5283, %v5282
        %v5285 = vrot.slane %v4552, 3
        %v5286 = vsel %vm4668, %v5285, %v5284
        %v5287 = vrot.slane %v4554, 2
        %v5288 = vsel %vm4671, %v5287, %v5286
        %v5289 = vrot.slane %v4556, 1
        %v5290 = vsel %vm4674, %v5289, %v5288
        %v5291 = vrot.slane %v4559, 7
        %v5292 = vsel %vm4656, %v5291, %v5223
        %v5293 = vrot.slane %v4561, 6
        %v5294 = vsel %vm4659, %v5293, %v5292
        %v5295 = vrot.slane %v4563, 5
        %v5296 = vsel %vm4662, %v5295, %v5294
        %v5297 = vrot.slane %v4565, 4
        %v5298 = vsel %vm4665, %v5297, %v5296
        %v5299 = vrot.slane %v4567, 3
        %v5300 = vsel %vm4668, %v5299, %v5298
        %v5301 = vrot.slane %v4569, 2
        %v5302 = vsel %vm4671, %v5301, %v5300
        %v5303 = vrot.slane %v4571, 1
        %v5304 = vsel %vm4674, %v5303, %v5302
        %v5305 = vrot.slane %v4560, 7
        %v5306 = vsel %vm4656, %v5305, %v5224
        %v5307 = vrot.slane %v4562, 6
        %v5308 = vsel %vm4659, %v5307, %v5306
        %v5309 = vrot.slane %v4564, 5
        %v5310 = vsel %vm4662, %v5309, %v5308
        %v5311 = vrot.slane %v4566, 4
        %v5312 = vsel %vm4665, %v5311, %v5310
        %v5313 = vrot.slane %v4568, 3
        %v5314 = vsel %vm4668, %v5313, %v5312
        %v5315 = vrot.slane %v4570, 2
        %v5316 = vsel %vm4671, %v5315, %v5314
        %v5317 = vrot.slane %v4572, 1
        %v5318 = vsel %vm4674, %v5317, %v5316
        %v5319 = vrot.slane %v4575, 7
        %v5320 = vsel %vm4656, %v5319, %v5225
        %v5321 = vrot.slane %v4577, 6
        %v5322 = vsel %vm4659, %v5321, %v5320
        %v5323 = vrot.slane %v4579, 5
        %v5324 = vsel %vm4662, %v5323, %v5322
        %v5325 = vrot.slane %v4581, 4
        %v5326 = vsel %vm4665, %v5325, %v5324
        %v5327 = vrot.slane %v4583, 3
        %v5328 = vsel %vm4668, %v5327, %v5326
        %v5329 = vrot.slane %v4585, 2
        %v5330 = vsel %vm4671, %v5329, %v5328
        %v5331 = vrot.slane %v4587, 1
        %v5332 = vsel %vm4674, %v5331, %v5330
        %v5333 = vrot.slane %v4576, 7
        %v5334 = vsel %vm4656, %v5333, %v5226
        %v5335 = vrot.slane %v4578, 6
        %v5336 = vsel %vm4659, %v5335, %v5334
        %v5337 = vrot.slane %v4580, 5
        %v5338 = vsel %vm4662, %v5337, %v5336
        %v5339 = vrot.slane %v4582, 4
        %v5340 = vsel %vm4665, %v5339, %v5338
        %v5341 = vrot.slane %v4584, 3
        %v5342 = vsel %vm4668, %v5341, %v5340
        %v5343 = vrot.slane %v4586, 2
        %v5344 = vsel %vm4671, %v5343, %v5342
        %v5345 = vrot.slane %v4588, 1
        %v5346 = vsel %vm4674, %v5345, %v5344
        %v5347 = vrot.slane %v4591, 7
        %v5348 = vsel %vm4656, %v5347, %v5227
        %v5349 = vrot.slane %v4593, 6
        %v5350 = vsel %vm4659, %v5349, %v5348
        %v5351 = vrot.slane %v4595, 5
        %v5352 = vsel %vm4662, %v5351, %v5350
        %v5353 = vrot.slane %v4597, 4
        %v5354 = vsel %vm4665, %v5353, %v5352
        %v5355 = vrot.slane %v4599, 3
        %v5356 = vsel %vm4668, %v5355, %v5354
        %v5357 = vrot.slane %v4601, 2
        %v5358 = vsel %vm4671, %v5357, %v5356
        %v5359 = vrot.slane %v4603, 1
        %v5360 = vsel %vm4674, %v5359, %v5358
        %v5361 = vrot.slane %v4592, 7
        %v5362 = vsel %vm4656, %v5361, %v5228
        %v5363 = vrot.slane %v4594, 6
        %v5364 = vsel %vm4659, %v5363, %v5362
        %v5365 = vrot.slane %v4596, 5
        %v5366 = vsel %vm4662, %v5365, %v5364
        %v5367 = vrot.slane %v4598, 4
        %v5368 = vsel %vm4665, %v5367, %v5366
        %v5369 = vrot.slane %v4600, 3
        %v5370 = vsel %vm4668, %v5369, %v5368
        %v5371 = vrot.slane %v4602, 2
        %v5372 = vsel %vm4671, %v5371, %v5370
        %v5373 = vrot.slane %v4604, 1
        %v5374 = vsel %vm4674, %v5373, %v5372
        %v5375 = vrot.slane %v4607, 7
        %v5376 = vsel %vm4656, %v5375, %v5229
        %v5377 = vrot.slane %v4609, 6
        %v5378 = vsel %vm4659, %v5377, %v5376
        %v5379 = vrot.slane %v4611, 5
        %v5380 = vsel %vm4662, %v5379, %v5378
        %v5381 = vrot.slane %v4613, 4
        %v5382 = vsel %vm4665, %v5381, %v5380
        %v5383 = vrot.slane %v4615, 3
        %v5384 = vsel %vm4668, %v5383, %v5382
        %v5385 = vrot.slane %v4617, 2
        %v5386 = vsel %vm4671, %v5385, %v5384
        %v5387 = vrot.slane %v4619, 1
        %v5388 = vsel %vm4674, %v5387, %v5386
        %v5389 = vrot.slane %v4608, 7
        %v5390 = vsel %vm4656, %v5389, %v5230
        %v5391 = vrot.slane %v4610, 6
        %v5392 = vsel %vm4659, %v5391, %v5390
        %v5393 = vrot.slane %v4612, 5
        %v5394 = vsel %vm4662, %v5393, %v5392
        %v5395 = vrot.slane %v4614, 4
        %v5396 = vsel %vm4665, %v5395, %v5394
        %v5397 = vrot.slane %v4616, 3
        %v5398 = vsel %vm4668, %v5397, %v5396
        %v5399 = vrot.slane %v4618, 2
        %v5400 = vsel %vm4671, %v5399, %v5398
        %v5401 = vrot.slane %v4620, 1
        %v5402 = vsel %vm4674, %v5401, %v5400
        %v5403 = vrot.slane %v4623, 7
        %v5404 = vsel %vm4656, %v5403, %v5231
        %v5405 = vrot.slane %v4625, 6
        %v5406 = vsel %vm4659, %v5405, %v5404
        %v5407 = vrot.slane %v4627, 5
        %v5408 = vsel %vm4662, %v5407, %v5406
        %v5409 = vrot.slane %v4629, 4
        %v5410 = vsel %vm4665, %v5409, %v5408
        %v5411 = vrot.slane %v4631, 3
        %v5412 = vsel %vm4668, %v5411, %v5410
        %v5413 = vrot.slane %v4633, 2
        %v5414 = vsel %vm4671, %v5413, %v5412
        %v5415 = vrot.slane %v4635, 1
        %v5416 = vsel %vm4674, %v5415, %v5414
        %v5417 = vrot.slane %v4624, 7
        %v5418 = vsel %vm4656, %v5417, %v5232
        %v5419 = vrot.slane %v4626, 6
        %v5420 = vsel %vm4659, %v5419, %v5418
        %v5421 = vrot.slane %v4628, 5
        %v5422 = vsel %vm4662, %v5421, %v5420
        %v5423 = vrot.slane %v4630, 4
        %v5424 = vsel %vm4665, %v5423, %v5422
        %v5425 = vrot.slane %v4632, 3
        %v5426 = vsel %vm4668, %v5425, %v5424
        %v5427 = vrot.slane %v4634, 2
        %v5428 = vsel %vm4671, %v5427, %v5426
        %v5429 = vrot.slane %v4636, 1
        %v5430 = vsel %vm4674, %v5429, %v5428
        %v5431 = vrot.slane %v4639, 7
        %v5432 = vsel %vm4656, %v5431, %v5233
        %v5433 = vrot.slane %v4641, 6
        %v5434 = vsel %vm4659, %v5433, %v5432
        %v5435 = vrot.slane %v4643, 5
        %v5436 = vsel %vm4662, %v5435, %v5434
        %v5437 = vrot.slane %v4645, 4
        %v5438 = vsel %vm4665, %v5437, %v5436
        %v5439 = vrot.slane %v4647, 3
        %v5440 = vsel %vm4668, %v5439, %v5438
        %v5441 = vrot.slane %v4649, 2
        %v5442 = vsel %vm4671, %v5441, %v5440
        %v5443 = vrot.slane %v4651, 1
        %v5444 = vsel %vm4674, %v5443, %v5442
        %v5445 = vrot.slane %v4640, 7
        %v5446 = vsel %vm4656, %v5445, %v5234
        %v5447 = vrot.slane %v4642, 6
        %v5448 = vsel %vm4659, %v5447, %v5446
        %v5449 = vrot.slane %v4644, 5
        %v5450 = vsel %vm4662, %v5449, %v5448
        %v5451 = vrot.slane %v4646, 4
        %v5452 = vsel %vm4665, %v5451, %v5450
        %v5453 = vrot.slane %v4648, 3
        %v5454 = vsel %vm4668, %v5453, %v5452
        %v5455 = vrot.slane %v4650, 2
        %v5456 = vsel %vm4671, %v5455, %v5454
        %v5457 = vrot.slane %v4652, 1
        %v5458 = vsel %vm4674, %v5457, %v5456
        %v5459 = vpack.c.b16 %v5276, %v5248
        %v5460 = vpack.c.b16 %v5290, %v5262
        %v5461 = vpack.c.b16 %v5332, %v5304
        %v5462 = vpack.c.b16 %v5346, %v5318
        %v5463 = vpack.c.b16 %v5388, %v5360
        %v5464 = vpack.c.b16 %v5402, %v5374
        %v5465 = vpack.c.b16 %v5444, %v5416
        %v5466 = vpack.c.b16 %v5458, %v5430
        %v5500 = vunpack.c.l.b16 %v4062
        %v5501 = vunpack.c.h.b16 %v4062
        %v5502 = vunpack.c.l.b16 %v4063
        %v5503 = vunpack.c.h.b16 %v4063
        %v5504 = vunpack.c.l.b16 %v4064
        %v5505 = vunpack.c.h.b16 %v4064
        %v5506 = vunpack.c.l.b16 %v4065
        %v5507 = vunpack.c.h.b16 %v4065
        %v5508 = vunpack.c.l.b16 %v4066
        %v5509 = vunpack.c.h.b16 %v4066
        %v5510 = vunpack.c.l.b16 %v4067
        %v5511 = vunpack.c.h.b16 %v4067
        %v5512 = vunpack.c.l.b16 %v4068
        %v5513 = vunpack.c.h.b16 %v4068
        %v5514 = vunpack.c.l.b16 %v4069
        %v5515 = vunpack.c.h.b16 %v4069
        %v5516 = vunpack.c.l.b16 %v4070
        %v5517 = vunpack.c.h.b16 %v4070
        %v5518 = vunpack.c.l.b16 %v4071
        %v5519 = vunpack.c.h.b16 %v4071
        %v5520 = vunpack.c.l.b16 %v4072
        %v5521 = vunpack.c.h.b16 %v4072
        %v5522 = vunpack.c.l.b16 %v4073
        %v5523 = vunpack.c.h.b16 %v4073
        %v5524 = vunpack.c.l.b16 %v4074
        %v5525 = vunpack.c.h.b16 %v4074
        %v5526 = vunpack.c.l.b16 %v4075
        %v5527 = vunpack.c.h.b16 %v4075
        %v5528 = vunpack.c.l.b16 %v4076
        %v5529 = vunpack.c.h.b16 %v4076
        %v5530 = vunpack.c.l.b16 %v4077
        %v5531 = vunpack.c.h.b16 %v4077
        %v5532 = vunpack.c.l.b16 %v4078
        %v5533 = vunpack.c.h.b16 %v4078
        %v5534 = vunpack.c.l.b16 %v4079
        %v5535 = vunpack.c.h.b16 %v4079
        %v5536 = vunpack.c.l.b16 %v4080
        %v5537 = vunpack.c.h.b16 %v4080
        %v5538 = vunpack.c.l.b16 %v4081
        %v5539 = vunpack.c.h.b16 %v4081
        %v5540 = vunpack.c.l.b16 %v4082
        %v5541 = vunpack.c.h.b16 %v4082
        %v5542 = vunpack.c.l.b16 %v4083
        %v5543 = vunpack.c.h.b16 %v4083
        %v5544 = vunpack.c.l.b16 %v4084
        %v5545 = vunpack.c.h.b16 %v4084
        %v5546 = vunpack.c.l.b16 %v4085
        %v5547 = vunpack.c.h.b16 %v4085
        %v5548 = vunpack.c.l.b16 %v4086
        %v5549 = vunpack.c.h.b16 %v4086
        %v5550 = vunpack.c.l.b16 %v4087
        %v5551 = vunpack.c.h.b16 %v4087
        %v5552 = vunpack.c.l.b16 %v4088
        %v5553 = vunpack.c.h.b16 %v4088
        %v5554 = vunpack.c.l.b16 %v4089
        %v5555 = vunpack.c.h.b16 %v4089
        %v5556 = vunpack.c.l.b16 %v4090
        %v5557 = vunpack.c.h.b16 %v4090
        %v5558 = vpack.c.b16 %v5502, %v5500
        %v5559 = vpack.c.b16 %v5503, %v5501
        %v5560 = vpack.c.b16 %v5506, %v5504
        %v5561 = vpack.c.b16 %v5507, %v5505
        %v5562 = vpack.c.b16 %v5510, %v5508
        %v5563 = vpack.c.b16 %v5511, %v5509
        %v5564 = vpack.c.b16 %v5514, %v5512
        %v5565 = vpack.c.b16 %v5515, %v5513
        %v5566 = vpack.c.b16 %v5518, %v5516
        %v5567 = vpack.c.b16 %v5519, %v5517
        %v5568 = vpack.c.b16 %v5522, %v5520
        %v5569 = vpack.c.b16 %v5523, %v5521
        %v5570 = vpack.c.b16 %v5526, %v5524
        %v5571 = vpack.c.b16 %v5527, %v5525
        %v5572 = vpack.c.b16 %v5530, %v5528
        %v5573 = vpack.c.b16 %v5531, %v5529
        %v5574 = vpack.c.b16 %v5534, %v5532
        %v5575 = vpack.c.b16 %v5535, %v5533
        %v5576 = vpack.c.b16 %v5538, %v5536
        %v5577 = vpack.c.b16 %v5539, %v5537
        %v5578 = vpack.c.b16 %v5542, %v5540
        %v5579 = vpack.c.b16 %v5543, %v5541
        %v5580 = vpack.c.b16 %v5546, %v5544
        %v5581 = vpack.c.b16 %v5547, %v5545
        %v5582 = vpack.c.b16 %v5550, %v5548
        %v5583 = vpack.c.b16 %v5551, %v5549
        %v5584 = vpack.c.b16 %v5554, %v5552
        %v5585 = vpack.c.b16 %v5555, %v5553
        %v5586 = vpack.c.b16 %v5556, %v5556
        %v5587 = vpack.c.b16 %v5557, %v5557
        %v5617 = vsel %vm5043, %v5460, 0
        %v5620 = vsel %vm5043, %v5462, 0
        %v5623 = vsel %vm5043, %v5464, 0
        %v5626 = vsel %vm5043, %v5466, 0
        %v5629 = vsel %vm5056, %v5586, 0
        %v5632 = vsel %vm5056, %v5587, 0
        %5634 = vmatpush.bf16.msra.mxu0 %v5572
        %5635 = vmatpush.bf16.msra.mxu0 %v5570
        %5636 = vmatpush.bf16.msra.mxu0 %v5568
        %5637 = vmatpush.bf16.msra.mxu0 %v5566
        %5638 = vmatpush.bf16.msra.mxu0 %v5564
        %5639 = vmatpush.bf16.msra.mxu0 %v5562
        %5640 = vmatpush.bf16.msra.mxu0 %v5560
        %5641 = vmatpush.bf16.msra.mxu0 %v5558
        %5642 = vmatmul.bf16.gmra.mxu0 %v5459
        %v5643 = vpop.f32.mrf.mxu0
        %v5644 = vadd.f32 %v5102, %v5643
        %v5645 = vpop.f32.mrf.mxu0
        %v5646 = vadd.f32 %v5104, %v5645
        %5647 = vmatmul.bf16.gmra.mxu0 %v5461
        %v5648 = vpop.f32.mrf.mxu0
        %v5649 = vadd.f32 %v5107, %v5648
        %v5650 = vpop.f32.mrf.mxu0
        %v5651 = vadd.f32 %v5109, %v5650
        %5652 = vmatmul.bf16.gmra.mxu0 %v5463
        %v5653 = vpop.f32.mrf.mxu0
        %v5654 = vadd.f32 %v5112, %v5653
        %v5655 = vpop.f32.mrf.mxu0
        %v5656 = vadd.f32 %v5114, %v5655
        %5657 = vmatmul.bf16.gmra.mxu0 %v5465
        %v5658 = vpop.f32.mrf.mxu0
        %v5659 = vadd.f32 %v5117, %v5658
        %v5660 = vpop.f32.mrf.mxu0
        %v5661 = vadd.f32 %v5119, %v5660
        %5662 = vdwg.mxu0
        %5663 = vmatpush.bf16.msra.mxu0 0
        %5664 = vmatpush.bf16.msra.mxu0 %v5629
        %5665 = vmatpush.bf16.msra.mxu0 %v5584
        %5666 = vmatpush.bf16.msra.mxu0 %v5582
        %5667 = vmatpush.bf16.msra.mxu0 %v5580
        %5668 = vmatpush.bf16.msra.mxu0 %v5578
        %5669 = vmatpush.bf16.msra.mxu0 %v5576
        %5670 = vmatpush.bf16.msra.mxu0 %v5574
        %5671 = vmatmul.bf16.gmra.mxu0 %v5617
        %v5672 = vpop.f32.mrf.mxu0
        %v5673 = vadd.f32 %v5644, %v5672
        %v5674 = vpop.f32.mrf.mxu0
        %v5675 = vadd.f32 %v5646, %v5674
        %5676 = vmatmul.bf16.gmra.mxu0 %v5620
        %v5677 = vpop.f32.mrf.mxu0
        %v5678 = vadd.f32 %v5649, %v5677
        %v5679 = vpop.f32.mrf.mxu0
        %v5680 = vadd.f32 %v5651, %v5679
        %5681 = vmatmul.bf16.gmra.mxu0 %v5623
        %v5682 = vpop.f32.mrf.mxu0
        %v5683 = vadd.f32 %v5654, %v5682
        %v5684 = vpop.f32.mrf.mxu0
        %v5685 = vadd.f32 %v5656, %v5684
        %5686 = vmatmul.bf16.gmra.mxu0 %v5626
        %v5687 = vpop.f32.mrf.mxu0
        %v5688 = vadd.f32 %v5659, %v5687
        %v5689 = vpop.f32.mrf.mxu0
        %v5690 = vadd.f32 %v5661, %v5689
        %5691 = vdwg.mxu0
        %5692 = vmatpush.bf16.msra.mxu0 %v5573
        %5693 = vmatpush.bf16.msra.mxu0 %v5571
        %5694 = vmatpush.bf16.msra.mxu0 %v5569
        %5695 = vmatpush.bf16.msra.mxu0 %v5567
        %5696 = vmatpush.bf16.msra.mxu0 %v5565
        %5697 = vmatpush.bf16.msra.mxu0 %v5563
        %5698 = vmatpush.bf16.msra.mxu0 %v5561
        %5699 = vmatpush.bf16.msra.mxu0 %v5559
        %5700 = vmatmul.bf16.gmra.mxu0 %v5459
        %v5701 = vpop.f32.mrf.mxu0
        %v5702 = vadd.f32 %v5160, %v5701
        %v5703 = vpop.f32.mrf.mxu0
        %v5704 = vadd.f32 %v5162, %v5703
        %5705 = vmatmul.bf16.gmra.mxu0 %v5461
        %v5706 = vpop.f32.mrf.mxu0
        %v5707 = vadd.f32 %v5165, %v5706
        %v5708 = vpop.f32.mrf.mxu0
        %v5709 = vadd.f32 %v5167, %v5708
        %5710 = vmatmul.bf16.gmra.mxu0 %v5463
        %v5711 = vpop.f32.mrf.mxu0
        %v5712 = vadd.f32 %v5170, %v5711
        %v5713 = vpop.f32.mrf.mxu0
        %v5714 = vadd.f32 %v5172, %v5713
        %5715 = vmatmul.bf16.gmra.mxu0 %v5465
        %v5716 = vpop.f32.mrf.mxu0
        %v5717 = vadd.f32 %v5175, %v5716
        %v5718 = vpop.f32.mrf.mxu0
        %v5719 = vadd.f32 %v5177, %v5718
        %5720 = vdwg.mxu0
        %5721 = vmatpush.bf16.msra.mxu0 0
        %5722 = vmatpush.bf16.msra.mxu0 %v5632
        %5723 = vmatpush.bf16.msra.mxu0 %v5585
        %5724 = vmatpush.bf16.msra.mxu0 %v5583
        %5725 = vmatpush.bf16.msra.mxu0 %v5581
        %5726 = vmatpush.bf16.msra.mxu0 %v5579
        %5727 = vmatpush.bf16.msra.mxu0 %v5577
        %5728 = vmatpush.bf16.msra.mxu0 %v5575
        %5729 = vmatmul.bf16.gmra.mxu0 %v5617
        %v5730 = vpop.f32.mrf.mxu0
        %v5731 = vadd.f32 %v5702, %v5730
        %v5732 = vpop.f32.mrf.mxu0
        %v5733 = vadd.f32 %v5704, %v5732
        %5734 = vmatmul.bf16.gmra.mxu0 %v5620
        %v5735 = vpop.f32.mrf.mxu0
        %v5736 = vadd.f32 %v5707, %v5735
        %v5737 = vpop.f32.mrf.mxu0
        %v5738 = vadd.f32 %v5709, %v5737
        %5739 = vmatmul.bf16.gmra.mxu0 %v5623
        %v5740 = vpop.f32.mrf.mxu0
        %v5741 = vadd.f32 %v5712, %v5740
        %v5742 = vpop.f32.mrf.mxu0
        %v5743 = vadd.f32 %v5714, %v5742
        %5744 = vmatmul.bf16.gmra.mxu0 %v5626
        %v5745 = vpop.f32.mrf.mxu0
        %v5746 = vadd.f32 %v5717, %v5745
        %v5747 = vpop.f32.mrf.mxu0
        %v5748 = vadd.f32 %v5719, %v5747
        %5749 = vdwg.mxu0
        %v5758 = vunpack.c.l.b16 %v3975
        %v5759 = vunpack.c.h.b16 %v3975
        %v5760 = vunpack.c.l.b16 %v3987
        %v5761 = vunpack.c.h.b16 %v3987
        %v5762 = vunpack.c.l.b16 %v3999
        %v5763 = vunpack.c.h.b16 %v3999
        %v5764 = vunpack.c.l.b16 %v4011
        %v5765 = vunpack.c.h.b16 %v4011
        %v5766 = vunpack.c.l.b16 %v4023
        %v5767 = vunpack.c.h.b16 %v4023
        %v5768 = vunpack.c.l.b16 %v4035
        %v5769 = vunpack.c.h.b16 %v4035
        %v5770 = vunpack.c.l.b16 %v4047
        %v5771 = vunpack.c.h.b16 %v4047
        %v5772 = vunpack.c.l.b16 %v4059
        %v5773 = vunpack.c.h.b16 %v4059
        %v5774 = vpack.c.b16 %v5758, %v5758
        %v5775 = vpack.c.b16 %v5759, %v5759
        %v5776 = vpack.c.b16 %v5760, %v5760
        %v5777 = vpack.c.b16 %v5761, %v5761
        %v5778 = vpack.c.b16 %v5762, %v5762
        %v5779 = vpack.c.b16 %v5763, %v5763
        %v5780 = vpack.c.b16 %v5764, %v5764
        %v5781 = vpack.c.b16 %v5765, %v5765
        %v5782 = vpack.c.b16 %v5766, %v5766
        %v5783 = vpack.c.b16 %v5767, %v5767
        %v5784 = vpack.c.b16 %v5768, %v5768
        %v5785 = vpack.c.b16 %v5769, %v5769
        %v5786 = vpack.c.b16 %v5770, %v5770
        %v5787 = vpack.c.b16 %v5771, %v5771
        %v5788 = vpack.c.b16 %v5772, %v5772
        %v5789 = vpack.c.b16 %v5773, %v5773
        %v5790 = vunpack.c.l.b16 %v5774
        %v5791 = vunpack.c.l.b16 %v5775
        %v5792 = vunpack.c.l.b16 %v5776
        %v5793 = vunpack.c.l.b16 %v5777
        %v5794 = vunpack.c.l.b16 %v5778
        %v5795 = vunpack.c.l.b16 %v5779
        %v5796 = vunpack.c.l.b16 %v5780
        %v5797 = vunpack.c.l.b16 %v5781
        %v5798 = vunpack.c.l.b16 %v5782
        %v5799 = vunpack.c.l.b16 %v5783
        %v5800 = vunpack.c.l.b16 %v5784
        %v5801 = vunpack.c.l.b16 %v5785
        %v5802 = vunpack.c.l.b16 %v5786
        %v5803 = vunpack.c.l.b16 %v5787
        %v5804 = vunpack.c.l.b16 %v5788
        %v5805 = vunpack.c.l.b16 %v5789
        %v5806 = vrot.slane %v4531, 7
        %v5807 = vsel %vm4656, %v5806, %v4529
        %v5808 = vrot.slane %v4533, 6
        %v5809 = vsel %vm4659, %v5808, %v5807
        %v5810 = vrot.slane %v4535, 5
        %v5811 = vsel %vm4662, %v5810, %v5809
        %v5812 = vrot.slane %v4537, 4
        %v5813 = vsel %vm4665, %v5812, %v5811
        %v5814 = vrot.slane %v4539, 3
        %v5815 = vsel %vm4668, %v5814, %v5813
        %v5816 = vrot.slane %v4541, 2
        %v5817 = vsel %vm4671, %v5816, %v5815
        %v5818 = vrot.slane %v5790, 1
        %v5819 = vsel %vm4674, %v5818, %v5817
        %v5820 = vrot.slane %v4532, 7
        %v5821 = vsel %vm4656, %v5820, %v4530
        %v5822 = vrot.slane %v4534, 6
        %v5823 = vsel %vm4659, %v5822, %v5821
        %v5824 = vrot.slane %v4536, 5
        %v5825 = vsel %vm4662, %v5824, %v5823
        %v5826 = vrot.slane %v4538, 4
        %v5827 = vsel %vm4665, %v5826, %v5825
        %v5828 = vrot.slane %v4540, 3
        %v5829 = vsel %vm4668, %v5828, %v5827
        %v5830 = vrot.slane %v4542, 2
        %v5831 = vsel %vm4671, %v5830, %v5829
        %v5832 = vrot.slane %v5791, 1
        %v5833 = vsel %vm4674, %v5832, %v5831
        %v5834 = vrot.slane %v4547, 7
        %v5835 = vsel %vm4656, %v5834, %v4545
        %v5836 = vrot.slane %v4549, 6
        %v5837 = vsel %vm4659, %v5836, %v5835
        %v5838 = vrot.slane %v4551, 5
        %v5839 = vsel %vm4662, %v5838, %v5837
        %v5840 = vrot.slane %v4553, 4
        %v5841 = vsel %vm4665, %v5840, %v5839
        %v5842 = vrot.slane %v4555, 3
        %v5843 = vsel %vm4668, %v5842, %v5841
        %v5844 = vrot.slane %v4557, 2
        %v5845 = vsel %vm4671, %v5844, %v5843
        %v5846 = vrot.slane %v5792, 1
        %v5847 = vsel %vm4674, %v5846, %v5845
        %v5848 = vrot.slane %v4548, 7
        %v5849 = vsel %vm4656, %v5848, %v4546
        %v5850 = vrot.slane %v4550, 6
        %v5851 = vsel %vm4659, %v5850, %v5849
        %v5852 = vrot.slane %v4552, 5
        %v5853 = vsel %vm4662, %v5852, %v5851
        %v5854 = vrot.slane %v4554, 4
        %v5855 = vsel %vm4665, %v5854, %v5853
        %v5856 = vrot.slane %v4556, 3
        %v5857 = vsel %vm4668, %v5856, %v5855
        %v5858 = vrot.slane %v4558, 2
        %v5859 = vsel %vm4671, %v5858, %v5857
        %v5860 = vrot.slane %v5793, 1
        %v5861 = vsel %vm4674, %v5860, %v5859
        %v5862 = vrot.slane %v4563, 7
        %v5863 = vsel %vm4656, %v5862, %v4561
        %v5864 = vrot.slane %v4565, 6
        %v5865 = vsel %vm4659, %v5864, %v5863
        %v5866 = vrot.slane %v4567, 5
        %v5867 = vsel %vm4662, %v5866, %v5865
        %v5868 = vrot.slane %v4569, 4
        %v5869 = vsel %vm4665, %v5868, %v5867
        %v5870 = vrot.slane %v4571, 3
        %v5871 = vsel %vm4668, %v5870, %v5869
        %v5872 = vrot.slane %v4573, 2
        %v5873 = vsel %vm4671, %v5872, %v5871
        %v5874 = vrot.slane %v5794, 1
        %v5875 = vsel %vm4674, %v5874, %v5873
        %v5876 = vrot.slane %v4564, 7
        %v5877 = vsel %vm4656, %v5876, %v4562
        %v5878 = vrot.slane %v4566, 6
        %v5879 = vsel %vm4659, %v5878, %v5877
        %v5880 = vrot.slane %v4568, 5
        %v5881 = vsel %vm4662, %v5880, %v5879
        %v5882 = vrot.slane %v4570, 4
        %v5883 = vsel %vm4665, %v5882, %v5881
        %v5884 = vrot.slane %v4572, 3
        %v5885 = vsel %vm4668, %v5884, %v5883
        %v5886 = vrot.slane %v4574, 2
        %v5887 = vsel %vm4671, %v5886, %v5885
        %v5888 = vrot.slane %v5795, 1
        %v5889 = vsel %vm4674, %v5888, %v5887
        %v5890 = vrot.slane %v4579, 7
        %v5891 = vsel %vm4656, %v5890, %v4577
        %v5892 = vrot.slane %v4581, 6
        %v5893 = vsel %vm4659, %v5892, %v5891
        %v5894 = vrot.slane %v4583, 5
        %v5895 = vsel %vm4662, %v5894, %v5893
        %v5896 = vrot.slane %v4585, 4
        %v5897 = vsel %vm4665, %v5896, %v5895
        %v5898 = vrot.slane %v4587, 3
        %v5899 = vsel %vm4668, %v5898, %v5897
        %v5900 = vrot.slane %v4589, 2
        %v5901 = vsel %vm4671, %v5900, %v5899
        %v5902 = vrot.slane %v5796, 1
        %v5903 = vsel %vm4674, %v5902, %v5901
        %v5904 = vrot.slane %v4580, 7
        %v5905 = vsel %vm4656, %v5904, %v4578
        %v5906 = vrot.slane %v4582, 6
        %v5907 = vsel %vm4659, %v5906, %v5905
        %v5908 = vrot.slane %v4584, 5
        %v5909 = vsel %vm4662, %v5908, %v5907
        %v5910 = vrot.slane %v4586, 4
        %v5911 = vsel %vm4665, %v5910, %v5909
        %v5912 = vrot.slane %v4588, 3
        %v5913 = vsel %vm4668, %v5912, %v5911
        %v5914 = vrot.slane %v4590, 2
        %v5915 = vsel %vm4671, %v5914, %v5913
        %v5916 = vrot.slane %v5797, 1
        %v5917 = vsel %vm4674, %v5916, %v5915
        %v5918 = vrot.slane %v4595, 7
        %v5919 = vsel %vm4656, %v5918, %v4593
        %v5920 = vrot.slane %v4597, 6
        %v5921 = vsel %vm4659, %v5920, %v5919
        %v5922 = vrot.slane %v4599, 5
        %v5923 = vsel %vm4662, %v5922, %v5921
        %v5924 = vrot.slane %v4601, 4
        %v5925 = vsel %vm4665, %v5924, %v5923
        %v5926 = vrot.slane %v4603, 3
        %v5927 = vsel %vm4668, %v5926, %v5925
        %v5928 = vrot.slane %v4605, 2
        %v5929 = vsel %vm4671, %v5928, %v5927
        %v5930 = vrot.slane %v5798, 1
        %v5931 = vsel %vm4674, %v5930, %v5929
        %v5932 = vrot.slane %v4596, 7
        %v5933 = vsel %vm4656, %v5932, %v4594
        %v5934 = vrot.slane %v4598, 6
        %v5935 = vsel %vm4659, %v5934, %v5933
        %v5936 = vrot.slane %v4600, 5
        %v5937 = vsel %vm4662, %v5936, %v5935
        %v5938 = vrot.slane %v4602, 4
        %v5939 = vsel %vm4665, %v5938, %v5937
        %v5940 = vrot.slane %v4604, 3
        %v5941 = vsel %vm4668, %v5940, %v5939
        %v5942 = vrot.slane %v4606, 2
        %v5943 = vsel %vm4671, %v5942, %v5941
        %v5944 = vrot.slane %v5799, 1
        %v5945 = vsel %vm4674, %v5944, %v5943
        %v5946 = vrot.slane %v4611, 7
        %v5947 = vsel %vm4656, %v5946, %v4609
        %v5948 = vrot.slane %v4613, 6
        %v5949 = vsel %vm4659, %v5948, %v5947
        %v5950 = vrot.slane %v4615, 5
        %v5951 = vsel %vm4662, %v5950, %v5949
        %v5952 = vrot.slane %v4617, 4
        %v5953 = vsel %vm4665, %v5952, %v5951
        %v5954 = vrot.slane %v4619, 3
        %v5955 = vsel %vm4668, %v5954, %v5953
        %v5956 = vrot.slane %v4621, 2
        %v5957 = vsel %vm4671, %v5956, %v5955
        %v5958 = vrot.slane %v5800, 1
        %v5959 = vsel %vm4674, %v5958, %v5957
        %v5960 = vrot.slane %v4612, 7
        %v5961 = vsel %vm4656, %v5960, %v4610
        %v5962 = vrot.slane %v4614, 6
        %v5963 = vsel %vm4659, %v5962, %v5961
        %v5964 = vrot.slane %v4616, 5
        %v5965 = vsel %vm4662, %v5964, %v5963
        %v5966 = vrot.slane %v4618, 4
        %v5967 = vsel %vm4665, %v5966, %v5965
        %v5968 = vrot.slane %v4620, 3
        %v5969 = vsel %vm4668, %v5968, %v5967
        %v5970 = vrot.slane %v4622, 2
        %v5971 = vsel %vm4671, %v5970, %v5969
        %v5972 = vrot.slane %v5801, 1
        %v5973 = vsel %vm4674, %v5972, %v5971
        %v5974 = vrot.slane %v4627, 7
        %v5975 = vsel %vm4656, %v5974, %v4625
        %v5976 = vrot.slane %v4629, 6
        %v5977 = vsel %vm4659, %v5976, %v5975
        %v5978 = vrot.slane %v4631, 5
        %v5979 = vsel %vm4662, %v5978, %v5977
        %v5980 = vrot.slane %v4633, 4
        %v5981 = vsel %vm4665, %v5980, %v5979
        %v5982 = vrot.slane %v4635, 3
        %v5983 = vsel %vm4668, %v5982, %v5981
        %v5984 = vrot.slane %v4637, 2
        %v5985 = vsel %vm4671, %v5984, %v5983
        %v5986 = vrot.slane %v5802, 1
        %v5987 = vsel %vm4674, %v5986, %v5985
        %v5988 = vrot.slane %v4628, 7
        %v5989 = vsel %vm4656, %v5988, %v4626
        %v5990 = vrot.slane %v4630, 6
        %v5991 = vsel %vm4659, %v5990, %v5989
        %v5992 = vrot.slane %v4632, 5
        %v5993 = vsel %vm4662, %v5992, %v5991
        %v5994 = vrot.slane %v4634, 4
        %v5995 = vsel %vm4665, %v5994, %v5993
        %v5996 = vrot.slane %v4636, 3
        %v5997 = vsel %vm4668, %v5996, %v5995
        %v5998 = vrot.slane %v4638, 2
        %v5999 = vsel %vm4671, %v5998, %v5997
        %v6000 = vrot.slane %v5803, 1
        %v6001 = vsel %vm4674, %v6000, %v5999
        %v6002 = vrot.slane %v4643, 7
        %v6003 = vsel %vm4656, %v6002, %v4641
        %v6004 = vrot.slane %v4645, 6
        %v6005 = vsel %vm4659, %v6004, %v6003
        %v6006 = vrot.slane %v4647, 5
        %v6007 = vsel %vm4662, %v6006, %v6005
        %v6008 = vrot.slane %v4649, 4
        %v6009 = vsel %vm4665, %v6008, %v6007
        %v6010 = vrot.slane %v4651, 3
        %v6011 = vsel %vm4668, %v6010, %v6009
        %v6012 = vrot.slane %v4653, 2
        %v6013 = vsel %vm4671, %v6012, %v6011
        %v6014 = vrot.slane %v5804, 1
        %v6015 = vsel %vm4674, %v6014, %v6013
        %v6016 = vrot.slane %v4644, 7
        %v6017 = vsel %vm4656, %v6016, %v4642
        %v6018 = vrot.slane %v4646, 6
        %v6019 = vsel %vm4659, %v6018, %v6017
        %v6020 = vrot.slane %v4648, 5
        %v6021 = vsel %vm4662, %v6020, %v6019
        %v6022 = vrot.slane %v4650, 4
        %v6023 = vsel %vm4665, %v6022, %v6021
        %v6024 = vrot.slane %v4652, 3
        %v6025 = vsel %vm4668, %v6024, %v6023
        %v6026 = vrot.slane %v4654, 2
        %v6027 = vsel %vm4671, %v6026, %v6025
        %v6028 = vrot.slane %v5805, 1
        %v6029 = vsel %vm4674, %v6028, %v6027
        %v6030 = vpack.c.b16 %v5847, %v5819
        %v6031 = vpack.c.b16 %v5861, %v5833
        %v6032 = vpack.c.b16 %v5903, %v5875
        %v6033 = vpack.c.b16 %v5917, %v5889
        %v6034 = vpack.c.b16 %v5959, %v5931
        %v6035 = vpack.c.b16 %v5973, %v5945
        %v6036 = vpack.c.b16 %v6015, %v5987
        %v6037 = vpack.c.b16 %v6029, %v6001
        %v6071 = vunpack.c.l.b16 %v4120
        %v6072 = vunpack.c.h.b16 %v4120
        %v6073 = vunpack.c.l.b16 %v4121
        %v6074 = vunpack.c.h.b16 %v4121
        %v6075 = vunpack.c.l.b16 %v4122
        %v6076 = vunpack.c.h.b16 %v4122
        %v6077 = vunpack.c.l.b16 %v4123
        %v6078 = vunpack.c.h.b16 %v4123
        %v6079 = vunpack.c.l.b16 %v4124
        %v6080 = vunpack.c.h.b16 %v4124
        %v6081 = vunpack.c.l.b16 %v4125
        %v6082 = vunpack.c.h.b16 %v4125
        %v6083 = vunpack.c.l.b16 %v4126
        %v6084 = vunpack.c.h.b16 %v4126
        %v6085 = vunpack.c.l.b16 %v4127
        %v6086 = vunpack.c.h.b16 %v4127
        %v6087 = vunpack.c.l.b16 %v4128
        %v6088 = vunpack.c.h.b16 %v4128
        %v6089 = vunpack.c.l.b16 %v4129
        %v6090 = vunpack.c.h.b16 %v4129
        %v6091 = vunpack.c.l.b16 %v4130
        %v6092 = vunpack.c.h.b16 %v4130
        %v6093 = vunpack.c.l.b16 %v4131
        %v6094 = vunpack.c.h.b16 %v4131
        %v6095 = vunpack.c.l.b16 %v4132
        %v6096 = vunpack.c.h.b16 %v4132
        %v6097 = vunpack.c.l.b16 %v4133
        %v6098 = vunpack.c.h.b16 %v4133
        %v6099 = vunpack.c.l.b16 %v4134
        %v6100 = vunpack.c.h.b16 %v4134
        %v6101 = vunpack.c.l.b16 %v4135
        %v6102 = vunpack.c.h.b16 %v4135
        %v6103 = vunpack.c.l.b16 %v4136
        %v6104 = vunpack.c.h.b16 %v4136
        %v6105 = vunpack.c.l.b16 %v4137
        %v6106 = vunpack.c.h.b16 %v4137
        %v6107 = vunpack.c.l.b16 %v4138
        %v6108 = vunpack.c.h.b16 %v4138
        %v6109 = vunpack.c.l.b16 %v4139
        %v6110 = vunpack.c.h.b16 %v4139
        %v6111 = vunpack.c.l.b16 %v4140
        %v6112 = vunpack.c.h.b16 %v4140
        %v6113 = vunpack.c.l.b16 %v4141
        %v6114 = vunpack.c.h.b16 %v4141
        %v6115 = vunpack.c.l.b16 %v4142
        %v6116 = vunpack.c.h.b16 %v4142
        %v6117 = vunpack.c.l.b16 %v4143
        %v6118 = vunpack.c.h.b16 %v4143
        %v6119 = vunpack.c.l.b16 %v4144
        %v6120 = vunpack.c.h.b16 %v4144
        %v6121 = vunpack.c.l.b16 %v4145
        %v6122 = vunpack.c.h.b16 %v4145
        %v6123 = vunpack.c.l.b16 %v4146
        %v6124 = vunpack.c.h.b16 %v4146
        %v6125 = vunpack.c.l.b16 %v4147
        %v6126 = vunpack.c.h.b16 %v4147
        %v6127 = vunpack.c.l.b16 %v4148
        %v6128 = vunpack.c.h.b16 %v4148
        %v6129 = vpack.c.b16 %v6073, %v6071
        %v6130 = vpack.c.b16 %v6074, %v6072
        %v6131 = vpack.c.b16 %v6077, %v6075
        %v6132 = vpack.c.b16 %v6078, %v6076
        %v6133 = vpack.c.b16 %v6081, %v6079
        %v6134 = vpack.c.b16 %v6082, %v6080
        %v6135 = vpack.c.b16 %v6085, %v6083
        %v6136 = vpack.c.b16 %v6086, %v6084
        %v6137 = vpack.c.b16 %v6089, %v6087
        %v6138 = vpack.c.b16 %v6090, %v6088
        %v6139 = vpack.c.b16 %v6093, %v6091
        %v6140 = vpack.c.b16 %v6094, %v6092
        %v6141 = vpack.c.b16 %v6097, %v6095
        %v6142 = vpack.c.b16 %v6098, %v6096
        %v6143 = vpack.c.b16 %v6101, %v6099
        %v6144 = vpack.c.b16 %v6102, %v6100
        %v6145 = vpack.c.b16 %v6105, %v6103
        %v6146 = vpack.c.b16 %v6106, %v6104
        %v6147 = vpack.c.b16 %v6109, %v6107
        %v6148 = vpack.c.b16 %v6110, %v6108
        %v6149 = vpack.c.b16 %v6113, %v6111
        %v6150 = vpack.c.b16 %v6114, %v6112
        %v6151 = vpack.c.b16 %v6117, %v6115
        %v6152 = vpack.c.b16 %v6118, %v6116
        %v6153 = vpack.c.b16 %v6121, %v6119
        %v6154 = vpack.c.b16 %v6122, %v6120
        %v6155 = vpack.c.b16 %v6125, %v6123
        %v6156 = vpack.c.b16 %v6126, %v6124
        %v6157 = vpack.c.b16 %v6127, %v6127
        %v6158 = vpack.c.b16 %v6128, %v6128
        %v6188 = vsel %vm5043, %v6031, 0
        %v6191 = vsel %vm5043, %v6033, 0
        %v6194 = vsel %vm5043, %v6035, 0
        %v6197 = vsel %vm5043, %v6037, 0
        %v6200 = vsel %vm5056, %v6157, 0
        %v6203 = vsel %vm5056, %v6158, 0
        %6205 = vmatpush.bf16.msra.mxu0 %v6143
        %6206 = vmatpush.bf16.msra.mxu0 %v6141
        %6207 = vmatpush.bf16.msra.mxu0 %v6139
        %6208 = vmatpush.bf16.msra.mxu0 %v6137
        %6209 = vmatpush.bf16.msra.mxu0 %v6135
        %6210 = vmatpush.bf16.msra.mxu0 %v6133
        %6211 = vmatpush.bf16.msra.mxu0 %v6131
        %6212 = vmatpush.bf16.msra.mxu0 %v6129
        %6213 = vmatmul.bf16.gmra.mxu0 %v6030
        %v6214 = vpop.f32.mrf.mxu0
        %v6215 = vadd.f32 0.0, %v6214
        %v6216 = vpop.f32.mrf.mxu0
        %v6217 = vadd.f32 0.0, %v6216
        %6218 = vmatmul.bf16.gmra.mxu0 %v6032
        %v6219 = vpop.f32.mrf.mxu0
        %v6220 = vadd.f32 0.0, %v6219
        %v6221 = vpop.f32.mrf.mxu0
        %v6222 = vadd.f32 0.0, %v6221
        %6223 = vmatmul.bf16.gmra.mxu0 %v6034
        %v6224 = vpop.f32.mrf.mxu0
        %v6225 = vadd.f32 0.0, %v6224
        %v6226 = vpop.f32.mrf.mxu0
        %v6227 = vadd.f32 0.0, %v6226
        %6228 = vmatmul.bf16.gmra.mxu0 %v6036
        %v6229 = vpop.f32.mrf.mxu0
        %v6230 = vadd.f32 0.0, %v6229
        %v6231 = vpop.f32.mrf.mxu0
        %v6232 = vadd.f32 0.0, %v6231
        %6233 = vdwg.mxu0
        %6234 = vmatpush.bf16.msra.mxu0 0
        %6235 = vmatpush.bf16.msra.mxu0 %v6200
        %6236 = vmatpush.bf16.msra.mxu0 %v6155
        %6237 = vmatpush.bf16.msra.mxu0 %v6153
        %6238 = vmatpush.bf16.msra.mxu0 %v6151
        %6239 = vmatpush.bf16.msra.mxu0 %v6149
        %6240 = vmatpush.bf16.msra.mxu0 %v6147
        %6241 = vmatpush.bf16.msra.mxu0 %v6145
        %6242 = vmatmul.bf16.gmra.mxu0 %v6188
        %v6243 = vpop.f32.mrf.mxu0
        %v6244 = vadd.f32 %v6215, %v6243
        %v6245 = vpop.f32.mrf.mxu0
        %v6246 = vadd.f32 %v6217, %v6245
        %6247 = vmatmul.bf16.gmra.mxu0 %v6191
        %v6248 = vpop.f32.mrf.mxu0
        %v6249 = vadd.f32 %v6220, %v6248
        %v6250 = vpop.f32.mrf.mxu0
        %v6251 = vadd.f32 %v6222, %v6250
        %6252 = vmatmul.bf16.gmra.mxu0 %v6194
        %v6253 = vpop.f32.mrf.mxu0
        %v6254 = vadd.f32 %v6225, %v6253
        %v6255 = vpop.f32.mrf.mxu0
        %v6256 = vadd.f32 %v6227, %v6255
        %6257 = vmatmul.bf16.gmra.mxu0 %v6197
        %v6258 = vpop.f32.mrf.mxu0
        %v6259 = vadd.f32 %v6230, %v6258
        %v6260 = vpop.f32.mrf.mxu0
        %v6261 = vadd.f32 %v6232, %v6260
        %6262 = vdwg.mxu0
        %6263 = vmatpush.bf16.msra.mxu0 %v6144
        %6264 = vmatpush.bf16.msra.mxu0 %v6142
        %6265 = vmatpush.bf16.msra.mxu0 %v6140
        %6266 = vmatpush.bf16.msra.mxu0 %v6138
        %6267 = vmatpush.bf16.msra.mxu0 %v6136
        %6268 = vmatpush.bf16.msra.mxu0 %v6134
        %6269 = vmatpush.bf16.msra.mxu0 %v6132
        %6270 = vmatpush.bf16.msra.mxu0 %v6130
        %6271 = vmatmul.bf16.gmra.mxu0 %v6030
        %v6272 = vpop.f32.mrf.mxu0
        %v6273 = vadd.f32 0.0, %v6272
        %v6274 = vpop.f32.mrf.mxu0
        %v6275 = vadd.f32 0.0, %v6274
        %6276 = vmatmul.bf16.gmra.mxu0 %v6032
        %v6277 = vpop.f32.mrf.mxu0
        %v6278 = vadd.f32 0.0, %v6277
        %v6279 = vpop.f32.mrf.mxu0
        %v6280 = vadd.f32 0.0, %v6279
        %6281 = vmatmul.bf16.gmra.mxu0 %v6034
        %v6282 = vpop.f32.mrf.mxu0
        %v6283 = vadd.f32 0.0, %v6282
        %v6284 = vpop.f32.mrf.mxu0
        %v6285 = vadd.f32 0.0, %v6284
        %6286 = vmatmul.bf16.gmra.mxu0 %v6036
        %v6287 = vpop.f32.mrf.mxu0
        %v6288 = vadd.f32 0.0, %v6287
        %v6289 = vpop.f32.mrf.mxu0
        %v6290 = vadd.f32 0.0, %v6289
        %6291 = vdwg.mxu0
        %6292 = vmatpush.bf16.msra.mxu0 0
        %6293 = vmatpush.bf16.msra.mxu0 %v6203
        %6294 = vmatpush.bf16.msra.mxu0 %v6156
        %6295 = vmatpush.bf16.msra.mxu0 %v6154
        %6296 = vmatpush.bf16.msra.mxu0 %v6152
        %6297 = vmatpush.bf16.msra.mxu0 %v6150
        %6298 = vmatpush.bf16.msra.mxu0 %v6148
        %6299 = vmatpush.bf16.msra.mxu0 %v6146
        %6300 = vmatmul.bf16.gmra.mxu0 %v6188
        %v6301 = vpop.f32.mrf.mxu0
        %v6302 = vadd.f32 %v6273, %v6301
        %v6303 = vpop.f32.mrf.mxu0
        %v6304 = vadd.f32 %v6275, %v6303
        %6305 = vmatmul.bf16.gmra.mxu0 %v6191
        %v6306 = vpop.f32.mrf.mxu0
        %v6307 = vadd.f32 %v6278, %v6306
        %v6308 = vpop.f32.mrf.mxu0
        %v6309 = vadd.f32 %v6280, %v6308
        %6310 = vmatmul.bf16.gmra.mxu0 %v6194
        %v6311 = vpop.f32.mrf.mxu0
        %v6312 = vadd.f32 %v6283, %v6311
        %v6313 = vpop.f32.mrf.mxu0
        %v6314 = vadd.f32 %v6285, %v6313
        %6315 = vmatmul.bf16.gmra.mxu0 %v6197
        %v6316 = vpop.f32.mrf.mxu0
        %v6317 = vadd.f32 %v6288, %v6316
        %v6318 = vpop.f32.mrf.mxu0
        %v6319 = vadd.f32 %v6290, %v6318
        %6320 = vdwg.mxu0
        %v6321 = vadd.f32 %v5673, %v6244
        %v6322 = vadd.f32 %v5731, %v6302
        %v6323 = vadd.f32 %v5675, %v6246
        %v6324 = vadd.f32 %v5733, %v6304
        %v6325 = vadd.f32 %v5678, %v6249
        %v6326 = vadd.f32 %v5736, %v6307
        %v6327 = vadd.f32 %v5680, %v6251
        %v6328 = vadd.f32 %v5738, %v6309
        %v6329 = vadd.f32 %v5683, %v6254
        %v6330 = vadd.f32 %v5741, %v6312
        %v6331 = vadd.f32 %v5685, %v6256
        %v6332 = vadd.f32 %v5743, %v6314
        %v6333 = vadd.f32 %v5688, %v6259
        %v6334 = vadd.f32 %v5746, %v6317
        %v6335 = vadd.f32 %v5690, %v6261
        %v6336 = vadd.f32 %v5748, %v6319
        %v6345 = vunpack.c.l.b16 %v3976
        %v6346 = vunpack.c.h.b16 %v3976
        %v6347 = vunpack.c.l.b16 %v3988
        %v6348 = vunpack.c.h.b16 %v3988
        %v6349 = vunpack.c.l.b16 %v4000
        %v6350 = vunpack.c.h.b16 %v4000
        %v6351 = vunpack.c.l.b16 %v4012
        %v6352 = vunpack.c.h.b16 %v4012
        %v6353 = vunpack.c.l.b16 %v4024
        %v6354 = vunpack.c.h.b16 %v4024
        %v6355 = vunpack.c.l.b16 %v4036
        %v6356 = vunpack.c.h.b16 %v4036
        %v6357 = vunpack.c.l.b16 %v4048
        %v6358 = vunpack.c.h.b16 %v4048
        %v6359 = vunpack.c.l.b16 %v4060
        %v6360 = vunpack.c.h.b16 %v4060
        %v6361 = vpack.c.b16 %v6345, %v6345
        %v6362 = vpack.c.b16 %v6346, %v6346
        %v6363 = vpack.c.b16 %v6347, %v6347
        %v6364 = vpack.c.b16 %v6348, %v6348
        %v6365 = vpack.c.b16 %v6349, %v6349
        %v6366 = vpack.c.b16 %v6350, %v6350
        %v6367 = vpack.c.b16 %v6351, %v6351
        %v6368 = vpack.c.b16 %v6352, %v6352
        %v6369 = vpack.c.b16 %v6353, %v6353
        %v6370 = vpack.c.b16 %v6354, %v6354
        %v6371 = vpack.c.b16 %v6355, %v6355
        %v6372 = vpack.c.b16 %v6356, %v6356
        %v6373 = vpack.c.b16 %v6357, %v6357
        %v6374 = vpack.c.b16 %v6358, %v6358
        %v6375 = vpack.c.b16 %v6359, %v6359
        %v6376 = vpack.c.b16 %v6360, %v6360
        %v6377 = vunpack.c.l.b16 %v6361
        %v6378 = vunpack.c.l.b16 %v6362
        %v6379 = vunpack.c.l.b16 %v6363
        %v6380 = vunpack.c.l.b16 %v6364
        %v6381 = vunpack.c.l.b16 %v6365
        %v6382 = vunpack.c.l.b16 %v6366
        %v6383 = vunpack.c.l.b16 %v6367
        %v6384 = vunpack.c.l.b16 %v6368
        %v6385 = vunpack.c.l.b16 %v6369
        %v6386 = vunpack.c.l.b16 %v6370
        %v6387 = vunpack.c.l.b16 %v6371
        %v6388 = vunpack.c.l.b16 %v6372
        %v6389 = vunpack.c.l.b16 %v6373
        %v6390 = vunpack.c.l.b16 %v6374
        %v6391 = vunpack.c.l.b16 %v6375
        %v6392 = vunpack.c.l.b16 %v6376
        %v6393 = vrot.slane %v4533, 7
        %v6394 = vsel %vm4656, %v6393, %v4531
        %v6395 = vrot.slane %v4535, 6
        %v6396 = vsel %vm4659, %v6395, %v6394
        %v6397 = vrot.slane %v4537, 5
        %v6398 = vsel %vm4662, %v6397, %v6396
        %v6399 = vrot.slane %v4539, 4
        %v6400 = vsel %vm4665, %v6399, %v6398
        %v6401 = vrot.slane %v4541, 3
        %v6402 = vsel %vm4668, %v6401, %v6400
        %v6403 = vrot.slane %v5790, 2
        %v6404 = vsel %vm4671, %v6403, %v6402
        %v6405 = vrot.slane %v6377, 1
        %v6406 = vsel %vm4674, %v6405, %v6404
        %v6407 = vrot.slane %v4534, 7
        %v6408 = vsel %vm4656, %v6407, %v4532
        %v6409 = vrot.slane %v4536, 6
        %v6410 = vsel %vm4659, %v6409, %v6408
        %v6411 = vrot.slane %v4538, 5
        %v6412 = vsel %vm4662, %v6411, %v6410
        %v6413 = vrot.slane %v4540, 4
        %v6414 = vsel %vm4665, %v6413, %v6412
        %v6415 = vrot.slane %v4542, 3
        %v6416 = vsel %vm4668, %v6415, %v6414
        %v6417 = vrot.slane %v5791, 2
        %v6418 = vsel %vm4671, %v6417, %v6416
        %v6419 = vrot.slane %v6378, 1
        %v6420 = vsel %vm4674, %v6419, %v6418
        %v6421 = vrot.slane %v4549, 7
        %v6422 = vsel %vm4656, %v6421, %v4547
        %v6423 = vrot.slane %v4551, 6
        %v6424 = vsel %vm4659, %v6423, %v6422
        %v6425 = vrot.slane %v4553, 5
        %v6426 = vsel %vm4662, %v6425, %v6424
        %v6427 = vrot.slane %v4555, 4
        %v6428 = vsel %vm4665, %v6427, %v6426
        %v6429 = vrot.slane %v4557, 3
        %v6430 = vsel %vm4668, %v6429, %v6428
        %v6431 = vrot.slane %v5792, 2
        %v6432 = vsel %vm4671, %v6431, %v6430
        %v6433 = vrot.slane %v6379, 1
        %v6434 = vsel %vm4674, %v6433, %v6432
        %v6435 = vrot.slane %v4550, 7
        %v6436 = vsel %vm4656, %v6435, %v4548
        %v6437 = vrot.slane %v4552, 6
        %v6438 = vsel %vm4659, %v6437, %v6436
        %v6439 = vrot.slane %v4554, 5
        %v6440 = vsel %vm4662, %v6439, %v6438
        %v6441 = vrot.slane %v4556, 4
        %v6442 = vsel %vm4665, %v6441, %v6440
        %v6443 = vrot.slane %v4558, 3
        %v6444 = vsel %vm4668, %v6443, %v6442
        %v6445 = vrot.slane %v5793, 2
        %v6446 = vsel %vm4671, %v6445, %v6444
        %v6447 = vrot.slane %v6380, 1
        %v6448 = vsel %vm4674, %v6447, %v6446
        %v6449 = vrot.slane %v4565, 7
        %v6450 = vsel %vm4656, %v6449, %v4563
        %v6451 = vrot.slane %v4567, 6
        %v6452 = vsel %vm4659, %v6451, %v6450
        %v6453 = vrot.slane %v4569, 5
        %v6454 = vsel %vm4662, %v6453, %v6452
        %v6455 = vrot.slane %v4571, 4
        %v6456 = vsel %vm4665, %v6455, %v6454
        %v6457 = vrot.slane %v4573, 3
        %v6458 = vsel %vm4668, %v6457, %v6456
        %v6459 = vrot.slane %v5794, 2
        %v6460 = vsel %vm4671, %v6459, %v6458
        %v6461 = vrot.slane %v6381, 1
        %v6462 = vsel %vm4674, %v6461, %v6460
        %v6463 = vrot.slane %v4566, 7
        %v6464 = vsel %vm4656, %v6463, %v4564
        %v6465 = vrot.slane %v4568, 6
        %v6466 = vsel %vm4659, %v6465, %v6464
        %v6467 = vrot.slane %v4570, 5
        %v6468 = vsel %vm4662, %v6467, %v6466
        %v6469 = vrot.slane %v4572, 4
        %v6470 = vsel %vm4665, %v6469, %v6468
        %v6471 = vrot.slane %v4574, 3
        %v6472 = vsel %vm4668, %v6471, %v6470
        %v6473 = vrot.slane %v5795, 2
        %v6474 = vsel %vm4671, %v6473, %v6472
        %v6475 = vrot.slane %v6382, 1
        %v6476 = vsel %vm4674, %v6475, %v6474
        %v6477 = vrot.slane %v4581, 7
        %v6478 = vsel %vm4656, %v6477, %v4579
        %v6479 = vrot.slane %v4583, 6
        %v6480 = vsel %vm4659, %v6479, %v6478
        %v6481 = vrot.slane %v4585, 5
        %v6482 = vsel %vm4662, %v6481, %v6480
        %v6483 = vrot.slane %v4587, 4
        %v6484 = vsel %vm4665, %v6483, %v6482
        %v6485 = vrot.slane %v4589, 3
        %v6486 = vsel %vm4668, %v6485, %v6484
        %v6487 = vrot.slane %v5796, 2
        %v6488 = vsel %vm4671, %v6487, %v6486
        %v6489 = vrot.slane %v6383, 1
        %v6490 = vsel %vm4674, %v6489, %v6488
        %v6491 = vrot.slane %v4582, 7
        %v6492 = vsel %vm4656, %v6491, %v4580
        %v6493 = vrot.slane %v4584, 6
        %v6494 = vsel %vm4659, %v6493, %v6492
        %v6495 = vrot.slane %v4586, 5
        %v6496 = vsel %vm4662, %v6495, %v6494
        %v6497 = vrot.slane %v4588, 4
        %v6498 = vsel %vm4665, %v6497, %v6496
        %v6499 = vrot.slane %v4590, 3
        %v6500 = vsel %vm4668, %v6499, %v6498
        %v6501 = vrot.slane %v5797, 2
        %v6502 = vsel %vm4671, %v6501, %v6500
        %v6503 = vrot.slane %v6384, 1
        %v6504 = vsel %vm4674, %v6503, %v6502
        %v6505 = vrot.slane %v4597, 7
        %v6506 = vsel %vm4656, %v6505, %v4595
        %v6507 = vrot.slane %v4599, 6
        %v6508 = vsel %vm4659, %v6507, %v6506
        %v6509 = vrot.slane %v4601, 5
        %v6510 = vsel %vm4662, %v6509, %v6508
        %v6511 = vrot.slane %v4603, 4
        %v6512 = vsel %vm4665, %v6511, %v6510
        %v6513 = vrot.slane %v4605, 3
        %v6514 = vsel %vm4668, %v6513, %v6512
        %v6515 = vrot.slane %v5798, 2
        %v6516 = vsel %vm4671, %v6515, %v6514
        %v6517 = vrot.slane %v6385, 1
        %v6518 = vsel %vm4674, %v6517, %v6516
        %v6519 = vrot.slane %v4598, 7
        %v6520 = vsel %vm4656, %v6519, %v4596
        %v6521 = vrot.slane %v4600, 6
        %v6522 = vsel %vm4659, %v6521, %v6520
        %v6523 = vrot.slane %v4602, 5
        %v6524 = vsel %vm4662, %v6523, %v6522
        %v6525 = vrot.slane %v4604, 4
        %v6526 = vsel %vm4665, %v6525, %v6524
        %v6527 = vrot.slane %v4606, 3
        %v6528 = vsel %vm4668, %v6527, %v6526
        %v6529 = vrot.slane %v5799, 2
        %v6530 = vsel %vm4671, %v6529, %v6528
        %v6531 = vrot.slane %v6386, 1
        %v6532 = vsel %vm4674, %v6531, %v6530
        %v6533 = vrot.slane %v4613, 7
        %v6534 = vsel %vm4656, %v6533, %v4611
        %v6535 = vrot.slane %v4615, 6
        %v6536 = vsel %vm4659, %v6535, %v6534
        %v6537 = vrot.slane %v4617, 5
        %v6538 = vsel %vm4662, %v6537, %v6536
        %v6539 = vrot.slane %v4619, 4
        %v6540 = vsel %vm4665, %v6539, %v6538
        %v6541 = vrot.slane %v4621, 3
        %v6542 = vsel %vm4668, %v6541, %v6540
        %v6543 = vrot.slane %v5800, 2
        %v6544 = vsel %vm4671, %v6543, %v6542
        %v6545 = vrot.slane %v6387, 1
        %v6546 = vsel %vm4674, %v6545, %v6544
        %v6547 = vrot.slane %v4614, 7
        %v6548 = vsel %vm4656, %v6547, %v4612
        %v6549 = vrot.slane %v4616, 6
        %v6550 = vsel %vm4659, %v6549, %v6548
        %v6551 = vrot.slane %v4618, 5
        %v6552 = vsel %vm4662, %v6551, %v6550
        %v6553 = vrot.slane %v4620, 4
        %v6554 = vsel %vm4665, %v6553, %v6552
        %v6555 = vrot.slane %v4622, 3
        %v6556 = vsel %vm4668, %v6555, %v6554
        %v6557 = vrot.slane %v5801, 2
        %v6558 = vsel %vm4671, %v6557, %v6556
        %v6559 = vrot.slane %v6388, 1
        %v6560 = vsel %vm4674, %v6559, %v6558
        %v6561 = vrot.slane %v4629, 7
        %v6562 = vsel %vm4656, %v6561, %v4627
        %v6563 = vrot.slane %v4631, 6
        %v6564 = vsel %vm4659, %v6563, %v6562
        %v6565 = vrot.slane %v4633, 5
        %v6566 = vsel %vm4662, %v6565, %v6564
        %v6567 = vrot.slane %v4635, 4
        %v6568 = vsel %vm4665, %v6567, %v6566
        %v6569 = vrot.slane %v4637, 3
        %v6570 = vsel %vm4668, %v6569, %v6568
        %v6571 = vrot.slane %v5802, 2
        %v6572 = vsel %vm4671, %v6571, %v6570
        %v6573 = vrot.slane %v6389, 1
        %v6574 = vsel %vm4674, %v6573, %v6572
        %v6575 = vrot.slane %v4630, 7
        %v6576 = vsel %vm4656, %v6575, %v4628
        %v6577 = vrot.slane %v4632, 6
        %v6578 = vsel %vm4659, %v6577, %v6576
        %v6579 = vrot.slane %v4634, 5
        %v6580 = vsel %vm4662, %v6579, %v6578
        %v6581 = vrot.slane %v4636, 4
        %v6582 = vsel %vm4665, %v6581, %v6580
        %v6583 = vrot.slane %v4638, 3
        %v6584 = vsel %vm4668, %v6583, %v6582
        %v6585 = vrot.slane %v5803, 2
        %v6586 = vsel %vm4671, %v6585, %v6584
        %v6587 = vrot.slane %v6390, 1
        %v6588 = vsel %vm4674, %v6587, %v6586
        %v6589 = vrot.slane %v4645, 7
        %v6590 = vsel %vm4656, %v6589, %v4643
        %v6591 = vrot.slane %v4647, 6
        %v6592 = vsel %vm4659, %v6591, %v6590
        %v6593 = vrot.slane %v4649, 5
        %v6594 = vsel %vm4662, %v6593, %v6592
        %v6595 = vrot.slane %v4651, 4
        %v6596 = vsel %vm4665, %v6595, %v6594
        %v6597 = vrot.slane %v4653, 3
        %v6598 = vsel %vm4668, %v6597, %v6596
        %v6599 = vrot.slane %v5804, 2
        %v6600 = vsel %vm4671, %v6599, %v6598
        %v6601 = vrot.slane %v6391, 1
        %v6602 = vsel %vm4674, %v6601, %v6600
        %v6603 = vrot.slane %v4646, 7
        %v6604 = vsel %vm4656, %v6603, %v4644
        %v6605 = vrot.slane %v4648, 6
        %v6606 = vsel %vm4659, %v6605, %v6604
        %v6607 = vrot.slane %v4650, 5
        %v6608 = vsel %vm4662, %v6607, %v6606
        %v6609 = vrot.slane %v4652, 4
        %v6610 = vsel %vm4665, %v6609, %v6608
        %v6611 = vrot.slane %v4654, 3
        %v6612 = vsel %vm4668, %v6611, %v6610
        %v6613 = vrot.slane %v5805, 2
        %v6614 = vsel %vm4671, %v6613, %v6612
        %v6615 = vrot.slane %v6392, 1
        %v6616 = vsel %vm4674, %v6615, %v6614
        %v6617 = vpack.c.b16 %v6434, %v6406
        %v6618 = vpack.c.b16 %v6448, %v6420
        %v6619 = vpack.c.b16 %v6490, %v6462
        %v6620 = vpack.c.b16 %v6504, %v6476
        %v6621 = vpack.c.b16 %v6546, %v6518
        %v6622 = vpack.c.b16 %v6560, %v6532
        %v6623 = vpack.c.b16 %v6602, %v6574
        %v6624 = vpack.c.b16 %v6616, %v6588
        %v6658 = vunpack.c.l.b16 %v4149
        %v6659 = vunpack.c.h.b16 %v4149
        %v6660 = vunpack.c.l.b16 %v4150
        %v6661 = vunpack.c.h.b16 %v4150
        %v6662 = vunpack.c.l.b16 %v4151
        %v6663 = vunpack.c.h.b16 %v4151
        %v6664 = vunpack.c.l.b16 %v4152
        %v6665 = vunpack.c.h.b16 %v4152
        %v6666 = vunpack.c.l.b16 %v4153
        %v6667 = vunpack.c.h.b16 %v4153
        %v6668 = vunpack.c.l.b16 %v4154
        %v6669 = vunpack.c.h.b16 %v4154
        %v6670 = vunpack.c.l.b16 %v4155
        %v6671 = vunpack.c.h.b16 %v4155
        %v6672 = vunpack.c.l.b16 %v4156
        %v6673 = vunpack.c.h.b16 %v4156
        %v6674 = vunpack.c.l.b16 %v4157
        %v6675 = vunpack.c.h.b16 %v4157
        %v6676 = vunpack.c.l.b16 %v4158
        %v6677 = vunpack.c.h.b16 %v4158
        %v6678 = vunpack.c.l.b16 %v4159
        %v6679 = vunpack.c.h.b16 %v4159
        %v6680 = vunpack.c.l.b16 %v4160
        %v6681 = vunpack.c.h.b16 %v4160
        %v6682 = vunpack.c.l.b16 %v4161
        %v6683 = vunpack.c.h.b16 %v4161
        %v6684 = vunpack.c.l.b16 %v4162
        %v6685 = vunpack.c.h.b16 %v4162
        %v6686 = vunpack.c.l.b16 %v4163
        %v6687 = vunpack.c.h.b16 %v4163
        %v6688 = vunpack.c.l.b16 %v4164
        %v6689 = vunpack.c.h.b16 %v4164
        %v6690 = vunpack.c.l.b16 %v4165
        %v6691 = vunpack.c.h.b16 %v4165
        %v6692 = vunpack.c.l.b16 %v4166
        %v6693 = vunpack.c.h.b16 %v4166
        %v6694 = vunpack.c.l.b16 %v4167
        %v6695 = vunpack.c.h.b16 %v4167
        %v6696 = vunpack.c.l.b16 %v4168
        %v6697 = vunpack.c.h.b16 %v4168
        %v6698 = vunpack.c.l.b16 %v4169
        %v6699 = vunpack.c.h.b16 %v4169
        %v6700 = vunpack.c.l.b16 %v4170
        %v6701 = vunpack.c.h.b16 %v4170
        %v6702 = vunpack.c.l.b16 %v4171
        %v6703 = vunpack.c.h.b16 %v4171
        %v6704 = vunpack.c.l.b16 %v4172
        %v6705 = vunpack.c.h.b16 %v4172
        %v6706 = vunpack.c.l.b16 %v4173
        %v6707 = vunpack.c.h.b16 %v4173
        %v6708 = vunpack.c.l.b16 %v4174
        %v6709 = vunpack.c.h.b16 %v4174
        %v6710 = vunpack.c.l.b16 %v4175
        %v6711 = vunpack.c.h.b16 %v4175
        %v6712 = vunpack.c.l.b16 %v4176
        %v6713 = vunpack.c.h.b16 %v4176
        %v6714 = vunpack.c.l.b16 %v4177
        %v6715 = vunpack.c.h.b16 %v4177
        %v6716 = vpack.c.b16 %v6660, %v6658
        %v6717 = vpack.c.b16 %v6661, %v6659
        %v6718 = vpack.c.b16 %v6664, %v6662
        %v6719 = vpack.c.b16 %v6665, %v6663
        %v6720 = vpack.c.b16 %v6668, %v6666
        %v6721 = vpack.c.b16 %v6669, %v6667
        %v6722 = vpack.c.b16 %v6672, %v6670
        %v6723 = vpack.c.b16 %v6673, %v6671
        %v6724 = vpack.c.b16 %v6676, %v6674
        %v6725 = vpack.c.b16 %v6677, %v6675
        %v6726 = vpack.c.b16 %v6680, %v6678
        %v6727 = vpack.c.b16 %v6681, %v6679
        %v6728 = vpack.c.b16 %v6684, %v6682
        %v6729 = vpack.c.b16 %v6685, %v6683
        %v6730 = vpack.c.b16 %v6688, %v6686
        %v6731 = vpack.c.b16 %v6689, %v6687
        %v6732 = vpack.c.b16 %v6692, %v6690
        %v6733 = vpack.c.b16 %v6693, %v6691
        %v6734 = vpack.c.b16 %v6696, %v6694
        %v6735 = vpack.c.b16 %v6697, %v6695
        %v6736 = vpack.c.b16 %v6700, %v6698
        %v6737 = vpack.c.b16 %v6701, %v6699
        %v6738 = vpack.c.b16 %v6704, %v6702
        %v6739 = vpack.c.b16 %v6705, %v6703
        %v6740 = vpack.c.b16 %v6708, %v6706
        %v6741 = vpack.c.b16 %v6709, %v6707
        %v6742 = vpack.c.b16 %v6712, %v6710
        %v6743 = vpack.c.b16 %v6713, %v6711
        %v6744 = vpack.c.b16 %v6714, %v6714
        %v6745 = vpack.c.b16 %v6715, %v6715
        %v6775 = vsel %vm5043, %v6618, 0
        %v6778 = vsel %vm5043, %v6620, 0
        %v6781 = vsel %vm5043, %v6622, 0
        %v6784 = vsel %vm5043, %v6624, 0
        %v6787 = vsel %vm5056, %v6744, 0
        %v6790 = vsel %vm5056, %v6745, 0
        %6792 = vmatpush.bf16.msra.mxu0 %v6730
        %6793 = vmatpush.bf16.msra.mxu0 %v6728
        %6794 = vmatpush.bf16.msra.mxu0 %v6726
        %6795 = vmatpush.bf16.msra.mxu0 %v6724
        %6796 = vmatpush.bf16.msra.mxu0 %v6722
        %6797 = vmatpush.bf16.msra.mxu0 %v6720
        %6798 = vmatpush.bf16.msra.mxu0 %v6718
        %6799 = vmatpush.bf16.msra.mxu0 %v6716
        %6800 = vmatmul.bf16.gmra.mxu0 %v6617
        %v6801 = vpop.f32.mrf.mxu0
        %v6802 = vadd.f32 0.0, %v6801
        %v6803 = vpop.f32.mrf.mxu0
        %v6804 = vadd.f32 0.0, %v6803
        %6805 = vmatmul.bf16.gmra.mxu0 %v6619
        %v6806 = vpop.f32.mrf.mxu0
        %v6807 = vadd.f32 0.0, %v6806
        %v6808 = vpop.f32.mrf.mxu0
        %v6809 = vadd.f32 0.0, %v6808
        %6810 = vmatmul.bf16.gmra.mxu0 %v6621
        %v6811 = vpop.f32.mrf.mxu0
        %v6812 = vadd.f32 0.0, %v6811
        %v6813 = vpop.f32.mrf.mxu0
        %v6814 = vadd.f32 0.0, %v6813
        %6815 = vmatmul.bf16.gmra.mxu0 %v6623
        %v6816 = vpop.f32.mrf.mxu0
        %v6817 = vadd.f32 0.0, %v6816
        %v6818 = vpop.f32.mrf.mxu0
        %v6819 = vadd.f32 0.0, %v6818
        %6820 = vdwg.mxu0
        %6821 = vmatpush.bf16.msra.mxu0 0
        %6822 = vmatpush.bf16.msra.mxu0 %v6787
        %6823 = vmatpush.bf16.msra.mxu0 %v6742
        %6824 = vmatpush.bf16.msra.mxu0 %v6740
        %6825 = vmatpush.bf16.msra.mxu0 %v6738
        %6826 = vmatpush.bf16.msra.mxu0 %v6736
        %6827 = vmatpush.bf16.msra.mxu0 %v6734
        %6828 = vmatpush.bf16.msra.mxu0 %v6732
        %6829 = vmatmul.bf16.gmra.mxu0 %v6775
        %v6830 = vpop.f32.mrf.mxu0
        %v6831 = vadd.f32 %v6802, %v6830
        %v6832 = vpop.f32.mrf.mxu0
        %v6833 = vadd.f32 %v6804, %v6832
        %6834 = vmatmul.bf16.gmra.mxu0 %v6778
        %v6835 = vpop.f32.mrf.mxu0
        %v6836 = vadd.f32 %v6807, %v6835
        %v6837 = vpop.f32.mrf.mxu0
        %v6838 = vadd.f32 %v6809, %v6837
        %6839 = vmatmul.bf16.gmra.mxu0 %v6781
        %v6840 = vpop.f32.mrf.mxu0
        %v6841 = vadd.f32 %v6812, %v6840
        %v6842 = vpop.f32.mrf.mxu0
        %v6843 = vadd.f32 %v6814, %v6842
        %6844 = vmatmul.bf16.gmra.mxu0 %v6784
        %v6845 = vpop.f32.mrf.mxu0
        %v6846 = vadd.f32 %v6817, %v6845
        %v6847 = vpop.f32.mrf.mxu0
        %v6848 = vadd.f32 %v6819, %v6847
        %6849 = vdwg.mxu0
        %6850 = vmatpush.bf16.msra.mxu0 %v6731
        %6851 = vmatpush.bf16.msra.mxu0 %v6729
        %6852 = vmatpush.bf16.msra.mxu0 %v6727
        %6853 = vmatpush.bf16.msra.mxu0 %v6725
        %6854 = vmatpush.bf16.msra.mxu0 %v6723
        %6855 = vmatpush.bf16.msra.mxu0 %v6721
        %6856 = vmatpush.bf16.msra.mxu0 %v6719
        %6857 = vmatpush.bf16.msra.mxu0 %v6717
        %6858 = vmatmul.bf16.gmra.mxu0 %v6617
        %v6859 = vpop.f32.mrf.mxu0
        %v6860 = vadd.f32 0.0, %v6859
        %v6861 = vpop.f32.mrf.mxu0
        %v6862 = vadd.f32 0.0, %v6861
        %6863 = vmatmul.bf16.gmra.mxu0 %v6619
        %v6864 = vpop.f32.mrf.mxu0
        %v6865 = vadd.f32 0.0, %v6864
        %v6866 = vpop.f32.mrf.mxu0
        %v6867 = vadd.f32 0.0, %v6866
        %6868 = vmatmul.bf16.gmra.mxu0 %v6621
        %v6869 = vpop.f32.mrf.mxu0
        %v6870 = vadd.f32 0.0, %v6869
        %v6871 = vpop.f32.mrf.mxu0
        %v6872 = vadd.f32 0.0, %v6871
        %6873 = vmatmul.bf16.gmra.mxu0 %v6623
        %v6874 = vpop.f32.mrf.mxu0
        %v6875 = vadd.f32 0.0, %v6874
        %v6876 = vpop.f32.mrf.mxu0
        %v6877 = vadd.f32 0.0, %v6876
        %6878 = vdwg.mxu0
        %6879 = vmatpush.bf16.msra.mxu0 0
        %6880 = vmatpush.bf16.msra.mxu0 %v6790
        %6881 = vmatpush.bf16.msra.mxu0 %v6743
        %6882 = vmatpush.bf16.msra.mxu0 %v6741
        %6883 = vmatpush.bf16.msra.mxu0 %v6739
        %6884 = vmatpush.bf16.msra.mxu0 %v6737
        %6885 = vmatpush.bf16.msra.mxu0 %v6735
        %6886 = vmatpush.bf16.msra.mxu0 %v6733
        %6887 = vmatmul.bf16.gmra.mxu0 %v6775
        %v6888 = vpop.f32.mrf.mxu0
        %v6889 = vadd.f32 %v6860, %v6888
        %v6890 = vpop.f32.mrf.mxu0
        %v6891 = vadd.f32 %v6862, %v6890
        %6892 = vmatmul.bf16.gmra.mxu0 %v6778
        %v6893 = vpop.f32.mrf.mxu0
        %v6894 = vadd.f32 %v6865, %v6893
        %v6895 = vpop.f32.mrf.mxu0
        %v6896 = vadd.f32 %v6867, %v6895
        %6897 = vmatmul.bf16.gmra.mxu0 %v6781
        %v6898 = vpop.f32.mrf.mxu0
        %v6899 = vadd.f32 %v6870, %v6898
        %v6900 = vpop.f32.mrf.mxu0
        %v6901 = vadd.f32 %v6872, %v6900
        %6902 = vmatmul.bf16.gmra.mxu0 %v6784
        %v6903 = vpop.f32.mrf.mxu0
        %v6904 = vadd.f32 %v6875, %v6903
        %v6905 = vpop.f32.mrf.mxu0
        %v6906 = vadd.f32 %v6877, %v6905
        %6907 = vdwg.mxu0
        %v6908 = vadd.f32 %v6321, %v6831
        %v6909 = vadd.f32 %v6322, %v6889
        %v6910 = vadd.f32 %v6323, %v6833
        %v6911 = vadd.f32 %v6324, %v6891
        %v6912 = vadd.f32 %v6325, %v6836
        %v6913 = vadd.f32 %v6326, %v6894
        %v6914 = vadd.f32 %v6327, %v6838
        %v6915 = vadd.f32 %v6328, %v6896
        %v6916 = vadd.f32 %v6329, %v6841
        %v6917 = vadd.f32 %v6330, %v6899
        %v6918 = vadd.f32 %v6331, %v6843
        %v6919 = vadd.f32 %v6332, %v6901
        %v6920 = vadd.f32 %v6333, %v6846
        %v6921 = vadd.f32 %v6334, %v6904
        %v6922 = vadd.f32 %v6335, %v6848
        %v6923 = vadd.f32 %v6336, %v6906
        %v6932 = vunpack.c.l.b16 %v3977
        %v6933 = vunpack.c.h.b16 %v3977
        %v6934 = vunpack.c.l.b16 %v3989
        %v6935 = vunpack.c.h.b16 %v3989
        %v6936 = vunpack.c.l.b16 %v4001
        %v6937 = vunpack.c.h.b16 %v4001
        %v6938 = vunpack.c.l.b16 %v4013
        %v6939 = vunpack.c.h.b16 %v4013
        %v6940 = vunpack.c.l.b16 %v4025
        %v6941 = vunpack.c.h.b16 %v4025
        %v6942 = vunpack.c.l.b16 %v4037
        %v6943 = vunpack.c.h.b16 %v4037
        %v6944 = vunpack.c.l.b16 %v4049
        %v6945 = vunpack.c.h.b16 %v4049
        %v6946 = vunpack.c.l.b16 %v4061
        %v6947 = vunpack.c.h.b16 %v4061
        %v6948 = vpack.c.b16 %v6932, %v6932
        %v6949 = vpack.c.b16 %v6933, %v6933
        %v6950 = vpack.c.b16 %v6934, %v6934
        %v6951 = vpack.c.b16 %v6935, %v6935
        %v6952 = vpack.c.b16 %v6936, %v6936
        %v6953 = vpack.c.b16 %v6937, %v6937
        %v6954 = vpack.c.b16 %v6938, %v6938
        %v6955 = vpack.c.b16 %v6939, %v6939
        %v6956 = vpack.c.b16 %v6940, %v6940
        %v6957 = vpack.c.b16 %v6941, %v6941
        %v6958 = vpack.c.b16 %v6942, %v6942
        %v6959 = vpack.c.b16 %v6943, %v6943
        %v6960 = vpack.c.b16 %v6944, %v6944
        %v6961 = vpack.c.b16 %v6945, %v6945
        %v6962 = vpack.c.b16 %v6946, %v6946
        %v6963 = vpack.c.b16 %v6947, %v6947
        %v6964 = vunpack.c.l.b16 %v6948
        %v6965 = vunpack.c.l.b16 %v6949
        %v6966 = vunpack.c.l.b16 %v6950
        %v6967 = vunpack.c.l.b16 %v6951
        %v6968 = vunpack.c.l.b16 %v6952
        %v6969 = vunpack.c.l.b16 %v6953
        %v6970 = vunpack.c.l.b16 %v6954
        %v6971 = vunpack.c.l.b16 %v6955
        %v6972 = vunpack.c.l.b16 %v6956
        %v6973 = vunpack.c.l.b16 %v6957
        %v6974 = vunpack.c.l.b16 %v6958
        %v6975 = vunpack.c.l.b16 %v6959
        %v6976 = vunpack.c.l.b16 %v6960
        %v6977 = vunpack.c.l.b16 %v6961
        %v6978 = vunpack.c.l.b16 %v6962
        %v6979 = vunpack.c.l.b16 %v6963
        %v6980 = vrot.slane %v4535, 7
        %v6981 = vsel %vm4656, %v6980, %v4533
        %v6982 = vrot.slane %v4537, 6
        %v6983 = vsel %vm4659, %v6982, %v6981
        %v6984 = vrot.slane %v4539, 5
        %v6985 = vsel %vm4662, %v6984, %v6983
        %v6986 = vrot.slane %v4541, 4
        %v6987 = vsel %vm4665, %v6986, %v6985
        %v6988 = vrot.slane %v5790, 3
        %v6989 = vsel %vm4668, %v6988, %v6987
        %v6990 = vrot.slane %v6377, 2
        %v6991 = vsel %vm4671, %v6990, %v6989
        %v6992 = vrot.slane %v6964, 1
        %v6993 = vsel %vm4674, %v6992, %v6991
        %v6994 = vrot.slane %v4536, 7
        %v6995 = vsel %vm4656, %v6994, %v4534
        %v6996 = vrot.slane %v4538, 6
        %v6997 = vsel %vm4659, %v6996, %v6995
        %v6998 = vrot.slane %v4540, 5
        %v6999 = vsel %vm4662, %v6998, %v6997
        %v7000 = vrot.slane %v4542, 4
        %v7001 = vsel %vm4665, %v7000, %v6999
        %v7002 = vrot.slane %v5791, 3
        %v7003 = vsel %vm4668, %v7002, %v7001
        %v7004 = vrot.slane %v6378, 2
        %v7005 = vsel %vm4671, %v7004, %v7003
        %v7006 = vrot.slane %v6965, 1
        %v7007 = vsel %vm4674, %v7006, %v7005
        %v7008 = vrot.slane %v4551, 7
        %v7009 = vsel %vm4656, %v7008, %v4549
        %v7010 = vrot.slane %v4553, 6
        %v7011 = vsel %vm4659, %v7010, %v7009
        %v7012 = vrot.slane %v4555, 5
        %v7013 = vsel %vm4662, %v7012, %v7011
        %v7014 = vrot.slane %v4557, 4
        %v7015 = vsel %vm4665, %v7014, %v7013
        %v7016 = vrot.slane %v5792, 3
        %v7017 = vsel %vm4668, %v7016, %v7015
        %v7018 = vrot.slane %v6379, 2
        %v7019 = vsel %vm4671, %v7018, %v7017
        %v7020 = vrot.slane %v6966, 1
        %v7021 = vsel %vm4674, %v7020, %v7019
        %v7022 = vrot.slane %v4552, 7
        %v7023 = vsel %vm4656, %v7022, %v4550
        %v7024 = vrot.slane %v4554, 6
        %v7025 = vsel %vm4659, %v7024, %v7023
        %v7026 = vrot.slane %v4556, 5
        %v7027 = vsel %vm4662, %v7026, %v7025
        %v7028 = vrot.slane %v4558, 4
        %v7029 = vsel %vm4665, %v7028, %v7027
        %v7030 = vrot.slane %v5793, 3
        %v7031 = vsel %vm4668, %v7030, %v7029
        %v7032 = vrot.slane %v6380, 2
        %v7033 = vsel %vm4671, %v7032, %v7031
        %v7034 = vrot.slane %v6967, 1
        %v7035 = vsel %vm4674, %v7034, %v7033
        %v7036 = vrot.slane %v4567, 7
        %v7037 = vsel %vm4656, %v7036, %v4565
        %v7038 = vrot.slane %v4569, 6
        %v7039 = vsel %vm4659, %v7038, %v7037
        %v7040 = vrot.slane %v4571, 5
        %v7041 = vsel %vm4662, %v7040, %v7039
        %v7042 = vrot.slane %v4573, 4
        %v7043 = vsel %vm4665, %v7042, %v7041
        %v7044 = vrot.slane %v5794, 3
        %v7045 = vsel %vm4668, %v7044, %v7043
        %v7046 = vrot.slane %v6381, 2
        %v7047 = vsel %vm4671, %v7046, %v7045
        %v7048 = vrot.slane %v6968, 1
        %v7049 = vsel %vm4674, %v7048, %v7047
        %v7050 = vrot.slane %v4568, 7
        %v7051 = vsel %vm4656, %v7050, %v4566
        %v7052 = vrot.slane %v4570, 6
        %v7053 = vsel %vm4659, %v7052, %v7051
        %v7054 = vrot.slane %v4572, 5
        %v7055 = vsel %vm4662, %v7054, %v7053
        %v7056 = vrot.slane %v4574, 4
        %v7057 = vsel %vm4665, %v7056, %v7055
        %v7058 = vrot.slane %v5795, 3
        %v7059 = vsel %vm4668, %v7058, %v7057
        %v7060 = vrot.slane %v6382, 2
        %v7061 = vsel %vm4671, %v7060, %v7059
        %v7062 = vrot.slane %v6969, 1
        %v7063 = vsel %vm4674, %v7062, %v7061
        %v7064 = vrot.slane %v4583, 7
        %v7065 = vsel %vm4656, %v7064, %v4581
        %v7066 = vrot.slane %v4585, 6
        %v7067 = vsel %vm4659, %v7066, %v7065
        %v7068 = vrot.slane %v4587, 5
        %v7069 = vsel %vm4662, %v7068, %v7067
        %v7070 = vrot.slane %v4589, 4
        %v7071 = vsel %vm4665, %v7070, %v7069
        %v7072 = vrot.slane %v5796, 3
        %v7073 = vsel %vm4668, %v7072, %v7071
        %v7074 = vrot.slane %v6383, 2
        %v7075 = vsel %vm4671, %v7074, %v7073
        %v7076 = vrot.slane %v6970, 1
        %v7077 = vsel %vm4674, %v7076, %v7075
        %v7078 = vrot.slane %v4584, 7
        %v7079 = vsel %vm4656, %v7078, %v4582
        %v7080 = vrot.slane %v4586, 6
        %v7081 = vsel %vm4659, %v7080, %v7079
        %v7082 = vrot.slane %v4588, 5
        %v7083 = vsel %vm4662, %v7082, %v7081
        %v7084 = vrot.slane %v4590, 4
        %v7085 = vsel %vm4665, %v7084, %v7083
        %v7086 = vrot.slane %v5797, 3
        %v7087 = vsel %vm4668, %v7086, %v7085
        %v7088 = vrot.slane %v6384, 2
        %v7089 = vsel %vm4671, %v7088, %v7087
        %v7090 = vrot.slane %v6971, 1
        %v7091 = vsel %vm4674, %v7090, %v7089
        %v7092 = vrot.slane %v4599, 7
        %v7093 = vsel %vm4656, %v7092, %v4597
        %v7094 = vrot.slane %v4601, 6
        %v7095 = vsel %vm4659, %v7094, %v7093
        %v7096 = vrot.slane %v4603, 5
        %v7097 = vsel %vm4662, %v7096, %v7095
        %v7098 = vrot.slane %v4605, 4
        %v7099 = vsel %vm4665, %v7098, %v7097
        %v7100 = vrot.slane %v5798, 3
        %v7101 = vsel %vm4668, %v7100, %v7099
        %v7102 = vrot.slane %v6385, 2
        %v7103 = vsel %vm4671, %v7102, %v7101
        %v7104 = vrot.slane %v6972, 1
        %v7105 = vsel %vm4674, %v7104, %v7103
        %v7106 = vrot.slane %v4600, 7
        %v7107 = vsel %vm4656, %v7106, %v4598
        %v7108 = vrot.slane %v4602, 6
        %v7109 = vsel %vm4659, %v7108, %v7107
        %v7110 = vrot.slane %v4604, 5
        %v7111 = vsel %vm4662, %v7110, %v7109
        %v7112 = vrot.slane %v4606, 4
        %v7113 = vsel %vm4665, %v7112, %v7111
        %v7114 = vrot.slane %v5799, 3
        %v7115 = vsel %vm4668, %v7114, %v7113
        %v7116 = vrot.slane %v6386, 2
        %v7117 = vsel %vm4671, %v7116, %v7115
        %v7118 = vrot.slane %v6973, 1
        %v7119 = vsel %vm4674, %v7118, %v7117
        %v7120 = vrot.slane %v4615, 7
        %v7121 = vsel %vm4656, %v7120, %v4613
        %v7122 = vrot.slane %v4617, 6
        %v7123 = vsel %vm4659, %v7122, %v7121
        %v7124 = vrot.slane %v4619, 5
        %v7125 = vsel %vm4662, %v7124, %v7123
        %v7126 = vrot.slane %v4621, 4
        %v7127 = vsel %vm4665, %v7126, %v7125
        %v7128 = vrot.slane %v5800, 3
        %v7129 = vsel %vm4668, %v7128, %v7127
        %v7130 = vrot.slane %v6387, 2
        %v7131 = vsel %vm4671, %v7130, %v7129
        %v7132 = vrot.slane %v6974, 1
        %v7133 = vsel %vm4674, %v7132, %v7131
        %v7134 = vrot.slane %v4616, 7
        %v7135 = vsel %vm4656, %v7134, %v4614
        %v7136 = vrot.slane %v4618, 6
        %v7137 = vsel %vm4659, %v7136, %v7135
        %v7138 = vrot.slane %v4620, 5
        %v7139 = vsel %vm4662, %v7138, %v7137
        %v7140 = vrot.slane %v4622, 4
        %v7141 = vsel %vm4665, %v7140, %v7139
        %v7142 = vrot.slane %v5801, 3
        %v7143 = vsel %vm4668, %v7142, %v7141
        %v7144 = vrot.slane %v6388, 2
        %v7145 = vsel %vm4671, %v7144, %v7143
        %v7146 = vrot.slane %v6975, 1
        %v7147 = vsel %vm4674, %v7146, %v7145
        %v7148 = vrot.slane %v4631, 7
        %v7149 = vsel %vm4656, %v7148, %v4629
        %v7150 = vrot.slane %v4633, 6
        %v7151 = vsel %vm4659, %v7150, %v7149
        %v7152 = vrot.slane %v4635, 5
        %v7153 = vsel %vm4662, %v7152, %v7151
        %v7154 = vrot.slane %v4637, 4
        %v7155 = vsel %vm4665, %v7154, %v7153
        %v7156 = vrot.slane %v5802, 3
        %v7157 = vsel %vm4668, %v7156, %v7155
        %v7158 = vrot.slane %v6389, 2
        %v7159 = vsel %vm4671, %v7158, %v7157
        %v7160 = vrot.slane %v6976, 1
        %v7161 = vsel %vm4674, %v7160, %v7159
        %v7162 = vrot.slane %v4632, 7
        %v7163 = vsel %vm4656, %v7162, %v4630
        %v7164 = vrot.slane %v4634, 6
        %v7165 = vsel %vm4659, %v7164, %v7163
        %v7166 = vrot.slane %v4636, 5
        %v7167 = vsel %vm4662, %v7166, %v7165
        %v7168 = vrot.slane %v4638, 4
        %v7169 = vsel %vm4665, %v7168, %v7167
        %v7170 = vrot.slane %v5803, 3
        %v7171 = vsel %vm4668, %v7170, %v7169
        %v7172 = vrot.slane %v6390, 2
        %v7173 = vsel %vm4671, %v7172, %v7171
        %v7174 = vrot.slane %v6977, 1
        %v7175 = vsel %vm4674, %v7174, %v7173
        %v7176 = vrot.slane %v4647, 7
        %v7177 = vsel %vm4656, %v7176, %v4645
        %v7178 = vrot.slane %v4649, 6
        %v7179 = vsel %vm4659, %v7178, %v7177
        %v7180 = vrot.slane %v4651, 5
        %v7181 = vsel %vm4662, %v7180, %v7179
        %v7182 = vrot.slane %v4653, 4
        %v7183 = vsel %vm4665, %v7182, %v7181
        %v7184 = vrot.slane %v5804, 3
        %v7185 = vsel %vm4668, %v7184, %v7183
        %v7186 = vrot.slane %v6391, 2
        %v7187 = vsel %vm4671, %v7186, %v7185
        %v7188 = vrot.slane %v6978, 1
        %v7189 = vsel %vm4674, %v7188, %v7187
        %v7190 = vrot.slane %v4648, 7
        %v7191 = vsel %vm4656, %v7190, %v4646
        %v7192 = vrot.slane %v4650, 6
        %v7193 = vsel %vm4659, %v7192, %v7191
        %v7194 = vrot.slane %v4652, 5
        %v7195 = vsel %vm4662, %v7194, %v7193
        %v7196 = vrot.slane %v4654, 4
        %v7197 = vsel %vm4665, %v7196, %v7195
        %v7198 = vrot.slane %v5805, 3
        %v7199 = vsel %vm4668, %v7198, %v7197
        %v7200 = vrot.slane %v6392, 2
        %v7201 = vsel %vm4671, %v7200, %v7199
        %v7202 = vrot.slane %v6979, 1
        %v7203 = vsel %vm4674, %v7202, %v7201
        %v7204 = vpack.c.b16 %v7021, %v6993
        %v7205 = vpack.c.b16 %v7035, %v7007
        %v7206 = vpack.c.b16 %v7077, %v7049
        %v7207 = vpack.c.b16 %v7091, %v7063
        %v7208 = vpack.c.b16 %v7133, %v7105
        %v7209 = vpack.c.b16 %v7147, %v7119
        %v7210 = vpack.c.b16 %v7189, %v7161
        %v7211 = vpack.c.b16 %v7203, %v7175
        %v7245 = vunpack.c.l.b16 %v4178
        %v7246 = vunpack.c.h.b16 %v4178
        %v7247 = vunpack.c.l.b16 %v4179
        %v7248 = vunpack.c.h.b16 %v4179
        %v7249 = vunpack.c.l.b16 %v4180
        %v7250 = vunpack.c.h.b16 %v4180
        %v7251 = vunpack.c.l.b16 %v4181
        %v7252 = vunpack.c.h.b16 %v4181
        %v7253 = vunpack.c.l.b16 %v4182
        %v7254 = vunpack.c.h.b16 %v4182
        %v7255 = vunpack.c.l.b16 %v4183
        %v7256 = vunpack.c.h.b16 %v4183
        %v7257 = vunpack.c.l.b16 %v4184
        %v7258 = vunpack.c.h.b16 %v4184
        %v7259 = vunpack.c.l.b16 %v4185
        %v7260 = vunpack.c.h.b16 %v4185
        %v7261 = vunpack.c.l.b16 %v4186
        %v7262 = vunpack.c.h.b16 %v4186
        %v7263 = vunpack.c.l.b16 %v4187
        %v7264 = vunpack.c.h.b16 %v4187
        %v7265 = vunpack.c.l.b16 %v4188
        %v7266 = vunpack.c.h.b16 %v4188
        %v7267 = vunpack.c.l.b16 %v4189
        %v7268 = vunpack.c.h.b16 %v4189
        %v7269 = vunpack.c.l.b16 %v4190
        %v7270 = vunpack.c.h.b16 %v4190
        %v7271 = vunpack.c.l.b16 %v4191
        %v7272 = vunpack.c.h.b16 %v4191
        %v7273 = vunpack.c.l.b16 %v4192
        %v7274 = vunpack.c.h.b16 %v4192
        %v7275 = vunpack.c.l.b16 %v4193
        %v7276 = vunpack.c.h.b16 %v4193
        %v7277 = vunpack.c.l.b16 %v4194
        %v7278 = vunpack.c.h.b16 %v4194
        %v7279 = vunpack.c.l.b16 %v4195
        %v7280 = vunpack.c.h.b16 %v4195
        %v7281 = vunpack.c.l.b16 %v4196
        %v7282 = vunpack.c.h.b16 %v4196
        %v7283 = vunpack.c.l.b16 %v4197
        %v7284 = vunpack.c.h.b16 %v4197
        %v7285 = vunpack.c.l.b16 %v4198
        %v7286 = vunpack.c.h.b16 %v4198
        %v7287 = vunpack.c.l.b16 %v4199
        %v7288 = vunpack.c.h.b16 %v4199
        %v7289 = vunpack.c.l.b16 %v4200
        %v7290 = vunpack.c.h.b16 %v4200
        %v7291 = vunpack.c.l.b16 %v4201
        %v7292 = vunpack.c.h.b16 %v4201
        %v7293 = vunpack.c.l.b16 %v4202
        %v7294 = vunpack.c.h.b16 %v4202
        %v7295 = vunpack.c.l.b16 %v4203
        %v7296 = vunpack.c.h.b16 %v4203
        %v7297 = vunpack.c.l.b16 %v4204
        %v7298 = vunpack.c.h.b16 %v4204
        %v7299 = vunpack.c.l.b16 %v4205
        %v7300 = vunpack.c.h.b16 %v4205
        %v7301 = vunpack.c.l.b16 %v4206
        %v7302 = vunpack.c.h.b16 %v4206
        %v7303 = vpack.c.b16 %v7247, %v7245
        %v7304 = vpack.c.b16 %v7248, %v7246
        %v7305 = vpack.c.b16 %v7251, %v7249
        %v7306 = vpack.c.b16 %v7252, %v7250
        %v7307 = vpack.c.b16 %v7255, %v7253
        %v7308 = vpack.c.b16 %v7256, %v7254
        %v7309 = vpack.c.b16 %v7259, %v7257
        %v7310 = vpack.c.b16 %v7260, %v7258
        %v7311 = vpack.c.b16 %v7263, %v7261
        %v7312 = vpack.c.b16 %v7264, %v7262
        %v7313 = vpack.c.b16 %v7267, %v7265
        %v7314 = vpack.c.b16 %v7268, %v7266
        %v7315 = vpack.c.b16 %v7271, %v7269
        %v7316 = vpack.c.b16 %v7272, %v7270
        %v7317 = vpack.c.b16 %v7275, %v7273
        %v7318 = vpack.c.b16 %v7276, %v7274
        %v7319 = vpack.c.b16 %v7279, %v7277
        %v7320 = vpack.c.b16 %v7280, %v7278
        %v7321 = vpack.c.b16 %v7283, %v7281
        %v7322 = vpack.c.b16 %v7284, %v7282
        %v7323 = vpack.c.b16 %v7287, %v7285
        %v7324 = vpack.c.b16 %v7288, %v7286
        %v7325 = vpack.c.b16 %v7291, %v7289
        %v7326 = vpack.c.b16 %v7292, %v7290
        %v7327 = vpack.c.b16 %v7295, %v7293
        %v7328 = vpack.c.b16 %v7296, %v7294
        %v7329 = vpack.c.b16 %v7299, %v7297
        %v7330 = vpack.c.b16 %v7300, %v7298
        %v7331 = vpack.c.b16 %v7301, %v7301
        %v7332 = vpack.c.b16 %v7302, %v7302
        %v7362 = vsel %vm5043, %v7205, 0
        %v7365 = vsel %vm5043, %v7207, 0
        %v7368 = vsel %vm5043, %v7209, 0
        %v7371 = vsel %vm5043, %v7211, 0
        %v7374 = vsel %vm5056, %v7331, 0
        %v7377 = vsel %vm5056, %v7332, 0
        %7379 = vmatpush.bf16.msra.mxu0 %v7317
        %7380 = vmatpush.bf16.msra.mxu0 %v7315
        %7381 = vmatpush.bf16.msra.mxu0 %v7313
        %7382 = vmatpush.bf16.msra.mxu0 %v7311
        %7383 = vmatpush.bf16.msra.mxu0 %v7309
        %7384 = vmatpush.bf16.msra.mxu0 %v7307
        %7385 = vmatpush.bf16.msra.mxu0 %v7305
        %7386 = vmatpush.bf16.msra.mxu0 %v7303
        %7387 = vmatmul.bf16.gmra.mxu0 %v7204
        %v7388 = vpop.f32.mrf.mxu0
        %v7389 = vadd.f32 0.0, %v7388
        %v7390 = vpop.f32.mrf.mxu0
        %v7391 = vadd.f32 0.0, %v7390
        %7392 = vmatmul.bf16.gmra.mxu0 %v7206
        %v7393 = vpop.f32.mrf.mxu0
        %v7394 = vadd.f32 0.0, %v7393
        %v7395 = vpop.f32.mrf.mxu0
        %v7396 = vadd.f32 0.0, %v7395
        %7397 = vmatmul.bf16.gmra.mxu0 %v7208
        %v7398 = vpop.f32.mrf.mxu0
        %v7399 = vadd.f32 0.0, %v7398
        %v7400 = vpop.f32.mrf.mxu0
        %v7401 = vadd.f32 0.0, %v7400
        %7402 = vmatmul.bf16.gmra.mxu0 %v7210
        %v7403 = vpop.f32.mrf.mxu0
        %v7404 = vadd.f32 0.0, %v7403
        %v7405 = vpop.f32.mrf.mxu0
        %v7406 = vadd.f32 0.0, %v7405
        %7407 = vdwg.mxu0
        %7408 = vmatpush.bf16.msra.mxu0 0
        %7409 = vmatpush.bf16.msra.mxu0 %v7374
        %7410 = vmatpush.bf16.msra.mxu0 %v7329
        %7411 = vmatpush.bf16.msra.mxu0 %v7327
        %7412 = vmatpush.bf16.msra.mxu0 %v7325
        %7413 = vmatpush.bf16.msra.mxu0 %v7323
        %7414 = vmatpush.bf16.msra.mxu0 %v7321
        %7415 = vmatpush.bf16.msra.mxu0 %v7319
        %7416 = vmatmul.bf16.gmra.mxu0 %v7362
        %v7417 = vpop.f32.mrf.mxu0
        %v7418 = vadd.f32 %v7389, %v7417
        %v7419 = vpop.f32.mrf.mxu0
        %v7420 = vadd.f32 %v7391, %v7419
        %7421 = vmatmul.bf16.gmra.mxu0 %v7365
        %v7422 = vpop.f32.mrf.mxu0
        %v7423 = vadd.f32 %v7394, %v7422
        %v7424 = vpop.f32.mrf.mxu0
        %v7425 = vadd.f32 %v7396, %v7424
        %7426 = vmatmul.bf16.gmra.mxu0 %v7368
        %v7427 = vpop.f32.mrf.mxu0
        %v7428 = vadd.f32 %v7399, %v7427
        %v7429 = vpop.f32.mrf.mxu0
        %v7430 = vadd.f32 %v7401, %v7429
        %7431 = vmatmul.bf16.gmra.mxu0 %v7371
        %v7432 = vpop.f32.mrf.mxu0
        %v7433 = vadd.f32 %v7404, %v7432
        %v7434 = vpop.f32.mrf.mxu0
        %v7435 = vadd.f32 %v7406, %v7434
        %7436 = vdwg.mxu0
        %7437 = vmatpush.bf16.msra.mxu0 %v7318
        %7438 = vmatpush.bf16.msra.mxu0 %v7316
        %7439 = vmatpush.bf16.msra.mxu0 %v7314
        %7440 = vmatpush.bf16.msra.mxu0 %v7312
        %7441 = vmatpush.bf16.msra.mxu0 %v7310
        %7442 = vmatpush.bf16.msra.mxu0 %v7308
        %7443 = vmatpush.bf16.msra.mxu0 %v7306
        %7444 = vmatpush.bf16.msra.mxu0 %v7304
        %7445 = vmatmul.bf16.gmra.mxu0 %v7204
        %v7446 = vpop.f32.mrf.mxu0
        %v7447 = vadd.f32 0.0, %v7446
        %v7448 = vpop.f32.mrf.mxu0
        %v7449 = vadd.f32 0.0, %v7448
        %7450 = vmatmul.bf16.gmra.mxu0 %v7206
        %v7451 = vpop.f32.mrf.mxu0
        %v7452 = vadd.f32 0.0, %v7451
        %v7453 = vpop.f32.mrf.mxu0
        %v7454 = vadd.f32 0.0, %v7453
        %7455 = vmatmul.bf16.gmra.mxu0 %v7208
        %v7456 = vpop.f32.mrf.mxu0
        %v7457 = vadd.f32 0.0, %v7456
        %v7458 = vpop.f32.mrf.mxu0
        %v7459 = vadd.f32 0.0, %v7458
        %7460 = vmatmul.bf16.gmra.mxu0 %v7210
        %v7461 = vpop.f32.mrf.mxu0
        %v7462 = vadd.f32 0.0, %v7461
        %v7463 = vpop.f32.mrf.mxu0
        %v7464 = vadd.f32 0.0, %v7463
        %7465 = vdwg.mxu0
        %7466 = vmatpush.bf16.msra.mxu0 0
        %7467 = vmatpush.bf16.msra.mxu0 %v7377
        %7468 = vmatpush.bf16.msra.mxu0 %v7330
        %7469 = vmatpush.bf16.msra.mxu0 %v7328
        %7470 = vmatpush.bf16.msra.mxu0 %v7326
        %7471 = vmatpush.bf16.msra.mxu0 %v7324
        %7472 = vmatpush.bf16.msra.mxu0 %v7322
        %7473 = vmatpush.bf16.msra.mxu0 %v7320
        %7474 = vmatmul.bf16.gmra.mxu0 %v7362
        %v7475 = vpop.f32.mrf.mxu0
        %v7476 = vadd.f32 %v7447, %v7475
        %v7477 = vpop.f32.mrf.mxu0
        %v7478 = vadd.f32 %v7449, %v7477
        %7479 = vmatmul.bf16.gmra.mxu0 %v7365
        %v7480 = vpop.f32.mrf.mxu0
        %v7481 = vadd.f32 %v7452, %v7480
        %v7482 = vpop.f32.mrf.mxu0
        %v7483 = vadd.f32 %v7454, %v7482
        %7484 = vmatmul.bf16.gmra.mxu0 %v7368
        %v7485 = vpop.f32.mrf.mxu0
        %v7486 = vadd.f32 %v7457, %v7485
        %v7487 = vpop.f32.mrf.mxu0
        %v7488 = vadd.f32 %v7459, %v7487
        %7489 = vmatmul.bf16.gmra.mxu0 %v7371
        %v7490 = vpop.f32.mrf.mxu0
        %v7491 = vadd.f32 %v7462, %v7490
        %v7492 = vpop.f32.mrf.mxu0
        %v7493 = vadd.f32 %v7464, %v7492
        %7494 = vdwg.mxu0
        %v7495 = vadd.f32 %v6908, %v7418
        %v7496 = vadd.f32 %v6909, %v7476
        %v7497 = vadd.f32 %v6910, %v7420
        %v7498 = vadd.f32 %v6911, %v7478
        %v7499 = vadd.f32 %v6912, %v7423
        %v7500 = vadd.f32 %v6913, %v7481
        %v7501 = vadd.f32 %v6914, %v7425
        %v7502 = vadd.f32 %v6915, %v7483
        %v7503 = vadd.f32 %v6916, %v7428
        %v7504 = vadd.f32 %v6917, %v7486
        %v7505 = vadd.f32 %v6918, %v7430
        %v7506 = vadd.f32 %v6919, %v7488
        %v7507 = vadd.f32 %v6920, %v7433
        %v7508 = vadd.f32 %v6921, %v7491
        %v7509 = vadd.f32 %v6922, %v7435
        %v7510 = vadd.f32 %v6923, %v7493
        %v7511 = vld [vmem:[%s4] sm:$0x3]
        %v7513 = vperm.slane %v7511, 0
        %v7514 = vperm.slane %v7511, 1
        %v7517 = vadd.f32 %v7495, %v7513
        %v7518 = vadd.f32 %v7496, %v7514
        %v7519 = vadd.f32 %v7497, %v7513
        %v7520 = vadd.f32 %v7498, %v7514
        %v7521 = vadd.f32 %v7499, %v7513
        %v7522 = vadd.f32 %v7500, %v7514
        %v7523 = vadd.f32 %v7501, %v7513
        %v7524 = vadd.f32 %v7502, %v7514
        %v7525 = vadd.f32 %v7503, %v7513
        %v7526 = vadd.f32 %v7504, %v7514
        %v7527 = vadd.f32 %v7505, %v7513
        %v7528 = vadd.f32 %v7506, %v7514
        %v7529 = vadd.f32 %v7507, %v7513
        %v7530 = vadd.f32 %v7508, %v7514
        %v7531 = vadd.f32 %v7509, %v7513
        %v7532 = vadd.f32 %v7510, %v7514
        %v7549 = vrot.slane %v7518, 6
        %v7550 = vrot.slane %v7520, 6
        %v7551 = vrot.slane %v7522, 6
        %v7552 = vrot.slane %v7524, 6
        %v7553 = vrot.slane %v7526, 6
        %v7554 = vrot.slane %v7528, 6
        %v7555 = vrot.slane %v7530, 6
        %v7556 = vrot.slane %v7532, 6
        %v7557 = vsel %vm2066, %v7517, %v7549
        %v7558 = vsel %vm2068, %v7517, %v7549
        %v7559 = vrot.slane %v7558, 2
        %v7560 = vsel %vm2071, %v7517, %v7549
        %v7561 = vrot.slane %v7560, 4
        %v7562 = vsel %vm581, %v7549, %v7517
        %v7563 = vrot.slane %v7562, 6
        %v7564 = vsel %vm2066, %v7519, %v7550
        %v7565 = vsel %vm2068, %v7519, %v7550
        %v7566 = vrot.slane %v7565, 2
        %v7567 = vsel %vm2071, %v7519, %v7550
        %v7568 = vrot.slane %v7567, 4
        %v7569 = vsel %vm581, %v7550, %v7519
        %v7570 = vrot.slane %v7569, 6
        %v7571 = vsel %vm2066, %v7521, %v7551
        %v7572 = vsel %vm2068, %v7521, %v7551
        %v7573 = vrot.slane %v7572, 2
        %v7574 = vsel %vm2071, %v7521, %v7551
        %v7575 = vrot.slane %v7574, 4
        %v7576 = vsel %vm581, %v7551, %v7521
        %v7577 = vrot.slane %v7576, 6
        %v7578 = vsel %vm2066, %v7523, %v7552
        %v7579 = vsel %vm2068, %v7523, %v7552
        %v7580 = vrot.slane %v7579, 2
        %v7581 = vsel %vm2071, %v7523, %v7552
        %v7582 = vrot.slane %v7581, 4
        %v7583 = vsel %vm581, %v7552, %v7523
        %v7584 = vrot.slane %v7583, 6
        %v7585 = vsel %vm2066, %v7525, %v7553
        %v7586 = vsel %vm2068, %v7525, %v7553
        %v7587 = vrot.slane %v7586, 2
        %v7588 = vsel %vm2071, %v7525, %v7553
        %v7589 = vrot.slane %v7588, 4
        %v7590 = vsel %vm581, %v7553, %v7525
        %v7591 = vrot.slane %v7590, 6
        %v7592 = vsel %vm2066, %v7527, %v7554
        %v7593 = vsel %vm2068, %v7527, %v7554
        %v7594 = vrot.slane %v7593, 2
        %v7595 = vsel %vm2071, %v7527, %v7554
        %v7596 = vrot.slane %v7595, 4
        %v7597 = vsel %vm581, %v7554, %v7527
        %v7598 = vrot.slane %v7597, 6
        %v7599 = vsel %vm2066, %v7529, %v7555
        %v7600 = vsel %vm2068, %v7529, %v7555
        %v7601 = vrot.slane %v7600, 2
        %v7602 = vsel %vm2071, %v7529, %v7555
        %v7603 = vrot.slane %v7602, 4
        %v7604 = vsel %vm581, %v7555, %v7529
        %v7605 = vrot.slane %v7604, 6
        %v7606 = vsel %vm2066, %v7531, %v7556
        %v7607 = vsel %vm2068, %v7531, %v7556
        %v7608 = vrot.slane %v7607, 2
        %v7609 = vsel %vm2071, %v7531, %v7556
        %v7610 = vrot.slane %v7609, 4
        %v7611 = vsel %vm581, %v7556, %v7531
        %v7612 = vrot.slane %v7611, 6
        %v7645 = vrot.slane %v7557, 7
        %v7646 = vrot.slane %v7645, 2
        %v7647 = vrot.slane %v7559, 7
        %v7648 = vrot.slane %v7647, 2
        %v7649 = vrot.slane %v7561, 7
        %v7650 = vrot.slane %v7649, 2
        %v7651 = vrot.slane %v7563, 7
        %v7652 = vrot.slane %v7651, 2
        %v7653 = vrot.slane %v7564, 7
        %v7654 = vrot.slane %v7653, 2
        %v7655 = vrot.slane %v7566, 7
        %v7656 = vrot.slane %v7655, 2
        %v7657 = vrot.slane %v7568, 7
        %v7658 = vrot.slane %v7657, 2
        %v7659 = vrot.slane %v7570, 7
        %v7660 = vrot.slane %v7659, 2
        %v7661 = vrot.slane %v7571, 7
        %v7662 = vrot.slane %v7661, 2
        %v7663 = vrot.slane %v7573, 7
        %v7664 = vrot.slane %v7663, 2
        %v7665 = vrot.slane %v7575, 7
        %v7666 = vrot.slane %v7665, 2
        %v7667 = vrot.slane %v7577, 7
        %v7668 = vrot.slane %v7667, 2
        %v7669 = vrot.slane %v7578, 7
        %v7670 = vrot.slane %v7669, 2
        %v7671 = vrot.slane %v7580, 7
        %v7672 = vrot.slane %v7671, 2
        %v7673 = vrot.slane %v7582, 7
        %v7674 = vrot.slane %v7673, 2
        %v7675 = vrot.slane %v7584, 7
        %v7676 = vrot.slane %v7675, 2
        %v7677 = vrot.slane %v7585, 7
        %v7678 = vrot.slane %v7677, 2
        %v7679 = vrot.slane %v7587, 7
        %v7680 = vrot.slane %v7679, 2
        %v7681 = vrot.slane %v7589, 7
        %v7682 = vrot.slane %v7681, 2
        %v7683 = vrot.slane %v7591, 7
        %v7684 = vrot.slane %v7683, 2
        %v7685 = vrot.slane %v7592, 7
        %v7686 = vrot.slane %v7685, 2
        %v7687 = vrot.slane %v7594, 7
        %v7688 = vrot.slane %v7687, 2
        %v7689 = vrot.slane %v7596, 7
        %v7690 = vrot.slane %v7689, 2
        %v7691 = vrot.slane %v7598, 7
        %v7692 = vrot.slane %v7691, 2
        %v7693 = vrot.slane %v7599, 7
        %v7694 = vrot.slane %v7693, 2
        %v7695 = vrot.slane %v7601, 7
        %v7696 = vrot.slane %v7695, 2
        %v7697 = vrot.slane %v7603, 7
        %v7698 = vrot.slane %v7697, 2
        %v7699 = vrot.slane %v7605, 7
        %v7700 = vrot.slane %v7699, 2
        %v7701 = vrot.slane %v7606, 7
        %v7702 = vrot.slane %v7701, 2
        %v7703 = vrot.slane %v7608, 7
        %v7704 = vrot.slane %v7703, 2
        %v7705 = vrot.slane %v7610, 7
        %v7706 = vrot.slane %v7705, 2
        %v7707 = vrot.slane %v7612, 7
        %v7708 = vrot.slane %v7707, 2
        %v7741 = vmax.f32 %v7557, %v7646
        %v7742 = vmax.f32 %v7559, %v7648
        %v7743 = vmax.f32 %v7561, %v7650
        %v7744 = vmax.f32 %v7563, %v7652
        %v7745 = vmax.f32 %v7564, %v7654
        %v7746 = vmax.f32 %v7566, %v7656
        %v7747 = vmax.f32 %v7568, %v7658
        %v7748 = vmax.f32 %v7570, %v7660
        %v7749 = vmax.f32 %v7571, %v7662
        %v7750 = vmax.f32 %v7573, %v7664
        %v7751 = vmax.f32 %v7575, %v7666
        %v7752 = vmax.f32 %v7577, %v7668
        %v7753 = vmax.f32 %v7578, %v7670
        %v7754 = vmax.f32 %v7580, %v7672
        %v7755 = vmax.f32 %v7582, %v7674
        %v7756 = vmax.f32 %v7584, %v7676
        %v7757 = vmax.f32 %v7585, %v7678
        %v7758 = vmax.f32 %v7587, %v7680
        %v7759 = vmax.f32 %v7589, %v7682
        %v7760 = vmax.f32 %v7591, %v7684
        %v7761 = vmax.f32 %v7592, %v7686
        %v7762 = vmax.f32 %v7594, %v7688
        %v7763 = vmax.f32 %v7596, %v7690
        %v7764 = vmax.f32 %v7598, %v7692
        %v7765 = vmax.f32 %v7599, %v7694
        %v7766 = vmax.f32 %v7601, %v7696
        %v7767 = vmax.f32 %v7603, %v7698
        %v7768 = vmax.f32 %v7605, %v7700
        %v7769 = vmax.f32 %v7606, %v7702
        %v7770 = vmax.f32 %v7608, %v7704
        %v7771 = vmax.f32 %v7610, %v7706
        %v7772 = vmax.f32 %v7612, %v7708
        %7805 = vrot.lane.b32.xlu0 %v7741, 108
        %v7806 = vpop.permute.xlu0 %7805
        %7807 = vrot.lane.b32.xlu0 %v7742, 108
        %v7808 = vpop.permute.xlu0 %7807
        %7809 = vrot.lane.b32.xlu0 %v7743, 108
        %v7810 = vpop.permute.xlu0 %7809
        %7811 = vrot.lane.b32.xlu0 %v7744, 108
        %v7812 = vpop.permute.xlu0 %7811
        %7813 = vrot.lane.b32.xlu0 %v7745, 108
        %v7814 = vpop.permute.xlu0 %7813
        %7815 = vrot.lane.b32.xlu0 %v7746, 108
        %v7816 = vpop.permute.xlu0 %7815
        %7817 = vrot.lane.b32.xlu0 %v7747, 108
        %v7818 = vpop.permute.xlu0 %7817
        %7819 = vrot.lane.b32.xlu0 %v7748, 108
        %v7820 = vpop.permute.xlu0 %7819
        %7821 = vrot.lane.b32.xlu0 %v7749, 108
        %v7822 = vpop.permute.xlu0 %7821
        %7823 = vrot.lane.b32.xlu0 %v7750, 108
        %v7824 = vpop.permute.xlu0 %7823
        %7825 = vrot.lane.b32.xlu0 %v7751, 108
        %v7826 = vpop.permute.xlu0 %7825
        %7827 = vrot.lane.b32.xlu0 %v7752, 108
        %v7828 = vpop.permute.xlu0 %7827
        %7829 = vrot.lane.b32.xlu0 %v7753, 108
        %v7830 = vpop.permute.xlu0 %7829
        %7831 = vrot.lane.b32.xlu0 %v7754, 108
        %v7832 = vpop.permute.xlu0 %7831
        %7833 = vrot.lane.b32.xlu0 %v7755, 108
        %v7834 = vpop.permute.xlu0 %7833
        %7835 = vrot.lane.b32.xlu0 %v7756, 108
        %v7836 = vpop.permute.xlu0 %7835
        %7837 = vrot.lane.b32.xlu0 %v7757, 108
        %v7838 = vpop.permute.xlu0 %7837
        %7839 = vrot.lane.b32.xlu0 %v7758, 108
        %v7840 = vpop.permute.xlu0 %7839
        %7841 = vrot.lane.b32.xlu0 %v7759, 108
        %v7842 = vpop.permute.xlu0 %7841
        %7843 = vrot.lane.b32.xlu0 %v7760, 108
        %v7844 = vpop.permute.xlu0 %7843
        %7845 = vrot.lane.b32.xlu0 %v7761, 108
        %v7846 = vpop.permute.xlu0 %7845
        %7847 = vrot.lane.b32.xlu0 %v7762, 108
        %v7848 = vpop.permute.xlu0 %7847
        %7849 = vrot.lane.b32.xlu0 %v7763, 108
        %v7850 = vpop.permute.xlu0 %7849
        %7851 = vrot.lane.b32.xlu0 %v7764, 108
        %v7852 = vpop.permute.xlu0 %7851
        %7853 = vrot.lane.b32.xlu0 %v7765, 108
        %v7854 = vpop.permute.xlu0 %7853
        %7855 = vrot.lane.b32.xlu0 %v7766, 108
        %v7856 = vpop.permute.xlu0 %7855
        %7857 = vrot.lane.b32.xlu0 %v7767, 108
        %v7858 = vpop.permute.xlu0 %7857
        %7859 = vrot.lane.b32.xlu0 %v7768, 108
        %v7860 = vpop.permute.xlu0 %7859
        %7861 = vrot.lane.b32.xlu0 %v7769, 108
        %v7862 = vpop.permute.xlu0 %7861
        %7863 = vrot.lane.b32.xlu0 %v7770, 108
        %v7864 = vpop.permute.xlu0 %7863
        %7865 = vrot.lane.b32.xlu0 %v7771, 108
        %v7866 = vpop.permute.xlu0 %7865
        %7867 = vrot.lane.b32.xlu0 %v7772, 108
        %v7868 = vpop.permute.xlu0 %7867
        %v7869 = vrot.slane %v7806, 2
        %v7870 = vrot.slane %v7808, 2
        %v7871 = vrot.slane %v7810, 2
        %v7872 = vrot.slane %v7812, 2
        %v7873 = vrot.slane %v7814, 2
        %v7874 = vrot.slane %v7816, 2
        %v7875 = vrot.slane %v7818, 2
        %v7876 = vrot.slane %v7820, 2
        %v7877 = vrot.slane %v7822, 2
        %v7878 = vrot.slane %v7824, 2
        %v7879 = vrot.slane %v7826, 2
        %v7880 = vrot.slane %v7828, 2
        %v7881 = vrot.slane %v7830, 2
        %v7882 = vrot.slane %v7832, 2
        %v7883 = vrot.slane %v7834, 2
        %v7884 = vrot.slane %v7836, 2
        %v7885 = vrot.slane %v7838, 2
        %v7886 = vrot.slane %v7840, 2
        %v7887 = vrot.slane %v7842, 2
        %v7888 = vrot.slane %v7844, 2
        %v7889 = vrot.slane %v7846, 2
        %v7890 = vrot.slane %v7848, 2
        %v7891 = vrot.slane %v7850, 2
        %v7892 = vrot.slane %v7852, 2
        %v7893 = vrot.slane %v7854, 2
        %v7894 = vrot.slane %v7856, 2
        %v7895 = vrot.slane %v7858, 2
        %v7896 = vrot.slane %v7860, 2
        %v7897 = vrot.slane %v7862, 2
        %v7898 = vrot.slane %v7864, 2
        %v7899 = vrot.slane %v7866, 2
        %v7900 = vrot.slane %v7868, 2
        %vm7901 = vcmask 883712
        %v7902 = vsel %vm7901, %v7806, %v7869
        %v7903 = vsel %vm7901, %v7808, %v7870
        %v7904 = vsel %vm7901, %v7810, %v7871
        %v7905 = vsel %vm7901, %v7812, %v7872
        %v7906 = vsel %vm7901, %v7814, %v7873
        %v7907 = vsel %vm7901, %v7816, %v7874
        %v7908 = vsel %vm7901, %v7818, %v7875
        %v7909 = vsel %vm7901, %v7820, %v7876
        %v7910 = vsel %vm7901, %v7822, %v7877
        %v7911 = vsel %vm7901, %v7824, %v7878
        %v7912 = vsel %vm7901, %v7826, %v7879
        %v7913 = vsel %vm7901, %v7828, %v7880
        %v7914 = vsel %vm7901, %v7830, %v7881
        %v7915 = vsel %vm7901, %v7832, %v7882
        %v7916 = vsel %vm7901, %v7834, %v7883
        %v7917 = vsel %vm7901, %v7836, %v7884
        %v7918 = vsel %vm7901, %v7838, %v7885
        %v7919 = vsel %vm7901, %v7840, %v7886
        %v7920 = vsel %vm7901, %v7842, %v7887
        %v7921 = vsel %vm7901, %v7844, %v7888
        %v7922 = vsel %vm7901, %v7846, %v7889
        %v7923 = vsel %vm7901, %v7848, %v7890
        %v7924 = vsel %vm7901, %v7850, %v7891
        %v7925 = vsel %vm7901, %v7852, %v7892
        %v7926 = vsel %vm7901, %v7854, %v7893
        %v7927 = vsel %vm7901, %v7856, %v7894
        %v7928 = vsel %vm7901, %v7858, %v7895
        %v7929 = vsel %vm7901, %v7860, %v7896
        %v7930 = vsel %vm7901, %v7862, %v7897
        %v7931 = vsel %vm7901, %v7864, %v7898
        %v7932 = vsel %vm7901, %v7866, %v7899
        %v7933 = vsel %vm7901, %v7868, %v7900
        %v7966 = vmax.f32 %v7741, %v7902
        %v7967 = vmax.f32 %v7742, %v7903
        %v7968 = vmax.f32 %v7743, %v7904
        %v7969 = vmax.f32 %v7744, %v7905
        %v7970 = vmax.f32 %v7745, %v7906
        %v7971 = vmax.f32 %v7746, %v7907
        %v7972 = vmax.f32 %v7747, %v7908
        %v7973 = vmax.f32 %v7748, %v7909
        %v7974 = vmax.f32 %v7749, %v7910
        %v7975 = vmax.f32 %v7750, %v7911
        %v7976 = vmax.f32 %v7751, %v7912
        %v7977 = vmax.f32 %v7752, %v7913
        %v7978 = vmax.f32 %v7753, %v7914
        %v7979 = vmax.f32 %v7754, %v7915
        %v7980 = vmax.f32 %v7755, %v7916
        %v7981 = vmax.f32 %v7756, %v7917
        %v7982 = vmax.f32 %v7757, %v7918
        %v7983 = vmax.f32 %v7758, %v7919
        %v7984 = vmax.f32 %v7759, %v7920
        %v7985 = vmax.f32 %v7760, %v7921
        %v7986 = vmax.f32 %v7761, %v7922
        %v7987 = vmax.f32 %v7762, %v7923
        %v7988 = vmax.f32 %v7763, %v7924
        %v7989 = vmax.f32 %v7764, %v7925
        %v7990 = vmax.f32 %v7765, %v7926
        %v7991 = vmax.f32 %v7766, %v7927
        %v7992 = vmax.f32 %v7767, %v7928
        %v7993 = vmax.f32 %v7768, %v7929
        %v7994 = vmax.f32 %v7769, %v7930
        %v7995 = vmax.f32 %v7770, %v7931
        %v7996 = vmax.f32 %v7771, %v7932
        %v7997 = vmax.f32 %v7772, %v7933
        %v7998 = vmax.f32 %v7966, 0.0
        %v7999 = vmax.f32 %v7967, 0.0
        %v8000 = vmax.f32 %v7968, 0.0
        %v8001 = vmax.f32 %v7969, 0.0
        %v8002 = vmax.f32 %v7970, 0.0
        %v8003 = vmax.f32 %v7971, 0.0
        %v8004 = vmax.f32 %v7972, 0.0
        %v8005 = vmax.f32 %v7973, 0.0
        %v8006 = vmax.f32 %v7974, 0.0
        %v8007 = vmax.f32 %v7975, 0.0
        %v8008 = vmax.f32 %v7976, 0.0
        %v8009 = vmax.f32 %v7977, 0.0
        %v8010 = vmax.f32 %v7978, 0.0
        %v8011 = vmax.f32 %v7979, 0.0
        %v8012 = vmax.f32 %v7980, 0.0
        %v8013 = vmax.f32 %v7981, 0.0
        %v8014 = vmax.f32 %v7982, 0.0
        %v8015 = vmax.f32 %v7983, 0.0
        %v8016 = vmax.f32 %v7984, 0.0
        %v8017 = vmax.f32 %v7985, 0.0
        %v8018 = vmax.f32 %v7986, 0.0
        %v8019 = vmax.f32 %v7987, 0.0
        %v8020 = vmax.f32 %v7988, 0.0
        %v8021 = vmax.f32 %v7989, 0.0
        %v8022 = vmax.f32 %v7990, 0.0
        %v8023 = vmax.f32 %v7991, 0.0
        %v8024 = vmax.f32 %v7992, 0.0
        %v8025 = vmax.f32 %v7993, 0.0
        %v8026 = vmax.f32 %v7994, 0.0
        %v8027 = vmax.f32 %v7995, 0.0
        %v8028 = vmax.f32 %v7996, 0.0
        %v8029 = vmax.f32 %v7997, 0.0
        %v8062 = vsel %vm4665, %v7998, %v7998
        %v8063 = vsel %vm4671, %v7998, %v8062
        %v8064 = vrot.slane %v7999, 7
        %v8065 = vsel %vm4656, %v8064, %v8063
        %v8066 = vsel %vm4662, %v8064, %v8065
        %v8067 = vsel %vm4668, %v8064, %v8066
        %v8068 = vsel %vm4674, %v8064, %v8067
        %v8069 = vsel %vm4665, %v8000, %v8000
        %v8070 = vsel %vm4671, %v8000, %v8069
        %v8071 = vrot.slane %v8001, 7
        %v8072 = vsel %vm4656, %v8071, %v8070
        %v8073 = vsel %vm4662, %v8071, %v8072
        %v8074 = vsel %vm4668, %v8071, %v8073
        %v8075 = vsel %vm4674, %v8071, %v8074
        %v8076 = vsel %vm4665, %v8002, %v8002
        %v8077 = vsel %vm4671, %v8002, %v8076
        %v8078 = vrot.slane %v8003, 7
        %v8079 = vsel %vm4656, %v8078, %v8077
        %v8080 = vsel %vm4662, %v8078, %v8079
        %v8081 = vsel %vm4668, %v8078, %v8080
        %v8082 = vsel %vm4674, %v8078, %v8081
        %v8083 = vsel %vm4665, %v8004, %v8004
        %v8084 = vsel %vm4671, %v8004, %v8083
        %v8085 = vrot.slane %v8005, 7
        %v8086 = vsel %vm4656, %v8085, %v8084
        %v8087 = vsel %vm4662, %v8085, %v8086
        %v8088 = vsel %vm4668, %v8085, %v8087
        %v8089 = vsel %vm4674, %v8085, %v8088
        %v8090 = vsel %vm4665, %v8006, %v8006
        %v8091 = vsel %vm4671, %v8006, %v8090
        %v8092 = vrot.slane %v8007, 7
        %v8093 = vsel %vm4656, %v8092, %v8091
        %v8094 = vsel %vm4662, %v8092, %v8093
        %v8095 = vsel %vm4668, %v8092, %v8094
        %v8096 = vsel %vm4674, %v8092, %v8095
        %v8097 = vsel %vm4665, %v8008, %v8008
        %v8098 = vsel %vm4671, %v8008, %v8097
        %v8099 = vrot.slane %v8009, 7
        %v8100 = vsel %vm4656, %v8099, %v8098
        %v8101 = vsel %vm4662, %v8099, %v8100
        %v8102 = vsel %vm4668, %v8099, %v8101
        %v8103 = vsel %vm4674, %v8099, %v8102
        %v8104 = vsel %vm4665, %v8010, %v8010
        %v8105 = vsel %vm4671, %v8010, %v8104
        %v8106 = vrot.slane %v8011, 7
        %v8107 = vsel %vm4656, %v8106, %v8105
        %v8108 = vsel %vm4662, %v8106, %v8107
        %v8109 = vsel %vm4668, %v8106, %v8108
        %v8110 = vsel %vm4674, %v8106, %v8109
        %v8111 = vsel %vm4665, %v8012, %v8012
        %v8112 = vsel %vm4671, %v8012, %v8111
        %v8113 = vrot.slane %v8013, 7
        %v8114 = vsel %vm4656, %v8113, %v8112
        %v8115 = vsel %vm4662, %v8113, %v8114
        %v8116 = vsel %vm4668, %v8113, %v8115
        %v8117 = vsel %vm4674, %v8113, %v8116
        %v8118 = vsel %vm4665, %v8014, %v8014
        %v8119 = vsel %vm4671, %v8014, %v8118
        %v8120 = vrot.slane %v8015, 7
        %v8121 = vsel %vm4656, %v8120, %v8119
        %v8122 = vsel %vm4662, %v8120, %v8121
        %v8123 = vsel %vm4668, %v8120, %v8122
        %v8124 = vsel %vm4674, %v8120, %v8123
        %v8125 = vsel %vm4665, %v8016, %v8016
        %v8126 = vsel %vm4671, %v8016, %v8125
        %v8127 = vrot.slane %v8017, 7
        %v8128 = vsel %vm4656, %v8127, %v8126
        %v8129 = vsel %vm4662, %v8127, %v8128
        %v8130 = vsel %vm4668, %v8127, %v8129
        %v8131 = vsel %vm4674, %v8127, %v8130
        %v8132 = vsel %vm4665, %v8018, %v8018
        %v8133 = vsel %vm4671, %v8018, %v8132
        %v8134 = vrot.slane %v8019, 7
        %v8135 = vsel %vm4656, %v8134, %v8133
        %v8136 = vsel %vm4662, %v8134, %v8135
        %v8137 = vsel %vm4668, %v8134, %v8136
        %v8138 = vsel %vm4674, %v8134, %v8137
        %v8139 = vsel %vm4665, %v8020, %v8020
        %v8140 = vsel %vm4671, %v8020, %v8139
        %v8141 = vrot.slane %v8021, 7
        %v8142 = vsel %vm4656, %v8141, %v8140
        %v8143 = vsel %vm4662, %v8141, %v8142
        %v8144 = vsel %vm4668, %v8141, %v8143
        %v8145 = vsel %vm4674, %v8141, %v8144
        %v8146 = vsel %vm4665, %v8022, %v8022
        %v8147 = vsel %vm4671, %v8022, %v8146
        %v8148 = vrot.slane %v8023, 7
        %v8149 = vsel %vm4656, %v8148, %v8147
        %v8150 = vsel %vm4662, %v8148, %v8149
        %v8151 = vsel %vm4668, %v8148, %v8150
        %v8152 = vsel %vm4674, %v8148, %v8151
        %v8153 = vsel %vm4665, %v8024, %v8024
        %v8154 = vsel %vm4671, %v8024, %v8153
        %v8155 = vrot.slane %v8025, 7
        %v8156 = vsel %vm4656, %v8155, %v8154
        %v8157 = vsel %vm4662, %v8155, %v8156
        %v8158 = vsel %vm4668, %v8155, %v8157
        %v8159 = vsel %vm4674, %v8155, %v8158
        %v8160 = vsel %vm4665, %v8026, %v8026
        %v8161 = vsel %vm4671, %v8026, %v8160
        %v8162 = vrot.slane %v8027, 7
        %v8163 = vsel %vm4656, %v8162, %v8161
        %v8164 = vsel %vm4662, %v8162, %v8163
        %v8165 = vsel %vm4668, %v8162, %v8164
        %v8166 = vsel %vm4674, %v8162, %v8165
        %v8167 = vsel %vm4665, %v8028, %v8028
        %v8168 = vsel %vm4671, %v8028, %v8167
        %v8169 = vrot.slane %v8029, 7
        %v8170 = vsel %vm4656, %v8169, %v8168
        %v8171 = vsel %vm4662, %v8169, %v8170
        %v8172 = vsel %vm4668, %v8169, %v8171
        %v8173 = vsel %vm4674, %v8169, %v8172
        %v8190 = vrot.slane %v8082, 4
        %vm8191 = vcmask 1047556
        %v8192 = vsel %vm8191, %v8190, %v8068
        %v8194 = vunpack.c.l.s4 1934713408
        %v8195 = vunpack.c.0.s8 %v8194
        %v8196 = vperm.slane %v8192, %v8195
        %v8197 = vrot.slane %v8196, 4
        %v8198 = vsel %vm8191, 0.0, %v8197
        %v8199 = vrot.slane %v8110, 4
        %v8200 = vsel %vm8191, %v8199, %v8096
        %v8202 = vunpack.c.l.s4 1934713408
        %v8203 = vunpack.c.0.s8 %v8202
        %v8204 = vperm.slane %v8200, %v8203
        %v8205 = vrot.slane %v8204, 4
        %v8206 = vsel %vm8191, 0.0, %v8205
        %v8207 = vrot.slane %v8138, 4
        %v8208 = vsel %vm8191, %v8207, %v8124
        %v8210 = vunpack.c.l.s4 1934713408
        %v8211 = vunpack.c.0.s8 %v8210
        %v8212 = vperm.slane %v8208, %v8211
        %v8213 = vrot.slane %v8212, 4
        %v8214 = vsel %vm8191, 0.0, %v8213
        %v8215 = vrot.slane %v8166, 4
        %v8216 = vsel %vm8191, %v8215, %v8152
        %v8218 = vunpack.c.l.s4 1934713408
        %v8219 = vunpack.c.0.s8 %v8218
        %v8220 = vperm.slane %v8216, %v8219
        %v8221 = vrot.slane %v8220, 4
        %v8222 = vsel %vm8191, 0.0, %v8221
        %v8223 = vrot.slane %v8089, 4
        %v8224 = vsel %vm8191, %v8223, %v8075
        %v8226 = vunpack.c.l.s4 1934713408
        %v8227 = vunpack.c.0.s8 %v8226
        %v8228 = vperm.slane %v8224, %v8227
        %v8229 = vrot.slane %v8228, 4
        %v8230 = vsel %vm8191, 0.0, %v8229
        %v8231 = vrot.slane %v8117, 4
        %v8232 = vsel %vm8191, %v8231, %v8103
        %v8234 = vunpack.c.l.s4 1934713408
        %v8235 = vunpack.c.0.s8 %v8234
        %v8236 = vperm.slane %v8232, %v8235
        %v8237 = vrot.slane %v8236, 4
        %v8238 = vsel %vm8191, 0.0, %v8237
        %v8239 = vrot.slane %v8145, 4
        %v8240 = vsel %vm8191, %v8239, %v8131
        %v8242 = vunpack.c.l.s4 1934713408
        %v8243 = vunpack.c.0.s8 %v8242
        %v8244 = vperm.slane %v8240, %v8243
        %v8245 = vrot.slane %v8244, 4
        %v8246 = vsel %vm8191, 0.0, %v8245
        %v8247 = vrot.slane %v8173, 4
        %v8248 = vsel %vm8191, %v8247, %v8159
        %v8250 = vunpack.c.l.s4 1934713408
        %v8251 = vunpack.c.0.s8 %v8250
        %v8252 = vperm.slane %v8248, %v8251
        %v8253 = vrot.slane %v8252, 4
        %v8254 = vsel %vm8191, 0.0, %v8253
        %8259 = vst [vmem:[#allocation1] ss:$4 sm:$0xff] %v8196
        %s8260 = scalar_lea.vmem [#allocation1], 1
        %8261 = vst [vmem:[%s8260] ss:$4 sm:$0xff] %v8204
        %s8262 = scalar_lea.vmem [#allocation1], 2
        %8263 = vst [vmem:[%s8262] ss:$4 sm:$0xff] %v8212
        %s8264 = scalar_lea.vmem [#allocation1], 3
        %8265 = vst [vmem:[%s8264] ss:$4 sm:$0xff] %v8220
        %v8266 = vld.sshfl [vmem:[#allocation1] sm:$0xff pattern:$0x73625140]
        %v8267 = vld.sshfl [vmem:[#allocation1 + $0x8] sm:$0xff pattern:$0x73625140]
        %8274 = vst [vmem:[#allocation1] ss:$4 sm:$0xff] %v8198
        %s8275 = scalar_lea.vmem [#allocation1], 1
        %8276 = vst [vmem:[%s8275] ss:$4 sm:$0xff] %v8206
        %s8277 = scalar_lea.vmem [#allocation1], 2
        %8278 = vst [vmem:[%s8277] ss:$4 sm:$0xff] %v8214
        %s8279 = scalar_lea.vmem [#allocation1], 3
        %8280 = vst [vmem:[%s8279] ss:$4 sm:$0xff] %v8222
        %v8281 = vld.sshfl [vmem:[#allocation1] sm:$0xff pattern:$0x73625140]
        %v8282 = vld.sshfl [vmem:[#allocation1 + $0x8] sm:$0xff pattern:$0x73625140]
        %8283 = vrot.lane.b32.xlu0 %v8281, 12
        %v8284 = vpop.permute.xlu0 %8283
        %8285 = vrot.lane.b32.xlu0 %v8282, 12
        %v8286 = vpop.permute.xlu0 %8285
        %vm8287 = vcmask 97280
        %v8288 = vsel %vm8287, %v8284, %v8286
        %8295 = vst [vmem:[#allocation1] ss:$4 sm:$0xff] %v8228
        %s8296 = scalar_lea.vmem [#allocation1], 1
        %8297 = vst [vmem:[%s8296] ss:$4 sm:$0xff] %v8236
        %s8298 = scalar_lea.vmem [#allocation1], 2
        %8299 = vst [vmem:[%s8298] ss:$4 sm:$0xff] %v8244
        %s8300 = scalar_lea.vmem [#allocation1], 3
        %8301 = vst [vmem:[%s8300] ss:$4 sm:$0xff] %v8252
        %v8302 = vld.sshfl [vmem:[#allocation1] sm:$0xff pattern:$0x73625140]
        %v8303 = vld.sshfl [vmem:[#allocation1 + $0x8] sm:$0xff pattern:$0x73625140]
        %8304 = vrot.lane.b32.xlu0 %v8302, 24
        %v8305 = vpop.permute.xlu0 %8304
        %8306 = vrot.lane.b32.xlu0 %v8303, 24
        %v8307 = vpop.permute.xlu0 %8306
        %vm8308 = vcmask 195584
        %v8309 = vsel %vm8308, %v8305, %v8307
        %8316 = vst [vmem:[#allocation1] ss:$4 sm:$0xff] %v8230
        %s8317 = scalar_lea.vmem [#allocation1], 1
        %8318 = vst [vmem:[%s8317] ss:$4 sm:$0xff] %v8238
        %s8319 = scalar_lea.vmem [#allocation1], 2
        %8320 = vst [vmem:[%s8319] ss:$4 sm:$0xff] %v8246
        %s8321 = scalar_lea.vmem [#allocation1], 3
        %8322 = vst [vmem:[%s8321] ss:$4 sm:$0xff] %v8254
        %v8323 = vld.sshfl [vmem:[#allocation1] sm:$0xff pattern:$0x73625140]
        %v8324 = vld.sshfl [vmem:[#allocation1 + $0x8] sm:$0xff pattern:$0x73625140]
        %8325 = vrot.lane.b32.xlu0 %v8323, 36
        %v8326 = vpop.permute.xlu0 %8325
        %8327 = vrot.lane.b32.xlu0 %v8324, 36
        %v8328 = vpop.permute.xlu0 %8327
        %vm8329 = vcmask 293888
        %v8330 = vsel %vm8329, %v8326, %v8328
        %v8333 = vsel %vm8287, %v8267, %v8284
        %v8334 = vsel %vm8308, %v8288, %v8305
        %v8335 = vsel %vm8329, %v8309, %v8326
        %v8336 = vpack.c.bf16 %v8266, %v8266
        %v8337 = vpack.c.bf16 %v8333, %v8333
        %v8338 = vpack.c.bf16 %v8334, %v8334
        %v8339 = vpack.c.bf16 %v8335, %v8335
        %v8340 = vpack.c.bf16 %v8330, %v8330
        %v8341 = vld [vmem:[%s5] sm:$0xf]
        %v8342 = vld [vmem:[%s5 + $0x4] sm:$0xf]
        %v8343 = vld [vmem:[%s5 + $0x8] sm:$0xf]
        %v8344 = vld [vmem:[%s5 + $0xc] sm:$0xf]
        %v8345 = vld [vmem:[%s5 + $0x10] sm:$0xf]
        %v8346 = vld [vmem:[%s5 + $0x14] sm:$0xf]
        %v8347 = vld [vmem:[%s5 + $0x18] sm:$0xf]
        %v8348 = vld [vmem:[%s5 + $0x1c] sm:$0xf]
        %v8349 = vld [vmem:[%s5 + $0x20] sm:$0xf]
        %v8350 = vld [vmem:[%s5 + $0x24] sm:$0xf]
        %v8351 = vld [vmem:[%s5 + $0x28] sm:$0xf]
        %v8352 = vld [vmem:[%s5 + $0x2c] sm:$0xf]
        %v8353 = vld [vmem:[%s5 + $0x30] sm:$0xf]
        %v8354 = vld [vmem:[%s5 + $0x34] sm:$0xf]
        %v8355 = vld [vmem:[%s5 + $0x38] sm:$0xf]
        %v8356 = vld [vmem:[%s5 + $0x3c] sm:$0xf]
        %v8357 = vld [vmem:[%s5 + $0x40] sm:$0xf]
        %v8358 = vld [vmem:[%s5 + $0x44] sm:$0xf]
        %v8359 = vld [vmem:[%s5 + $0x48] sm:$0xf]
        %v8360 = vld [vmem:[%s5 + $0x4c] sm:$0xf]
        %v8361 = vld [vmem:[%s5 + $0x50] sm:$0xf]
        %v8362 = vld [vmem:[%s5 + $0x54] sm:$0xf]
        %v8363 = vld [vmem:[%s5 + $0x58] sm:$0xf]
        %v8364 = vld [vmem:[%s5 + $0x5c] sm:$0xf]
        %v8365 = vld [vmem:[%s5 + $0x60] sm:$0xf]
        %v8366 = vld [vmem:[%s5 + $0x64] sm:$0xf]
        %v8367 = vld [vmem:[%s5 + $0x68] sm:$0xf]
        %v8368 = vld [vmem:[%s5 + $0x6c] sm:$0xf]
        %v8369 = vld [vmem:[%s5 + $0x70] sm:$0xf]
        %v8370 = vld [vmem:[%s5 + $0x74] sm:$0xf]
        %v8371 = vld [vmem:[%s5 + $0x78] sm:$0xf]
        %v8372 = vld [vmem:[%s5 + $0x7c] sm:$0xf]
        %v8373 = vld [vmem:[%s5 + $0x80] sm:$0xf]
        %v8374 = vld [vmem:[%s5 + $0x84] sm:$0xf]
        %v8375 = vld [vmem:[%s5 + $0x88] sm:$0xf]
        %v8376 = vld [vmem:[%s5 + $0x8c] sm:$0xf]
        %v8377 = vld [vmem:[%s5 + $0x90] sm:$0xf]
        %v8378 = vld [vmem:[%s5 + $0x94] sm:$0xf]
        %v8379 = vld [vmem:[%s5 + $0x98] sm:$0xf]
        %v8380 = vld [vmem:[%s5 + $0x9c] sm:$0xf]
        %v8381 = vld [vmem:[%s5 + $0xa0] sm:$0xf]
        %v8382 = vld [vmem:[%s5 + $0xa4] sm:$0xf]
        %v8383 = vld [vmem:[%s5 + $0xa8] sm:$0xf]
        %v8384 = vld [vmem:[%s5 + $0xac] sm:$0xf]
        %v8385 = vld [vmem:[%s5 + $0xb0] sm:$0xf]
        %v8386 = vld [vmem:[%s5 + $0xb4] sm:$0xf]
        %v8387 = vld [vmem:[%s5 + $0xb8] sm:$0xf]
        %v8388 = vld [vmem:[%s5 + $0xbc] sm:$0xf]
        %v8389 = vld [vmem:[%s5 + $0xc0] sm:$0xf]
        %v8390 = vld [vmem:[%s5 + $0xc4] sm:$0xf]
        %v8391 = vld [vmem:[%s5 + $0xc8] sm:$0xf]
        %v8392 = vld [vmem:[%s5 + $0xcc] sm:$0xf]
        %v8393 = vld [vmem:[%s5 + $0xd0] sm:$0xf]
        %v8394 = vld [vmem:[%s5 + $0xd4] sm:$0xf]
        %v8395 = vld [vmem:[%s5 + $0xd8] sm:$0xf]
        %v8396 = vld [vmem:[%s5 + $0xdc] sm:$0xf]
        %v8397 = vld [vmem:[%s5 + $0xe0] sm:$0xf]
        %v8398 = vld [vmem:[%s5 + $0xe4] sm:$0xf]
        %v8399 = vld [vmem:[%s5 + $0xe8] sm:$0xf]
        %v8400 = vld [vmem:[%s5 + $0xec] sm:$0xf]
        %v8401 = vld [vmem:[%s5 + $0xf0] sm:$0xf]
        %v8402 = vld [vmem:[%s5 + $0xf4] sm:$0xf]
        %v8403 = vld [vmem:[%s5 + $0xf8] sm:$0xf]
        %v8404 = vld [vmem:[%s5 + $0xfc] sm:$0xf]
        %v8405 = vld [vmem:[%s5 + $0x100] sm:$0xf]
        %v8406 = vld [vmem:[%s5 + $0x104] sm:$0xf]
        %v8407 = vld [vmem:[%s5 + $0x108] sm:$0xf]
        %v8408 = vld [vmem:[%s5 + $0x10c] sm:$0xf]
        %v8409 = vld [vmem:[%s5 + $0x110] sm:$0xf]
        %v8410 = vld [vmem:[%s5 + $0x114] sm:$0xf]
        %v8411 = vld [vmem:[%s6] sm:$0x1]
        %v8413 = vperm.slane %v8411, 0
        %v8485 = vunpack.c.l.b16 %v8341
        %v8486 = vunpack.c.l.b16 %v8342
        %v8487 = vunpack.c.l.b16 %v8343
        %v8488 = vunpack.c.l.b16 %v8344
        %v8489 = vunpack.c.l.b16 %v8345
        %v8490 = vunpack.c.l.b16 %v8346
        %v8491 = vunpack.c.l.b16 %v8347
        %v8492 = vunpack.c.l.b16 %v8348
        %v8493 = vunpack.c.l.b16 %v8349
        %v8494 = vunpack.c.l.b16 %v8350
        %v8495 = vunpack.c.l.b16 %v8351
        %v8496 = vunpack.c.l.b16 %v8352
        %v8497 = vunpack.c.l.b16 %v8353
        %v8498 = vunpack.c.l.b16 %v8354
        %v8499 = vunpack.c.l.b16 %v8355
        %v8500 = vunpack.c.l.b16 %v8356
        %v8501 = vunpack.c.l.b16 %v8357
        %v8502 = vunpack.c.l.b16 %v8358
        %v8503 = vunpack.c.l.b16 %v8359
        %v8504 = vunpack.c.l.b16 %v8360
        %v8505 = vunpack.c.l.b16 %v8361
        %v8506 = vunpack.c.l.b16 %v8362
        %v8507 = vunpack.c.l.b16 %v8363
        %v8508 = vunpack.c.l.b16 %v8364
        %v8509 = vunpack.c.l.b16 %v8365
        %v8510 = vunpack.c.l.b16 %v8366
        %v8511 = vunpack.c.l.b16 %v8367
        %v8512 = vunpack.c.l.b16 %v8368
        %v8513 = vunpack.c.l.b16 %v8369
        %v8514 = vunpack.c.l.b16 %v8370
        %v8515 = vunpack.c.l.b16 %v8371
        %v8516 = vunpack.c.l.b16 %v8372
        %v8517 = vunpack.c.l.b16 %v8373
        %v8518 = vunpack.c.l.b16 %v8374
        %v8519 = vunpack.c.l.b16 %v8375
        %v8520 = vunpack.c.l.b16 %v8376
        %v8521 = vunpack.c.l.b16 %v8377
        %v8522 = vunpack.c.l.b16 %v8378
        %v8523 = vunpack.c.l.b16 %v8379
        %v8524 = vunpack.c.l.b16 %v8380
        %v8525 = vunpack.c.l.b16 %v8381
        %v8526 = vunpack.c.l.b16 %v8382
        %v8527 = vunpack.c.l.b16 %v8383
        %v8528 = vunpack.c.l.b16 %v8384
        %v8529 = vunpack.c.l.b16 %v8385
        %v8530 = vunpack.c.l.b16 %v8386
        %v8531 = vunpack.c.l.b16 %v8387
        %v8532 = vunpack.c.l.b16 %v8388
        %v8533 = vunpack.c.l.b16 %v8389
        %v8534 = vunpack.c.l.b16 %v8390
        %v8535 = vunpack.c.l.b16 %v8391
        %v8536 = vunpack.c.l.b16 %v8392
        %v8537 = vunpack.c.l.b16 %v8393
        %v8538 = vunpack.c.l.b16 %v8394
        %v8539 = vunpack.c.l.b16 %v8395
        %v8540 = vunpack.c.l.b16 %v8396
        %v8541 = vunpack.c.l.b16 %v8397
        %v8542 = vunpack.c.l.b16 %v8398
        %v8543 = vunpack.c.l.b16 %v8399
        %v8544 = vunpack.c.l.b16 %v8400
        %v8545 = vunpack.c.l.b16 %v8401
        %v8546 = vunpack.c.l.b16 %v8402
        %v8547 = vunpack.c.l.b16 %v8403
        %v8548 = vunpack.c.l.b16 %v8404
        %v8549 = vunpack.c.l.b16 %v8405
        %v8550 = vunpack.c.l.b16 %v8406
        %v8551 = vunpack.c.l.b16 %v8407
        %v8552 = vunpack.c.l.b16 %v8408
        %v8553 = vunpack.c.l.b16 %v8409
        %v8554 = vunpack.c.l.b16 %v8410
        %v8555 = vpack.c.b16 %v8486, %v8485
        %v8556 = vpack.c.b16 %v8488, %v8487
        %v8557 = vpack.c.b16 %v8490, %v8489
        %v8558 = vpack.c.b16 %v8492, %v8491
        %v8559 = vpack.c.b16 %v8494, %v8493
        %v8560 = vpack.c.b16 %v8496, %v8495
        %v8561 = vpack.c.b16 %v8498, %v8497
        %v8562 = vpack.c.b16 %v8500, %v8499
        %v8563 = vpack.c.b16 %v8502, %v8501
        %v8564 = vpack.c.b16 %v8504, %v8503
        %v8565 = vpack.c.b16 %v8506, %v8505
        %v8566 = vpack.c.b16 %v8508, %v8507
        %v8567 = vpack.c.b16 %v8510, %v8509
        %v8568 = vpack.c.b16 %v8512, %v8511
        %v8569 = vpack.c.b16 %v8514, %v8513
        %v8570 = vpack.c.b16 %v8516, %v8515
        %v8571 = vpack.c.b16 %v8518, %v8517
        %v8572 = vpack.c.b16 %v8520, %v8519
        %v8573 = vpack.c.b16 %v8522, %v8521
        %v8574 = vpack.c.b16 %v8524, %v8523
        %v8575 = vpack.c.b16 %v8526, %v8525
        %v8576 = vpack.c.b16 %v8528, %v8527
        %v8577 = vpack.c.b16 %v8530, %v8529
        %v8578 = vpack.c.b16 %v8532, %v8531
        %v8579 = vpack.c.b16 %v8534, %v8533
        %v8580 = vpack.c.b16 %v8536, %v8535
        %v8581 = vpack.c.b16 %v8538, %v8537
        %v8582 = vpack.c.b16 %v8540, %v8539
        %v8583 = vpack.c.b16 %v8542, %v8541
        %v8584 = vpack.c.b16 %v8544, %v8543
        %v8585 = vpack.c.b16 %v8546, %v8545
        %v8586 = vpack.c.b16 %v8548, %v8547
        %v8587 = vpack.c.b16 %v8550, %v8549
        %v8588 = vpack.c.b16 %v8552, %v8551
        %v8589 = vpack.c.b16 %v8554, %v8553
        %vm8625 = vcmask 392192
        %v8627 = vsel %vm8625, %v8340, 0
        %8629 = vmatpush.bf16.msra.mxu0 %v8562
        %8630 = vmatpush.bf16.msra.mxu0 %v8561
        %8631 = vmatpush.bf16.msra.mxu0 %v8560
        %8632 = vmatpush.bf16.msra.mxu0 %v8559
        %8633 = vmatpush.bf16.msra.mxu0 %v8558
        %8634 = vmatpush.bf16.msra.mxu0 %v8557
        %8635 = vmatpush.bf16.msra.mxu0 %v8556
        %8636 = vmatpush.bf16.msra.mxu0 %v8555
        %8637 = vmatmul.bf16.gmra.mxu0 %v8336
        %v8638 = vpop.f32.mrf.mxu0
        %v8639 = vadd.f32 %v8413, %v8638
        %v8640 = vpop.f32.mrf.mxu0
        %8641 = vdwg.mxu0
        %8642 = vmatpush.bf16.msra.mxu0 %v8570
        %8643 = vmatpush.bf16.msra.mxu0 %v8569
        %8644 = vmatpush.bf16.msra.mxu0 %v8568
        %8645 = vmatpush.bf16.msra.mxu0 %v8567
        %8646 = vmatpush.bf16.msra.mxu0 %v8566
        %8647 = vmatpush.bf16.msra.mxu0 %v8565
        %8648 = vmatpush.bf16.msra.mxu0 %v8564
        %8649 = vmatpush.bf16.msra.mxu0 %v8563
        %8650 = vmatmul.bf16.gmra.mxu0 %v8337
        %v8651 = vpop.f32.mrf.mxu0
        %v8652 = vadd.f32 %v8639, %v8651
        %v8653 = vpop.f32.mrf.mxu0
        %8654 = vdwg.mxu0
        %8655 = vmatpush.bf16.msra.mxu0 %v8578
        %8656 = vmatpush.bf16.msra.mxu0 %v8577
        %8657 = vmatpush.bf16.msra.mxu0 %v8576
        %8658 = vmatpush.bf16.msra.mxu0 %v8575
        %8659 = vmatpush.bf16.msra.mxu0 %v8574
        %8660 = vmatpush.bf16.msra.mxu0 %v8573
        %8661 = vmatpush.bf16.msra.mxu0 %v8572
        %8662 = vmatpush.bf16.msra.mxu0 %v8571
        %8663 = vmatmul.bf16.gmra.mxu0 %v8338
        %v8664 = vpop.f32.mrf.mxu0
        %v8665 = vadd.f32 %v8652, %v8664
        %v8666 = vpop.f32.mrf.mxu0
        %8667 = vdwg.mxu0
        %8668 = vmatpush.bf16.msra.mxu0 %v8586
        %8669 = vmatpush.bf16.msra.mxu0 %v8585
        %8670 = vmatpush.bf16.msra.mxu0 %v8584
        %8671 = vmatpush.bf16.msra.mxu0 %v8583
        %8672 = vmatpush.bf16.msra.mxu0 %v8582
        %8673 = vmatpush.bf16.msra.mxu0 %v8581
        %8674 = vmatpush.bf16.msra.mxu0 %v8580
        %8675 = vmatpush.bf16.msra.mxu0 %v8579
        %8676 = vmatmul.bf16.gmra.mxu0 %v8339
        %v8677 = vpop.f32.mrf.mxu0
        %v8678 = vadd.f32 %v8665, %v8677
        %v8679 = vpop.f32.mrf.mxu0
        %8680 = vdwg.mxu0
        %8681 = vmatpush.bf16.msra.mxu0 0
        %8682 = vmatpush.bf16.msra.mxu0 0
        %8683 = vmatpush.bf16.msra.mxu0 0
        %8684 = vmatpush.bf16.msra.mxu0 0
        %8685 = vmatpush.bf16.msra.mxu0 0
        %8686 = vmatpush.bf16.msra.mxu0 %v8589
        %8687 = vmatpush.bf16.msra.mxu0 %v8588
        %8688 = vmatpush.bf16.msra.mxu0 %v8587
        %8689 = vmatmul.bf16.gmra.mxu0 %v8627
        %v8690 = vpop.f32.mrf.mxu0
        %v8691 = vadd.f32 %v8678, %v8690
        %v8692 = vpop.f32.mrf.mxu0
        %8693 = vdwg.mxu0
        %v8694 = vmax.f32 %v8691, 0.0
        %v8695 = vld [vmem:[%s7] sm:$0xff]
        %v8696 = vld [vmem:[%s7 + $0x8] sm:$0xff]
        %v8697 = vld [vmem:[%s7 + $0x10] sm:$0xff]
        %v8698 = vld [vmem:[%s7 + $0x18] sm:$0xff]
        %v8699 = vld [vmem:[%s7 + $0x20] sm:$0xff]
        %v8700 = vld [vmem:[%s7 + $0x28] sm:$0xff]
        %v8701 = vld [vmem:[%s7 + $0x30] sm:$0x3]
        %v8702 = vld [vmem:[%s8] sm:$0x1]
        %v8704 = vperm.slane %v8702, 0
        %vm8706 = vcmask 408576
        %v8708 = vsel %vm8706, %v8694, 0
        %v8711 = vsel %vm2066, %v8701, 0
        %8713 = vmatpush.msra.mxu0 0.0
        %8714 = vmatpush.msra.mxu0 0.0
        %8715 = vmatpush.msra.mxu0 0.0
        %8716 = vmatpush.msra.mxu0 0.0
        %8717 = vmatpush.msra.mxu0 0.0
        %8718 = vmatpush.msra.mxu0 0.0
        %8719 = vmatpush.msra.mxu0 0.0
        %8720 = vmatpush.msra.mxu0 0.0
        %8721 = vmatpush.msra.mxu0 0.0
        %8722 = vmatpush.msra.mxu0 %v8711
        %8723 = vmatpush.msra.mxu0 %v8700
        %8724 = vmatpush.msra.mxu0 %v8699
        %8725 = vmatpush.msra.mxu0 %v8698
        %8726 = vmatpush.msra.mxu0 %v8697
        %8727 = vmatpush.msra.mxu0 %v8696
        %8728 = vmatpush.msra.mxu0 %v8695
        %8729 = vmatmul.f32.gmra.mxu0 %v8708
        %v8730 = vpop.f32.mrf.mxu0
        %v8731 = vadd.f32 %v8704, %v8730
        %8732 = vdwg.mxu0
        %vm8733 = vcmask 80896
        %v8734 = vsel %vm8733, %v8731, -inf
        %8735 = vmax.xlane.f32.xlu0 %v8734
        %v8736 = vpop.xlane.xlu0 %8735
        %v8737 = vsub.f32 %v8731, %v8736
        %v8738 = vmul.f32 %v8737, 1.442695
        %v8739 = vpow.pop %v8738
        %v8740 = vsel %vm8733, %v8739, 0.0
        %8741 = vadd.xlane.f32.xlu0 %v8740
        %v8742 = vpop.xlane.xlu0 %8741
        %v8743 = vlog2.pop %v8742
        %v8744 = vmul.f32 %v8743, 0.6931472
        %v8745 = vsub.f32 %v8737, %v8744
        %8746 = vst.msk [vmem:[%s328] sm:$0xff] %vm8733, %v8745
        %s8747 = sand.u32 %s225, 1
        %s8748 = scalar_lea.sflag [#allocation3], %s8747
        %s8749 = sand.u32 %s225, 1
        %s8750 = smul.addr %s8749, 8
        %s8751 = scalar_lea.vmem [#allocation2], %s8750
        // Predicated region
        $region57: #{net_forward.1} parent=55 // pred_check
          %p8752 = pneg %p235
        $region58: #{net_forward.1} parent=55 // pred_check_branch
          %8754 = sbr.rel (%p8752) target = $region60
        $region59: #{net_forward.1} parent=55 // pred_region
          %8756 = vsyncadd %s8748, 0
          %s8757 = smul.addr %s23, 8
          %s8758 = scalar_lea.hbm %s9, %s8757
          %s8760 = sshll.u32 %s8751, 4
          %s8761 = int_to_ptr.vmem [resolvable:$true] %s8760
          %s8762 = sshll.u32 %s8758, 4
          %s8763 = int_to_ptr.hbm [resolvable:$true] %s8762
          %8765 = dma.vmem_to_hbm [thread:$0]  %s8761, 128, %s8763, %s8748
        $region60: #{net_forward.1} parent=55 // pred_fallthru
          _
      $region56: #{net_forward.1} parent=5 // pred_fallthru
        _
      %p8766 = scmp.le.s32.totalorder 2, %s18
      // Predicated region
      $region61: #{net_forward.1} parent=5 // pred_check
        %p8767 = pneg %p8766
      $region62: #{net_forward.1} parent=5 // pred_check_branch
        %8769 = sbr.rel (%p8767) target = $region64
      $region63: #{net_forward.1} parent=5 // pred_region
        %s8770 = ssub.s32 %s18, 2
        // Predicated region
        $region65: #{net_forward.1} parent=63 // pred_check
          %p8771 = pneg %p241
        $region66: #{net_forward.1} parent=63 // pred_check_branch
          %8773 = sbr.rel (%p8771) target = $region68
        $region67: #{net_forward.1} parent=63 // pred_region
          %s8774 = sand.u32 %s226, 1
          %s8775 = scalar_lea.sflag [#allocation3], %s8774
          %s8776 = sand.u32 %s226, 1
          %s8777 = smul.addr %s8776, 8
          %s8778 = scalar_lea.vmem [#allocation2], %s8777
          %8780 = dma.done %s8775, 128
        $region68: #{net_forward.1} parent=63 // pred_fallthru
          _
      $region64: #{net_forward.1} parent=5 // pred_fallthru
        _
    $region6: #{net_forward.1} parent=1 // loop_footer
      %s22 = sadd.s32 1, %s18
    $region7: #{net_forward.1} parent=1 // loop_footer_branch
      %17 = sbr.rel target = $region3
    $region8: #{net_forward.1} parent=1 // loop_exit
      _
    %8781 = vsyncpa [#allocation3], 1
    %s8782 = scalar_lea.sflag [#allocation3], 1
    %8783 = vsyncpa %s8782, 1

</llo_original>
